<compile_context>
chip_gen: v7x
topology: tpu7x:2x2x1
jax: 0.10.0
libtpu: 0.0.40
codegen_flags: <defaults>
</compile_context>

<pallas_src>
import functools

import jax
import jax.numpy as jnp
from jax.experimental import pallas as pl
from jax.experimental.pallas import tpu as pltpu

LAYER_NUMS = (3, 5, 5)
LAYER_STRIDES = (2, 2, 2)
NUM_FILTERS = (128, 128, 256)
NUM_INPUT_FILTERS = 128


def _round_up(x, m):
    return ((x + m - 1) // m) * m


# ---------------------------------------------------------------------------
# stride-1 conv3x3 + folded BN + ReLU: taps formed in-kernel (no im2col in HBM)
# ---------------------------------------------------------------------------
def _conv3x3_s1_kernel(x_ref, w_ref, scale_ref, bias_ref, o_ref, *, ho, wo):
    # x_ref:     (Hp, Wp, Cin)   zero-padded slab of one image (bf16)
    # w_ref:     (9, Cin, Cout)  bf16, tap-major (dy*3+dx)
    # scale/bias:(1, Cout)       f32 folded inference BatchNorm
    # o_ref:     (ho*wo, Cout)   bf16
    cin = x_ref.shape[-1]
    cout = o_ref.shape[-1]
    acc = jnp.zeros((ho * wo, cout), jnp.float32)
    for dy in range(3):
        for dx in range(3):
            tap = x_ref[dy:dy + ho, dx:dx + wo, :].reshape(ho * wo, cin)
            acc = acc + jnp.dot(tap, w_ref[dy * 3 + dx],
                                preferred_element_type=jnp.float32)
    y = acc * scale_ref[...] + bias_ref[...]
    o_ref[...] = jnp.maximum(y, 0.0).astype(o_ref.dtype)


def conv3x3_s1_bn_relu(x_nhwc, w9, scale, bias):
    """3x3 conv (pad=1, stride=1, no bias) + folded BN + ReLU. NHWC bf16."""
    N, H, W, Cin = x_nhwc.shape
    Cout = w9.shape[-1]
    Ho, Wo = H, W
    Hp, Wp = H + 2, W + 2

    x_pad = jnp.pad(x_nhwc, ((0, 0), (1, 1), (1, 1), (0, 0)))

    kernel = functools.partial(_conv3x3_s1_kernel, ho=Ho, wo=Wo)
    out = pl.pallas_call(
        kernel,
        out_shape=jax.ShapeDtypeStruct((N, Ho * Wo, Cout), jnp.bfloat16),
        grid=(N,),
        in_specs=[
            pl.BlockSpec((None, Hp, Wp, Cin), lambda n: (n, 0, 0, 0)),  # slab
            pl.BlockSpec((9, Cin, Cout), lambda n: (0, 0, 0)),          # weights (resident)
            pl.BlockSpec((1, Cout), lambda n: (0, 0)),                  # BN scale
            pl.BlockSpec((1, Cout), lambda n: (0, 0)),                  # BN bias
        ],
        out_specs=pl.BlockSpec((None, Ho * Wo, Cout), lambda n: (n, 0, 0)),
        compiler_params=pltpu.CompilerParams(
            dimension_semantics=("parallel",)),
    )(x_pad, w9, scale, bias)
    # TODO(synk): for very large feature maps, tile over output rows with a
    # halo (manual DMA) instead of one whole image slab per grid step.
    return out.reshape(N, Ho, Wo, Cout)


# ---------------------------------------------------------------------------
# stride-2 conv3x3 + folded BN + ReLU: wrapper im2col -> one full-K MXU matmul
# ---------------------------------------------------------------------------
def _matmul_bn_relu_kernel(x_ref, w_ref, scale_ref, bias_ref, o_ref):
    # (TM, 9*Cin) @ (9*Cin, Cout): bf16 operands, f32 accumulation on the MXU.
    acc = jnp.dot(x_ref[...], w_ref[...], preferred_element_type=jnp.float32)
    y = acc * scale_ref[...] + bias_ref[...]
    o_ref[...] = jnp.maximum(y, 0.0).astype(o_ref.dtype)


def conv3x3_s2_bn_relu(x_nhwc, w9, scale, bias):
    """3x3 conv (pad=1, stride=2, no bias) + folded BN + ReLU. NHWC bf16."""
    N, H, W, Cin = x_nhwc.shape
    Cout = w9.shape[-1]
    K = 9 * Cin
    Ho = (H + 2 - 3) // 2 + 1
    Wo = (W + 2 - 3) // 2 + 1
    M = N * Ho * Wo

    x_pad = jnp.pad(x_nhwc, ((0, 0), (1, 1), (1, 1), (0, 0)))
    # Fold the 9 taps into the reduction dim: (M, 9*Cin), (dy, dx) major.
    taps = []
    for dy in range(3):
        for dx in range(3):
            taps.append(x_pad[:, dy:dy + 2 * Ho:2, dx:dx + 2 * Wo:2, :])
    x_col = jnp.concatenate(taps, axis=-1).reshape(M, K)
    w2d = w9.reshape(K, Cout)

    tm = min(512, _round_up(M, 16))
    m_pad = _round_up(M, tm)
    if m_pad != M:
        x_col = jnp.pad(x_col, ((0, m_pad - M), (0, 0)))

    out = pl.pallas_call(
        _matmul_bn_relu_kernel,
        out_shape=jax.ShapeDtypeStruct((m_pad, Cout), jnp.bfloat16),
        grid=(m_pad // tm,),
        in_specs=[
            pl.BlockSpec((tm, K), lambda i: (i, 0)),     # activation tile
            pl.BlockSpec((K, Cout), lambda i: (0, 0)),   # resident weights
            pl.BlockSpec((1, Cout), lambda i: (0, 0)),   # resident BN scale
            pl.BlockSpec((1, Cout), lambda i: (0, 0)),   # resident BN bias
        ],
        out_specs=pl.BlockSpec((tm, Cout), lambda i: (i, 0)),
        compiler_params=pltpu.CompilerParams(
            dimension_semantics=("parallel",)),
    )(x_col, w2d, scale, bias)
    return out[:M].reshape(N, Ho, Wo, Cout)


# ---------------------------------------------------------------------------
# Parameters (Conv weights + folded inference BatchNorm), matching PSA config
# ---------------------------------------------------------------------------
def _make_layer_params(key, cin, cout):
    k1, k2, k3, k4, k5 = jax.random.split(key, 5)
    std = (2.0 / (9 * cin)) ** 0.5
    w = std * jax.random.normal(k1, (3, 3, cin, cout), jnp.float32)   # HWIO
    gamma = 1.0 + 0.1 * jax.random.normal(k2, (cout,), jnp.float32)
    beta = 0.1 * jax.random.normal(k3, (cout,), jnp.float32)
    running_mean = 0.1 * jax.random.normal(k4, (cout,), jnp.float32)
    running_var = 1.0 + jax.random.uniform(k5, (cout,), jnp.float32)
    eps = 1e-3
    scale = gamma / jnp.sqrt(running_var + eps)
    bias = beta - running_mean * scale
    # Tap-major weights (dy*3+dx, cin, cout), bf16 for the MXU.
    w9 = w.reshape(9, cin, cout).astype(jnp.bfloat16)
    return w9, scale.reshape(1, cout), bias.reshape(1, cout)


def build_psa_params(key):
    """Parameters for block1/block2/block3 of PSA (the forward path)."""
    blocks = []
    in_c = NUM_INPUT_FILTERS
    keys = jax.random.split(key, sum(n + 1 for n in LAYER_NUMS))
    ki = 0
    for b in range(3):
        out_c = NUM_FILTERS[b]
        layers = []
        layers.append(_make_layer_params(keys[ki], in_c, out_c)); ki += 1  # stride-2
        for _ in range(LAYER_NUMS[b]):                                     # stride-1
            layers.append(_make_layer_params(keys[ki], out_c, out_c)); ki += 1
        blocks.append(layers)
        in_c = out_c
    return blocks


@functools.partial(jax.jit, static_argnames=("feature_blocks",))
def psa_forward(x_nchw, params, feature_blocks=3):
    """Matches PSA.forward(x, feature_blocks=3) semantics (NCHW in, NCHW out)."""
    x = jnp.transpose(x_nchw, (0, 2, 3, 1)).astype(jnp.bfloat16)   # NCHW -> NHWC
    for b in range(feature_blocks):
        for li, (w9, scale, bias) in enumerate(params[b]):
            stride = LAYER_STRIDES[b] if li == 0 else 1
            if stride == 1:
                x = conv3x3_s1_bn_relu(x, w9, scale, bias)
            else:
                x = conv3x3_s2_bn_relu(x, w9, scale, bias)
    return jnp.transpose(x, (0, 3, 1, 2)).astype(jnp.float32)      # NHWC -> NCHW


if __name__ == "__main__":
    key = jax.random.PRNGKey(0)
    kx, kp = jax.random.split(key)

    # Small spatial extent, default PSA channel config (num_input_filters=128).
    N, C, H, W = 2, 128, 16, 16
    x = jax.random.normal(kx, (N, C, H, W), dtype=jnp.float32)

    params = build_psa_params(kp)

    y = psa_forward(x, params, feature_blocks=3)
    y = jax.block_until_ready(y)

    # block1/2/3 each downsample by 2 -> 16/8 = 2 spatial, 256 channels.
    assert y.shape == (N, 256, H // 8, W // 8), y.shape
    assert bool(jnp.all(jnp.isfinite(y)))
    print("KERNEL_OK")
</pallas_src>

<mosaic_0001>
module attributes {stable_mosaic.version = 11 : i64} {
  func.func @_matmul_bn_relu_kernel(%arg0: i32, %arg1: memref<128x1152xbf16, #tpu.memory_space<vmem>>, %arg2: memref<1152x128xbf16, #tpu.memory_space<vmem>>, %arg3: memref<1x128xf32, #tpu.memory_space<vmem>>, %arg4: memref<1x128xf32, #tpu.memory_space<vmem>>, %arg5: memref<128x128xbf16, #tpu.memory_space<vmem>>) attributes {dimension_semantics = [#tpu.dimension_semantics<parallel>], iteration_bounds = array<i64: 1>, scalar_prefetch = 0 : i64, scratch_operands = 0 : i64, tpu.core_type = #tpu.core_type<tc>, window_params = [{transform_indices = @transform_0, window_bounds = array<i64: 128, 1152>}, {pipeline_mode = #tpu.pipeline_mode<synchronous>, transform_indices = @transform_1, window_bounds = array<i64: 1152, 128>}, {pipeline_mode = #tpu.pipeline_mode<synchronous>, transform_indices = @transform_2, window_bounds = array<i64: 1, 128>}, {pipeline_mode = #tpu.pipeline_mode<synchronous>, transform_indices = @transform_3, window_bounds = array<i64: 1, 128>}, {transform_indices = @transform_4, window_bounds = array<i64: 128, 128>}]} {
    %c0 = arith.constant 0 : index
    %c0_0 = arith.constant 0 : index
    %0 = vector.load %arg1[%c0, %c0_0] : memref<128x1152xbf16, #tpu.memory_space<vmem>>, vector<128x1152xbf16>
    %c0_1 = arith.constant 0 : index
    %c0_2 = arith.constant 0 : index
    %1 = vector.load %arg2[%c0_1, %c0_2] : memref<1152x128xbf16, #tpu.memory_space<vmem>>, vector<1152x128xbf16>
    %cst = arith.constant dense<0.000000e+00> : vector<128x128xf32>
    %2 = tpu.matmul %0, %1, %cst {dimension_numbers = #tpu.dot_dimension_numbers<[1], [0], [0], [1], [0, 0, 1, 1], [], []>} : vector<128x1152xbf16>, vector<1152x128xbf16>, vector<128x128xf32> -> vector<128x128xf32>
    %c0_3 = arith.constant 0 : index
    %c0_4 = arith.constant 0 : index
    %3 = vector.load %arg3[%c0_3, %c0_4] : memref<1x128xf32, #tpu.memory_space<vmem>>, vector<1x128xf32>
    %4 = vector.broadcast %3 : vector<1x128xf32> to vector<128x128xf32>
    %5 = arith.mulf %2, %4 : vector<128x128xf32>
    %c0_5 = arith.constant 0 : index
    %c0_6 = arith.constant 0 : index
    %6 = vector.load %arg4[%c0_5, %c0_6] : memref<1x128xf32, #tpu.memory_space<vmem>>, vector<1x128xf32>
    %7 = vector.broadcast %6 : vector<1x128xf32> to vector<128x128xf32>
    %8 = arith.addf %5, %7 : vector<128x128xf32>
    %cst_7 = arith.constant 0.000000e+00 : f32
    %9 = vector.broadcast %cst_7 : f32 to vector<128x128xf32>
    %10 = arith.maximumf %8, %9 : vector<128x128xf32>
    %11 = arith.truncf %10 : vector<128x128xf32> to vector<128x128xbf16>
    %c0_8 = arith.constant 0 : index
    %c0_9 = arith.constant 0 : index
    %12 = vector.load %arg5[%c0_8, %c0_9] : memref<128x128xbf16, #tpu.memory_space<vmem>>, vector<128x128xbf16>
    tpu.vector_store %arg5[%c0_8, %c0_9], %11 {strides = array<i32>} : memref<128x128xbf16, #tpu.memory_space<vmem>>, vector<128x128xbf16>,
    return
  }
  func.func @transform_0(%arg0: i32) -> (i32, i32) {
    %c0_i32 = arith.constant 0 : i32
    %c0_i32_0 = arith.constant 0 : i32
    return %arg0, %c0_i32 : i32, i32
  }
  func.func @transform_1(%arg0: i32) -> (i32, i32) {
    %c0_i32 = arith.constant 0 : i32
    %c0_i32_0 = arith.constant 0 : i32
    %c0_i32_1 = arith.constant 0 : i32
    return %c0_i32, %c0_i32_0 : i32, i32
  }
  func.func @transform_2(%arg0: i32) -> (i32, i32) {
    %c0_i32 = arith.constant 0 : i32
    %c0_i32_0 = arith.constant 0 : i32
    %c0_i32_1 = arith.constant 0 : i32
    return %c0_i32, %c0_i32_0 : i32, i32
  }
  func.func @transform_3(%arg0: i32) -> (i32, i32) {
    %c0_i32 = arith.constant 0 : i32
    %c0_i32_0 = arith.constant 0 : i32
    %c0_i32_1 = arith.constant 0 : i32
    return %c0_i32, %c0_i32_0 : i32, i32
  }
  func.func @transform_4(%arg0: i32) -> (i32, i32) {
    %c0_i32 = arith.constant 0 : i32
    %c0_i32_0 = arith.constant 0 : i32
    return %arg0, %c0_i32 : i32, i32
  }
}

module attributes {stable_mosaic.version = 11 : i64} {
  func.func @_conv3x3_s1_kernel(%arg0: i32, %arg1: memref<1x10x10x128xbf16, #tpu.memory_space<vmem>>, %arg2: memref<9x128x128xbf16, #tpu.memory_space<vmem>>, %arg3: memref<1x128xf32, #tpu.memory_space<vmem>>, %arg4: memref<1x128xf32, #tpu.memory_space<vmem>>, %arg5: memref<1x64x128xbf16, #tpu.memory_space<vmem>>) attributes {dimension_semantics = [#tpu.dimension_semantics<parallel>], iteration_bounds = array<i64: 2>, scalar_prefetch = 0 : i64, scratch_operands = 0 : i64, tpu.core_type = #tpu.core_type<tc>, window_params = [{transform_indices = @transform_0, window_bounds = array<i64: 1, 10, 10, 128>}, {pipeline_mode = #tpu.pipeline_mode<synchronous>, transform_indices = @transform_1, window_bounds = array<i64: 9, 128, 128>}, {pipeline_mode = #tpu.pipeline_mode<synchronous>, transform_indices = @transform_2, window_bounds = array<i64: 1, 128>}, {pipeline_mode = #tpu.pipeline_mode<synchronous>, transform_indices = @transform_3, window_bounds = array<i64: 1, 128>}, {transform_indices = @transform_4, window_bounds = array<i64: 1, 64, 128>}]} {
    %cst = arith.constant 0.000000e+00 : f32
    %0 = vector.broadcast %cst : f32 to vector<64x128xf32>
    %c0 = arith.constant 0 : index
    %c0_0 = arith.constant 0 : index
    %c0_1 = arith.constant 0 : index
    %c0_2 = arith.constant 0 : index
    %1 = vector.load %arg1[%c0, %c0_0, %c0_1, %c0_2] : memref<1x10x10x128xbf16, #tpu.memory_space<vmem>>, vector<1x8x8x128xbf16>
    %2 = vector.shape_cast %1 : vector<1x8x8x128xbf16> to vector<8x8x128xbf16>
    %3 = vector.shape_cast %2 : vector<8x8x128xbf16> to vector<64x128xbf16>
    %c0_3 = arith.constant 0 : index
    %c0_4 = arith.constant 0 : index
    %c0_5 = arith.constant 0 : index
    %4 = vector.load %arg2[%c0_3, %c0_4, %c0_5] : memref<9x128x128xbf16, #tpu.memory_space<vmem>>, vector<1x128x128xbf16>
    %5 = vector.shape_cast %4 : vector<1x128x128xbf16> to vector<128x128xbf16>
    %cst_6 = arith.constant dense<0.000000e+00> : vector<64x128xf32>
    %6 = tpu.matmul %3, %5, %cst_6 {dimension_numbers = #tpu.dot_dimension_numbers<[1], [0], [0], [1], [0, 0, 1, 1], [], []>} : vector<64x128xbf16>, vector<128x128xbf16>, vector<64x128xf32> -> vector<64x128xf32>
    %7 = arith.addf %0, %6 : vector<64x128xf32>
    %c0_7 = arith.constant 0 : index
    %c0_8 = arith.constant 0 : index
    %c1 = arith.constant 1 : index
    %c0_9 = arith.constant 0 : index
    %8 = vector.load %arg1[%c0_7, %c0_8, %c1, %c0_9] : memref<1x10x10x128xbf16, #tpu.memory_space<vmem>>, vector<1x8x8x128xbf16>
    %9 = vector.shape_cast %8 : vector<1x8x8x128xbf16> to vector<8x8x128xbf16>
    %10 = vector.shape_cast %9 : vector<8x8x128xbf16> to vector<64x128xbf16>
    %c1_10 = arith.constant 1 : index
    %c0_11 = arith.constant 0 : index
    %c0_12 = arith.constant 0 : index
    %11 = vector.load %arg2[%c1_10, %c0_11, %c0_12] : memref<9x128x128xbf16, #tpu.memory_space<vmem>>, vector<1x128x128xbf16>
    %12 = vector.shape_cast %11 : vector<1x128x128xbf16> to vector<128x128xbf16>
    %cst_13 = arith.constant dense<0.000000e+00> : vector<64x128xf32>
    %13 = tpu.matmul %10, %12, %cst_13 {dimension_numbers = #tpu.dot_dimension_numbers<[1], [0], [0], [1], [0, 0, 1, 1], [], []>} : vector<64x128xbf16>, vector<128x128xbf16>, vector<64x128xf32> -> vector<64x128xf32>
    %14 = arith.addf %7, %13 : vector<64x128xf32>
    %c0_14 = arith.constant 0 : index
    %c0_15 = arith.constant 0 : index
    %c2 = arith.constant 2 : index
    %c0_16 = arith.constant 0 : index
    %15 = vector.load %arg1[%c0_14, %c0_15, %c2, %c0_16] : memref<1x10x10x128xbf16, #tpu.memory_space<vmem>>, vector<1x8x8x128xbf16>
    %16 = vector.shape_cast %15 : vector<1x8x8x128xbf16> to vector<8x8x128xbf16>
    %17 = vector.shape_cast %16 : vector<8x8x128xbf16> to vector<64x128xbf16>
    %c2_17 = arith.constant 2 : index
    %c0_18 = arith.constant 0 : index
    %c0_19 = arith.constant 0 : index
    %18 = vector.load %arg2[%c2_17, %c0_18, %c0_19] : memref<9x128x128xbf16, #tpu.memory_space<vmem>>, vector<1x128x128xbf16>
    %19 = vector.shape_cast %18 : vector<1x128x128xbf16> to vector<128x128xbf16>
    %cst_20 = arith.constant dense<0.000000e+00> : vector<64x128xf32>
    %20 = tpu.matmul %17, %19, %cst_20 {dimension_numbers = #tpu.dot_dimension_numbers<[1], [0], [0], [1], [0, 0, 1, 1], [], []>} : vector<64x128xbf16>, vector<128x128xbf16>, vector<64x128xf32> -> vector<64x128xf32>
    %21 = arith.addf %14, %20 : vector<64x128xf32>
    %c0_21 = arith.constant 0 : index
    %c1_22 = arith.constant 1 : index
    %c0_23 = arith.constant 0 : index
    %c0_24 = arith.constant 0 : index
    %22 = vector.load %arg1[%c0_21, %c1_22, %c0_23, %c0_24] : memref<1x10x10x128xbf16, #tpu.memory_space<vmem>>, vector<1x8x8x128xbf16>
    %23 = vector.shape_cast %22 : vector<1x8x8x128xbf16> to vector<8x8x128xbf16>
    %24 = vector.shape_cast %23 : vector<8x8x128xbf16> to vector<64x128xbf16>
    %c3 = arith.constant 3 : index
    %c0_25 = arith.constant 0 : index
    %c0_26 = arith.constant 0 : index
    %25 = vector.load %arg2[%c3, %c0_25, %c0_26] : memref<9x128x128xbf16, #tpu.memory_space<vmem>>, vector<1x128x128xbf16>
    %26 = vector.shape_cast %25 : vector<1x128x128xbf16> to vector<128x128xbf16>
    %cst_27 = arith.constant dense<0.000000e+00> : vector<64x128xf32>
    %27 = tpu.matmul %24, %26, %cst_27 {dimension_numbers = #tpu.dot_dimension_numbers<[1], [0], [0], [1], [0, 0, 1, 1], [], []>} : vector<64x128xbf16>, vector<128x128xbf16>, vector<64x128xf32> -> vector<64x128xf32>
    %28 = arith.addf %21, %27 : vector<64x128xf32>
    %c0_28 = arith.constant 0 : index
    %c1_29 = arith.constant 1 : index
    %c1_30 = arith.constant 1 : index
    %c0_31 = arith.constant 0 : index
    %29 = vector.load %arg1[%c0_28, %c1_29, %c1_30, %c0_31] : memref<1x10x10x128xbf16, #tpu.memory_space<vmem>>, vector<1x8x8x128xbf16>
    %30 = vector.shape_cast %29 : vector<1x8x8x128xbf16> to vector<8x8x128xbf16>
    %31 = vector.shape_cast %30 : vector<8x8x128xbf16> to vector<64x128xbf16>
    %c4 = arith.constant 4 : index
    %c0_32 = arith.constant 0 : index
    %c0_33 = arith.constant 0 : index
    %32 = vector.load %arg2[%c4, %c0_32, %c0_33] : memref<9x128x128xbf16, #tpu.memory_space<vmem>>, vector<1x128x128xbf16>
    %33 = vector.shape_cast %32 : vector<1x128x128xbf16> to vector<128x128xbf16>
    %cst_34 = arith.constant dense<0.000000e+00> : vector<64x128xf32>
    %34 = tpu.matmul %31, %33, %cst_34 {dimension_numbers = #tpu.dot_dimension_numbers<[1], [0], [0], [1], [0, 0, 1, 1], [], []>} : vector<64x128xbf16>, vector<128x128xbf16>, vector<64x128xf32> -> vector<64x128xf32>
    %35 = arith.addf %28, %34 : vector<64x128xf32>
    %c0_35 = arith.constant 0 : index
    %c1_36 = arith.constant 1 : index
    %c2_37 = arith.constant 2 : index
    %c0_38 = arith.constant 0 : index
    %36 = vector.load %arg1[%c0_35, %c1_36, %c2_37, %c0_38] : memref<1x10x10x128xbf16, #tpu.memory_space<vmem>>, vector<1x8x8x128xbf16>
    %37 = vector.shape_cast %36 : vector<1x8x8x128xbf16> to vector<8x8x128xbf16>
    %38 = vector.shape_cast %37 : vector<8x8x128xbf16> to vector<64x128xbf16>
    %c5 = arith.constant 5 : index
    %c0_39 = arith.constant 0 : index
    %c0_40 = arith.constant 0 : index
    %39 = vector.load %arg2[%c5, %c0_39, %c0_40] : memref<9x128x128xbf16, #tpu.memory_space<vmem>>, vector<1x128x128xbf16>
    %40 = vector.shape_cast %39 : vector<1x128x128xbf16> to vector<128x128xbf16>
    %cst_41 = arith.constant dense<0.000000e+00> : vector<64x128xf32>
    %41 = tpu.matmul %38, %40, %cst_41 {dimension_numbers = #tpu.dot_dimension_numbers<[1], [0], [0], [1], [0, 0, 1, 1], [], []>} : vector<64x128xbf16>, vector<128x128xbf16>, vector<64x128xf32> -> vector<64x128xf32>
    %42 = arith.addf %35, %41 : vector<64x128xf32>
    %c0_42 = arith.constant 0 : index
    %c2_43 = arith.constant 2 : index
    %c0_44 = arith.constant 0 : index
    %c0_45 = arith.constant 0 : index
    %43 = vector.load %arg1[%c0_42, %c2_43, %c0_44, %c0_45] : memref<1x10x10x128xbf16, #tpu.memory_space<vmem>>, vector<1x8x8x128xbf16>
    %44 = vector.shape_cast %43 : vector<1x8x8x128xbf16> to vector<8x8x128xbf16>
    %45 = vector.shape_cast %44 : vector<8x8x128xbf16> to vector<64x128xbf16>
    %c6 = arith.constant 6 : index
    %c0_46 = arith.constant 0 : index
    %c0_47 = arith.constant 0 : index
    %46 = vector.load %arg2[%c6, %c0_46, %c0_47] : memref<9x128x128xbf16, #tpu.memory_space<vmem>>, vector<1x128x128xbf16>
    %47 = vector.shape_cast %46 : vector<1x128x128xbf16> to vector<128x128xbf16>
    %cst_48 = arith.constant dense<0.000000e+00> : vector<64x128xf32>
    %48 = tpu.matmul %45, %47, %cst_48 {dimension_numbers = #tpu.dot_dimension_numbers<[1], [0], [0], [1], [0, 0, 1, 1], [], []>} : vector<64x128xbf16>, vector<128x128xbf16>, vector<64x128xf32> -> vector<64x128xf32>
    %49 = arith.addf %42, %48 : vector<64x128xf32>
    %c0_49 = arith.constant 0 : index
    %c2_50 = arith.constant 2 : index
    %c1_51 = arith.constant 1 : index
    %c0_52 = arith.constant 0 : index
    %50 = vector.load %arg1[%c0_49, %c2_50, %c1_51, %c0_52] : memref<1x10x10x128xbf16, #tpu.memory_space<vmem>>, vector<1x8x8x128xbf16>
    %51 = vector.shape_cast %50 : vector<1x8x8x128xbf16> to vector<8x8x128xbf16>
    %52 = vector.shape_cast %51 : vector<8x8x128xbf16> to vector<64x128xbf16>
    %c7 = arith.constant 7 : index
    %c0_53 = arith.constant 0 : index
    %c0_54 = arith.constant 0 : index
    %53 = vector.load %arg2[%c7, %c0_53, %c0_54] : memref<9x128x128xbf16, #tpu.memory_space<vmem>>, vector<1x128x128xbf16>
    %54 = vector.shape_cast %53 : vector<1x128x128xbf16> to vector<128x128xbf16>
    %cst_55 = arith.constant dense<0.000000e+00> : vector<64x128xf32>
    %55 = tpu.matmul %52, %54, %cst_55 {dimension_numbers = #tpu.dot_dimension_numbers<[1], [0], [0], [1], [0, 0, 1, 1], [], []>} : vector<64x128xbf16>, vector<128x128xbf16>, vector<64x128xf32> -> vector<64x128xf32>
    %56 = arith.addf %49, %55 : vector<64x128xf32>
    %c0_56 = arith.constant 0 : index
    %c2_57 = arith.constant 2 : index
    %c2_58 = arith.constant 2 : index
    %c0_59 = arith.constant 0 : index
    %57 = vector.load %arg1[%c0_56, %c2_57, %c2_58, %c0_59] : memref<1x10x10x128xbf16, #tpu.memory_space<vmem>>, vector<1x8x8x128xbf16>
    %58 = vector.shape_cast %57 : vector<1x8x8x128xbf16> to vector<8x8x128xbf16>
    %59 = vector.shape_cast %58 : vector<8x8x128xbf16> to vector<64x128xbf16>
    %c8 = arith.constant 8 : index
    %c0_60 = arith.constant 0 : index
    %c0_61 = arith.constant 0 : index
    %60 = vector.load %arg2[%c8, %c0_60, %c0_61] : memref<9x128x128xbf16, #tpu.memory_space<vmem>>, vector<1x128x128xbf16>
    %61 = vector.shape_cast %60 : vector<1x128x128xbf16> to vector<128x128xbf16>
    %cst_62 = arith.constant dense<0.000000e+00> : vector<64x128xf32>
    %62 = tpu.matmul %59, %61, %cst_62 {dimension_numbers = #tpu.dot_dimension_numbers<[1], [0], [0], [1], [0, 0, 1, 1], [], []>} : vector<64x128xbf16>, vector<128x128xbf16>, vector<64x128xf32> -> vector<64x128xf32>
    %63 = arith.addf %56, %62 : vector<64x128xf32>
    %c0_63 = arith.constant 0 : index
    %c0_64 = arith.constant 0 : index
    %64 = vector.load %arg3[%c0_63, %c0_64] : memref<1x128xf32, #tpu.memory_space<vmem>>, vector<1x128xf32>
    %65 = vector.broadcast %64 : vector<1x128xf32> to vector<64x128xf32>
    %66 = arith.mulf %63, %65 : vector<64x128xf32>
    %c0_65 = arith.constant 0 : index
    %c0_66 = arith.constant 0 : index
    %67 = vector.load %arg4[%c0_65, %c0_66] : memref<1x128xf32, #tpu.memory_space<vmem>>, vector<1x128xf32>
    %68 = vector.broadcast %67 : vector<1x128xf32> to vector<64x128xf32>
    %69 = arith.addf %66, %68 : vector<64x128xf32>
    %cst_67 = arith.constant 0.000000e+00 : f32
    %70 = vector.broadcast %cst_67 : f32 to vector<64x128xf32>
    %71 = arith.maximumf %69, %70 : vector<64x128xf32>
    %72 = arith.truncf %71 : vector<64x128xf32> to vector<64x128xbf16>
    %c0_68 = arith.constant 0 : index
    %c0_69 = arith.constant 0 : index
    %c0_70 = arith.constant 0 : index
    %73 = vector.load %arg5[%c0_68, %c0_69, %c0_70] : memref<1x64x128xbf16, #tpu.memory_space<vmem>>, vector<1x64x128xbf16>
    %74 = vector.shape_cast %73 : vector<1x64x128xbf16> to vector<64x128xbf16>
    %75 = vector.shape_cast %72 : vector<64x128xbf16> to vector<1x64x128xbf16>
    tpu.vector_store %arg5[%c0_68, %c0_69, %c0_70], %75 {strides = array<i32>} : memref<1x64x128xbf16, #tpu.memory_space<vmem>>, vector<1x64x128xbf16>,
    return
  }
  func.func @transform_0(%arg0: i32) -> (i32, i32, i32, i32) {
    %c0_i32 = arith.constant 0 : i32
    %c0_i32_0 = arith.constant 0 : i32
    %c0_i32_1 = arith.constant 0 : i32
    %c0_i32_2 = arith.constant 0 : i32
    return %arg0, %c0_i32, %c0_i32_0, %c0_i32_1 : i32, i32, i32, i32
  }
  func.func @transform_1(%arg0: i32) -> (i32, i32, i32) {
    %c0_i32 = arith.constant 0 : i32
    %c0_i32_0 = arith.constant 0 : i32
    %c0_i32_1 = arith.constant 0 : i32
    %c0_i32_2 = arith.constant 0 : i32
    return %c0_i32, %c0_i32_0, %c0_i32_1 : i32, i32, i32
  }
  func.func @transform_2(%arg0: i32) -> (i32, i32) {
    %c0_i32 = arith.constant 0 : i32
    %c0_i32_0 = arith.constant 0 : i32
    %c0_i32_1 = arith.constant 0 : i32
    return %c0_i32, %c0_i32_0 : i32, i32
  }
  func.func @transform_3(%arg0: i32) -> (i32, i32) {
    %c0_i32 = arith.constant 0 : i32
    %c0_i32_0 = arith.constant 0 : i32
    %c0_i32_1 = arith.constant 0 : i32
    return %c0_i32, %c0_i32_0 : i32, i32
  }
  func.func @transform_4(%arg0: i32) -> (i32, i32, i32) {
    %c0_i32 = arith.constant 0 : i32
    %c0_i32_0 = arith.constant 0 : i32
    %c0_i32_1 = arith.constant 0 : i32
    return %arg0, %c0_i32, %c0_i32_0 : i32, i32, i32
  }
}

module attributes {stable_mosaic.version = 11 : i64} {
  func.func @_matmul_bn_relu_kernel(%arg0: i32, %arg1: memref<32x1152xbf16, #tpu.memory_space<vmem>>, %arg2: memref<1152x128xbf16, #tpu.memory_space<vmem>>, %arg3: memref<1x128xf32, #tpu.memory_space<vmem>>, %arg4: memref<1x128xf32, #tpu.memory_space<vmem>>, %arg5: memref<32x128xbf16, #tpu.memory_space<vmem>>) attributes {dimension_semantics = [#tpu.dimension_semantics<parallel>], iteration_bounds = array<i64: 1>, scalar_prefetch = 0 : i64, scratch_operands = 0 : i64, tpu.core_type = #tpu.core_type<tc>, window_params = [{transform_indices = @transform_0, window_bounds = array<i64: 32, 1152>}, {pipeline_mode = #tpu.pipeline_mode<synchronous>, transform_indices = @transform_1, window_bounds = array<i64: 1152, 128>}, {pipeline_mode = #tpu.pipeline_mode<synchronous>, transform_indices = @transform_2, window_bounds = array<i64: 1, 128>}, {pipeline_mode = #tpu.pipeline_mode<synchronous>, transform_indices = @transform_3, window_bounds = array<i64: 1, 128>}, {transform_indices = @transform_4, window_bounds = array<i64: 32, 128>}]} {
    %c0 = arith.constant 0 : index
    %c0_0 = arith.constant 0 : index
    %0 = vector.load %arg1[%c0, %c0_0] : memref<32x1152xbf16, #tpu.memory_space<vmem>>, vector<32x1152xbf16>
    %c0_1 = arith.constant 0 : index
    %c0_2 = arith.constant 0 : index
    %1 = vector.load %arg2[%c0_1, %c0_2] : memref<1152x128xbf16, #tpu.memory_space<vmem>>, vector<1152x128xbf16>
    %cst = arith.constant dense<0.000000e+00> : vector<32x128xf32>
    %2 = tpu.matmul %0, %1, %cst {dimension_numbers = #tpu.dot_dimension_numbers<[1], [0], [0], [1], [0, 0, 1, 1], [], []>} : vector<32x1152xbf16>, vector<1152x128xbf16>, vector<32x128xf32> -> vector<32x128xf32>
    %c0_3 = arith.constant 0 : index
    %c0_4 = arith.constant 0 : index
    %3 = vector.load %arg3[%c0_3, %c0_4] : memref<1x128xf32, #tpu.memory_space<vmem>>, vector<1x128xf32>
    %4 = vector.broadcast %3 : vector<1x128xf32> to vector<32x128xf32>
    %5 = arith.mulf %2, %4 : vector<32x128xf32>
    %c0_5 = arith.constant 0 : index
    %c0_6 = arith.constant 0 : index
    %6 = vector.load %arg4[%c0_5, %c0_6] : memref<1x128xf32, #tpu.memory_space<vmem>>, vector<1x128xf32>
    %7 = vector.broadcast %6 : vector<1x128xf32> to vector<32x128xf32>
    %8 = arith.addf %5, %7 : vector<32x128xf32>
    %cst_7 = arith.constant 0.000000e+00 : f32
    %9 = vector.broadcast %cst_7 : f32 to vector<32x128xf32>
    %10 = arith.maximumf %8, %9 : vector<32x128xf32>
    %11 = arith.truncf %10 : vector<32x128xf32> to vector<32x128xbf16>
    %c0_8 = arith.constant 0 : index
    %c0_9 = arith.constant 0 : index
    %12 = vector.load %arg5[%c0_8, %c0_9] : memref<32x128xbf16, #tpu.memory_space<vmem>>, vector<32x128xbf16>
    tpu.vector_store %arg5[%c0_8, %c0_9], %11 {strides = array<i32>} : memref<32x128xbf16, #tpu.memory_space<vmem>>, vector<32x128xbf16>,
    return
  }
  func.func @transform_0(%arg0: i32) -> (i32, i32) {
    %c0_i32 = arith.constant 0 : i32
    %c0_i32_0 = arith.constant 0 : i32
    return %arg0, %c0_i32 : i32, i32
  }
  func.func @transform_1(%arg0: i32) -> (i32, i32) {
    %c0_i32 = arith.constant 0 : i32
    %c0_i32_0 = arith.constant 0 : i32
    %c0_i32_1 = arith.constant 0 : i32
    return %c0_i32, %c0_i32_0 : i32, i32
  }
  func.func @transform_2(%arg0: i32) -> (i32, i32) {
    %c0_i32 = arith.constant 0 : i32
    %c0_i32_0 = arith.constant 0 : i32
    %c0_i32_1 = arith.constant 0 : i32
    return %c0_i32, %c0_i32_0 : i32, i32
  }
  func.func @transform_3(%arg0: i32) -> (i32, i32) {
    %c0_i32 = arith.constant 0 : i32
    %c0_i32_0 = arith.constant 0 : i32
    %c0_i32_1 = arith.constant 0 : i32
    return %c0_i32, %c0_i32_0 : i32, i32
  }
  func.func @transform_4(%arg0: i32) -> (i32, i32) {
    %c0_i32 = arith.constant 0 : i32
    %c0_i32_0 = arith.constant 0 : i32
    return %arg0, %c0_i32 : i32, i32
  }
}

module attributes {stable_mosaic.version = 11 : i64} {
  func.func @_conv3x3_s1_kernel(%arg0: i32, %arg1: memref<1x6x6x128xbf16, #tpu.memory_space<vmem>>, %arg2: memref<9x128x128xbf16, #tpu.memory_space<vmem>>, %arg3: memref<1x128xf32, #tpu.memory_space<vmem>>, %arg4: memref<1x128xf32, #tpu.memory_space<vmem>>, %arg5: memref<1x16x128xbf16, #tpu.memory_space<vmem>>) attributes {dimension_semantics = [#tpu.dimension_semantics<parallel>], iteration_bounds = array<i64: 2>, scalar_prefetch = 0 : i64, scratch_operands = 0 : i64, tpu.core_type = #tpu.core_type<tc>, window_params = [{transform_indices = @transform_0, window_bounds = array<i64: 1, 6, 6, 128>}, {pipeline_mode = #tpu.pipeline_mode<synchronous>, transform_indices = @transform_1, window_bounds = array<i64: 9, 128, 128>}, {pipeline_mode = #tpu.pipeline_mode<synchronous>, transform_indices = @transform_2, window_bounds = array<i64: 1, 128>}, {pipeline_mode = #tpu.pipeline_mode<synchronous>, transform_indices = @transform_3, window_bounds = array<i64: 1, 128>}, {transform_indices = @transform_4, window_bounds = array<i64: 1, 16, 128>}]} {
    %cst = arith.constant 0.000000e+00 : f32
    %0 = vector.broadcast %cst : f32 to vector<16x128xf32>
    %c0 = arith.constant 0 : index
    %c0_0 = arith.constant 0 : index
    %c0_1 = arith.constant 0 : index
    %c0_2 = arith.constant 0 : index
    %1 = vector.load %arg1[%c0, %c0_0, %c0_1, %c0_2] : memref<1x6x6x128xbf16, #tpu.memory_space<vmem>>, vector<1x4x4x128xbf16>
    %2 = vector.shape_cast %1 : vector<1x4x4x128xbf16> to vector<4x4x128xbf16>
    %3 = vector.shape_cast %2 : vector<4x4x128xbf16> to vector<16x128xbf16>
    %c0_3 = arith.constant 0 : index
    %c0_4 = arith.constant 0 : index
    %c0_5 = arith.constant 0 : index
    %4 = vector.load %arg2[%c0_3, %c0_4, %c0_5] : memref<9x128x128xbf16, #tpu.memory_space<vmem>>, vector<1x128x128xbf16>
    %5 = vector.shape_cast %4 : vector<1x128x128xbf16> to vector<128x128xbf16>
    %cst_6 = arith.constant dense<0.000000e+00> : vector<16x128xf32>
    %6 = tpu.matmul %3, %5, %cst_6 {dimension_numbers = #tpu.dot_dimension_numbers<[1], [0], [0], [1], [0, 0, 1, 1], [], []>} : vector<16x128xbf16>, vector<128x128xbf16>, vector<16x128xf32> -> vector<16x128xf32>
    %7 = arith.addf %0, %6 : vector<16x128xf32>
    %c0_7 = arith.constant 0 : index
    %c0_8 = arith.constant 0 : index
    %c1 = arith.constant 1 : index
    %c0_9 = arith.constant 0 : index
    %8 = vector.load %arg1[%c0_7, %c0_8, %c1, %c0_9] : memref<1x6x6x128xbf16, #tpu.memory_space<vmem>>, vector<1x4x4x128xbf16>
    %9 = vector.shape_cast %8 : vector<1x4x4x128xbf16> to vector<4x4x128xbf16>
    %10 = vector.shape_cast %9 : vector<4x4x128xbf16> to vector<16x128xbf16>
    %c1_10 = arith.constant 1 : index
    %c0_11 = arith.constant 0 : index
    %c0_12 = arith.constant 0 : index
    %11 = vector.load %arg2[%c1_10, %c0_11, %c0_12] : memref<9x128x128xbf16, #tpu.memory_space<vmem>>, vector<1x128x128xbf16>
    %12 = vector.shape_cast %11 : vector<1x128x128xbf16> to vector<128x128xbf16>
    %cst_13 = arith.constant dense<0.000000e+00> : vector<16x128xf32>
    %13 = tpu.matmul %10, %12, %cst_13 {dimension_numbers = #tpu.dot_dimension_numbers<[1], [0], [0], [1], [0, 0, 1, 1], [], []>} : vector<16x128xbf16>, vector<128x128xbf16>, vector<16x128xf32> -> vector<16x128xf32>
    %14 = arith.addf %7, %13 : vector<16x128xf32>
    %c0_14 = arith.constant 0 : index
    %c0_15 = arith.constant 0 : index
    %c2 = arith.constant 2 : index
    %c0_16 = arith.constant 0 : index
    %15 = vector.load %arg1[%c0_14, %c0_15, %c2, %c0_16] : memref<1x6x6x128xbf16, #tpu.memory_space<vmem>>, vector<1x4x4x128xbf16>
    %16 = vector.shape_cast %15 : vector<1x4x4x128xbf16> to vector<4x4x128xbf16>
    %17 = vector.shape_cast %16 : vector<4x4x128xbf16> to vector<16x128xbf16>
    %c2_17 = arith.constant 2 : index
    %c0_18 = arith.constant 0 : index
    %c0_19 = arith.constant 0 : index
    %18 = vector.load %arg2[%c2_17, %c0_18, %c0_19] : memref<9x128x128xbf16, #tpu.memory_space<vmem>>, vector<1x128x128xbf16>
    %19 = vector.shape_cast %18 : vector<1x128x128xbf16> to vector<128x128xbf16>
    %cst_20 = arith.constant dense<0.000000e+00> : vector<16x128xf32>
    %20 = tpu.matmul %17, %19, %cst_20 {dimension_numbers = #tpu.dot_dimension_numbers<[1], [0], [0], [1], [0, 0, 1, 1], [], []>} : vector<16x128xbf16>, vector<128x128xbf16>, vector<16x128xf32> -> vector<16x128xf32>
    %21 = arith.addf %14, %20 : vector<16x128xf32>
    %c0_21 = arith.constant 0 : index
    %c1_22 = arith.constant 1 : index
    %c0_23 = arith.constant 0 : index
    %c0_24 = arith.constant 0 : index
    %22 = vector.load %arg1[%c0_21, %c1_22, %c0_23, %c0_24] : memref<1x6x6x128xbf16, #tpu.memory_space<vmem>>, vector<1x4x4x128xbf16>
    %23 = vector.shape_cast %22 : vector<1x4x4x128xbf16> to vector<4x4x128xbf16>
    %24 = vector.shape_cast %23 : vector<4x4x128xbf16> to vector<16x128xbf16>
    %c3 = arith.constant 3 : index
    %c0_25 = arith.constant 0 : index
    %c0_26 = arith.constant 0 : index
    %25 = vector.load %arg2[%c3, %c0_25, %c0_26] : memref<9x128x128xbf16, #tpu.memory_space<vmem>>, vector<1x128x128xbf16>
    %26 = vector.shape_cast %25 : vector<1x128x128xbf16> to vector<128x128xbf16>
    %cst_27 = arith.constant dense<0.000000e+00> : vector<16x128xf32>
    %27 = tpu.matmul %24, %26, %cst_27 {dimension_numbers = #tpu.dot_dimension_numbers<[1], [0], [0], [1], [0, 0, 1, 1], [], []>} : vector<16x128xbf16>, vector<128x128xbf16>, vector<16x128xf32> -> vector<16x128xf32>
    %28 = arith.addf %21, %27 : vector<16x128xf32>
    %c0_28 = arith.constant 0 : index
    %c1_29 = arith.constant 1 : index
    %c1_30 = arith.constant 1 : index
    %c0_31 = arith.constant 0 : index
    %29 = vector.load %arg1[%c0_28, %c1_29, %c1_30, %c0_31] : memref<1x6x6x128xbf16, #tpu.memory_space<vmem>>, vector<1x4x4x128xbf16>
    %30 = vector.shape_cast %29 : vector<1x4x4x128xbf16> to vector<4x4x128xbf16>
    %31 = vector.shape_cast %30 : vector<4x4x128xbf16> to vector<16x128xbf16>
    %c4 = arith.constant 4 : index
    %c0_32 = arith.constant 0 : index
    %c0_33 = arith.constant 0 : index
    %32 = vector.load %arg2[%c4, %c0_32, %c0_33] : memref<9x128x128xbf16, #tpu.memory_space<vmem>>, vector<1x128x128xbf16>
    %33 = vector.shape_cast %32 : vector<1x128x128xbf16> to vector<128x128xbf16>
    %cst_34 = arith.constant dense<0.000000e+00> : vector<16x128xf32>
    %34 = tpu.matmul %31, %33, %cst_34 {dimension_numbers = #tpu.dot_dimension_numbers<[1], [0], [0], [1], [0, 0, 1, 1], [], []>} : vector<16x128xbf16>, vector<128x128xbf16>, vector<16x128xf32> -> vector<16x128xf32>
    %35 = arith.addf %28, %34 : vector<16x128xf32>
    %c0_35 = arith.constant 0 : index
    %c1_36 = arith.constant 1 : index
    %c2_37 = arith.constant 2 : index
    %c0_38 = arith.constant 0 : index
    %36 = vector.load %arg1[%c0_35, %c1_36, %c2_37, %c0_38] : memref<1x6x6x128xbf16, #tpu.memory_space<vmem>>, vector<1x4x4x128xbf16>
    %37 = vector.shape_cast %36 : vector<1x4x4x128xbf16> to vector<4x4x128xbf16>
    %38 = vector.shape_cast %37 : vector<4x4x128xbf16> to vector<16x128xbf16>
    %c5 = arith.constant 5 : index
    %c0_39 = arith.constant 0 : index
    %c0_40 = arith.constant 0 : index
    %39 = vector.load %arg2[%c5, %c0_39, %c0_40] : memref<9x128x128xbf16, #tpu.memory_space<vmem>>, vector<1x128x128xbf16>
    %40 = vector.shape_cast %39 : vector<1x128x128xbf16> to vector<128x128xbf16>
    %cst_41 = arith.constant dense<0.000000e+00> : vector<16x128xf32>
    %41 = tpu.matmul %38, %40, %cst_41 {dimension_numbers = #tpu.dot_dimension_numbers<[1], [0], [0], [1], [0, 0, 1, 1], [], []>} : vector<16x128xbf16>, vector<128x128xbf16>, vector<16x128xf32> -> vector<16x128xf32>
    %42 = arith.addf %35, %41 : vector<16x128xf32>
    %c0_42 = arith.constant 0 : index
    %c2_43 = arith.constant 2 : index
    %c0_44 = arith.constant 0 : index
    %c0_45 = arith.constant 0 : index
    %43 = vector.load %arg1[%c0_42, %c2_43, %c0_44, %c0_45] : memref<1x6x6x128xbf16, #tpu.memory_space<vmem>>, vector<1x4x4x128xbf16>
    %44 = vector.shape_cast %43 : vector<1x4x4x128xbf16> to vector<4x4x128xbf16>
    %45 = vector.shape_cast %44 : vector<4x4x128xbf16> to vector<16x128xbf16>
    %c6 = arith.constant 6 : index
    %c0_46 = arith.constant 0 : index
    %c0_47 = arith.constant 0 : index
    %46 = vector.load %arg2[%c6, %c0_46, %c0_47] : memref<9x128x128xbf16, #tpu.memory_space<vmem>>, vector<1x128x128xbf16>
    %47 = vector.shape_cast %46 : vector<1x128x128xbf16> to vector<128x128xbf16>
    %cst_48 = arith.constant dense<0.000000e+00> : vector<16x128xf32>
    %48 = tpu.matmul %45, %47, %cst_48 {dimension_numbers = #tpu.dot_dimension_numbers<[1], [0], [0], [1], [0, 0, 1, 1], [], []>} : vector<16x128xbf16>, vector<128x128xbf16>, vector<16x128xf32> -> vector<16x128xf32>
    %49 = arith.addf %42, %48 : vector<16x128xf32>
    %c0_49 = arith.constant 0 : index
    %c2_50 = arith.constant 2 : index
    %c1_51 = arith.constant 1 : index
    %c0_52 = arith.constant 0 : index
    %50 = vector.load %arg1[%c0_49, %c2_50, %c1_51, %c0_52] : memref<1x6x6x128xbf16, #tpu.memory_space<vmem>>, vector<1x4x4x128xbf16>
    %51 = vector.shape_cast %50 : vector<1x4x4x128xbf16> to vector<4x4x128xbf16>
    %52 = vector.shape_cast %51 : vector<4x4x128xbf16> to vector<16x128xbf16>
    %c7 = arith.constant 7 : index
    %c0_53 = arith.constant 0 : index
    %c0_54 = arith.constant 0 : index
    %53 = vector.load %arg2[%c7, %c0_53, %c0_54] : memref<9x128x128xbf16, #tpu.memory_space<vmem>>, vector<1x128x128xbf16>
    %54 = vector.shape_cast %53 : vector<1x128x128xbf16> to vector<128x128xbf16>
    %cst_55 = arith.constant dense<0.000000e+00> : vector<16x128xf32>
    %55 = tpu.matmul %52, %54, %cst_55 {dimension_numbers = #tpu.dot_dimension_numbers<[1], [0], [0], [1], [0, 0, 1, 1], [], []>} : vector<16x128xbf16>, vector<128x128xbf16>, vector<16x128xf32> -> vector<16x128xf32>
    %56 = arith.addf %49, %55 : vector<16x128xf32>
    %c0_56 = arith.constant 0 : index
    %c2_57 = arith.constant 2 : index
    %c2_58 = arith.constant 2 : index
    %c0_59 = arith.constant 0 : index
    %57 = vector.load %arg1[%c0_56, %c2_57, %c2_58, %c0_59] : memref<1x6x6x128xbf16, #tpu.memory_space<vmem>>, vector<1x4x4x128xbf16>
    %58 = vector.shape_cast %57 : vector<1x4x4x128xbf16> to vector<4x4x128xbf16>
    %59 = vector.shape_cast %58 : vector<4x4x128xbf16> to vector<16x128xbf16>
    %c8 = arith.constant 8 : index
    %c0_60 = arith.constant 0 : index
    %c0_61 = arith.constant 0 : index
    %60 = vector.load %arg2[%c8, %c0_60, %c0_61] : memref<9x128x128xbf16, #tpu.memory_space<vmem>>, vector<1x128x128xbf16>
    %61 = vector.shape_cast %60 : vector<1x128x128xbf16> to vector<128x128xbf16>
    %cst_62 = arith.constant dense<0.000000e+00> : vector<16x128xf32>
    %62 = tpu.matmul %59, %61, %cst_62 {dimension_numbers = #tpu.dot_dimension_numbers<[1], [0], [0], [1], [0, 0, 1, 1], [], []>} : vector<16x128xbf16>, vector<128x128xbf16>, vector<16x128xf32> -> vector<16x128xf32>
    %63 = arith.addf %56, %62 : vector<16x128xf32>
    %c0_63 = arith.constant 0 : index
    %c0_64 = arith.constant 0 : index
    %64 = vector.load %arg3[%c0_63, %c0_64] : memref<1x128xf32, #tpu.memory_space<vmem>>, vector<1x128xf32>
    %65 = vector.broadcast %64 : vector<1x128xf32> to vector<16x128xf32>
    %66 = arith.mulf %63, %65 : vector<16x128xf32>
    %c0_65 = arith.constant 0 : index
    %c0_66 = arith.constant 0 : index
    %67 = vector.load %arg4[%c0_65, %c0_66] : memref<1x128xf32, #tpu.memory_space<vmem>>, vector<1x128xf32>
    %68 = vector.broadcast %67 : vector<1x128xf32> to vector<16x128xf32>
    %69 = arith.addf %66, %68 : vector<16x128xf32>
    %cst_67 = arith.constant 0.000000e+00 : f32
    %70 = vector.broadcast %cst_67 : f32 to vector<16x128xf32>
    %71 = arith.maximumf %69, %70 : vector<16x128xf32>
    %72 = arith.truncf %71 : vector<16x128xf32> to vector<16x128xbf16>
    %c0_68 = arith.constant 0 : index
    %c0_69 = arith.constant 0 : index
    %c0_70 = arith.constant 0 : index
    %73 = vector.load %arg5[%c0_68, %c0_69, %c0_70] : memref<1x16x128xbf16, #tpu.memory_space<vmem>>, vector<1x16x128xbf16>
    %74 = vector.shape_cast %73 : vector<1x16x128xbf16> to vector<16x128xbf16>
    %75 = vector.shape_cast %72 : vector<16x128xbf16> to vector<1x16x128xbf16>
    tpu.vector_store %arg5[%c0_68, %c0_69, %c0_70], %75 {strides = array<i32>} : memref<1x16x128xbf16, #tpu.memory_space<vmem>>, vector<1x16x128xbf16>,
    return
  }
  func.func @transform_0(%arg0: i32) -> (i32, i32, i32, i32) {
    %c0_i32 = arith.constant 0 : i32
    %c0_i32_0 = arith.constant 0 : i32
    %c0_i32_1 = arith.constant 0 : i32
    %c0_i32_2 = arith.constant 0 : i32
    return %arg0, %c0_i32, %c0_i32_0, %c0_i32_1 : i32, i32, i32, i32
  }
  func.func @transform_1(%arg0: i32) -> (i32, i32, i32) {
    %c0_i32 = arith.constant 0 : i32
    %c0_i32_0 = arith.constant 0 : i32
    %c0_i32_1 = arith.constant 0 : i32
    %c0_i32_2 = arith.constant 0 : i32
    return %c0_i32, %c0_i32_0, %c0_i32_1 : i32, i32, i32
  }
  func.func @transform_2(%arg0: i32) -> (i32, i32) {
    %c0_i32 = arith.constant 0 : i32
    %c0_i32_0 = arith.constant 0 : i32
    %c0_i32_1 = arith.constant 0 : i32
    return %c0_i32, %c0_i32_0 : i32, i32
  }
  func.func @transform_3(%arg0: i32) -> (i32, i32) {
    %c0_i32 = arith.constant 0 : i32
    %c0_i32_0 = arith.constant 0 : i32
    %c0_i32_1 = arith.constant 0 : i32
    return %c0_i32, %c0_i32_0 : i32, i32
  }
  func.func @transform_4(%arg0: i32) -> (i32, i32, i32) {
    %c0_i32 = arith.constant 0 : i32
    %c0_i32_0 = arith.constant 0 : i32
    %c0_i32_1 = arith.constant 0 : i32
    return %arg0, %c0_i32, %c0_i32_0 : i32, i32, i32
  }
}

module attributes {stable_mosaic.version = 11 : i64} {
  func.func @_matmul_bn_relu_kernel(%arg0: i32, %arg1: memref<16x1152xbf16, #tpu.memory_space<vmem>>, %arg2: memref<1152x256xbf16, #tpu.memory_space<vmem>>, %arg3: memref<1x256xf32, #tpu.memory_space<vmem>>, %arg4: memref<1x256xf32, #tpu.memory_space<vmem>>, %arg5: memref<16x256xbf16, #tpu.memory_space<vmem>>) attributes {dimension_semantics = [#tpu.dimension_semantics<parallel>], iteration_bounds = array<i64: 1>, scalar_prefetch = 0 : i64, scratch_operands = 0 : i64, tpu.core_type = #tpu.core_type<tc>, window_params = [{transform_indices = @transform_0, window_bounds = array<i64: 16, 1152>}, {pipeline_mode = #tpu.pipeline_mode<synchronous>, transform_indices = @transform_1, window_bounds = array<i64: 1152, 256>}, {pipeline_mode = #tpu.pipeline_mode<synchronous>, transform_indices = @transform_2, window_bounds = array<i64: 1, 256>}, {pipeline_mode = #tpu.pipeline_mode<synchronous>, transform_indices = @transform_3, window_bounds = array<i64: 1, 256>}, {transform_indices = @transform_4, window_bounds = array<i64: 16, 256>}]} {
    %c0 = arith.constant 0 : index
    %c0_0 = arith.constant 0 : index
    %0 = vector.load %arg1[%c0, %c0_0] : memref<16x1152xbf16, #tpu.memory_space<vmem>>, vector<16x1152xbf16>
    %c0_1 = arith.constant 0 : index
    %c0_2 = arith.constant 0 : index
    %1 = vector.load %arg2[%c0_1, %c0_2] : memref<1152x256xbf16, #tpu.memory_space<vmem>>, vector<1152x256xbf16>
    %cst = arith.constant dense<0.000000e+00> : vector<16x256xf32>
    %2 = tpu.matmul %0, %1, %cst {dimension_numbers = #tpu.dot_dimension_numbers<[1], [0], [0], [1], [0, 0, 1, 1], [], []>} : vector<16x1152xbf16>, vector<1152x256xbf16>, vector<16x256xf32> -> vector<16x256xf32>
    %c0_3 = arith.constant 0 : index
    %c0_4 = arith.constant 0 : index
    %3 = vector.load %arg3[%c0_3, %c0_4] : memref<1x256xf32, #tpu.memory_space<vmem>>, vector<1x256xf32>
    %4 = vector.broadcast %3 : vector<1x256xf32> to vector<16x256xf32>
    %5 = arith.mulf %2, %4 : vector<16x256xf32>
    %c0_5 = arith.constant 0 : index
    %c0_6 = arith.constant 0 : index
    %6 = vector.load %arg4[%c0_5, %c0_6] : memref<1x256xf32, #tpu.memory_space<vmem>>, vector<1x256xf32>
    %7 = vector.broadcast %6 : vector<1x256xf32> to vector<16x256xf32>
    %8 = arith.addf %5, %7 : vector<16x256xf32>
    %cst_7 = arith.constant 0.000000e+00 : f32
    %9 = vector.broadcast %cst_7 : f32 to vector<16x256xf32>
    %10 = arith.maximumf %8, %9 : vector<16x256xf32>
    %11 = arith.truncf %10 : vector<16x256xf32> to vector<16x256xbf16>
    %c0_8 = arith.constant 0 : index
    %c0_9 = arith.constant 0 : index
    %12 = vector.load %arg5[%c0_8, %c0_9] : memref<16x256xbf16, #tpu.memory_space<vmem>>, vector<16x256xbf16>
    tpu.vector_store %arg5[%c0_8, %c0_9], %11 {strides = array<i32>} : memref<16x256xbf16, #tpu.memory_space<vmem>>, vector<16x256xbf16>,
    return
  }
  func.func @transform_0(%arg0: i32) -> (i32, i32) {
    %c0_i32 = arith.constant 0 : i32
    %c0_i32_0 = arith.constant 0 : i32
    return %arg0, %c0_i32 : i32, i32
  }
  func.func @transform_1(%arg0: i32) -> (i32, i32) {
    %c0_i32 = arith.constant 0 : i32
    %c0_i32_0 = arith.constant 0 : i32
    %c0_i32_1 = arith.constant 0 : i32
    return %c0_i32, %c0_i32_0 : i32, i32
  }
  func.func @transform_2(%arg0: i32) -> (i32, i32) {
    %c0_i32 = arith.constant 0 : i32
    %c0_i32_0 = arith.constant 0 : i32
    %c0_i32_1 = arith.constant 0 : i32
    return %c0_i32, %c0_i32_0 : i32, i32
  }
  func.func @transform_3(%arg0: i32) -> (i32, i32) {
    %c0_i32 = arith.constant 0 : i32
    %c0_i32_0 = arith.constant 0 : i32
    %c0_i32_1 = arith.constant 0 : i32
    return %c0_i32, %c0_i32_0 : i32, i32
  }
  func.func @transform_4(%arg0: i32) -> (i32, i32) {
    %c0_i32 = arith.constant 0 : i32
    %c0_i32_0 = arith.constant 0 : i32
    return %arg0, %c0_i32 : i32, i32
  }
}

module attributes {stable_mosaic.version = 11 : i64} {
  func.func @_conv3x3_s1_kernel(%arg0: i32, %arg1: memref<1x4x4x256xbf16, #tpu.memory_space<vmem>>, %arg2: memref<9x256x256xbf16, #tpu.memory_space<vmem>>, %arg3: memref<1x256xf32, #tpu.memory_space<vmem>>, %arg4: memref<1x256xf32, #tpu.memory_space<vmem>>, %arg5: memref<1x4x256xbf16, #tpu.memory_space<vmem>>) attributes {dimension_semantics = [#tpu.dimension_semantics<parallel>], iteration_bounds = array<i64: 2>, scalar_prefetch = 0 : i64, scratch_operands = 0 : i64, tpu.core_type = #tpu.core_type<tc>, window_params = [{transform_indices = @transform_0, window_bounds = array<i64: 1, 4, 4, 256>}, {pipeline_mode = #tpu.pipeline_mode<synchronous>, transform_indices = @transform_1, window_bounds = array<i64: 9, 256, 256>}, {pipeline_mode = #tpu.pipeline_mode<synchronous>, transform_indices = @transform_2, window_bounds = array<i64: 1, 256>}, {pipeline_mode = #tpu.pipeline_mode<synchronous>, transform_indices = @transform_3, window_bounds = array<i64: 1, 256>}, {transform_indices = @transform_4, window_bounds = array<i64: 1, 4, 256>}]} {
    %cst = arith.constant 0.000000e+00 : f32
    %0 = vector.broadcast %cst : f32 to vector<4x256xf32>
    %c0 = arith.constant 0 : index
    %c0_0 = arith.constant 0 : index
    %c0_1 = arith.constant 0 : index
    %c0_2 = arith.constant 0 : index
    %1 = vector.load %arg1[%c0, %c0_0, %c0_1, %c0_2] : memref<1x4x4x256xbf16, #tpu.memory_space<vmem>>, vector<1x2x2x256xbf16>
    %2 = vector.shape_cast %1 : vector<1x2x2x256xbf16> to vector<2x2x256xbf16>
    %3 = vector.shape_cast %2 : vector<2x2x256xbf16> to vector<4x256xbf16>
    %c0_3 = arith.constant 0 : index
    %c0_4 = arith.constant 0 : index
    %c0_5 = arith.constant 0 : index
    %4 = vector.load %arg2[%c0_3, %c0_4, %c0_5] : memref<9x256x256xbf16, #tpu.memory_space<vmem>>, vector<1x256x256xbf16>
    %5 = vector.shape_cast %4 : vector<1x256x256xbf16> to vector<256x256xbf16>
    %cst_6 = arith.constant dense<0.000000e+00> : vector<4x256xf32>
    %6 = tpu.matmul %3, %5, %cst_6 {dimension_numbers = #tpu.dot_dimension_numbers<[1], [0], [0], [1], [0, 0, 1, 1], [], []>} : vector<4x256xbf16>, vector<256x256xbf16>, vector<4x256xf32> -> vector<4x256xf32>
    %7 = arith.addf %0, %6 : vector<4x256xf32>
    %c0_7 = arith.constant 0 : index
    %c0_8 = arith.constant 0 : index
    %c1 = arith.constant 1 : index
    %c0_9 = arith.constant 0 : index
    %8 = vector.load %arg1[%c0_7, %c0_8, %c1, %c0_9] : memref<1x4x4x256xbf16, #tpu.memory_space<vmem>>, vector<1x2x2x256xbf16>
    %9 = vector.shape_cast %8 : vector<1x2x2x256xbf16> to vector<2x2x256xbf16>
    %10 = vector.shape_cast %9 : vector<2x2x256xbf16> to vector<4x256xbf16>
    %c1_10 = arith.constant 1 : index
    %c0_11 = arith.constant 0 : index
    %c0_12 = arith.constant 0 : index
    %11 = vector.load %arg2[%c1_10, %c0_11, %c0_12] : memref<9x256x256xbf16, #tpu.memory_space<vmem>>, vector<1x256x256xbf16>
    %12 = vector.shape_cast %11 : vector<1x256x256xbf16> to vector<256x256xbf16>
    %cst_13 = arith.constant dense<0.000000e+00> : vector<4x256xf32>
    %13 = tpu.matmul %10, %12, %cst_13 {dimension_numbers = #tpu.dot_dimension_numbers<[1], [0], [0], [1], [0, 0, 1, 1], [], []>} : vector<4x256xbf16>, vector<256x256xbf16>, vector<4x256xf32> -> vector<4x256xf32>
    %14 = arith.addf %7, %13 : vector<4x256xf32>
    %c0_14 = arith.constant 0 : index
    %c0_15 = arith.constant 0 : index
    %c2 = arith.constant 2 : index
    %c0_16 = arith.constant 0 : index
    %15 = vector.load %arg1[%c0_14, %c0_15, %c2, %c0_16] : memref<1x4x4x256xbf16, #tpu.memory_space<vmem>>, vector<1x2x2x256xbf16>
    %16 = vector.shape_cast %15 : vector<1x2x2x256xbf16> to vector<2x2x256xbf16>
    %17 = vector.shape_cast %16 : vector<2x2x256xbf16> to vector<4x256xbf16>
    %c2_17 = arith.constant 2 : index
    %c0_18 = arith.constant 0 : index
    %c0_19 = arith.constant 0 : index
    %18 = vector.load %arg2[%c2_17, %c0_18, %c0_19] : memref<9x256x256xbf16, #tpu.memory_space<vmem>>, vector<1x256x256xbf16>
    %19 = vector.shape_cast %18 : vector<1x256x256xbf16> to vector<256x256xbf16>
    %cst_20 = arith.constant dense<0.000000e+00> : vector<4x256xf32>
    %20 = tpu.matmul %17, %19, %cst_20 {dimension_numbers = #tpu.dot_dimension_numbers<[1], [0], [0], [1], [0, 0, 1, 1], [], []>} : vector<4x256xbf16>, vector<256x256xbf16>, vector<4x256xf32> -> vector<4x256xf32>
    %21 = arith.addf %14, %20 : vector<4x256xf32>
    %c0_21 = arith.constant 0 : index
    %c1_22 = arith.constant 1 : index
    %c0_23 = arith.constant 0 : index
    %c0_24 = arith.constant 0 : index
    %22 = vector.load %arg1[%c0_21, %c1_22, %c0_23, %c0_24] : memref<1x4x4x256xbf16, #tpu.memory_space<vmem>>, vector<1x2x2x256xbf16>
    %23 = vector.shape_cast %22 : vector<1x2x2x256xbf16> to vector<2x2x256xbf16>
    %24 = vector.shape_cast %23 : vector<2x2x256xbf16> to vector<4x256xbf16>
    %c3 = arith.constant 3 : index
    %c0_25 = arith.constant 0 : index
    %c0_26 = arith.constant 0 : index
    %25 = vector.load %arg2[%c3, %c0_25, %c0_26] : memref<9x256x256xbf16, #tpu.memory_space<vmem>>, vector<1x256x256xbf16>
    %26 = vector.shape_cast %25 : vector<1x256x256xbf16> to vector<256x256xbf16>
    %cst_27 = arith.constant dense<0.000000e+00> : vector<4x256xf32>
    %27 = tpu.matmul %24, %26, %cst_27 {dimension_numbers = #tpu.dot_dimension_numbers<[1], [0], [0], [1], [0, 0, 1, 1], [], []>} : vector<4x256xbf16>, vector<256x256xbf16>, vector<4x256xf32> -> vector<4x256xf32>
    %28 = arith.addf %21, %27 : vector<4x256xf32>
    %c0_28 = arith.constant 0 : index
    %c1_29 = arith.constant 1 : index
    %c1_30 = arith.constant 1 : index
    %c0_31 = arith.constant 0 : index
    %29 = vector.load %arg1[%c0_28, %c1_29, %c1_30, %c0_31] : memref<1x4x4x256xbf16, #tpu.memory_space<vmem>>, vector<1x2x2x256xbf16>
    %30 = vector.shape_cast %29 : vector<1x2x2x256xbf16> to vector<2x2x256xbf16>
    %31 = vector.shape_cast %30 : vector<2x2x256xbf16> to vector<4x256xbf16>
    %c4 = arith.constant 4 : index
    %c0_32 = arith.constant 0 : index
    %c0_33 = arith.constant 0 : index
    %32 = vector.load %arg2[%c4, %c0_32, %c0_33] : memref<9x256x256xbf16, #tpu.memory_space<vmem>>, vector<1x256x256xbf16>
    %33 = vector.shape_cast %32 : vector<1x256x256xbf16> to vector<256x256xbf16>
    %cst_34 = arith.constant dense<0.000000e+00> : vector<4x256xf32>
    %34 = tpu.matmul %31, %33, %cst_34 {dimension_numbers = #tpu.dot_dimension_numbers<[1], [0], [0], [1], [0, 0, 1, 1], [], []>} : vector<4x256xbf16>, vector<256x256xbf16>, vector<4x256xf32> -> vector<4x256xf32>
    %35 = arith.addf %28, %34 : vector<4x256xf32>
    %c0_35 = arith.constant 0 : index
    %c1_36 = arith.constant 1 : index
    %c2_37 = arith.constant 2 : index
    %c0_38 = arith.constant 0 : index
    %36 = vector.load %arg1[%c0_35, %c1_36, %c2_37, %c0_38] : memref<1x4x4x256xbf16, #tpu.memory_space<vmem>>, vector<1x2x2x256xbf16>
    %37 = vector.shape_cast %36 : vector<1x2x2x256xbf16> to vector<2x2x256xbf16>
    %38 = vector.shape_cast %37 : vector<2x2x256xbf16> to vector<4x256xbf16>
    %c5 = arith.constant 5 : index
    %c0_39 = arith.constant 0 : index
    %c0_40 = arith.constant 0 : index
    %39 = vector.load %arg2[%c5, %c0_39, %c0_40] : memref<9x256x256xbf16, #tpu.memory_space<vmem>>, vector<1x256x256xbf16>
    %40 = vector.shape_cast %39 : vector<1x256x256xbf16> to vector<256x256xbf16>
    %cst_41 = arith.constant dense<0.000000e+00> : vector<4x256xf32>
    %41 = tpu.matmul %38, %40, %cst_41 {dimension_numbers = #tpu.dot_dimension_numbers<[1], [0], [0], [1], [0, 0, 1, 1], [], []>} : vector<4x256xbf16>, vector<256x256xbf16>, vector<4x256xf32> -> vector<4x256xf32>
    %42 = arith.addf %35, %41 : vector<4x256xf32>
    %c0_42 = arith.constant 0 : index
    %c2_43 = arith.constant 2 : index
    %c0_44 = arith.constant 0 : index
    %c0_45 = arith.constant 0 : index
    %43 = vector.load %arg1[%c0_42, %c2_43, %c0_44, %c0_45] : memref<1x4x4x256xbf16, #tpu.memory_space<vmem>>, vector<1x2x2x256xbf16>
    %44 = vector.shape_cast %43 : vector<1x2x2x256xbf16> to vector<2x2x256xbf16>
    %45 = vector.shape_cast %44 : vector<2x2x256xbf16> to vector<4x256xbf16>
    %c6 = arith.constant 6 : index
    %c0_46 = arith.constant 0 : index
    %c0_47 = arith.constant 0 : index
    %46 = vector.load %arg2[%c6, %c0_46, %c0_47] : memref<9x256x256xbf16, #tpu.memory_space<vmem>>, vector<1x256x256xbf16>
    %47 = vector.shape_cast %46 : vector<1x256x256xbf16> to vector<256x256xbf16>
    %cst_48 = arith.constant dense<0.000000e+00> : vector<4x256xf32>
    %48 = tpu.matmul %45, %47, %cst_48 {dimension_numbers = #tpu.dot_dimension_numbers<[1], [0], [0], [1], [0, 0, 1, 1], [], []>} : vector<4x256xbf16>, vector<256x256xbf16>, vector<4x256xf32> -> vector<4x256xf32>
    %49 = arith.addf %42, %48 : vector<4x256xf32>
    %c0_49 = arith.constant 0 : index
    %c2_50 = arith.constant 2 : index
    %c1_51 = arith.constant 1 : index
    %c0_52 = arith.constant 0 : index
    %50 = vector.load %arg1[%c0_49, %c2_50, %c1_51, %c0_52] : memref<1x4x4x256xbf16, #tpu.memory_space<vmem>>, vector<1x2x2x256xbf16>
    %51 = vector.shape_cast %50 : vector<1x2x2x256xbf16> to vector<2x2x256xbf16>
    %52 = vector.shape_cast %51 : vector<2x2x256xbf16> to vector<4x256xbf16>
    %c7 = arith.constant 7 : index
    %c0_53 = arith.constant 0 : index
    %c0_54 = arith.constant 0 : index
    %53 = vector.load %arg2[%c7, %c0_53, %c0_54] : memref<9x256x256xbf16, #tpu.memory_space<vmem>>, vector<1x256x256xbf16>
    %54 = vector.shape_cast %53 : vector<1x256x256xbf16> to vector<256x256xbf16>
    %cst_55 = arith.constant dense<0.000000e+00> : vector<4x256xf32>
    %55 = tpu.matmul %52, %54, %cst_55 {dimension_numbers = #tpu.dot_dimension_numbers<[1], [0], [0], [1], [0, 0, 1, 1], [], []>} : vector<4x256xbf16>, vector<256x256xbf16>, vector<4x256xf32> -> vector<4x256xf32>
    %56 = arith.addf %49, %55 : vector<4x256xf32>
    %c0_56 = arith.constant 0 : index
    %c2_57 = arith.constant 2 : index
    %c2_58 = arith.constant 2 : index
    %c0_59 = arith.constant 0 : index
    %57 = vector.load %arg1[%c0_56, %c2_57, %c2_58, %c0_59] : memref<1x4x4x256xbf16, #tpu.memory_space<vmem>>, vector<1x2x2x256xbf16>
    %58 = vector.shape_cast %57 : vector<1x2x2x256xbf16> to vector<2x2x256xbf16>
    %59 = vector.shape_cast %58 : vector<2x2x256xbf16> to vector<4x256xbf16>
    %c8 = arith.constant 8 : index
    %c0_60 = arith.constant 0 : index
    %c0_61 = arith.constant 0 : index
    %60 = vector.load %arg2[%c8, %c0_60, %c0_61] : memref<9x256x256xbf16, #tpu.memory_space<vmem>>, vector<1x256x256xbf16>
    %61 = vector.shape_cast %60 : vector<1x256x256xbf16> to vector<256x256xbf16>
    %cst_62 = arith.constant dense<0.000000e+00> : vector<4x256xf32>
    %62 = tpu.matmul %59, %61, %cst_62 {dimension_numbers = #tpu.dot_dimension_numbers<[1], [0], [0], [1], [0, 0, 1, 1], [], []>} : vector<4x256xbf16>, vector<256x256xbf16>, vector<4x256xf32> -> vector<4x256xf32>
    %63 = arith.addf %56, %62 : vector<4x256xf32>
    %c0_63 = arith.constant 0 : index
    %c0_64 = arith.constant 0 : index
    %64 = vector.load %arg3[%c0_63, %c0_64] : memref<1x256xf32, #tpu.memory_space<vmem>>, vector<1x256xf32>
    %65 = vector.broadcast %64 : vector<1x256xf32> to vector<4x256xf32>
    %66 = arith.mulf %63, %65 : vector<4x256xf32>
    %c0_65 = arith.constant 0 : index
    %c0_66 = arith.constant 0 : index
    %67 = vector.load %arg4[%c0_65, %c0_66] : memref<1x256xf32, #tpu.memory_space<vmem>>, vector<1x256xf32>
    %68 = vector.broadcast %67 : vector<1x256xf32> to vector<4x256xf32>
    %69 = arith.addf %66, %68 : vector<4x256xf32>
    %cst_67 = arith.constant 0.000000e+00 : f32
    %70 = vector.broadcast %cst_67 : f32 to vector<4x256xf32>
    %71 = arith.maximumf %69, %70 : vector<4x256xf32>
    %72 = arith.truncf %71 : vector<4x256xf32> to vector<4x256xbf16>
    %c0_68 = arith.constant 0 : index
    %c0_69 = arith.constant 0 : index
    %c0_70 = arith.constant 0 : index
    %73 = vector.load %arg5[%c0_68, %c0_69, %c0_70] : memref<1x4x256xbf16, #tpu.memory_space<vmem>>, vector<1x4x256xbf16>
    %74 = vector.shape_cast %73 : vector<1x4x256xbf16> to vector<4x256xbf16>
    %75 = vector.shape_cast %72 : vector<4x256xbf16> to vector<1x4x256xbf16>
    tpu.vector_store %arg5[%c0_68, %c0_69, %c0_70], %75 {strides = array<i32>} : memref<1x4x256xbf16, #tpu.memory_space<vmem>>, vector<1x4x256xbf16>,
    return
  }
  func.func @transform_0(%arg0: i32) -> (i32, i32, i32, i32) {
    %c0_i32 = arith.constant 0 : i32
    %c0_i32_0 = arith.constant 0 : i32
    %c0_i32_1 = arith.constant 0 : i32
    %c0_i32_2 = arith.constant 0 : i32
    return %arg0, %c0_i32, %c0_i32_0, %c0_i32_1 : i32, i32, i32, i32
  }
  func.func @transform_1(%arg0: i32) -> (i32, i32, i32) {
    %c0_i32 = arith.constant 0 : i32
    %c0_i32_0 = arith.constant 0 : i32
    %c0_i32_1 = arith.constant 0 : i32
    %c0_i32_2 = arith.constant 0 : i32
    return %c0_i32, %c0_i32_0, %c0_i32_1 : i32, i32, i32
  }
  func.func @transform_2(%arg0: i32) -> (i32, i32) {
    %c0_i32 = arith.constant 0 : i32
    %c0_i32_0 = arith.constant 0 : i32
    %c0_i32_1 = arith.constant 0 : i32
    return %c0_i32, %c0_i32_0 : i32, i32
  }
  func.func @transform_3(%arg0: i32) -> (i32, i32) {
    %c0_i32 = arith.constant 0 : i32
    %c0_i32_0 = arith.constant 0 : i32
    %c0_i32_1 = arith.constant 0 : i32
    return %c0_i32, %c0_i32_0 : i32, i32
  }
  func.func @transform_4(%arg0: i32) -> (i32, i32, i32) {
    %c0_i32 = arith.constant 0 : i32
    %c0_i32_0 = arith.constant 0 : i32
    %c0_i32_1 = arith.constant 0 : i32
    return %arg0, %c0_i32, %c0_i32_0 : i32, i32, i32
  }
}

</mosaic_0001>

<llo_original>
// kernel: psa_forward.16
$region0: #{psa_forward.16}
  #allocation0 [shape = 'u32[]', space=smem, size = 0x4, offset = 0x4, fixed_abs, tag = 'smem constant byte address 0x4 - core index']
  #allocation1 [shape = 'u32[144,128]{1,0:T(1,128)}', space=vmem, size = 0x12000, scoped, tag = 'internal scratch']
  %s0 = inlined_call_operand.vmem [shape: bf16[128,1152], index: 0, kind: input, shape index: {}]
  %s1 = inlined_call_operand.vmem [shape: bf16[1152,128], index: 1, kind: input, shape index: {}]
  %s2 = inlined_call_operand.vmem [shape: f32[1,128], index: 2, kind: input, shape index: {}]
  %s3 = inlined_call_operand.vmem [shape: f32[1,128], index: 3, kind: input, shape index: {}]
  %s4 = inlined_call_operand.vmem [shape: bf16[128,128], index: 4, kind: output, shape index: {}]
  %s5 = sld [smem:[#allocation0]]
  $region26: #{psa_forward.16} parent=0
    _
  %s7 = ssub.s32 1, %s5
  %s8 = scalar_select 0, %s7, %s5
  // Predicated region
  $region2: #{psa_forward.16} parent=0 // pred_check
    _
  $region3: #{psa_forward.16} parent=0 // pred_check_branch
    %10 = sbr.rel (0) target = $region5
  $region4: #{psa_forward.16} parent=0 // pred_region
    _
  $region5: #{psa_forward.16} parent=0 // pred_fallthru
    _
  // Predicated region
  $region6: #{psa_forward.16} parent=0 // pred_check
    _
  $region7: #{psa_forward.16} parent=0 // pred_check_branch
    %12 = sbr.rel (0) target = $region9
  $region8: #{psa_forward.16} parent=0 // pred_region
    _
  $region9: #{psa_forward.16} parent=0 // pred_fallthru
    _
  // Predicated region
  $region10: #{psa_forward.16} parent=0 // pred_check
    _
  $region11: #{psa_forward.16} parent=0 // pred_check_branch
    %14 = sbr.rel (0) target = $region13
  $region12: #{psa_forward.16} parent=0 // pred_region
    _
  $region13: #{psa_forward.16} parent=0 // pred_fallthru
    _
  // Predicated region
  $region14: #{psa_forward.16} parent=0 // pred_check
    _
  $region15: #{psa_forward.16} parent=0 // pred_check_branch
    %16 = sbr.rel (0) target = $region17
  $region16: #{psa_forward.16} parent=0 // pred_region
    _
  $region17: #{psa_forward.16} parent=0 // pred_fallthru
    _
  %v18 = vld [vmem:[%s0] sm:$0xff]
  %v19 = vld [vmem:[%s0 + $0x8] sm:$0xff]
  %v20 = vld [vmem:[%s0 + $0x10] sm:$0xff]
  %v21 = vld [vmem:[%s0 + $0x18] sm:$0xff]
  %v22 = vld [vmem:[%s0 + $0x20] sm:$0xf]
  %v23 = vld [vmem:[%s0 + $0x24] sm:$0xff]
  %v24 = vld [vmem:[%s0 + $0x2c] sm:$0xff]
  %v25 = vld [vmem:[%s0 + $0x34] sm:$0xff]
  %v26 = vld [vmem:[%s0 + $0x3c] sm:$0xff]
  %v27 = vld [vmem:[%s0 + $0x44] sm:$0xf]
  %v28 = vld [vmem:[%s0 + $0x48] sm:$0xff]
  %v29 = vld [vmem:[%s0 + $0x50] sm:$0xff]
  %v30 = vld [vmem:[%s0 + $0x58] sm:$0xff]
  %v31 = vld [vmem:[%s0 + $0x60] sm:$0xff]
  %v32 = vld [vmem:[%s0 + $0x68] sm:$0xf]
  %v33 = vld [vmem:[%s0 + $0x6c] sm:$0xff]
  %v34 = vld [vmem:[%s0 + $0x74] sm:$0xff]
  %v35 = vld [vmem:[%s0 + $0x7c] sm:$0xff]
  %v36 = vld [vmem:[%s0 + $0x84] sm:$0xff]
  %v37 = vld [vmem:[%s0 + $0x8c] sm:$0xf]
  %v38 = vld [vmem:[%s0 + $0x90] sm:$0xff]
  %v39 = vld [vmem:[%s0 + $0x98] sm:$0xff]
  %v40 = vld [vmem:[%s0 + $0xa0] sm:$0xff]
  %v41 = vld [vmem:[%s0 + $0xa8] sm:$0xff]
  %v42 = vld [vmem:[%s0 + $0xb0] sm:$0xf]
  %v43 = vld [vmem:[%s0 + $0xb4] sm:$0xff]
  %v44 = vld [vmem:[%s0 + $0xbc] sm:$0xff]
  %v45 = vld [vmem:[%s0 + $0xc4] sm:$0xff]
  %v46 = vld [vmem:[%s0 + $0xcc] sm:$0xff]
  %v47 = vld [vmem:[%s0 + $0xd4] sm:$0xf]
  %v48 = vld [vmem:[%s0 + $0xd8] sm:$0xff]
  %v49 = vld [vmem:[%s0 + $0xe0] sm:$0xff]
  %v50 = vld [vmem:[%s0 + $0xe8] sm:$0xff]
  %v51 = vld [vmem:[%s0 + $0xf0] sm:$0xff]
  %v52 = vld [vmem:[%s0 + $0xf8] sm:$0xf]
  %v53 = vld [vmem:[%s0 + $0xfc] sm:$0xff]
  %v54 = vld [vmem:[%s0 + $0x104] sm:$0xff]
  %v55 = vld [vmem:[%s0 + $0x10c] sm:$0xff]
  %v56 = vld [vmem:[%s0 + $0x114] sm:$0xff]
  %v57 = vld [vmem:[%s0 + $0x11c] sm:$0xf]
  %v58 = vld [vmem:[%s0 + $0x120] sm:$0xff]
  %v59 = vld [vmem:[%s0 + $0x128] sm:$0xff]
  %v60 = vld [vmem:[%s0 + $0x130] sm:$0xff]
  %v61 = vld [vmem:[%s0 + $0x138] sm:$0xff]
  %v62 = vld [vmem:[%s0 + $0x140] sm:$0xf]
  %v63 = vld [vmem:[%s0 + $0x144] sm:$0xff]
  %v64 = vld [vmem:[%s0 + $0x14c] sm:$0xff]
  %v65 = vld [vmem:[%s0 + $0x154] sm:$0xff]
  %v66 = vld [vmem:[%s0 + $0x15c] sm:$0xff]
  %v67 = vld [vmem:[%s0 + $0x164] sm:$0xf]
  %v68 = vld [vmem:[%s0 + $0x168] sm:$0xff]
  %v69 = vld [vmem:[%s0 + $0x170] sm:$0xff]
  %v70 = vld [vmem:[%s0 + $0x178] sm:$0xff]
  %v71 = vld [vmem:[%s0 + $0x180] sm:$0xff]
  %v72 = vld [vmem:[%s0 + $0x188] sm:$0xf]
  %v73 = vld [vmem:[%s0 + $0x18c] sm:$0xff]
  %v74 = vld [vmem:[%s0 + $0x194] sm:$0xff]
  %v75 = vld [vmem:[%s0 + $0x19c] sm:$0xff]
  %v76 = vld [vmem:[%s0 + $0x1a4] sm:$0xff]
  %v77 = vld [vmem:[%s0 + $0x1ac] sm:$0xf]
  %v78 = vld [vmem:[%s0 + $0x1b0] sm:$0xff]
  %v79 = vld [vmem:[%s0 + $0x1b8] sm:$0xff]
  %v80 = vld [vmem:[%s0 + $0x1c0] sm:$0xff]
  %v81 = vld [vmem:[%s0 + $0x1c8] sm:$0xff]
  %v82 = vld [vmem:[%s0 + $0x1d0] sm:$0xf]
  %v83 = vld [vmem:[%s0 + $0x1d4] sm:$0xff]
  %v84 = vld [vmem:[%s0 + $0x1dc] sm:$0xff]
  %v85 = vld [vmem:[%s0 + $0x1e4] sm:$0xff]
  %v86 = vld [vmem:[%s0 + $0x1ec] sm:$0xff]
  %v87 = vld [vmem:[%s0 + $0x1f4] sm:$0xf]
  %v88 = vld [vmem:[%s0 + $0x1f8] sm:$0xff]
  %v89 = vld [vmem:[%s0 + $0x200] sm:$0xff]
  %v90 = vld [vmem:[%s0 + $0x208] sm:$0xff]
  %v91 = vld [vmem:[%s0 + $0x210] sm:$0xff]
  %v92 = vld [vmem:[%s0 + $0x218] sm:$0xf]
  %v93 = vld [vmem:[%s0 + $0x21c] sm:$0xff]
  %v94 = vld [vmem:[%s0 + $0x224] sm:$0xff]
  %v95 = vld [vmem:[%s0 + $0x22c] sm:$0xff]
  %v96 = vld [vmem:[%s0 + $0x234] sm:$0xff]
  %v97 = vld [vmem:[%s0 + $0x23c] sm:$0xf]
  %v98 = vld [vmem:[%s1] sm:$0xf]
  %v99 = vld [vmem:[%s1 + $0x4] sm:$0xf]
  %v100 = vld [vmem:[%s1 + $0x8] sm:$0xf]
  %v101 = vld [vmem:[%s1 + $0xc] sm:$0xf]
  %v102 = vld [vmem:[%s1 + $0x10] sm:$0xf]
  %v103 = vld [vmem:[%s1 + $0x14] sm:$0xf]
  %v104 = vld [vmem:[%s1 + $0x18] sm:$0xf]
  %v105 = vld [vmem:[%s1 + $0x1c] sm:$0xf]
  %v106 = vld [vmem:[%s1 + $0x20] sm:$0xf]
  %v107 = vld [vmem:[%s1 + $0x24] sm:$0xf]
  %v108 = vld [vmem:[%s1 + $0x28] sm:$0xf]
  %v109 = vld [vmem:[%s1 + $0x2c] sm:$0xf]
  %v110 = vld [vmem:[%s1 + $0x30] sm:$0xf]
  %v111 = vld [vmem:[%s1 + $0x34] sm:$0xf]
  %v112 = vld [vmem:[%s1 + $0x38] sm:$0xf]
  %v113 = vld [vmem:[%s1 + $0x3c] sm:$0xf]
  %v114 = vld [vmem:[%s1 + $0x40] sm:$0xf]
  %v115 = vld [vmem:[%s1 + $0x44] sm:$0xf]
  %v116 = vld [vmem:[%s1 + $0x48] sm:$0xf]
  %v117 = vld [vmem:[%s1 + $0x4c] sm:$0xf]
  %v118 = vld [vmem:[%s1 + $0x50] sm:$0xf]
  %v119 = vld [vmem:[%s1 + $0x54] sm:$0xf]
  %v120 = vld [vmem:[%s1 + $0x58] sm:$0xf]
  %v121 = vld [vmem:[%s1 + $0x5c] sm:$0xf]
  %v122 = vld [vmem:[%s1 + $0x60] sm:$0xf]
  %v123 = vld [vmem:[%s1 + $0x64] sm:$0xf]
  %v124 = vld [vmem:[%s1 + $0x68] sm:$0xf]
  %v125 = vld [vmem:[%s1 + $0x6c] sm:$0xf]
  %v126 = vld [vmem:[%s1 + $0x70] sm:$0xf]
  %v127 = vld [vmem:[%s1 + $0x74] sm:$0xf]
  %v128 = vld [vmem:[%s1 + $0x78] sm:$0xf]
  %v129 = vld [vmem:[%s1 + $0x7c] sm:$0xf]
  %v130 = vld [vmem:[%s1 + $0x80] sm:$0xf]
  %v131 = vld [vmem:[%s1 + $0x84] sm:$0xf]
  %v132 = vld [vmem:[%s1 + $0x88] sm:$0xf]
  %v133 = vld [vmem:[%s1 + $0x8c] sm:$0xf]
  %v134 = vld [vmem:[%s1 + $0x90] sm:$0xf]
  %v135 = vld [vmem:[%s1 + $0x94] sm:$0xf]
  %v136 = vld [vmem:[%s1 + $0x98] sm:$0xf]
  %v137 = vld [vmem:[%s1 + $0x9c] sm:$0xf]
  %v138 = vld [vmem:[%s1 + $0xa0] sm:$0xf]
  %v139 = vld [vmem:[%s1 + $0xa4] sm:$0xf]
  %v140 = vld [vmem:[%s1 + $0xa8] sm:$0xf]
  %v141 = vld [vmem:[%s1 + $0xac] sm:$0xf]
  %v142 = vld [vmem:[%s1 + $0xb0] sm:$0xf]
  %v143 = vld [vmem:[%s1 + $0xb4] sm:$0xf]
  %v144 = vld [vmem:[%s1 + $0xb8] sm:$0xf]
  %v145 = vld [vmem:[%s1 + $0xbc] sm:$0xf]
  %v146 = vld [vmem:[%s1 + $0xc0] sm:$0xf]
  %v147 = vld [vmem:[%s1 + $0xc4] sm:$0xf]
  %v148 = vld [vmem:[%s1 + $0xc8] sm:$0xf]
  %v149 = vld [vmem:[%s1 + $0xcc] sm:$0xf]
  %v150 = vld [vmem:[%s1 + $0xd0] sm:$0xf]
  %v151 = vld [vmem:[%s1 + $0xd4] sm:$0xf]
  %v152 = vld [vmem:[%s1 + $0xd8] sm:$0xf]
  %v153 = vld [vmem:[%s1 + $0xdc] sm:$0xf]
  %v154 = vld [vmem:[%s1 + $0xe0] sm:$0xf]
  %v155 = vld [vmem:[%s1 + $0xe4] sm:$0xf]
  %v156 = vld [vmem:[%s1 + $0xe8] sm:$0xf]
  %v157 = vld [vmem:[%s1 + $0xec] sm:$0xf]
  %v158 = vld [vmem:[%s1 + $0xf0] sm:$0xf]
  %v159 = vld [vmem:[%s1 + $0xf4] sm:$0xf]
  %v160 = vld [vmem:[%s1 + $0xf8] sm:$0xf]
  %v161 = vld [vmem:[%s1 + $0xfc] sm:$0xf]
  %v162 = vld [vmem:[%s1 + $0x100] sm:$0xf]
  %v163 = vld [vmem:[%s1 + $0x104] sm:$0xf]
  %v164 = vld [vmem:[%s1 + $0x108] sm:$0xf]
  %v165 = vld [vmem:[%s1 + $0x10c] sm:$0xf]
  %v166 = vld [vmem:[%s1 + $0x110] sm:$0xf]
  %v167 = vld [vmem:[%s1 + $0x114] sm:$0xf]
  %v168 = vld [vmem:[%s1 + $0x118] sm:$0xf]
  %v169 = vld [vmem:[%s1 + $0x11c] sm:$0xf]
  %v170 = vld [vmem:[%s1 + $0x120] sm:$0xf]
  %v171 = vld [vmem:[%s1 + $0x124] sm:$0xf]
  %v172 = vld [vmem:[%s1 + $0x128] sm:$0xf]
  %v173 = vld [vmem:[%s1 + $0x12c] sm:$0xf]
  %v174 = vld [vmem:[%s1 + $0x130] sm:$0xf]
  %v175 = vld [vmem:[%s1 + $0x134] sm:$0xf]
  %v176 = vld [vmem:[%s1 + $0x138] sm:$0xf]
  %v177 = vld [vmem:[%s1 + $0x13c] sm:$0xf]
  %v178 = vld [vmem:[%s1 + $0x140] sm:$0xf]
  %v179 = vld [vmem:[%s1 + $0x144] sm:$0xf]
  %v180 = vld [vmem:[%s1 + $0x148] sm:$0xf]
  %v181 = vld [vmem:[%s1 + $0x14c] sm:$0xf]
  %v182 = vld [vmem:[%s1 + $0x150] sm:$0xf]
  %v183 = vld [vmem:[%s1 + $0x154] sm:$0xf]
  %v184 = vld [vmem:[%s1 + $0x158] sm:$0xf]
  %v185 = vld [vmem:[%s1 + $0x15c] sm:$0xf]
  %v186 = vld [vmem:[%s1 + $0x160] sm:$0xf]
  %v187 = vld [vmem:[%s1 + $0x164] sm:$0xf]
  %v188 = vld [vmem:[%s1 + $0x168] sm:$0xf]
  %v189 = vld [vmem:[%s1 + $0x16c] sm:$0xf]
  %v190 = vld [vmem:[%s1 + $0x170] sm:$0xf]
  %v191 = vld [vmem:[%s1 + $0x174] sm:$0xf]
  %v192 = vld [vmem:[%s1 + $0x178] sm:$0xf]
  %v193 = vld [vmem:[%s1 + $0x17c] sm:$0xf]
  %v194 = vld [vmem:[%s1 + $0x180] sm:$0xf]
  %v195 = vld [vmem:[%s1 + $0x184] sm:$0xf]
  %v196 = vld [vmem:[%s1 + $0x188] sm:$0xf]
  %v197 = vld [vmem:[%s1 + $0x18c] sm:$0xf]
  %v198 = vld [vmem:[%s1 + $0x190] sm:$0xf]
  %v199 = vld [vmem:[%s1 + $0x194] sm:$0xf]
  %v200 = vld [vmem:[%s1 + $0x198] sm:$0xf]
  %v201 = vld [vmem:[%s1 + $0x19c] sm:$0xf]
  %v202 = vld [vmem:[%s1 + $0x1a0] sm:$0xf]
  %v203 = vld [vmem:[%s1 + $0x1a4] sm:$0xf]
  %v204 = vld [vmem:[%s1 + $0x1a8] sm:$0xf]
  %v205 = vld [vmem:[%s1 + $0x1ac] sm:$0xf]
  %v206 = vld [vmem:[%s1 + $0x1b0] sm:$0xf]
  %v207 = vld [vmem:[%s1 + $0x1b4] sm:$0xf]
  %v208 = vld [vmem:[%s1 + $0x1b8] sm:$0xf]
  %v209 = vld [vmem:[%s1 + $0x1bc] sm:$0xf]
  %v210 = vld [vmem:[%s1 + $0x1c0] sm:$0xf]
  %v211 = vld [vmem:[%s1 + $0x1c4] sm:$0xf]
  %v212 = vld [vmem:[%s1 + $0x1c8] sm:$0xf]
  %v213 = vld [vmem:[%s1 + $0x1cc] sm:$0xf]
  %v214 = vld [vmem:[%s1 + $0x1d0] sm:$0xf]
  %v215 = vld [vmem:[%s1 + $0x1d4] sm:$0xf]
  %v216 = vld [vmem:[%s1 + $0x1d8] sm:$0xf]
  %v217 = vld [vmem:[%s1 + $0x1dc] sm:$0xf]
  %v218 = vld [vmem:[%s1 + $0x1e0] sm:$0xf]
  %v219 = vld [vmem:[%s1 + $0x1e4] sm:$0xf]
  %v220 = vld [vmem:[%s1 + $0x1e8] sm:$0xf]
  %v221 = vld [vmem:[%s1 + $0x1ec] sm:$0xf]
  %v222 = vld [vmem:[%s1 + $0x1f0] sm:$0xf]
  %v223 = vld [vmem:[%s1 + $0x1f4] sm:$0xf]
  %v224 = vld [vmem:[%s1 + $0x1f8] sm:$0xf]
  %v225 = vld [vmem:[%s1 + $0x1fc] sm:$0xf]
  %v226 = vld [vmem:[%s1 + $0x200] sm:$0xf]
  %v227 = vld [vmem:[%s1 + $0x204] sm:$0xf]
  %v228 = vld [vmem:[%s1 + $0x208] sm:$0xf]
  %v229 = vld [vmem:[%s1 + $0x20c] sm:$0xf]
  %v230 = vld [vmem:[%s1 + $0x210] sm:$0xf]
  %v231 = vld [vmem:[%s1 + $0x214] sm:$0xf]
  %v232 = vld [vmem:[%s1 + $0x218] sm:$0xf]
  %v233 = vld [vmem:[%s1 + $0x21c] sm:$0xf]
  %v234 = vld [vmem:[%s1 + $0x220] sm:$0xf]
  %v235 = vld [vmem:[%s1 + $0x224] sm:$0xf]
  %v236 = vld [vmem:[%s1 + $0x228] sm:$0xf]
  %v237 = vld [vmem:[%s1 + $0x22c] sm:$0xf]
  %v238 = vld [vmem:[%s1 + $0x230] sm:$0xf]
  %v239 = vld [vmem:[%s1 + $0x234] sm:$0xf]
  %v240 = vld [vmem:[%s1 + $0x238] sm:$0xf]
  %v241 = vld [vmem:[%s1 + $0x23c] sm:$0xf]
  %v322 = vunpack.c.l.b16 %v18
  %v323 = vunpack.c.h.b16 %v18
  %v324 = vunpack.c.l.b16 %v19
  %v325 = vunpack.c.h.b16 %v19
  %v326 = vunpack.c.l.b16 %v20
  %v327 = vunpack.c.h.b16 %v20
  %v328 = vunpack.c.l.b16 %v21
  %v329 = vunpack.c.h.b16 %v21
  %v330 = vunpack.c.l.b16 %v22
  %v331 = vunpack.c.l.b16 %v23
  %v332 = vunpack.c.h.b16 %v23
  %v333 = vunpack.c.l.b16 %v24
  %v334 = vunpack.c.h.b16 %v24
  %v335 = vunpack.c.l.b16 %v25
  %v336 = vunpack.c.h.b16 %v25
  %v337 = vunpack.c.l.b16 %v26
  %v338 = vunpack.c.h.b16 %v26
  %v339 = vunpack.c.l.b16 %v27
  %v340 = vunpack.c.l.b16 %v28
  %v341 = vunpack.c.h.b16 %v28
  %v342 = vunpack.c.l.b16 %v29
  %v343 = vunpack.c.h.b16 %v29
  %v344 = vunpack.c.l.b16 %v30
  %v345 = vunpack.c.h.b16 %v30
  %v346 = vunpack.c.l.b16 %v31
  %v347 = vunpack.c.h.b16 %v31
  %v348 = vunpack.c.l.b16 %v32
  %v349 = vunpack.c.l.b16 %v33
  %v350 = vunpack.c.h.b16 %v33
  %v351 = vunpack.c.l.b16 %v34
  %v352 = vunpack.c.h.b16 %v34
  %v353 = vunpack.c.l.b16 %v35
  %v354 = vunpack.c.h.b16 %v35
  %v355 = vunpack.c.l.b16 %v36
  %v356 = vunpack.c.h.b16 %v36
  %v357 = vunpack.c.l.b16 %v37
  %v358 = vunpack.c.l.b16 %v38
  %v359 = vunpack.c.h.b16 %v38
  %v360 = vunpack.c.l.b16 %v39
  %v361 = vunpack.c.h.b16 %v39
  %v362 = vunpack.c.l.b16 %v40
  %v363 = vunpack.c.h.b16 %v40
  %v364 = vunpack.c.l.b16 %v41
  %v365 = vunpack.c.h.b16 %v41
  %v366 = vunpack.c.l.b16 %v42
  %v367 = vunpack.c.l.b16 %v43
  %v368 = vunpack.c.h.b16 %v43
  %v369 = vunpack.c.l.b16 %v44
  %v370 = vunpack.c.h.b16 %v44
  %v371 = vunpack.c.l.b16 %v45
  %v372 = vunpack.c.h.b16 %v45
  %v373 = vunpack.c.l.b16 %v46
  %v374 = vunpack.c.h.b16 %v46
  %v375 = vunpack.c.l.b16 %v47
  %v376 = vunpack.c.l.b16 %v48
  %v377 = vunpack.c.h.b16 %v48
  %v378 = vunpack.c.l.b16 %v49
  %v379 = vunpack.c.h.b16 %v49
  %v380 = vunpack.c.l.b16 %v50
  %v381 = vunpack.c.h.b16 %v50
  %v382 = vunpack.c.l.b16 %v51
  %v383 = vunpack.c.h.b16 %v51
  %v384 = vunpack.c.l.b16 %v52
  %v385 = vunpack.c.l.b16 %v53
  %v386 = vunpack.c.h.b16 %v53
  %v387 = vunpack.c.l.b16 %v54
  %v388 = vunpack.c.h.b16 %v54
  %v389 = vunpack.c.l.b16 %v55
  %v390 = vunpack.c.h.b16 %v55
  %v391 = vunpack.c.l.b16 %v56
  %v392 = vunpack.c.h.b16 %v56
  %v393 = vunpack.c.l.b16 %v57
  %v394 = vunpack.c.l.b16 %v58
  %v395 = vunpack.c.h.b16 %v58
  %v396 = vunpack.c.l.b16 %v59
  %v397 = vunpack.c.h.b16 %v59
  %v398 = vunpack.c.l.b16 %v60
  %v399 = vunpack.c.h.b16 %v60
  %v400 = vunpack.c.l.b16 %v61
  %v401 = vunpack.c.h.b16 %v61
  %v402 = vunpack.c.l.b16 %v62
  %v403 = vunpack.c.l.b16 %v63
  %v404 = vunpack.c.h.b16 %v63
  %v405 = vunpack.c.l.b16 %v64
  %v406 = vunpack.c.h.b16 %v64
  %v407 = vunpack.c.l.b16 %v65
  %v408 = vunpack.c.h.b16 %v65
  %v409 = vunpack.c.l.b16 %v66
  %v410 = vunpack.c.h.b16 %v66
  %v411 = vunpack.c.l.b16 %v67
  %v412 = vunpack.c.l.b16 %v68
  %v413 = vunpack.c.h.b16 %v68
  %v414 = vunpack.c.l.b16 %v69
  %v415 = vunpack.c.h.b16 %v69
  %v416 = vunpack.c.l.b16 %v70
  %v417 = vunpack.c.h.b16 %v70
  %v418 = vunpack.c.l.b16 %v71
  %v419 = vunpack.c.h.b16 %v71
  %v420 = vunpack.c.l.b16 %v72
  %v421 = vunpack.c.l.b16 %v73
  %v422 = vunpack.c.h.b16 %v73
  %v423 = vunpack.c.l.b16 %v74
  %v424 = vunpack.c.h.b16 %v74
  %v425 = vunpack.c.l.b16 %v75
  %v426 = vunpack.c.h.b16 %v75
  %v427 = vunpack.c.l.b16 %v76
  %v428 = vunpack.c.h.b16 %v76
  %v429 = vunpack.c.l.b16 %v77
  %v430 = vunpack.c.l.b16 %v78
  %v431 = vunpack.c.h.b16 %v78
  %v432 = vunpack.c.l.b16 %v79
  %v433 = vunpack.c.h.b16 %v79
  %v434 = vunpack.c.l.b16 %v80
  %v435 = vunpack.c.h.b16 %v80
  %v436 = vunpack.c.l.b16 %v81
  %v437 = vunpack.c.h.b16 %v81
  %v438 = vunpack.c.l.b16 %v82
  %v439 = vunpack.c.l.b16 %v83
  %v440 = vunpack.c.h.b16 %v83
  %v441 = vunpack.c.l.b16 %v84
  %v442 = vunpack.c.h.b16 %v84
  %v443 = vunpack.c.l.b16 %v85
  %v444 = vunpack.c.h.b16 %v85
  %v445 = vunpack.c.l.b16 %v86
  %v446 = vunpack.c.h.b16 %v86
  %v447 = vunpack.c.l.b16 %v87
  %v448 = vunpack.c.l.b16 %v88
  %v449 = vunpack.c.h.b16 %v88
  %v450 = vunpack.c.l.b16 %v89
  %v451 = vunpack.c.h.b16 %v89
  %v452 = vunpack.c.l.b16 %v90
  %v453 = vunpack.c.h.b16 %v90
  %v454 = vunpack.c.l.b16 %v91
  %v455 = vunpack.c.h.b16 %v91
  %v456 = vunpack.c.l.b16 %v92
  %v457 = vunpack.c.l.b16 %v93
  %v458 = vunpack.c.h.b16 %v93
  %v459 = vunpack.c.l.b16 %v94
  %v460 = vunpack.c.h.b16 %v94
  %v461 = vunpack.c.l.b16 %v95
  %v462 = vunpack.c.h.b16 %v95
  %v463 = vunpack.c.l.b16 %v96
  %v464 = vunpack.c.h.b16 %v96
  %v465 = vunpack.c.l.b16 %v97
  %v466 = vpack.c.b16 %v331, %v322
  %v467 = vpack.c.b16 %v332, %v323
  %v468 = vpack.c.b16 %v333, %v324
  %v469 = vpack.c.b16 %v334, %v325
  %v470 = vpack.c.b16 %v335, %v326
  %v471 = vpack.c.b16 %v336, %v327
  %v472 = vpack.c.b16 %v337, %v328
  %v473 = vpack.c.b16 %v338, %v329
  %v474 = vpack.c.b16 %v339, %v330
  %v475 = vpack.c.b16 %v349, %v340
  %v476 = vpack.c.b16 %v350, %v341
  %v477 = vpack.c.b16 %v351, %v342
  %v478 = vpack.c.b16 %v352, %v343
  %v479 = vpack.c.b16 %v353, %v344
  %v480 = vpack.c.b16 %v354, %v345
  %v481 = vpack.c.b16 %v355, %v346
  %v482 = vpack.c.b16 %v356, %v347
  %v483 = vpack.c.b16 %v357, %v348
  %v484 = vpack.c.b16 %v367, %v358
  %v485 = vpack.c.b16 %v368, %v359
  %v486 = vpack.c.b16 %v369, %v360
  %v487 = vpack.c.b16 %v370, %v361
  %v488 = vpack.c.b16 %v371, %v362
  %v489 = vpack.c.b16 %v372, %v363
  %v490 = vpack.c.b16 %v373, %v364
  %v491 = vpack.c.b16 %v374, %v365
  %v492 = vpack.c.b16 %v375, %v366
  %v493 = vpack.c.b16 %v385, %v376
  %v494 = vpack.c.b16 %v386, %v377
  %v495 = vpack.c.b16 %v387, %v378
  %v496 = vpack.c.b16 %v388, %v379
  %v497 = vpack.c.b16 %v389, %v380
  %v498 = vpack.c.b16 %v390, %v381
  %v499 = vpack.c.b16 %v391, %v382
  %v500 = vpack.c.b16 %v392, %v383
  %v501 = vpack.c.b16 %v393, %v384
  %v502 = vpack.c.b16 %v403, %v394
  %v503 = vpack.c.b16 %v404, %v395
  %v504 = vpack.c.b16 %v405, %v396
  %v505 = vpack.c.b16 %v406, %v397
  %v506 = vpack.c.b16 %v407, %v398
  %v507 = vpack.c.b16 %v408, %v399
  %v508 = vpack.c.b16 %v409, %v400
  %v509 = vpack.c.b16 %v410, %v401
  %v510 = vpack.c.b16 %v411, %v402
  %v511 = vpack.c.b16 %v421, %v412
  %v512 = vpack.c.b16 %v422, %v413
  %v513 = vpack.c.b16 %v423, %v414
  %v514 = vpack.c.b16 %v424, %v415
  %v515 = vpack.c.b16 %v425, %v416
  %v516 = vpack.c.b16 %v426, %v417
  %v517 = vpack.c.b16 %v427, %v418
  %v518 = vpack.c.b16 %v428, %v419
  %v519 = vpack.c.b16 %v429, %v420
  %v520 = vpack.c.b16 %v439, %v430
  %v521 = vpack.c.b16 %v440, %v431
  %v522 = vpack.c.b16 %v441, %v432
  %v523 = vpack.c.b16 %v442, %v433
  %v524 = vpack.c.b16 %v443, %v434
  %v525 = vpack.c.b16 %v444, %v435
  %v526 = vpack.c.b16 %v445, %v436
  %v527 = vpack.c.b16 %v446, %v437
  %v528 = vpack.c.b16 %v447, %v438
  %v529 = vpack.c.b16 %v457, %v448
  %v530 = vpack.c.b16 %v458, %v449
  %v531 = vpack.c.b16 %v459, %v450
  %v532 = vpack.c.b16 %v460, %v451
  %v533 = vpack.c.b16 %v461, %v452
  %v534 = vpack.c.b16 %v462, %v453
  %v535 = vpack.c.b16 %v463, %v454
  %v536 = vpack.c.b16 %v464, %v455
  %v537 = vpack.c.b16 %v465, %v456
  %v754 = vunpack.c.l.b16 %v98
  %v755 = vunpack.c.l.b16 %v99
  %v756 = vunpack.c.l.b16 %v100
  %v757 = vunpack.c.l.b16 %v101
  %v758 = vunpack.c.l.b16 %v102
  %v759 = vunpack.c.l.b16 %v103
  %v760 = vunpack.c.l.b16 %v104
  %v761 = vunpack.c.l.b16 %v105
  %v762 = vunpack.c.l.b16 %v106
  %v763 = vunpack.c.l.b16 %v107
  %v764 = vunpack.c.l.b16 %v108
  %v765 = vunpack.c.l.b16 %v109
  %v766 = vunpack.c.l.b16 %v110
  %v767 = vunpack.c.l.b16 %v111
  %v768 = vunpack.c.l.b16 %v112
  %v769 = vunpack.c.l.b16 %v113
  %v770 = vunpack.c.l.b16 %v114
  %v771 = vunpack.c.l.b16 %v115
  %v772 = vunpack.c.l.b16 %v116
  %v773 = vunpack.c.l.b16 %v117
  %v774 = vunpack.c.l.b16 %v118
  %v775 = vunpack.c.l.b16 %v119
  %v776 = vunpack.c.l.b16 %v120
  %v777 = vunpack.c.l.b16 %v121
  %v778 = vunpack.c.l.b16 %v122
  %v779 = vunpack.c.l.b16 %v123
  %v780 = vunpack.c.l.b16 %v124
  %v781 = vunpack.c.l.b16 %v125
  %v782 = vunpack.c.l.b16 %v126
  %v783 = vunpack.c.l.b16 %v127
  %v784 = vunpack.c.l.b16 %v128
  %v785 = vunpack.c.l.b16 %v129
  %v786 = vunpack.c.l.b16 %v130
  %v787 = vunpack.c.l.b16 %v131
  %v788 = vunpack.c.l.b16 %v132
  %v789 = vunpack.c.l.b16 %v133
  %v790 = vunpack.c.l.b16 %v134
  %v791 = vunpack.c.l.b16 %v135
  %v792 = vunpack.c.l.b16 %v136
  %v793 = vunpack.c.l.b16 %v137
  %v794 = vunpack.c.l.b16 %v138
  %v795 = vunpack.c.l.b16 %v139
  %v796 = vunpack.c.l.b16 %v140
  %v797 = vunpack.c.l.b16 %v141
  %v798 = vunpack.c.l.b16 %v142
  %v799 = vunpack.c.l.b16 %v143
  %v800 = vunpack.c.l.b16 %v144
  %v801 = vunpack.c.l.b16 %v145
  %v802 = vunpack.c.l.b16 %v146
  %v803 = vunpack.c.l.b16 %v147
  %v804 = vunpack.c.l.b16 %v148
  %v805 = vunpack.c.l.b16 %v149
  %v806 = vunpack.c.l.b16 %v150
  %v807 = vunpack.c.l.b16 %v151
  %v808 = vunpack.c.l.b16 %v152
  %v809 = vunpack.c.l.b16 %v153
  %v810 = vunpack.c.l.b16 %v154
  %v811 = vunpack.c.l.b16 %v155
  %v812 = vunpack.c.l.b16 %v156
  %v813 = vunpack.c.l.b16 %v157
  %v814 = vunpack.c.l.b16 %v158
  %v815 = vunpack.c.l.b16 %v159
  %v816 = vunpack.c.l.b16 %v160
  %v817 = vunpack.c.l.b16 %v161
  %v818 = vunpack.c.l.b16 %v162
  %v819 = vunpack.c.l.b16 %v163
  %v820 = vunpack.c.l.b16 %v164
  %v821 = vunpack.c.l.b16 %v165
  %v822 = vunpack.c.l.b16 %v166
  %v823 = vunpack.c.l.b16 %v167
  %v824 = vunpack.c.l.b16 %v168
  %v825 = vunpack.c.l.b16 %v169
  %v826 = vunpack.c.l.b16 %v170
  %v827 = vunpack.c.l.b16 %v171
  %v828 = vunpack.c.l.b16 %v172
  %v829 = vunpack.c.l.b16 %v173
  %v830 = vunpack.c.l.b16 %v174
  %v831 = vunpack.c.l.b16 %v175
  %v832 = vunpack.c.l.b16 %v176
  %v833 = vunpack.c.l.b16 %v177
  %v834 = vunpack.c.l.b16 %v178
  %v835 = vunpack.c.l.b16 %v179
  %v836 = vunpack.c.l.b16 %v180
  %v837 = vunpack.c.l.b16 %v181
  %v838 = vunpack.c.l.b16 %v182
  %v839 = vunpack.c.l.b16 %v183
  %v840 = vunpack.c.l.b16 %v184
  %v841 = vunpack.c.l.b16 %v185
  %v842 = vunpack.c.l.b16 %v186
  %v843 = vunpack.c.l.b16 %v187
  %v844 = vunpack.c.l.b16 %v188
  %v845 = vunpack.c.l.b16 %v189
  %v846 = vunpack.c.l.b16 %v190
  %v847 = vunpack.c.l.b16 %v191
  %v848 = vunpack.c.l.b16 %v192
  %v849 = vunpack.c.l.b16 %v193
  %v850 = vunpack.c.l.b16 %v194
  %v851 = vunpack.c.l.b16 %v195
  %v852 = vunpack.c.l.b16 %v196
  %v853 = vunpack.c.l.b16 %v197
  %v854 = vunpack.c.l.b16 %v198
  %v855 = vunpack.c.l.b16 %v199
  %v856 = vunpack.c.l.b16 %v200
  %v857 = vunpack.c.l.b16 %v201
  %v858 = vunpack.c.l.b16 %v202
  %v859 = vunpack.c.l.b16 %v203
  %v860 = vunpack.c.l.b16 %v204
  %v861 = vunpack.c.l.b16 %v205
  %v862 = vunpack.c.l.b16 %v206
  %v863 = vunpack.c.l.b16 %v207
  %v864 = vunpack.c.l.b16 %v208
  %v865 = vunpack.c.l.b16 %v209
  %v866 = vunpack.c.l.b16 %v210
  %v867 = vunpack.c.l.b16 %v211
  %v868 = vunpack.c.l.b16 %v212
  %v869 = vunpack.c.l.b16 %v213
  %v870 = vunpack.c.l.b16 %v214
  %v871 = vunpack.c.l.b16 %v215
  %v872 = vunpack.c.l.b16 %v216
  %v873 = vunpack.c.l.b16 %v217
  %v874 = vunpack.c.l.b16 %v218
  %v875 = vunpack.c.l.b16 %v219
  %v876 = vunpack.c.l.b16 %v220
  %v877 = vunpack.c.l.b16 %v221
  %v878 = vunpack.c.l.b16 %v222
  %v879 = vunpack.c.l.b16 %v223
  %v880 = vunpack.c.l.b16 %v224
  %v881 = vunpack.c.l.b16 %v225
  %v882 = vunpack.c.l.b16 %v226
  %v883 = vunpack.c.l.b16 %v227
  %v884 = vunpack.c.l.b16 %v228
  %v885 = vunpack.c.l.b16 %v229
  %v886 = vunpack.c.l.b16 %v230
  %v887 = vunpack.c.l.b16 %v231
  %v888 = vunpack.c.l.b16 %v232
  %v889 = vunpack.c.l.b16 %v233
  %v890 = vunpack.c.l.b16 %v234
  %v891 = vunpack.c.l.b16 %v235
  %v892 = vunpack.c.l.b16 %v236
  %v893 = vunpack.c.l.b16 %v237
  %v894 = vunpack.c.l.b16 %v238
  %v895 = vunpack.c.l.b16 %v239
  %v896 = vunpack.c.l.b16 %v240
  %v897 = vunpack.c.l.b16 %v241
  %v898 = vpack.c.b16 %v755, %v754
  %v899 = vpack.c.b16 %v757, %v756
  %v900 = vpack.c.b16 %v759, %v758
  %v901 = vpack.c.b16 %v761, %v760
  %v902 = vpack.c.b16 %v763, %v762
  %v903 = vpack.c.b16 %v765, %v764
  %v904 = vpack.c.b16 %v767, %v766
  %v905 = vpack.c.b16 %v769, %v768
  %v906 = vpack.c.b16 %v771, %v770
  %v907 = vpack.c.b16 %v773, %v772
  %v908 = vpack.c.b16 %v775, %v774
  %v909 = vpack.c.b16 %v777, %v776
  %v910 = vpack.c.b16 %v779, %v778
  %v911 = vpack.c.b16 %v781, %v780
  %v912 = vpack.c.b16 %v783, %v782
  %v913 = vpack.c.b16 %v785, %v784
  %v914 = vpack.c.b16 %v787, %v786
  %v915 = vpack.c.b16 %v789, %v788
  %v916 = vpack.c.b16 %v791, %v790
  %v917 = vpack.c.b16 %v793, %v792
  %v918 = vpack.c.b16 %v795, %v794
  %v919 = vpack.c.b16 %v797, %v796
  %v920 = vpack.c.b16 %v799, %v798
  %v921 = vpack.c.b16 %v801, %v800
  %v922 = vpack.c.b16 %v803, %v802
  %v923 = vpack.c.b16 %v805, %v804
  %v924 = vpack.c.b16 %v807, %v806
  %v925 = vpack.c.b16 %v809, %v808
  %v926 = vpack.c.b16 %v811, %v810
  %v927 = vpack.c.b16 %v813, %v812
  %v928 = vpack.c.b16 %v815, %v814
  %v929 = vpack.c.b16 %v817, %v816
  %v930 = vpack.c.b16 %v819, %v818
  %v931 = vpack.c.b16 %v821, %v820
  %v932 = vpack.c.b16 %v823, %v822
  %v933 = vpack.c.b16 %v825, %v824
  %v934 = vpack.c.b16 %v827, %v826
  %v935 = vpack.c.b16 %v829, %v828
  %v936 = vpack.c.b16 %v831, %v830
  %v937 = vpack.c.b16 %v833, %v832
  %v938 = vpack.c.b16 %v835, %v834
  %v939 = vpack.c.b16 %v837, %v836
  %v940 = vpack.c.b16 %v839, %v838
  %v941 = vpack.c.b16 %v841, %v840
  %v942 = vpack.c.b16 %v843, %v842
  %v943 = vpack.c.b16 %v845, %v844
  %v944 = vpack.c.b16 %v847, %v846
  %v945 = vpack.c.b16 %v849, %v848
  %v946 = vpack.c.b16 %v851, %v850
  %v947 = vpack.c.b16 %v853, %v852
  %v948 = vpack.c.b16 %v855, %v854
  %v949 = vpack.c.b16 %v857, %v856
  %v950 = vpack.c.b16 %v859, %v858
  %v951 = vpack.c.b16 %v861, %v860
  %v952 = vpack.c.b16 %v863, %v862
  %v953 = vpack.c.b16 %v865, %v864
  %v954 = vpack.c.b16 %v867, %v866
  %v955 = vpack.c.b16 %v869, %v868
  %v956 = vpack.c.b16 %v871, %v870
  %v957 = vpack.c.b16 %v873, %v872
  %v958 = vpack.c.b16 %v875, %v874
  %v959 = vpack.c.b16 %v877, %v876
  %v960 = vpack.c.b16 %v879, %v878
  %v961 = vpack.c.b16 %v881, %v880
  %v962 = vpack.c.b16 %v883, %v882
  %v963 = vpack.c.b16 %v885, %v884
  %v964 = vpack.c.b16 %v887, %v886
  %v965 = vpack.c.b16 %v889, %v888
  %v966 = vpack.c.b16 %v891, %v890
  %v967 = vpack.c.b16 %v893, %v892
  %v968 = vpack.c.b16 %v895, %v894
  %v969 = vpack.c.b16 %v897, %v896
  %1042 = vmatprep.subr.bf16.mxu0 0
  %1043 = vmatpush1.bf16.msra.mxu0 %v898
  %1044 = vmatprep.subr.bf16.mxu0 0
  %1045 = vmatpush1.bf16.msra.mxu0 %v899
  %1046 = vmatprep.subr.bf16.mxu0 0
  %1047 = vmatpush1.bf16.msra.mxu0 %v900
  %1048 = vmatprep.subr.bf16.mxu0 0
  %1049 = vmatpush1.bf16.msra.mxu0 %v901
  %1050 = vmatprep.subr.bf16.mxu0 0
  %1051 = vmatpush1.bf16.msra.mxu0 %v902
  %1052 = vmatprep.subr.bf16.mxu0 0
  %1053 = vmatpush1.bf16.msra.mxu0 %v903
  %1054 = vmatprep.subr.bf16.mxu0 0
  %1055 = vmatpush1.bf16.msra.mxu0 %v904
  %1056 = vmatprep.subr.bf16.mxu0 0
  %1057 = vmatpush1.bf16.msra.mxu0 %v905
  %1058 = vmatprep.subr.bf16.mxu0 0
  %1059 = vmatpush1.bf16.msra.mxu0 %v906
  %1060 = vmatprep.subr.bf16.mxu0 0
  %1061 = vmatpush1.bf16.msra.mxu0 %v907
  %1062 = vmatprep.subr.bf16.mxu0 0
  %1063 = vmatpush1.bf16.msra.mxu0 %v908
  %1064 = vmatprep.subr.bf16.mxu0 0
  %1065 = vmatpush1.bf16.msra.mxu0 %v909
  %1066 = vmatprep.subr.bf16.mxu0 0
  %1067 = vmatpush1.bf16.msra.mxu0 %v910
  %1068 = vmatprep.subr.bf16.mxu0 0
  %1069 = vmatpush1.bf16.msra.mxu0 %v911
  %1070 = vmatprep.subr.bf16.mxu0 0
  %1071 = vmatpush1.bf16.msra.mxu0 %v912
  %1072 = vmatprep.subr.bf16.mxu0 0
  %1073 = vmatpush1.bf16.msra.mxu0 %v913
  %1074 = vmatprep.mubr.bf16.mxu0 %v467
  %1075 = vmatmul.mubr.bf16.gmra.mrb[0].mxu0 %v466
  %v1076 = vpop.f32.mrb[0].mxu0
  %v1077 = vadd.f32 0.0, %v1076
  %v1078 = vpop.f32.mrb[0].mxu0
  %v1079 = vpop.f32.mrb[0].mxu0
  %v1080 = vadd.f32 0.0, %v1079
  %v1081 = vpop.f32.mrb[0].mxu0
  %1082 = vmatprep.mubr.bf16.mxu0 %v476
  %1083 = vmatmul.mubr.bf16.gmra.mrb[0].mxu0 %v475
  %v1084 = vpop.f32.mrb[0].mxu0
  %v1085 = vadd.f32 0.0, %v1084
  %v1086 = vpop.f32.mrb[0].mxu0
  %v1087 = vpop.f32.mrb[0].mxu0
  %v1088 = vadd.f32 0.0, %v1087
  %v1089 = vpop.f32.mrb[0].mxu0
  %1090 = vmatprep.mubr.bf16.mxu0 %v485
  %1091 = vmatmul.mubr.bf16.gmra.mrb[0].mxu0 %v484
  %v1092 = vpop.f32.mrb[0].mxu0
  %v1093 = vadd.f32 0.0, %v1092
  %v1094 = vpop.f32.mrb[0].mxu0
  %v1095 = vpop.f32.mrb[0].mxu0
  %v1096 = vadd.f32 0.0, %v1095
  %v1097 = vpop.f32.mrb[0].mxu0
  %1098 = vmatprep.mubr.bf16.mxu0 %v494
  %1099 = vmatmul.mubr.bf16.gmra.mrb[0].mxu0 %v493
  %v1100 = vpop.f32.mrb[0].mxu0
  %v1101 = vadd.f32 0.0, %v1100
  %v1102 = vpop.f32.mrb[0].mxu0
  %v1103 = vpop.f32.mrb[0].mxu0
  %v1104 = vadd.f32 0.0, %v1103
  %v1105 = vpop.f32.mrb[0].mxu0
  %1106 = vmatprep.mubr.bf16.mxu0 %v503
  %1107 = vmatmul.mubr.bf16.gmra.mrb[0].mxu0 %v502
  %v1108 = vpop.f32.mrb[0].mxu0
  %v1109 = vadd.f32 0.0, %v1108
  %v1110 = vpop.f32.mrb[0].mxu0
  %v1111 = vpop.f32.mrb[0].mxu0
  %v1112 = vadd.f32 0.0, %v1111
  %v1113 = vpop.f32.mrb[0].mxu0
  %1114 = vmatprep.mubr.bf16.mxu0 %v512
  %1115 = vmatmul.mubr.bf16.gmra.mrb[0].mxu0 %v511
  %v1116 = vpop.f32.mrb[0].mxu0
  %v1117 = vadd.f32 0.0, %v1116
  %v1118 = vpop.f32.mrb[0].mxu0
  %v1119 = vpop.f32.mrb[0].mxu0
  %v1120 = vadd.f32 0.0, %v1119
  %v1121 = vpop.f32.mrb[0].mxu0
  %1122 = vmatprep.mubr.bf16.mxu0 %v521
  %1123 = vmatmul.mubr.bf16.gmra.mrb[0].mxu0 %v520
  %v1124 = vpop.f32.mrb[0].mxu0
  %v1125 = vadd.f32 0.0, %v1124
  %v1126 = vpop.f32.mrb[0].mxu0
  %v1127 = vpop.f32.mrb[0].mxu0
  %v1128 = vadd.f32 0.0, %v1127
  %v1129 = vpop.f32.mrb[0].mxu0
  %1130 = vmatprep.mubr.bf16.mxu0 %v530
  %1131 = vmatmul.mubr.bf16.gmra.mrb[0].mxu0 %v529
  %v1132 = vpop.f32.mrb[0].mxu0
  %v1133 = vadd.f32 0.0, %v1132
  %v1134 = vpop.f32.mrb[0].mxu0
  %v1135 = vpop.f32.mrb[0].mxu0
  %v1136 = vadd.f32 0.0, %v1135
  %v1137 = vpop.f32.mrb[0].mxu0
  %1138 = vdwg.mxu0
  %1139 = vmatprep.subr.bf16.mxu0 0
  %1140 = vmatpush1.bf16.msra.mxu0 %v914
  %1141 = vmatprep.subr.bf16.mxu0 0
  %1142 = vmatpush1.bf16.msra.mxu0 %v915
  %1143 = vmatprep.subr.bf16.mxu0 0
  %1144 = vmatpush1.bf16.msra.mxu0 %v916
  %1145 = vmatprep.subr.bf16.mxu0 0
  %1146 = vmatpush1.bf16.msra.mxu0 %v917
  %1147 = vmatprep.subr.bf16.mxu0 0
  %1148 = vmatpush1.bf16.msra.mxu0 %v918
  %1149 = vmatprep.subr.bf16.mxu0 0
  %1150 = vmatpush1.bf16.msra.mxu0 %v919
  %1151 = vmatprep.subr.bf16.mxu0 0
  %1152 = vmatpush1.bf16.msra.mxu0 %v920
  %1153 = vmatprep.subr.bf16.mxu0 0
  %1154 = vmatpush1.bf16.msra.mxu0 %v921
  %1155 = vmatprep.subr.bf16.mxu0 0
  %1156 = vmatpush1.bf16.msra.mxu0 %v922
  %1157 = vmatprep.subr.bf16.mxu0 0
  %1158 = vmatpush1.bf16.msra.mxu0 %v923
  %1159 = vmatprep.subr.bf16.mxu0 0
  %1160 = vmatpush1.bf16.msra.mxu0 %v924
  %1161 = vmatprep.subr.bf16.mxu0 0
  %1162 = vmatpush1.bf16.msra.mxu0 %v925
  %1163 = vmatprep.subr.bf16.mxu0 0
  %1164 = vmatpush1.bf16.msra.mxu0 %v926
  %1165 = vmatprep.subr.bf16.mxu0 0
  %1166 = vmatpush1.bf16.msra.mxu0 %v927
  %1167 = vmatprep.subr.bf16.mxu0 0
  %1168 = vmatpush1.bf16.msra.mxu0 %v928
  %1169 = vmatprep.subr.bf16.mxu0 0
  %1170 = vmatpush1.bf16.msra.mxu0 %v929
  %1171 = vmatprep.mubr.bf16.mxu0 %v469
  %1172 = vmatmul.mubr.bf16.gmra.mrb[0].mxu0 %v468
  %v1173 = vpop.f32.mrb[0].mxu0
  %v1174 = vadd.f32 %v1077, %v1173
  %v1175 = vpop.f32.mrb[0].mxu0
  %v1176 = vpop.f32.mrb[0].mxu0
  %v1177 = vadd.f32 %v1080, %v1176
  %v1178 = vpop.f32.mrb[0].mxu0
  %1179 = vmatprep.mubr.bf16.mxu0 %v478
  %1180 = vmatmul.mubr.bf16.gmra.mrb[0].mxu0 %v477
  %v1181 = vpop.f32.mrb[0].mxu0
  %v1182 = vadd.f32 %v1085, %v1181
  %v1183 = vpop.f32.mrb[0].mxu0
  %v1184 = vpop.f32.mrb[0].mxu0
  %v1185 = vadd.f32 %v1088, %v1184
  %v1186 = vpop.f32.mrb[0].mxu0
  %1187 = vmatprep.mubr.bf16.mxu0 %v487
  %1188 = vmatmul.mubr.bf16.gmra.mrb[0].mxu0 %v486
  %v1189 = vpop.f32.mrb[0].mxu0
  %v1190 = vadd.f32 %v1093, %v1189
  %v1191 = vpop.f32.mrb[0].mxu0
  %v1192 = vpop.f32.mrb[0].mxu0
  %v1193 = vadd.f32 %v1096, %v1192
  %v1194 = vpop.f32.mrb[0].mxu0
  %1195 = vmatprep.mubr.bf16.mxu0 %v496
  %1196 = vmatmul.mubr.bf16.gmra.mrb[0].mxu0 %v495
  %v1197 = vpop.f32.mrb[0].mxu0
  %v1198 = vadd.f32 %v1101, %v1197
  %v1199 = vpop.f32.mrb[0].mxu0
  %v1200 = vpop.f32.mrb[0].mxu0
  %v1201 = vadd.f32 %v1104, %v1200
  %v1202 = vpop.f32.mrb[0].mxu0
  %1203 = vmatprep.mubr.bf16.mxu0 %v505
  %1204 = vmatmul.mubr.bf16.gmra.mrb[0].mxu0 %v504
  %v1205 = vpop.f32.mrb[0].mxu0
  %v1206 = vadd.f32 %v1109, %v1205
  %v1207 = vpop.f32.mrb[0].mxu0
  %v1208 = vpop.f32.mrb[0].mxu0
  %v1209 = vadd.f32 %v1112, %v1208
  %v1210 = vpop.f32.mrb[0].mxu0
  %1211 = vmatprep.mubr.bf16.mxu0 %v514
  %1212 = vmatmul.mubr.bf16.gmra.mrb[0].mxu0 %v513
  %v1213 = vpop.f32.mrb[0].mxu0
  %v1214 = vadd.f32 %v1117, %v1213
  %v1215 = vpop.f32.mrb[0].mxu0
  %v1216 = vpop.f32.mrb[0].mxu0
  %v1217 = vadd.f32 %v1120, %v1216
  %v1218 = vpop.f32.mrb[0].mxu0
  %1219 = vmatprep.mubr.bf16.mxu0 %v523
  %1220 = vmatmul.mubr.bf16.gmra.mrb[0].mxu0 %v522
  %v1221 = vpop.f32.mrb[0].mxu0
  %v1222 = vadd.f32 %v1125, %v1221
  %v1223 = vpop.f32.mrb[0].mxu0
  %v1224 = vpop.f32.mrb[0].mxu0
  %v1225 = vadd.f32 %v1128, %v1224
  %v1226 = vpop.f32.mrb[0].mxu0
  %1227 = vmatprep.mubr.bf16.mxu0 %v532
  %1228 = vmatmul.mubr.bf16.gmra.mrb[0].mxu0 %v531
  %v1229 = vpop.f32.mrb[0].mxu0
  %v1230 = vadd.f32 %v1133, %v1229
  %v1231 = vpop.f32.mrb[0].mxu0
  %v1232 = vpop.f32.mrb[0].mxu0
  %v1233 = vadd.f32 %v1136, %v1232
  %v1234 = vpop.f32.mrb[0].mxu0
  %1235 = vdwg.mxu0
  %1236 = vmatprep.subr.bf16.mxu0 0
  %1237 = vmatpush1.bf16.msra.mxu0 %v930
  %1238 = vmatprep.subr.bf16.mxu0 0
  %1239 = vmatpush1.bf16.msra.mxu0 %v931
  %1240 = vmatprep.subr.bf16.mxu0 0
  %1241 = vmatpush1.bf16.msra.mxu0 %v932
  %1242 = vmatprep.subr.bf16.mxu0 0
  %1243 = vmatpush1.bf16.msra.mxu0 %v933
  %1244 = vmatprep.subr.bf16.mxu0 0
  %1245 = vmatpush1.bf16.msra.mxu0 %v934
  %1246 = vmatprep.subr.bf16.mxu0 0
  %1247 = vmatpush1.bf16.msra.mxu0 %v935
  %1248 = vmatprep.subr.bf16.mxu0 0
  %1249 = vmatpush1.bf16.msra.mxu0 %v936
  %1250 = vmatprep.subr.bf16.mxu0 0
  %1251 = vmatpush1.bf16.msra.mxu0 %v937
  %1252 = vmatprep.subr.bf16.mxu0 0
  %1253 = vmatpush1.bf16.msra.mxu0 %v938
  %1254 = vmatprep.subr.bf16.mxu0 0
  %1255 = vmatpush1.bf16.msra.mxu0 %v939
  %1256 = vmatprep.subr.bf16.mxu0 0
  %1257 = vmatpush1.bf16.msra.mxu0 %v940
  %1258 = vmatprep.subr.bf16.mxu0 0
  %1259 = vmatpush1.bf16.msra.mxu0 %v941
  %1260 = vmatprep.subr.bf16.mxu0 0
  %1261 = vmatpush1.bf16.msra.mxu0 %v942
  %1262 = vmatprep.subr.bf16.mxu0 0
  %1263 = vmatpush1.bf16.msra.mxu0 %v943
  %1264 = vmatprep.subr.bf16.mxu0 0
  %1265 = vmatpush1.bf16.msra.mxu0 %v944
  %1266 = vmatprep.subr.bf16.mxu0 0
  %1267 = vmatpush1.bf16.msra.mxu0 %v945
  %1268 = vmatprep.mubr.bf16.mxu0 %v471
  %1269 = vmatmul.mubr.bf16.gmra.mrb[0].mxu0 %v470
  %v1270 = vpop.f32.mrb[0].mxu0
  %v1271 = vadd.f32 %v1174, %v1270
  %v1272 = vpop.f32.mrb[0].mxu0
  %v1273 = vpop.f32.mrb[0].mxu0
  %v1274 = vadd.f32 %v1177, %v1273
  %v1275 = vpop.f32.mrb[0].mxu0
  %1276 = vmatprep.mubr.bf16.mxu0 %v480
  %1277 = vmatmul.mubr.bf16.gmra.mrb[0].mxu0 %v479
  %v1278 = vpop.f32.mrb[0].mxu0
  %v1279 = vadd.f32 %v1182, %v1278
  %v1280 = vpop.f32.mrb[0].mxu0
  %v1281 = vpop.f32.mrb[0].mxu0
  %v1282 = vadd.f32 %v1185, %v1281
  %v1283 = vpop.f32.mrb[0].mxu0
  %1284 = vmatprep.mubr.bf16.mxu0 %v489
  %1285 = vmatmul.mubr.bf16.gmra.mrb[0].mxu0 %v488
  %v1286 = vpop.f32.mrb[0].mxu0
  %v1287 = vadd.f32 %v1190, %v1286
  %v1288 = vpop.f32.mrb[0].mxu0
  %v1289 = vpop.f32.mrb[0].mxu0
  %v1290 = vadd.f32 %v1193, %v1289
  %v1291 = vpop.f32.mrb[0].mxu0
  %1292 = vmatprep.mubr.bf16.mxu0 %v498
  %1293 = vmatmul.mubr.bf16.gmra.mrb[0].mxu0 %v497
  %v1294 = vpop.f32.mrb[0].mxu0
  %v1295 = vadd.f32 %v1198, %v1294
  %v1296 = vpop.f32.mrb[0].mxu0
  %v1297 = vpop.f32.mrb[0].mxu0
  %v1298 = vadd.f32 %v1201, %v1297
  %v1299 = vpop.f32.mrb[0].mxu0
  %1300 = vmatprep.mubr.bf16.mxu0 %v507
  %1301 = vmatmul.mubr.bf16.gmra.mrb[0].mxu0 %v506
  %v1302 = vpop.f32.mrb[0].mxu0
  %v1303 = vadd.f32 %v1206, %v1302
  %v1304 = vpop.f32.mrb[0].mxu0
  %v1305 = vpop.f32.mrb[0].mxu0
  %v1306 = vadd.f32 %v1209, %v1305
  %v1307 = vpop.f32.mrb[0].mxu0
  %1308 = vmatprep.mubr.bf16.mxu0 %v516
  %1309 = vmatmul.mubr.bf16.gmra.mrb[0].mxu0 %v515
  %v1310 = vpop.f32.mrb[0].mxu0
  %v1311 = vadd.f32 %v1214, %v1310
  %v1312 = vpop.f32.mrb[0].mxu0
  %v1313 = vpop.f32.mrb[0].mxu0
  %v1314 = vadd.f32 %v1217, %v1313
  %v1315 = vpop.f32.mrb[0].mxu0
  %1316 = vmatprep.mubr.bf16.mxu0 %v525
  %1317 = vmatmul.mubr.bf16.gmra.mrb[0].mxu0 %v524
  %v1318 = vpop.f32.mrb[0].mxu0
  %v1319 = vadd.f32 %v1222, %v1318
  %v1320 = vpop.f32.mrb[0].mxu0
  %v1321 = vpop.f32.mrb[0].mxu0
  %v1322 = vadd.f32 %v1225, %v1321
  %v1323 = vpop.f32.mrb[0].mxu0
  %1324 = vmatprep.mubr.bf16.mxu0 %v534
  %1325 = vmatmul.mubr.bf16.gmra.mrb[0].mxu0 %v533
  %v1326 = vpop.f32.mrb[0].mxu0
  %v1327 = vadd.f32 %v1230, %v1326
  %v1328 = vpop.f32.mrb[0].mxu0
  %v1329 = vpop.f32.mrb[0].mxu0
  %v1330 = vadd.f32 %v1233, %v1329
  %v1331 = vpop.f32.mrb[0].mxu0
  %1332 = vdwg.mxu0
  %1333 = vmatprep.subr.bf16.mxu0 0
  %1334 = vmatpush1.bf16.msra.mxu0 %v946
  %1335 = vmatprep.subr.bf16.mxu0 0
  %1336 = vmatpush1.bf16.msra.mxu0 %v947
  %1337 = vmatprep.subr.bf16.mxu0 0
  %1338 = vmatpush1.bf16.msra.mxu0 %v948
  %1339 = vmatprep.subr.bf16.mxu0 0
  %1340 = vmatpush1.bf16.msra.mxu0 %v949
  %1341 = vmatprep.subr.bf16.mxu0 0
  %1342 = vmatpush1.bf16.msra.mxu0 %v950
  %1343 = vmatprep.subr.bf16.mxu0 0
  %1344 = vmatpush1.bf16.msra.mxu0 %v951
  %1345 = vmatprep.subr.bf16.mxu0 0
  %1346 = vmatpush1.bf16.msra.mxu0 %v952
  %1347 = vmatprep.subr.bf16.mxu0 0
  %1348 = vmatpush1.bf16.msra.mxu0 %v953
  %1349 = vmatprep.subr.bf16.mxu0 0
  %1350 = vmatpush1.bf16.msra.mxu0 %v954
  %1351 = vmatprep.subr.bf16.mxu0 0
  %1352 = vmatpush1.bf16.msra.mxu0 %v955
  %1353 = vmatprep.subr.bf16.mxu0 0
  %1354 = vmatpush1.bf16.msra.mxu0 %v956
  %1355 = vmatprep.subr.bf16.mxu0 0
  %1356 = vmatpush1.bf16.msra.mxu0 %v957
  %1357 = vmatprep.subr.bf16.mxu0 0
  %1358 = vmatpush1.bf16.msra.mxu0 %v958
  %1359 = vmatprep.subr.bf16.mxu0 0
  %1360 = vmatpush1.bf16.msra.mxu0 %v959
  %1361 = vmatprep.subr.bf16.mxu0 0
  %1362 = vmatpush1.bf16.msra.mxu0 %v960
  %1363 = vmatprep.subr.bf16.mxu0 0
  %1364 = vmatpush1.bf16.msra.mxu0 %v961
  %1365 = vmatprep.mubr.bf16.mxu0 %v473
  %1366 = vmatmul.mubr.bf16.gmra.mrb[0].mxu0 %v472
  %v1367 = vpop.f32.mrb[0].mxu0
  %v1368 = vadd.f32 %v1271, %v1367
  %v1369 = vpop.f32.mrb[0].mxu0
  %v1370 = vpop.f32.mrb[0].mxu0
  %v1371 = vadd.f32 %v1274, %v1370
  %v1372 = vpop.f32.mrb[0].mxu0
  %1373 = vmatprep.mubr.bf16.mxu0 %v482
  %1374 = vmatmul.mubr.bf16.gmra.mrb[0].mxu0 %v481
  %v1375 = vpop.f32.mrb[0].mxu0
  %v1376 = vadd.f32 %v1279, %v1375
  %v1377 = vpop.f32.mrb[0].mxu0
  %v1378 = vpop.f32.mrb[0].mxu0
  %v1379 = vadd.f32 %v1282, %v1378
  %v1380 = vpop.f32.mrb[0].mxu0
  %1381 = vmatprep.mubr.bf16.mxu0 %v491
  %1382 = vmatmul.mubr.bf16.gmra.mrb[0].mxu0 %v490
  %v1383 = vpop.f32.mrb[0].mxu0
  %v1384 = vadd.f32 %v1287, %v1383
  %v1385 = vpop.f32.mrb[0].mxu0
  %v1386 = vpop.f32.mrb[0].mxu0
  %v1387 = vadd.f32 %v1290, %v1386
  %v1388 = vpop.f32.mrb[0].mxu0
  %1389 = vmatprep.mubr.bf16.mxu0 %v500
  %1390 = vmatmul.mubr.bf16.gmra.mrb[0].mxu0 %v499
  %v1391 = vpop.f32.mrb[0].mxu0
  %v1392 = vadd.f32 %v1295, %v1391
  %v1393 = vpop.f32.mrb[0].mxu0
  %v1394 = vpop.f32.mrb[0].mxu0
  %v1395 = vadd.f32 %v1298, %v1394
  %v1396 = vpop.f32.mrb[0].mxu0
  %1397 = vmatprep.mubr.bf16.mxu0 %v509
  %1398 = vmatmul.mubr.bf16.gmra.mrb[0].mxu0 %v508
  %v1399 = vpop.f32.mrb[0].mxu0
  %v1400 = vadd.f32 %v1303, %v1399
  %v1401 = vpop.f32.mrb[0].mxu0
  %v1402 = vpop.f32.mrb[0].mxu0
  %v1403 = vadd.f32 %v1306, %v1402
  %v1404 = vpop.f32.mrb[0].mxu0
  %1405 = vmatprep.mubr.bf16.mxu0 %v518
  %1406 = vmatmul.mubr.bf16.gmra.mrb[0].mxu0 %v517
  %v1407 = vpop.f32.mrb[0].mxu0
  %v1408 = vadd.f32 %v1311, %v1407
  %v1409 = vpop.f32.mrb[0].mxu0
  %v1410 = vpop.f32.mrb[0].mxu0
  %v1411 = vadd.f32 %v1314, %v1410
  %v1412 = vpop.f32.mrb[0].mxu0
  %1413 = vmatprep.mubr.bf16.mxu0 %v527
  %1414 = vmatmul.mubr.bf16.gmra.mrb[0].mxu0 %v526
  %v1415 = vpop.f32.mrb[0].mxu0
  %v1416 = vadd.f32 %v1319, %v1415
  %v1417 = vpop.f32.mrb[0].mxu0
  %v1418 = vpop.f32.mrb[0].mxu0
  %v1419 = vadd.f32 %v1322, %v1418
  %v1420 = vpop.f32.mrb[0].mxu0
  %1421 = vmatprep.mubr.bf16.mxu0 %v536
  %1422 = vmatmul.mubr.bf16.gmra.mrb[0].mxu0 %v535
  %v1423 = vpop.f32.mrb[0].mxu0
  %v1424 = vadd.f32 %v1327, %v1423
  %v1425 = vpop.f32.mrb[0].mxu0
  %v1426 = vpop.f32.mrb[0].mxu0
  %v1427 = vadd.f32 %v1330, %v1426
  %v1428 = vpop.f32.mrb[0].mxu0
  %1429 = vdwg.mxu0
  %1430 = vmatprep.subr.bf16.mxu0 0
  %1431 = vmatpush1.bf16.msra.mxu0 %v962
  %1432 = vmatprep.subr.bf16.mxu0 0
  %1433 = vmatpush1.bf16.msra.mxu0 %v963
  %1434 = vmatprep.subr.bf16.mxu0 0
  %1435 = vmatpush1.bf16.msra.mxu0 %v964
  %1436 = vmatprep.subr.bf16.mxu0 0
  %1437 = vmatpush1.bf16.msra.mxu0 %v965
  %1438 = vmatprep.subr.bf16.mxu0 0
  %1439 = vmatpush1.bf16.msra.mxu0 %v966
  %1440 = vmatprep.subr.bf16.mxu0 0
  %1441 = vmatpush1.bf16.msra.mxu0 %v967
  %1442 = vmatprep.subr.bf16.mxu0 0
  %1443 = vmatpush1.bf16.msra.mxu0 %v968
  %1444 = vmatprep.subr.bf16.mxu0 0
  %1445 = vmatpush1.bf16.msra.mxu0 %v969
  %1446 = vmatprep.subr.bf16.mxu0 0
  %1447 = vmatpush1.bf16.msra.mxu0 0
  %1448 = vmatprep.subr.bf16.mxu0 0
  %1449 = vmatpush1.bf16.msra.mxu0 0
  %1450 = vmatprep.subr.bf16.mxu0 0
  %1451 = vmatpush1.bf16.msra.mxu0 0
  %1452 = vmatprep.subr.bf16.mxu0 0
  %1453 = vmatpush1.bf16.msra.mxu0 0
  %1454 = vmatprep.subr.bf16.mxu0 0
  %1455 = vmatpush1.bf16.msra.mxu0 0
  %1456 = vmatprep.subr.bf16.mxu0 0
  %1457 = vmatpush1.bf16.msra.mxu0 0
  %1458 = vmatprep.subr.bf16.mxu0 0
  %1459 = vmatpush1.bf16.msra.mxu0 0
  %1460 = vmatprep.subr.bf16.mxu0 0
  %1461 = vmatpush1.bf16.msra.mxu0 0
  %1462 = vmatprep.mubr.bf16.mxu0 0
  %1463 = vmatmul.mubr.bf16.gmra.mrb[0].mxu0 %v474
  %v1464 = vpop.f32.mrb[0].mxu0
  %v1465 = vadd.f32 %v1368, %v1464
  %v1466 = vpop.f32.mrb[0].mxu0
  %v1467 = vpop.f32.mrb[0].mxu0
  %v1468 = vadd.f32 %v1371, %v1467
  %v1469 = vpop.f32.mrb[0].mxu0
  %1470 = vmatprep.mubr.bf16.mxu0 0
  %1471 = vmatmul.mubr.bf16.gmra.mrb[0].mxu0 %v483
  %v1472 = vpop.f32.mrb[0].mxu0
  %v1473 = vadd.f32 %v1376, %v1472
  %v1474 = vpop.f32.mrb[0].mxu0
  %v1475 = vpop.f32.mrb[0].mxu0
  %v1476 = vadd.f32 %v1379, %v1475
  %v1477 = vpop.f32.mrb[0].mxu0
  %1478 = vmatprep.mubr.bf16.mxu0 0
  %1479 = vmatmul.mubr.bf16.gmra.mrb[0].mxu0 %v492
  %v1480 = vpop.f32.mrb[0].mxu0
  %v1481 = vadd.f32 %v1384, %v1480
  %v1482 = vpop.f32.mrb[0].mxu0
  %v1483 = vpop.f32.mrb[0].mxu0
  %v1484 = vadd.f32 %v1387, %v1483
  %v1485 = vpop.f32.mrb[0].mxu0
  %1486 = vmatprep.mubr.bf16.mxu0 0
  %1487 = vmatmul.mubr.bf16.gmra.mrb[0].mxu0 %v501
  %v1488 = vpop.f32.mrb[0].mxu0
  %v1489 = vadd.f32 %v1392, %v1488
  %v1490 = vpop.f32.mrb[0].mxu0
  %v1491 = vpop.f32.mrb[0].mxu0
  %v1492 = vadd.f32 %v1395, %v1491
  %v1493 = vpop.f32.mrb[0].mxu0
  %1494 = vmatprep.mubr.bf16.mxu0 0
  %1495 = vmatmul.mubr.bf16.gmra.mrb[0].mxu0 %v510
  %v1496 = vpop.f32.mrb[0].mxu0
  %v1497 = vadd.f32 %v1400, %v1496
  %v1498 = vpop.f32.mrb[0].mxu0
  %v1499 = vpop.f32.mrb[0].mxu0
  %v1500 = vadd.f32 %v1403, %v1499
  %v1501 = vpop.f32.mrb[0].mxu0
  %1502 = vmatprep.mubr.bf16.mxu0 0
  %1503 = vmatmul.mubr.bf16.gmra.mrb[0].mxu0 %v519
  %v1504 = vpop.f32.mrb[0].mxu0
  %v1505 = vadd.f32 %v1408, %v1504
  %v1506 = vpop.f32.mrb[0].mxu0
  %v1507 = vpop.f32.mrb[0].mxu0
  %v1508 = vadd.f32 %v1411, %v1507
  %v1509 = vpop.f32.mrb[0].mxu0
  %1510 = vmatprep.mubr.bf16.mxu0 0
  %1511 = vmatmul.mubr.bf16.gmra.mrb[0].mxu0 %v528
  %v1512 = vpop.f32.mrb[0].mxu0
  %v1513 = vadd.f32 %v1416, %v1512
  %v1514 = vpop.f32.mrb[0].mxu0
  %v1515 = vpop.f32.mrb[0].mxu0
  %v1516 = vadd.f32 %v1419, %v1515
  %v1517 = vpop.f32.mrb[0].mxu0
  %1518 = vmatprep.mubr.bf16.mxu0 0
  %1519 = vmatmul.mubr.bf16.gmra.mrb[0].mxu0 %v537
  %v1520 = vpop.f32.mrb[0].mxu0
  %v1521 = vadd.f32 %v1424, %v1520
  %v1522 = vpop.f32.mrb[0].mxu0
  %v1523 = vpop.f32.mrb[0].mxu0
  %v1524 = vadd.f32 %v1427, %v1523
  %v1525 = vpop.f32.mrb[0].mxu0
  %1526 = vdwg.mxu0
  %v1527 = vld [vmem:[%s2] sm:$0x1]
  %v1529 = vlaneseq
  %v1530 = vshrl.u32 %v1529, 7
  %v1531 = vsub.s32 0, %v1530
  %v1532 = vrot.slane %v1527, %v1531
  %v1534 = vmul.f32 %v1465, %v1532
  %v1535 = vmul.f32 %v1468, %v1532
  %v1536 = vmul.f32 %v1473, %v1532
  %v1537 = vmul.f32 %v1476, %v1532
  %v1538 = vmul.f32 %v1481, %v1532
  %v1539 = vmul.f32 %v1484, %v1532
  %v1540 = vmul.f32 %v1489, %v1532
  %v1541 = vmul.f32 %v1492, %v1532
  %v1542 = vmul.f32 %v1497, %v1532
  %v1543 = vmul.f32 %v1500, %v1532
  %v1544 = vmul.f32 %v1505, %v1532
  %v1545 = vmul.f32 %v1508, %v1532
  %v1546 = vmul.f32 %v1513, %v1532
  %v1547 = vmul.f32 %v1516, %v1532
  %v1548 = vmul.f32 %v1521, %v1532
  %v1549 = vmul.f32 %v1524, %v1532
  %v1550 = vld [vmem:[%s3] sm:$0x1]
  %v1552 = vlaneseq
  %v1553 = vshrl.u32 %v1552, 7
  %v1554 = vsub.s32 0, %v1553
  %v1555 = vrot.slane %v1550, %v1554
  %v1557 = vadd.f32 %v1534, %v1555
  %v1558 = vadd.f32 %v1535, %v1555
  %v1559 = vadd.f32 %v1536, %v1555
  %v1560 = vadd.f32 %v1537, %v1555
  %v1561 = vadd.f32 %v1538, %v1555
  %v1562 = vadd.f32 %v1539, %v1555
  %v1563 = vadd.f32 %v1540, %v1555
  %v1564 = vadd.f32 %v1541, %v1555
  %v1565 = vadd.f32 %v1542, %v1555
  %v1566 = vadd.f32 %v1543, %v1555
  %v1567 = vadd.f32 %v1544, %v1555
  %v1568 = vadd.f32 %v1545, %v1555
  %v1569 = vadd.f32 %v1546, %v1555
  %v1570 = vadd.f32 %v1547, %v1555
  %v1571 = vadd.f32 %v1548, %v1555
  %v1572 = vadd.f32 %v1549, %v1555
  %v1573 = vmax.f32 %v1557, 0.0
  %v1574 = vmax.f32 %v1558, 0.0
  %v1575 = vmax.f32 %v1559, 0.0
  %v1576 = vmax.f32 %v1560, 0.0
  %v1577 = vmax.f32 %v1561, 0.0
  %v1578 = vmax.f32 %v1562, 0.0
  %v1579 = vmax.f32 %v1563, 0.0
  %v1580 = vmax.f32 %v1564, 0.0
  %v1581 = vmax.f32 %v1565, 0.0
  %v1582 = vmax.f32 %v1566, 0.0
  %v1583 = vmax.f32 %v1567, 0.0
  %v1584 = vmax.f32 %v1568, 0.0
  %v1585 = vmax.f32 %v1569, 0.0
  %v1586 = vmax.f32 %v1570, 0.0
  %v1587 = vmax.f32 %v1571, 0.0
  %v1588 = vmax.f32 %v1572, 0.0
  %v1589 = vpack.c.bf16 %v1574, %v1573
  %v1590 = vpack.c.bf16 %v1576, %v1575
  %v1591 = vpack.c.bf16 %v1578, %v1577
  %v1592 = vpack.c.bf16 %v1580, %v1579
  %v1593 = vpack.c.bf16 %v1582, %v1581
  %v1594 = vpack.c.bf16 %v1584, %v1583
  %v1595 = vpack.c.bf16 %v1586, %v1585
  %v1596 = vpack.c.bf16 %v1588, %v1587
  %v1605 = vunpack.c.l.b16 %v1589
  %v1606 = vunpack.c.h.b16 %v1589
  %v1607 = vunpack.c.l.b16 %v1590
  %v1608 = vunpack.c.h.b16 %v1590
  %v1609 = vunpack.c.l.b16 %v1591
  %v1610 = vunpack.c.h.b16 %v1591
  %v1611 = vunpack.c.l.b16 %v1592
  %v1612 = vunpack.c.h.b16 %v1592
  %v1613 = vunpack.c.l.b16 %v1593
  %v1614 = vunpack.c.h.b16 %v1593
  %v1615 = vunpack.c.l.b16 %v1594
  %v1616 = vunpack.c.h.b16 %v1594
  %v1617 = vunpack.c.l.b16 %v1595
  %v1618 = vunpack.c.h.b16 %v1595
  %v1619 = vunpack.c.l.b16 %v1596
  %v1620 = vunpack.c.h.b16 %v1596
  %v1621 = vpack.c.b16 %v1605, %v1605
  %v1622 = vpack.c.b16 %v1606, %v1606
  %v1623 = vpack.c.b16 %v1607, %v1607
  %v1624 = vpack.c.b16 %v1608, %v1608
  %v1625 = vpack.c.b16 %v1609, %v1609
  %v1626 = vpack.c.b16 %v1610, %v1610
  %v1627 = vpack.c.b16 %v1611, %v1611
  %v1628 = vpack.c.b16 %v1612, %v1612
  %v1629 = vpack.c.b16 %v1613, %v1613
  %v1630 = vpack.c.b16 %v1614, %v1614
  %v1631 = vpack.c.b16 %v1615, %v1615
  %v1632 = vpack.c.b16 %v1616, %v1616
  %v1633 = vpack.c.b16 %v1617, %v1617
  %v1634 = vpack.c.b16 %v1618, %v1618
  %v1635 = vpack.c.b16 %v1619, %v1619
  %v1636 = vpack.c.b16 %v1620, %v1620
  %1653 = vst [vmem:[%s4] sm:$0xf] %v1621
  %1654 = vst [vmem:[%s4 + $0x4] sm:$0xf] %v1622
  %1655 = vst [vmem:[%s4 + $0x8] sm:$0xf] %v1623
  %1656 = vst [vmem:[%s4 + $0xc] sm:$0xf] %v1624
  %1657 = vst [vmem:[%s4 + $0x10] sm:$0xf] %v1625
  %1658 = vst [vmem:[%s4 + $0x14] sm:$0xf] %v1626
  %1659 = vst [vmem:[%s4 + $0x18] sm:$0xf] %v1627
  %1660 = vst [vmem:[%s4 + $0x1c] sm:$0xf] %v1628
  %1661 = vst [vmem:[%s4 + $0x20] sm:$0xf] %v1629
  %1662 = vst [vmem:[%s4 + $0x24] sm:$0xf] %v1630
  %1663 = vst [vmem:[%s4 + $0x28] sm:$0xf] %v1631
  %1664 = vst [vmem:[%s4 + $0x2c] sm:$0xf] %v1632
  %1665 = vst [vmem:[%s4 + $0x30] sm:$0xf] %v1633
  %1666 = vst [vmem:[%s4 + $0x34] sm:$0xf] %v1634
  %1667 = vst [vmem:[%s4 + $0x38] sm:$0xf] %v1635
  %1668 = vst [vmem:[%s4 + $0x3c] sm:$0xf] %v1636
  // Predicated region
  $region18: #{psa_forward.16} parent=0 // pred_check
    _
  $region19: #{psa_forward.16} parent=0 // pred_check_branch
    %1670 = sbr.rel (0) target = $region21
  $region20: #{psa_forward.16} parent=0 // pred_region
    _
  $region21: #{psa_forward.16} parent=0 // pred_fallthru
    _
  // Predicated region
  $region22: #{psa_forward.16} parent=0 // pred_check
    _
  $region23: #{psa_forward.16} parent=0 // pred_check_branch
    %1672 = sbr.rel (0) target = $region25
  $region24: #{psa_forward.16} parent=0 // pred_region
    _
  $region25: #{psa_forward.16} parent=0 // pred_fallthru
    _

// kernel: psa_forward.20
$region0: #{psa_forward.20}
  #allocation0 [shape = 'u32[]', space=smem, size = 0x4, offset = 0x4, fixed_abs, tag = 'smem constant byte address 0x4 - core index']
  #allocation1 [shape = 'u32[144,128]{1,0:T(1,128)}', space=vmem, size = 0x12000, scoped, tag = 'internal scratch']
  %s0 = inlined_call_operand.vmem [shape: bf16[32,1152], index: 0, kind: input, shape index: {}]
  %s1 = inlined_call_operand.vmem [shape: bf16[1152,128], index: 1, kind: input, shape index: {}]
  %s2 = inlined_call_operand.vmem [shape: f32[1,128], index: 2, kind: input, shape index: {}]
  %s3 = inlined_call_operand.vmem [shape: f32[1,128], index: 3, kind: input, shape index: {}]
  %s4 = inlined_call_operand.vmem [shape: bf16[32,128], index: 4, kind: output, shape index: {}]
  %s5 = sld [smem:[#allocation0]]
  $region26: #{psa_forward.20} parent=0
    _
  %s7 = ssub.s32 1, %s5
  %s8 = scalar_select 0, %s7, %s5
  // Predicated region
  $region2: #{psa_forward.20} parent=0 // pred_check
    _
  $region3: #{psa_forward.20} parent=0 // pred_check_branch
    %10 = sbr.rel (0) target = $region5
  $region4: #{psa_forward.20} parent=0 // pred_region
    _
  $region5: #{psa_forward.20} parent=0 // pred_fallthru
    _
  // Predicated region
  $region6: #{psa_forward.20} parent=0 // pred_check
    _
  $region7: #{psa_forward.20} parent=0 // pred_check_branch
    %12 = sbr.rel (0) target = $region9
  $region8: #{psa_forward.20} parent=0 // pred_region
    _
  $region9: #{psa_forward.20} parent=0 // pred_fallthru
    _
  // Predicated region
  $region10: #{psa_forward.20} parent=0 // pred_check
    _
  $region11: #{psa_forward.20} parent=0 // pred_check_branch
    %14 = sbr.rel (0) target = $region13
  $region12: #{psa_forward.20} parent=0 // pred_region
    _
  $region13: #{psa_forward.20} parent=0 // pred_fallthru
    _
  // Predicated region
  $region14: #{psa_forward.20} parent=0 // pred_check
    _
  $region15: #{psa_forward.20} parent=0 // pred_check_branch
    %16 = sbr.rel (0) target = $region17
  $region16: #{psa_forward.20} parent=0 // pred_region
    _
  $region17: #{psa_forward.20} parent=0 // pred_fallthru
    _
  %v18 = vld [vmem:[%s0] sm:$0xff]
  %v19 = vld [vmem:[%s0 + $0x8] sm:$0xff]
  %v20 = vld [vmem:[%s0 + $0x10] sm:$0xff]
  %v21 = vld [vmem:[%s0 + $0x18] sm:$0xff]
  %v22 = vld [vmem:[%s0 + $0x20] sm:$0xf]
  %v23 = vld [vmem:[%s0 + $0x24] sm:$0xff]
  %v24 = vld [vmem:[%s0 + $0x2c] sm:$0xff]
  %v25 = vld [vmem:[%s0 + $0x34] sm:$0xff]
  %v26 = vld [vmem:[%s0 + $0x3c] sm:$0xff]
  %v27 = vld [vmem:[%s0 + $0x44] sm:$0xf]
  %v28 = vld [vmem:[%s0 + $0x48] sm:$0xff]
  %v29 = vld [vmem:[%s0 + $0x50] sm:$0xff]
  %v30 = vld [vmem:[%s0 + $0x58] sm:$0xff]
  %v31 = vld [vmem:[%s0 + $0x60] sm:$0xff]
  %v32 = vld [vmem:[%s0 + $0x68] sm:$0xf]
  %v33 = vld [vmem:[%s0 + $0x6c] sm:$0xff]
  %v34 = vld [vmem:[%s0 + $0x74] sm:$0xff]
  %v35 = vld [vmem:[%s0 + $0x7c] sm:$0xff]
  %v36 = vld [vmem:[%s0 + $0x84] sm:$0xff]
  %v37 = vld [vmem:[%s0 + $0x8c] sm:$0xf]
  %v38 = vld [vmem:[%s1] sm:$0xf]
  %v39 = vld [vmem:[%s1 + $0x4] sm:$0xf]
  %v40 = vld [vmem:[%s1 + $0x8] sm:$0xf]
  %v41 = vld [vmem:[%s1 + $0xc] sm:$0xf]
  %v42 = vld [vmem:[%s1 + $0x10] sm:$0xf]
  %v43 = vld [vmem:[%s1 + $0x14] sm:$0xf]
  %v44 = vld [vmem:[%s1 + $0x18] sm:$0xf]
  %v45 = vld [vmem:[%s1 + $0x1c] sm:$0xf]
  %v46 = vld [vmem:[%s1 + $0x20] sm:$0xf]
  %v47 = vld [vmem:[%s1 + $0x24] sm:$0xf]
  %v48 = vld [vmem:[%s1 + $0x28] sm:$0xf]
  %v49 = vld [vmem:[%s1 + $0x2c] sm:$0xf]
  %v50 = vld [vmem:[%s1 + $0x30] sm:$0xf]
  %v51 = vld [vmem:[%s1 + $0x34] sm:$0xf]
  %v52 = vld [vmem:[%s1 + $0x38] sm:$0xf]
  %v53 = vld [vmem:[%s1 + $0x3c] sm:$0xf]
  %v54 = vld [vmem:[%s1 + $0x40] sm:$0xf]
  %v55 = vld [vmem:[%s1 + $0x44] sm:$0xf]
  %v56 = vld [vmem:[%s1 + $0x48] sm:$0xf]
  %v57 = vld [vmem:[%s1 + $0x4c] sm:$0xf]
  %v58 = vld [vmem:[%s1 + $0x50] sm:$0xf]
  %v59 = vld [vmem:[%s1 + $0x54] sm:$0xf]
  %v60 = vld [vmem:[%s1 + $0x58] sm:$0xf]
  %v61 = vld [vmem:[%s1 + $0x5c] sm:$0xf]
  %v62 = vld [vmem:[%s1 + $0x60] sm:$0xf]
  %v63 = vld [vmem:[%s1 + $0x64] sm:$0xf]
  %v64 = vld [vmem:[%s1 + $0x68] sm:$0xf]
  %v65 = vld [vmem:[%s1 + $0x6c] sm:$0xf]
  %v66 = vld [vmem:[%s1 + $0x70] sm:$0xf]
  %v67 = vld [vmem:[%s1 + $0x74] sm:$0xf]
  %v68 = vld [vmem:[%s1 + $0x78] sm:$0xf]
  %v69 = vld [vmem:[%s1 + $0x7c] sm:$0xf]
  %v70 = vld [vmem:[%s1 + $0x80] sm:$0xf]
  %v71 = vld [vmem:[%s1 + $0x84] sm:$0xf]
  %v72 = vld [vmem:[%s1 + $0x88] sm:$0xf]
  %v73 = vld [vmem:[%s1 + $0x8c] sm:$0xf]
  %v74 = vld [vmem:[%s1 + $0x90] sm:$0xf]
  %v75 = vld [vmem:[%s1 + $0x94] sm:$0xf]
  %v76 = vld [vmem:[%s1 + $0x98] sm:$0xf]
  %v77 = vld [vmem:[%s1 + $0x9c] sm:$0xf]
  %v78 = vld [vmem:[%s1 + $0xa0] sm:$0xf]
  %v79 = vld [vmem:[%s1 + $0xa4] sm:$0xf]
  %v80 = vld [vmem:[%s1 + $0xa8] sm:$0xf]
  %v81 = vld [vmem:[%s1 + $0xac] sm:$0xf]
  %v82 = vld [vmem:[%s1 + $0xb0] sm:$0xf]
  %v83 = vld [vmem:[%s1 + $0xb4] sm:$0xf]
  %v84 = vld [vmem:[%s1 + $0xb8] sm:$0xf]
  %v85 = vld [vmem:[%s1 + $0xbc] sm:$0xf]
  %v86 = vld [vmem:[%s1 + $0xc0] sm:$0xf]
  %v87 = vld [vmem:[%s1 + $0xc4] sm:$0xf]
  %v88 = vld [vmem:[%s1 + $0xc8] sm:$0xf]
  %v89 = vld [vmem:[%s1 + $0xcc] sm:$0xf]
  %v90 = vld [vmem:[%s1 + $0xd0] sm:$0xf]
  %v91 = vld [vmem:[%s1 + $0xd4] sm:$0xf]
  %v92 = vld [vmem:[%s1 + $0xd8] sm:$0xf]
  %v93 = vld [vmem:[%s1 + $0xdc] sm:$0xf]
  %v94 = vld [vmem:[%s1 + $0xe0] sm:$0xf]
  %v95 = vld [vmem:[%s1 + $0xe4] sm:$0xf]
  %v96 = vld [vmem:[%s1 + $0xe8] sm:$0xf]
  %v97 = vld [vmem:[%s1 + $0xec] sm:$0xf]
  %v98 = vld [vmem:[%s1 + $0xf0] sm:$0xf]
  %v99 = vld [vmem:[%s1 + $0xf4] sm:$0xf]
  %v100 = vld [vmem:[%s1 + $0xf8] sm:$0xf]
  %v101 = vld [vmem:[%s1 + $0xfc] sm:$0xf]
  %v102 = vld [vmem:[%s1 + $0x100] sm:$0xf]
  %v103 = vld [vmem:[%s1 + $0x104] sm:$0xf]
  %v104 = vld [vmem:[%s1 + $0x108] sm:$0xf]
  %v105 = vld [vmem:[%s1 + $0x10c] sm:$0xf]
  %v106 = vld [vmem:[%s1 + $0x110] sm:$0xf]
  %v107 = vld [vmem:[%s1 + $0x114] sm:$0xf]
  %v108 = vld [vmem:[%s1 + $0x118] sm:$0xf]
  %v109 = vld [vmem:[%s1 + $0x11c] sm:$0xf]
  %v110 = vld [vmem:[%s1 + $0x120] sm:$0xf]
  %v111 = vld [vmem:[%s1 + $0x124] sm:$0xf]
  %v112 = vld [vmem:[%s1 + $0x128] sm:$0xf]
  %v113 = vld [vmem:[%s1 + $0x12c] sm:$0xf]
  %v114 = vld [vmem:[%s1 + $0x130] sm:$0xf]
  %v115 = vld [vmem:[%s1 + $0x134] sm:$0xf]
  %v116 = vld [vmem:[%s1 + $0x138] sm:$0xf]
  %v117 = vld [vmem:[%s1 + $0x13c] sm:$0xf]
  %v118 = vld [vmem:[%s1 + $0x140] sm:$0xf]
  %v119 = vld [vmem:[%s1 + $0x144] sm:$0xf]
  %v120 = vld [vmem:[%s1 + $0x148] sm:$0xf]
  %v121 = vld [vmem:[%s1 + $0x14c] sm:$0xf]
  %v122 = vld [vmem:[%s1 + $0x150] sm:$0xf]
  %v123 = vld [vmem:[%s1 + $0x154] sm:$0xf]
  %v124 = vld [vmem:[%s1 + $0x158] sm:$0xf]
  %v125 = vld [vmem:[%s1 + $0x15c] sm:$0xf]
  %v126 = vld [vmem:[%s1 + $0x160] sm:$0xf]
  %v127 = vld [vmem:[%s1 + $0x164] sm:$0xf]
  %v128 = vld [vmem:[%s1 + $0x168] sm:$0xf]
  %v129 = vld [vmem:[%s1 + $0x16c] sm:$0xf]
  %v130 = vld [vmem:[%s1 + $0x170] sm:$0xf]
  %v131 = vld [vmem:[%s1 + $0x174] sm:$0xf]
  %v132 = vld [vmem:[%s1 + $0x178] sm:$0xf]
  %v133 = vld [vmem:[%s1 + $0x17c] sm:$0xf]
  %v134 = vld [vmem:[%s1 + $0x180] sm:$0xf]
  %v135 = vld [vmem:[%s1 + $0x184] sm:$0xf]
  %v136 = vld [vmem:[%s1 + $0x188] sm:$0xf]
  %v137 = vld [vmem:[%s1 + $0x18c] sm:$0xf]
  %v138 = vld [vmem:[%s1 + $0x190] sm:$0xf]
  %v139 = vld [vmem:[%s1 + $0x194] sm:$0xf]
  %v140 = vld [vmem:[%s1 + $0x198] sm:$0xf]
  %v141 = vld [vmem:[%s1 + $0x19c] sm:$0xf]
  %v142 = vld [vmem:[%s1 + $0x1a0] sm:$0xf]
  %v143 = vld [vmem:[%s1 + $0x1a4] sm:$0xf]
  %v144 = vld [vmem:[%s1 + $0x1a8] sm:$0xf]
  %v145 = vld [vmem:[%s1 + $0x1ac] sm:$0xf]
  %v146 = vld [vmem:[%s1 + $0x1b0] sm:$0xf]
  %v147 = vld [vmem:[%s1 + $0x1b4] sm:$0xf]
  %v148 = vld [vmem:[%s1 + $0x1b8] sm:$0xf]
  %v149 = vld [vmem:[%s1 + $0x1bc] sm:$0xf]
  %v150 = vld [vmem:[%s1 + $0x1c0] sm:$0xf]
  %v151 = vld [vmem:[%s1 + $0x1c4] sm:$0xf]
  %v152 = vld [vmem:[%s1 + $0x1c8] sm:$0xf]
  %v153 = vld [vmem:[%s1 + $0x1cc] sm:$0xf]
  %v154 = vld [vmem:[%s1 + $0x1d0] sm:$0xf]
  %v155 = vld [vmem:[%s1 + $0x1d4] sm:$0xf]
  %v156 = vld [vmem:[%s1 + $0x1d8] sm:$0xf]
  %v157 = vld [vmem:[%s1 + $0x1dc] sm:$0xf]
  %v158 = vld [vmem:[%s1 + $0x1e0] sm:$0xf]
  %v159 = vld [vmem:[%s1 + $0x1e4] sm:$0xf]
  %v160 = vld [vmem:[%s1 + $0x1e8] sm:$0xf]
  %v161 = vld [vmem:[%s1 + $0x1ec] sm:$0xf]
  %v162 = vld [vmem:[%s1 + $0x1f0] sm:$0xf]
  %v163 = vld [vmem:[%s1 + $0x1f4] sm:$0xf]
  %v164 = vld [vmem:[%s1 + $0x1f8] sm:$0xf]
  %v165 = vld [vmem:[%s1 + $0x1fc] sm:$0xf]
  %v166 = vld [vmem:[%s1 + $0x200] sm:$0xf]
  %v167 = vld [vmem:[%s1 + $0x204] sm:$0xf]
  %v168 = vld [vmem:[%s1 + $0x208] sm:$0xf]
  %v169 = vld [vmem:[%s1 + $0x20c] sm:$0xf]
  %v170 = vld [vmem:[%s1 + $0x210] sm:$0xf]
  %v171 = vld [vmem:[%s1 + $0x214] sm:$0xf]
  %v172 = vld [vmem:[%s1 + $0x218] sm:$0xf]
  %v173 = vld [vmem:[%s1 + $0x21c] sm:$0xf]
  %v174 = vld [vmem:[%s1 + $0x220] sm:$0xf]
  %v175 = vld [vmem:[%s1 + $0x224] sm:$0xf]
  %v176 = vld [vmem:[%s1 + $0x228] sm:$0xf]
  %v177 = vld [vmem:[%s1 + $0x22c] sm:$0xf]
  %v178 = vld [vmem:[%s1 + $0x230] sm:$0xf]
  %v179 = vld [vmem:[%s1 + $0x234] sm:$0xf]
  %v180 = vld [vmem:[%s1 + $0x238] sm:$0xf]
  %v181 = vld [vmem:[%s1 + $0x23c] sm:$0xf]
  %v202 = vunpack.c.l.b16 %v18
  %v203 = vunpack.c.h.b16 %v18
  %v204 = vunpack.c.l.b16 %v19
  %v205 = vunpack.c.h.b16 %v19
  %v206 = vunpack.c.l.b16 %v20
  %v207 = vunpack.c.h.b16 %v20
  %v208 = vunpack.c.l.b16 %v21
  %v209 = vunpack.c.h.b16 %v21
  %v210 = vunpack.c.l.b16 %v22
  %v211 = vunpack.c.l.b16 %v23
  %v212 = vunpack.c.h.b16 %v23
  %v213 = vunpack.c.l.b16 %v24
  %v214 = vunpack.c.h.b16 %v24
  %v215 = vunpack.c.l.b16 %v25
  %v216 = vunpack.c.h.b16 %v25
  %v217 = vunpack.c.l.b16 %v26
  %v218 = vunpack.c.h.b16 %v26
  %v219 = vunpack.c.l.b16 %v27
  %v220 = vunpack.c.l.b16 %v28
  %v221 = vunpack.c.h.b16 %v28
  %v222 = vunpack.c.l.b16 %v29
  %v223 = vunpack.c.h.b16 %v29
  %v224 = vunpack.c.l.b16 %v30
  %v225 = vunpack.c.h.b16 %v30
  %v226 = vunpack.c.l.b16 %v31
  %v227 = vunpack.c.h.b16 %v31
  %v228 = vunpack.c.l.b16 %v32
  %v229 = vunpack.c.l.b16 %v33
  %v230 = vunpack.c.h.b16 %v33
  %v231 = vunpack.c.l.b16 %v34
  %v232 = vunpack.c.h.b16 %v34
  %v233 = vunpack.c.l.b16 %v35
  %v234 = vunpack.c.h.b16 %v35
  %v235 = vunpack.c.l.b16 %v36
  %v236 = vunpack.c.h.b16 %v36
  %v237 = vunpack.c.l.b16 %v37
  %v238 = vpack.c.b16 %v211, %v202
  %v239 = vpack.c.b16 %v212, %v203
  %v240 = vpack.c.b16 %v213, %v204
  %v241 = vpack.c.b16 %v214, %v205
  %v242 = vpack.c.b16 %v215, %v206
  %v243 = vpack.c.b16 %v216, %v207
  %v244 = vpack.c.b16 %v217, %v208
  %v245 = vpack.c.b16 %v218, %v209
  %v246 = vpack.c.b16 %v219, %v210
  %v247 = vpack.c.b16 %v229, %v220
  %v248 = vpack.c.b16 %v230, %v221
  %v249 = vpack.c.b16 %v231, %v222
  %v250 = vpack.c.b16 %v232, %v223
  %v251 = vpack.c.b16 %v233, %v224
  %v252 = vpack.c.b16 %v234, %v225
  %v253 = vpack.c.b16 %v235, %v226
  %v254 = vpack.c.b16 %v236, %v227
  %v255 = vpack.c.b16 %v237, %v228
  %v418 = vunpack.c.l.b16 %v38
  %v419 = vunpack.c.l.b16 %v39
  %v420 = vunpack.c.l.b16 %v40
  %v421 = vunpack.c.l.b16 %v41
  %v422 = vunpack.c.l.b16 %v42
  %v423 = vunpack.c.l.b16 %v43
  %v424 = vunpack.c.l.b16 %v44
  %v425 = vunpack.c.l.b16 %v45
  %v426 = vunpack.c.l.b16 %v46
  %v427 = vunpack.c.l.b16 %v47
  %v428 = vunpack.c.l.b16 %v48
  %v429 = vunpack.c.l.b16 %v49
  %v430 = vunpack.c.l.b16 %v50
  %v431 = vunpack.c.l.b16 %v51
  %v432 = vunpack.c.l.b16 %v52
  %v433 = vunpack.c.l.b16 %v53
  %v434 = vunpack.c.l.b16 %v54
  %v435 = vunpack.c.l.b16 %v55
  %v436 = vunpack.c.l.b16 %v56
  %v437 = vunpack.c.l.b16 %v57
  %v438 = vunpack.c.l.b16 %v58
  %v439 = vunpack.c.l.b16 %v59
  %v440 = vunpack.c.l.b16 %v60
  %v441 = vunpack.c.l.b16 %v61
  %v442 = vunpack.c.l.b16 %v62
  %v443 = vunpack.c.l.b16 %v63
  %v444 = vunpack.c.l.b16 %v64
  %v445 = vunpack.c.l.b16 %v65
  %v446 = vunpack.c.l.b16 %v66
  %v447 = vunpack.c.l.b16 %v67
  %v448 = vunpack.c.l.b16 %v68
  %v449 = vunpack.c.l.b16 %v69
  %v450 = vunpack.c.l.b16 %v70
  %v451 = vunpack.c.l.b16 %v71
  %v452 = vunpack.c.l.b16 %v72
  %v453 = vunpack.c.l.b16 %v73
  %v454 = vunpack.c.l.b16 %v74
  %v455 = vunpack.c.l.b16 %v75
  %v456 = vunpack.c.l.b16 %v76
  %v457 = vunpack.c.l.b16 %v77
  %v458 = vunpack.c.l.b16 %v78
  %v459 = vunpack.c.l.b16 %v79
  %v460 = vunpack.c.l.b16 %v80
  %v461 = vunpack.c.l.b16 %v81
  %v462 = vunpack.c.l.b16 %v82
  %v463 = vunpack.c.l.b16 %v83
  %v464 = vunpack.c.l.b16 %v84
  %v465 = vunpack.c.l.b16 %v85
  %v466 = vunpack.c.l.b16 %v86
  %v467 = vunpack.c.l.b16 %v87
  %v468 = vunpack.c.l.b16 %v88
  %v469 = vunpack.c.l.b16 %v89
  %v470 = vunpack.c.l.b16 %v90
  %v471 = vunpack.c.l.b16 %v91
  %v472 = vunpack.c.l.b16 %v92
  %v473 = vunpack.c.l.b16 %v93
  %v474 = vunpack.c.l.b16 %v94
  %v475 = vunpack.c.l.b16 %v95
  %v476 = vunpack.c.l.b16 %v96
  %v477 = vunpack.c.l.b16 %v97
  %v478 = vunpack.c.l.b16 %v98
  %v479 = vunpack.c.l.b16 %v99
  %v480 = vunpack.c.l.b16 %v100
  %v481 = vunpack.c.l.b16 %v101
  %v482 = vunpack.c.l.b16 %v102
  %v483 = vunpack.c.l.b16 %v103
  %v484 = vunpack.c.l.b16 %v104
  %v485 = vunpack.c.l.b16 %v105
  %v486 = vunpack.c.l.b16 %v106
  %v487 = vunpack.c.l.b16 %v107
  %v488 = vunpack.c.l.b16 %v108
  %v489 = vunpack.c.l.b16 %v109
  %v490 = vunpack.c.l.b16 %v110
  %v491 = vunpack.c.l.b16 %v111
  %v492 = vunpack.c.l.b16 %v112
  %v493 = vunpack.c.l.b16 %v113
  %v494 = vunpack.c.l.b16 %v114
  %v495 = vunpack.c.l.b16 %v115
  %v496 = vunpack.c.l.b16 %v116
  %v497 = vunpack.c.l.b16 %v117
  %v498 = vunpack.c.l.b16 %v118
  %v499 = vunpack.c.l.b16 %v119
  %v500 = vunpack.c.l.b16 %v120
  %v501 = vunpack.c.l.b16 %v121
  %v502 = vunpack.c.l.b16 %v122
  %v503 = vunpack.c.l.b16 %v123
  %v504 = vunpack.c.l.b16 %v124
  %v505 = vunpack.c.l.b16 %v125
  %v506 = vunpack.c.l.b16 %v126
  %v507 = vunpack.c.l.b16 %v127
  %v508 = vunpack.c.l.b16 %v128
  %v509 = vunpack.c.l.b16 %v129
  %v510 = vunpack.c.l.b16 %v130
  %v511 = vunpack.c.l.b16 %v131
  %v512 = vunpack.c.l.b16 %v132
  %v513 = vunpack.c.l.b16 %v133
  %v514 = vunpack.c.l.b16 %v134
  %v515 = vunpack.c.l.b16 %v135
  %v516 = vunpack.c.l.b16 %v136
  %v517 = vunpack.c.l.b16 %v137
  %v518 = vunpack.c.l.b16 %v138
  %v519 = vunpack.c.l.b16 %v139
  %v520 = vunpack.c.l.b16 %v140
  %v521 = vunpack.c.l.b16 %v141
  %v522 = vunpack.c.l.b16 %v142
  %v523 = vunpack.c.l.b16 %v143
  %v524 = vunpack.c.l.b16 %v144
  %v525 = vunpack.c.l.b16 %v145
  %v526 = vunpack.c.l.b16 %v146
  %v527 = vunpack.c.l.b16 %v147
  %v528 = vunpack.c.l.b16 %v148
  %v529 = vunpack.c.l.b16 %v149
  %v530 = vunpack.c.l.b16 %v150
  %v531 = vunpack.c.l.b16 %v151
  %v532 = vunpack.c.l.b16 %v152
  %v533 = vunpack.c.l.b16 %v153
  %v534 = vunpack.c.l.b16 %v154
  %v535 = vunpack.c.l.b16 %v155
  %v536 = vunpack.c.l.b16 %v156
  %v537 = vunpack.c.l.b16 %v157
  %v538 = vunpack.c.l.b16 %v158
  %v539 = vunpack.c.l.b16 %v159
  %v540 = vunpack.c.l.b16 %v160
  %v541 = vunpack.c.l.b16 %v161
  %v542 = vunpack.c.l.b16 %v162
  %v543 = vunpack.c.l.b16 %v163
  %v544 = vunpack.c.l.b16 %v164
  %v545 = vunpack.c.l.b16 %v165
  %v546 = vunpack.c.l.b16 %v166
  %v547 = vunpack.c.l.b16 %v167
  %v548 = vunpack.c.l.b16 %v168
  %v549 = vunpack.c.l.b16 %v169
  %v550 = vunpack.c.l.b16 %v170
  %v551 = vunpack.c.l.b16 %v171
  %v552 = vunpack.c.l.b16 %v172
  %v553 = vunpack.c.l.b16 %v173
  %v554 = vunpack.c.l.b16 %v174
  %v555 = vunpack.c.l.b16 %v175
  %v556 = vunpack.c.l.b16 %v176
  %v557 = vunpack.c.l.b16 %v177
  %v558 = vunpack.c.l.b16 %v178
  %v559 = vunpack.c.l.b16 %v179
  %v560 = vunpack.c.l.b16 %v180
  %v561 = vunpack.c.l.b16 %v181
  %v562 = vpack.c.b16 %v419, %v418
  %v563 = vpack.c.b16 %v421, %v420
  %v564 = vpack.c.b16 %v423, %v422
  %v565 = vpack.c.b16 %v425, %v424
  %v566 = vpack.c.b16 %v427, %v426
  %v567 = vpack.c.b16 %v429, %v428
  %v568 = vpack.c.b16 %v431, %v430
  %v569 = vpack.c.b16 %v433, %v432
  %v570 = vpack.c.b16 %v435, %v434
  %v571 = vpack.c.b16 %v437, %v436
  %v572 = vpack.c.b16 %v439, %v438
  %v573 = vpack.c.b16 %v441, %v440
  %v574 = vpack.c.b16 %v443, %v442
  %v575 = vpack.c.b16 %v445, %v444
  %v576 = vpack.c.b16 %v447, %v446
  %v577 = vpack.c.b16 %v449, %v448
  %v578 = vpack.c.b16 %v451, %v450
  %v579 = vpack.c.b16 %v453, %v452
  %v580 = vpack.c.b16 %v455, %v454
  %v581 = vpack.c.b16 %v457, %v456
  %v582 = vpack.c.b16 %v459, %v458
  %v583 = vpack.c.b16 %v461, %v460
  %v584 = vpack.c.b16 %v463, %v462
  %v585 = vpack.c.b16 %v465, %v464
  %v586 = vpack.c.b16 %v467, %v466
  %v587 = vpack.c.b16 %v469, %v468
  %v588 = vpack.c.b16 %v471, %v470
  %v589 = vpack.c.b16 %v473, %v472
  %v590 = vpack.c.b16 %v475, %v474
  %v591 = vpack.c.b16 %v477, %v476
  %v592 = vpack.c.b16 %v479, %v478
  %v593 = vpack.c.b16 %v481, %v480
  %v594 = vpack.c.b16 %v483, %v482
  %v595 = vpack.c.b16 %v485, %v484
  %v596 = vpack.c.b16 %v487, %v486
  %v597 = vpack.c.b16 %v489, %v488
  %v598 = vpack.c.b16 %v491, %v490
  %v599 = vpack.c.b16 %v493, %v492
  %v600 = vpack.c.b16 %v495, %v494
  %v601 = vpack.c.b16 %v497, %v496
  %v602 = vpack.c.b16 %v499, %v498
  %v603 = vpack.c.b16 %v501, %v500
  %v604 = vpack.c.b16 %v503, %v502
  %v605 = vpack.c.b16 %v505, %v504
  %v606 = vpack.c.b16 %v507, %v506
  %v607 = vpack.c.b16 %v509, %v508
  %v608 = vpack.c.b16 %v511, %v510
  %v609 = vpack.c.b16 %v513, %v512
  %v610 = vpack.c.b16 %v515, %v514
  %v611 = vpack.c.b16 %v517, %v516
  %v612 = vpack.c.b16 %v519, %v518
  %v613 = vpack.c.b16 %v521, %v520
  %v614 = vpack.c.b16 %v523, %v522
  %v615 = vpack.c.b16 %v525, %v524
  %v616 = vpack.c.b16 %v527, %v526
  %v617 = vpack.c.b16 %v529, %v528
  %v618 = vpack.c.b16 %v531, %v530
  %v619 = vpack.c.b16 %v533, %v532
  %v620 = vpack.c.b16 %v535, %v534
  %v621 = vpack.c.b16 %v537, %v536
  %v622 = vpack.c.b16 %v539, %v538
  %v623 = vpack.c.b16 %v541, %v540
  %v624 = vpack.c.b16 %v543, %v542
  %v625 = vpack.c.b16 %v545, %v544
  %v626 = vpack.c.b16 %v547, %v546
  %v627 = vpack.c.b16 %v549, %v548
  %v628 = vpack.c.b16 %v551, %v550
  %v629 = vpack.c.b16 %v553, %v552
  %v630 = vpack.c.b16 %v555, %v554
  %v631 = vpack.c.b16 %v557, %v556
  %v632 = vpack.c.b16 %v559, %v558
  %v633 = vpack.c.b16 %v561, %v560
  %706 = vmatprep.subr.bf16.mxu0 0
  %707 = vmatpush1.bf16.msra.mxu0 %v562
  %708 = vmatprep.subr.bf16.mxu0 0
  %709 = vmatpush1.bf16.msra.mxu0 %v563
  %710 = vmatprep.subr.bf16.mxu0 0
  %711 = vmatpush1.bf16.msra.mxu0 %v564
  %712 = vmatprep.subr.bf16.mxu0 0
  %713 = vmatpush1.bf16.msra.mxu0 %v565
  %714 = vmatprep.subr.bf16.mxu0 0
  %715 = vmatpush1.bf16.msra.mxu0 %v566
  %716 = vmatprep.subr.bf16.mxu0 0
  %717 = vmatpush1.bf16.msra.mxu0 %v567
  %718 = vmatprep.subr.bf16.mxu0 0
  %719 = vmatpush1.bf16.msra.mxu0 %v568
  %720 = vmatprep.subr.bf16.mxu0 0
  %721 = vmatpush1.bf16.msra.mxu0 %v569
  %722 = vmatprep.subr.bf16.mxu0 0
  %723 = vmatpush1.bf16.msra.mxu0 %v570
  %724 = vmatprep.subr.bf16.mxu0 0
  %725 = vmatpush1.bf16.msra.mxu0 %v571
  %726 = vmatprep.subr.bf16.mxu0 0
  %727 = vmatpush1.bf16.msra.mxu0 %v572
  %728 = vmatprep.subr.bf16.mxu0 0
  %729 = vmatpush1.bf16.msra.mxu0 %v573
  %730 = vmatprep.subr.bf16.mxu0 0
  %731 = vmatpush1.bf16.msra.mxu0 %v574
  %732 = vmatprep.subr.bf16.mxu0 0
  %733 = vmatpush1.bf16.msra.mxu0 %v575
  %734 = vmatprep.subr.bf16.mxu0 0
  %735 = vmatpush1.bf16.msra.mxu0 %v576
  %736 = vmatprep.subr.bf16.mxu0 0
  %737 = vmatpush1.bf16.msra.mxu0 %v577
  %738 = vmatprep.mubr.bf16.mxu0 %v239
  %739 = vmatmul.mubr.bf16.gmra.mrb[0].mxu0 %v238
  %v740 = vpop.f32.mrb[0].mxu0
  %v741 = vadd.f32 0.0, %v740
  %v742 = vpop.f32.mrb[0].mxu0
  %v743 = vpop.f32.mrb[0].mxu0
  %v744 = vadd.f32 0.0, %v743
  %v745 = vpop.f32.mrb[0].mxu0
  %746 = vmatprep.mubr.bf16.mxu0 %v248
  %747 = vmatmul.mubr.bf16.gmra.mrb[0].mxu0 %v247
  %v748 = vpop.f32.mrb[0].mxu0
  %v749 = vadd.f32 0.0, %v748
  %v750 = vpop.f32.mrb[0].mxu0
  %v751 = vpop.f32.mrb[0].mxu0
  %v752 = vadd.f32 0.0, %v751
  %v753 = vpop.f32.mrb[0].mxu0
  %754 = vdwg.mxu0
  %755 = vmatprep.subr.bf16.mxu0 0
  %756 = vmatpush1.bf16.msra.mxu0 %v578
  %757 = vmatprep.subr.bf16.mxu0 0
  %758 = vmatpush1.bf16.msra.mxu0 %v579
  %759 = vmatprep.subr.bf16.mxu0 0
  %760 = vmatpush1.bf16.msra.mxu0 %v580
  %761 = vmatprep.subr.bf16.mxu0 0
  %762 = vmatpush1.bf16.msra.mxu0 %v581
  %763 = vmatprep.subr.bf16.mxu0 0
  %764 = vmatpush1.bf16.msra.mxu0 %v582
  %765 = vmatprep.subr.bf16.mxu0 0
  %766 = vmatpush1.bf16.msra.mxu0 %v583
  %767 = vmatprep.subr.bf16.mxu0 0
  %768 = vmatpush1.bf16.msra.mxu0 %v584
  %769 = vmatprep.subr.bf16.mxu0 0
  %770 = vmatpush1.bf16.msra.mxu0 %v585
  %771 = vmatprep.subr.bf16.mxu0 0
  %772 = vmatpush1.bf16.msra.mxu0 %v586
  %773 = vmatprep.subr.bf16.mxu0 0
  %774 = vmatpush1.bf16.msra.mxu0 %v587
  %775 = vmatprep.subr.bf16.mxu0 0
  %776 = vmatpush1.bf16.msra.mxu0 %v588
  %777 = vmatprep.subr.bf16.mxu0 0
  %778 = vmatpush1.bf16.msra.mxu0 %v589
  %779 = vmatprep.subr.bf16.mxu0 0
  %780 = vmatpush1.bf16.msra.mxu0 %v590
  %781 = vmatprep.subr.bf16.mxu0 0
  %782 = vmatpush1.bf16.msra.mxu0 %v591
  %783 = vmatprep.subr.bf16.mxu0 0
  %784 = vmatpush1.bf16.msra.mxu0 %v592
  %785 = vmatprep.subr.bf16.mxu0 0
  %786 = vmatpush1.bf16.msra.mxu0 %v593
  %787 = vmatprep.mubr.bf16.mxu0 %v241
  %788 = vmatmul.mubr.bf16.gmra.mrb[0].mxu0 %v240
  %v789 = vpop.f32.mrb[0].mxu0
  %v790 = vadd.f32 %v741, %v789
  %v791 = vpop.f32.mrb[0].mxu0
  %v792 = vpop.f32.mrb[0].mxu0
  %v793 = vadd.f32 %v744, %v792
  %v794 = vpop.f32.mrb[0].mxu0
  %795 = vmatprep.mubr.bf16.mxu0 %v250
  %796 = vmatmul.mubr.bf16.gmra.mrb[0].mxu0 %v249
  %v797 = vpop.f32.mrb[0].mxu0
  %v798 = vadd.f32 %v749, %v797
  %v799 = vpop.f32.mrb[0].mxu0
  %v800 = vpop.f32.mrb[0].mxu0
  %v801 = vadd.f32 %v752, %v800
  %v802 = vpop.f32.mrb[0].mxu0
  %803 = vdwg.mxu0
  %804 = vmatprep.subr.bf16.mxu0 0
  %805 = vmatpush1.bf16.msra.mxu0 %v594
  %806 = vmatprep.subr.bf16.mxu0 0
  %807 = vmatpush1.bf16.msra.mxu0 %v595
  %808 = vmatprep.subr.bf16.mxu0 0
  %809 = vmatpush1.bf16.msra.mxu0 %v596
  %810 = vmatprep.subr.bf16.mxu0 0
  %811 = vmatpush1.bf16.msra.mxu0 %v597
  %812 = vmatprep.subr.bf16.mxu0 0
  %813 = vmatpush1.bf16.msra.mxu0 %v598
  %814 = vmatprep.subr.bf16.mxu0 0
  %815 = vmatpush1.bf16.msra.mxu0 %v599
  %816 = vmatprep.subr.bf16.mxu0 0
  %817 = vmatpush1.bf16.msra.mxu0 %v600
  %818 = vmatprep.subr.bf16.mxu0 0
  %819 = vmatpush1.bf16.msra.mxu0 %v601
  %820 = vmatprep.subr.bf16.mxu0 0
  %821 = vmatpush1.bf16.msra.mxu0 %v602
  %822 = vmatprep.subr.bf16.mxu0 0
  %823 = vmatpush1.bf16.msra.mxu0 %v603
  %824 = vmatprep.subr.bf16.mxu0 0
  %825 = vmatpush1.bf16.msra.mxu0 %v604
  %826 = vmatprep.subr.bf16.mxu0 0
  %827 = vmatpush1.bf16.msra.mxu0 %v605
  %828 = vmatprep.subr.bf16.mxu0 0
  %829 = vmatpush1.bf16.msra.mxu0 %v606
  %830 = vmatprep.subr.bf16.mxu0 0
  %831 = vmatpush1.bf16.msra.mxu0 %v607
  %832 = vmatprep.subr.bf16.mxu0 0
  %833 = vmatpush1.bf16.msra.mxu0 %v608
  %834 = vmatprep.subr.bf16.mxu0 0
  %835 = vmatpush1.bf16.msra.mxu0 %v609
  %836 = vmatprep.mubr.bf16.mxu0 %v243
  %837 = vmatmul.mubr.bf16.gmra.mrb[0].mxu0 %v242
  %v838 = vpop.f32.mrb[0].mxu0
  %v839 = vadd.f32 %v790, %v838
  %v840 = vpop.f32.mrb[0].mxu0
  %v841 = vpop.f32.mrb[0].mxu0
  %v842 = vadd.f32 %v793, %v841
  %v843 = vpop.f32.mrb[0].mxu0
  %844 = vmatprep.mubr.bf16.mxu0 %v252
  %845 = vmatmul.mubr.bf16.gmra.mrb[0].mxu0 %v251
  %v846 = vpop.f32.mrb[0].mxu0
  %v847 = vadd.f32 %v798, %v846
  %v848 = vpop.f32.mrb[0].mxu0
  %v849 = vpop.f32.mrb[0].mxu0
  %v850 = vadd.f32 %v801, %v849
  %v851 = vpop.f32.mrb[0].mxu0
  %852 = vdwg.mxu0
  %853 = vmatprep.subr.bf16.mxu0 0
  %854 = vmatpush1.bf16.msra.mxu0 %v610
  %855 = vmatprep.subr.bf16.mxu0 0
  %856 = vmatpush1.bf16.msra.mxu0 %v611
  %857 = vmatprep.subr.bf16.mxu0 0
  %858 = vmatpush1.bf16.msra.mxu0 %v612
  %859 = vmatprep.subr.bf16.mxu0 0
  %860 = vmatpush1.bf16.msra.mxu0 %v613
  %861 = vmatprep.subr.bf16.mxu0 0
  %862 = vmatpush1.bf16.msra.mxu0 %v614
  %863 = vmatprep.subr.bf16.mxu0 0
  %864 = vmatpush1.bf16.msra.mxu0 %v615
  %865 = vmatprep.subr.bf16.mxu0 0
  %866 = vmatpush1.bf16.msra.mxu0 %v616
  %867 = vmatprep.subr.bf16.mxu0 0
  %868 = vmatpush1.bf16.msra.mxu0 %v617
  %869 = vmatprep.subr.bf16.mxu0 0
  %870 = vmatpush1.bf16.msra.mxu0 %v618
  %871 = vmatprep.subr.bf16.mxu0 0
  %872 = vmatpush1.bf16.msra.mxu0 %v619
  %873 = vmatprep.subr.bf16.mxu0 0
  %874 = vmatpush1.bf16.msra.mxu0 %v620
  %875 = vmatprep.subr.bf16.mxu0 0
  %876 = vmatpush1.bf16.msra.mxu0 %v621
  %877 = vmatprep.subr.bf16.mxu0 0
  %878 = vmatpush1.bf16.msra.mxu0 %v622
  %879 = vmatprep.subr.bf16.mxu0 0
  %880 = vmatpush1.bf16.msra.mxu0 %v623
  %881 = vmatprep.subr.bf16.mxu0 0
  %882 = vmatpush1.bf16.msra.mxu0 %v624
  %883 = vmatprep.subr.bf16.mxu0 0
  %884 = vmatpush1.bf16.msra.mxu0 %v625
  %885 = vmatprep.mubr.bf16.mxu0 %v245
  %886 = vmatmul.mubr.bf16.gmra.mrb[0].mxu0 %v244
  %v887 = vpop.f32.mrb[0].mxu0
  %v888 = vadd.f32 %v839, %v887
  %v889 = vpop.f32.mrb[0].mxu0
  %v890 = vpop.f32.mrb[0].mxu0
  %v891 = vadd.f32 %v842, %v890
  %v892 = vpop.f32.mrb[0].mxu0
  %893 = vmatprep.mubr.bf16.mxu0 %v254
  %894 = vmatmul.mubr.bf16.gmra.mrb[0].mxu0 %v253
  %v895 = vpop.f32.mrb[0].mxu0
  %v896 = vadd.f32 %v847, %v895
  %v897 = vpop.f32.mrb[0].mxu0
  %v898 = vpop.f32.mrb[0].mxu0
  %v899 = vadd.f32 %v850, %v898
  %v900 = vpop.f32.mrb[0].mxu0
  %901 = vdwg.mxu0
  %902 = vmatprep.subr.bf16.mxu0 0
  %903 = vmatpush1.bf16.msra.mxu0 %v626
  %904 = vmatprep.subr.bf16.mxu0 0
  %905 = vmatpush1.bf16.msra.mxu0 %v627
  %906 = vmatprep.subr.bf16.mxu0 0
  %907 = vmatpush1.bf16.msra.mxu0 %v628
  %908 = vmatprep.subr.bf16.mxu0 0
  %909 = vmatpush1.bf16.msra.mxu0 %v629
  %910 = vmatprep.subr.bf16.mxu0 0
  %911 = vmatpush1.bf16.msra.mxu0 %v630
  %912 = vmatprep.subr.bf16.mxu0 0
  %913 = vmatpush1.bf16.msra.mxu0 %v631
  %914 = vmatprep.subr.bf16.mxu0 0
  %915 = vmatpush1.bf16.msra.mxu0 %v632
  %916 = vmatprep.subr.bf16.mxu0 0
  %917 = vmatpush1.bf16.msra.mxu0 %v633
  %918 = vmatprep.subr.bf16.mxu0 0
  %919 = vmatpush1.bf16.msra.mxu0 0
  %920 = vmatprep.subr.bf16.mxu0 0
  %921 = vmatpush1.bf16.msra.mxu0 0
  %922 = vmatprep.subr.bf16.mxu0 0
  %923 = vmatpush1.bf16.msra.mxu0 0
  %924 = vmatprep.subr.bf16.mxu0 0
  %925 = vmatpush1.bf16.msra.mxu0 0
  %926 = vmatprep.subr.bf16.mxu0 0
  %927 = vmatpush1.bf16.msra.mxu0 0
  %928 = vmatprep.subr.bf16.mxu0 0
  %929 = vmatpush1.bf16.msra.mxu0 0
  %930 = vmatprep.subr.bf16.mxu0 0
  %931 = vmatpush1.bf16.msra.mxu0 0
  %932 = vmatprep.subr.bf16.mxu0 0
  %933 = vmatpush1.bf16.msra.mxu0 0
  %934 = vmatprep.mubr.bf16.mxu0 0
  %935 = vmatmul.mubr.bf16.gmra.mrb[0].mxu0 %v246
  %v936 = vpop.f32.mrb[0].mxu0
  %v937 = vadd.f32 %v888, %v936
  %v938 = vpop.f32.mrb[0].mxu0
  %v939 = vpop.f32.mrb[0].mxu0
  %v940 = vadd.f32 %v891, %v939
  %v941 = vpop.f32.mrb[0].mxu0
  %942 = vmatprep.mubr.bf16.mxu0 0
  %943 = vmatmul.mubr.bf16.gmra.mrb[0].mxu0 %v255
  %v944 = vpop.f32.mrb[0].mxu0
  %v945 = vadd.f32 %v896, %v944
  %v946 = vpop.f32.mrb[0].mxu0
  %v947 = vpop.f32.mrb[0].mxu0
  %v948 = vadd.f32 %v899, %v947
  %v949 = vpop.f32.mrb[0].mxu0
  %950 = vdwg.mxu0
  %v951 = vld [vmem:[%s2] sm:$0x1]
  %v953 = vlaneseq
  %v954 = vshrl.u32 %v953, 7
  %v955 = vsub.s32 0, %v954
  %v956 = vrot.slane %v951, %v955
  %v958 = vmul.f32 %v937, %v956
  %v959 = vmul.f32 %v940, %v956
  %v960 = vmul.f32 %v945, %v956
  %v961 = vmul.f32 %v948, %v956
  %v962 = vld [vmem:[%s3] sm:$0x1]
  %v964 = vlaneseq
  %v965 = vshrl.u32 %v964, 7
  %v966 = vsub.s32 0, %v965
  %v967 = vrot.slane %v962, %v966
  %v969 = vadd.f32 %v958, %v967
  %v970 = vadd.f32 %v959, %v967
  %v971 = vadd.f32 %v960, %v967
  %v972 = vadd.f32 %v961, %v967
  %v973 = vmax.f32 %v969, 0.0
  %v974 = vmax.f32 %v970, 0.0
  %v975 = vmax.f32 %v971, 0.0
  %v976 = vmax.f32 %v972, 0.0
  %v977 = vpack.c.bf16 %v974, %v973
  %v978 = vpack.c.bf16 %v976, %v975
  %v981 = vunpack.c.l.b16 %v977
  %v982 = vunpack.c.h.b16 %v977
  %v983 = vunpack.c.l.b16 %v978
  %v984 = vunpack.c.h.b16 %v978
  %v985 = vpack.c.b16 %v981, %v981
  %v986 = vpack.c.b16 %v982, %v982
  %v987 = vpack.c.b16 %v983, %v983
  %v988 = vpack.c.b16 %v984, %v984
  %993 = vst [vmem:[%s4] sm:$0xf] %v985
  %994 = vst [vmem:[%s4 + $0x4] sm:$0xf] %v986
  %995 = vst [vmem:[%s4 + $0x8] sm:$0xf] %v987
  %996 = vst [vmem:[%s4 + $0xc] sm:$0xf] %v988
  // Predicated region
  $region18: #{psa_forward.20} parent=0 // pred_check
    _
  $region19: #{psa_forward.20} parent=0 // pred_check_branch
    %998 = sbr.rel (0) target = $region21
  $region20: #{psa_forward.20} parent=0 // pred_region
    _
  $region21: #{psa_forward.20} parent=0 // pred_fallthru
    _
  // Predicated region
  $region22: #{psa_forward.20} parent=0 // pred_check
    _
  $region23: #{psa_forward.20} parent=0 // pred_check_branch
    %1000 = sbr.rel (0) target = $region25
  $region24: #{psa_forward.20} parent=0 // pred_region
    _
  $region25: #{psa_forward.20} parent=0 // pred_fallthru
    _

// kernel: psa_forward.17
$region0: #{psa_forward.17}
  #allocation0 [shape = 'u32[]', space=smem, size = 0x4, offset = 0x4, fixed_abs, tag = 'smem constant byte address 0x4 - core index']
  #allocation1 [shape = 'u32[144,128]{1,0:T(1,128)}', space=vmem, size = 0x12000, scoped, tag = 'internal scratch']
  %s0 = inlined_call_operand.vmem [shape: bf16[2,10,10,128], index: 0, kind: input, shape index: {}]
  %s1 = inlined_call_operand.vmem [shape: bf16[9,128,128], index: 1, kind: input, shape index: {}]
  %s2 = inlined_call_operand.vmem [shape: f32[1,128], index: 2, kind: input, shape index: {}]
  %s3 = inlined_call_operand.vmem [shape: f32[1,128], index: 3, kind: input, shape index: {}]
  %s4 = inlined_call_operand.vmem [shape: bf16[2,64,128], index: 4, kind: output, shape index: {}]
  %s5 = sld [smem:[#allocation0]]
  $region49: #{psa_forward.17} parent=0
    _
  %s7 = ssub.s32 1, %s5
  %s8 = scalar_select 0, %s7, %s5
  loop: start=0, step=1, limit=4
  $region2: #{psa_forward.17} parent=0 // loop_pre_header
    _
  $region3: #{psa_forward.17} parent=0 // loop_header
    %s10 = sphi 0, %s14
    %p11 = scmp.ge.s32.totalorder %s10, 4
    %s20 = sphi 0, %s22
    %s23 = sphi 0, %s20
    %s24 = sphi 0, %s23
    %s40 = sphi 0, %s24
    %s44 = sphi 0, %s44
    %s46 = sphi 0, %s44
    %s47 = sphi 0, %s46
    %s61 = sphi 0, %s47
    %s65 = sphi 0, %s65
    %s67 = sphi 0, %s65
    %s68 = sphi 0, %s67
    %s82 = sphi 0, %s68
    %s86 = sphi 0, %s86
    %s88 = sphi 0, %s86
    %s89 = sphi 0, %s88
    %s103 = sphi 0, %s89
    %s109 = sphi 0, %s111
    %s112 = sphi 0, %s109
    %s113 = sphi 0, %s112
    %s129 = sphi 0, %s113
  $region4: #{psa_forward.17} parent=0 // loop_header_branch
    %13 = sbr.rel (%p11) target = $region8
  $region5: #{psa_forward.17} parent=0 // loop_body
    %s15 = ssub.s32 %s10, 1
    %s16 = ssub.s32 %s10, 2
    %s17 = sadd.s32 %s10, 1
    %s18 = ssub.s32 %s10, %s17
    %p19 = scmp.eq.s32.totalorder %s18, 0
    %s21 = sadd.s32 %s20, 1
    %s22 = scalar_select %p19, %s20, %s21
    %p25 = pneg %p19
    %p26 = scmp.eq.s32.totalorder %s10, 1
    %p27 = por %p25, %p26
    %p28 = scmp.ne.s32.totalorder %s20, %s23
    %p29 = scmp.eq.s32.totalorder %s10, 0
    %p30 = por %p28, %p29
    %p31 = scmp.ne.s32.totalorder %s20, %s23
    %p32 = scmp.eq.s32.totalorder %s15, 1
    %p33 = por %p31, %p32
    %p34 = scmp.ne.s32.totalorder %s23, %s24
    %p35 = scmp.eq.s32.totalorder %s15, 0
    %p36 = por %p34, %p35
    %p37 = scmp.ne.s32.totalorder %s23, %s24
    %p38 = scmp.eq.s32.totalorder %s16, 1
    %p39 = por %p37, %p38
    %p41 = scmp.ne.s32.totalorder %s24, %s40
    %p42 = scmp.eq.s32.totalorder %s16, 0
    %p43 = por %p41, %p42
    %s45 = sadd.s32 %s44, 1
    %p48 = scmp.eq.s32.totalorder %s10, 1
    %p49 = scmp.ne.s32.totalorder %s44, %s46
    %p50 = scmp.eq.s32.totalorder %s10, 0
    %p51 = por %p49, %p50
    %p52 = scmp.ne.s32.totalorder %s44, %s46
    %p53 = scmp.eq.s32.totalorder %s15, 1
    %p54 = por %p52, %p53
    %p55 = scmp.ne.s32.totalorder %s46, %s47
    %p56 = scmp.eq.s32.totalorder %s15, 0
    %p57 = por %p55, %p56
    %p58 = scmp.ne.s32.totalorder %s46, %s47
    %p59 = scmp.eq.s32.totalorder %s16, 1
    %p60 = por %p58, %p59
    %p62 = scmp.ne.s32.totalorder %s47, %s61
    %p63 = scmp.eq.s32.totalorder %s16, 0
    %p64 = por %p62, %p63
    %s66 = sadd.s32 %s65, 1
    %p69 = scmp.eq.s32.totalorder %s10, 1
    %p70 = scmp.ne.s32.totalorder %s65, %s67
    %p71 = scmp.eq.s32.totalorder %s10, 0
    %p72 = por %p70, %p71
    %p73 = scmp.ne.s32.totalorder %s65, %s67
    %p74 = scmp.eq.s32.totalorder %s15, 1
    %p75 = por %p73, %p74
    %p76 = scmp.ne.s32.totalorder %s67, %s68
    %p77 = scmp.eq.s32.totalorder %s15, 0
    %p78 = por %p76, %p77
    %p79 = scmp.ne.s32.totalorder %s67, %s68
    %p80 = scmp.eq.s32.totalorder %s16, 1
    %p81 = por %p79, %p80
    %p83 = scmp.ne.s32.totalorder %s68, %s82
    %p84 = scmp.eq.s32.totalorder %s16, 0
    %p85 = por %p83, %p84
    %s87 = sadd.s32 %s86, 1
    %p90 = scmp.eq.s32.totalorder %s10, 1
    %p91 = scmp.ne.s32.totalorder %s86, %s88
    %p92 = scmp.eq.s32.totalorder %s10, 0
    %p93 = por %p91, %p92
    %p94 = scmp.ne.s32.totalorder %s86, %s88
    %p95 = scmp.eq.s32.totalorder %s15, 1
    %p96 = por %p94, %p95
    %p97 = scmp.ne.s32.totalorder %s88, %s89
    %p98 = scmp.eq.s32.totalorder %s15, 0
    %p99 = por %p97, %p98
    %p100 = scmp.ne.s32.totalorder %s88, %s89
    %p101 = scmp.eq.s32.totalorder %s16, 1
    %p102 = por %p100, %p101
    %p104 = scmp.ne.s32.totalorder %s89, %s103
    %p105 = scmp.eq.s32.totalorder %s16, 0
    %p106 = por %p104, %p105
    %s107 = ssub.s32 %s10, %s17
    %p108 = scmp.eq.s32.totalorder %s107, 0
    %s110 = sadd.s32 %s109, 1
    %s111 = scalar_select %p108, %s109, %s110
    %p114 = pneg %p108
    %p115 = scmp.eq.s32.totalorder %s10, 1
    %p116 = por %p114, %p115
    %p117 = scmp.ne.s32.totalorder %s109, %s112
    %p118 = scmp.eq.s32.totalorder %s10, 0
    %p119 = por %p117, %p118
    %p120 = scmp.ne.s32.totalorder %s109, %s112
    %p121 = scmp.eq.s32.totalorder %s15, 1
    %p122 = por %p120, %p121
    %p123 = scmp.ne.s32.totalorder %s112, %s113
    %p124 = scmp.eq.s32.totalorder %s15, 0
    %p125 = por %p123, %p124
    %p126 = scmp.ne.s32.totalorder %s112, %s113
    %p127 = scmp.eq.s32.totalorder %s16, 1
    %p128 = por %p126, %p127
    %p130 = scmp.ne.s32.totalorder %s113, %s129
    %p131 = scmp.eq.s32.totalorder %s16, 0
    %p132 = por %p130, %p131
    %p133 = scmp.le.s32.totalorder 1, %s10
    %p134 = scmp.lt.s32.totalorder %s10, 3
    %p135 = pnand %p133, %p134
    %p136 = pneg %p135
    // Predicated region
    $region9: #{psa_forward.17} parent=5 // pred_check
      _
    $region10: #{psa_forward.17} parent=5 // pred_check_branch
      %138 = sbr.rel (%p135) target = $region12
    $region11: #{psa_forward.17} parent=5 // pred_region
      %s139 = ssub.s32 %s10, 1
      // Predicated region
      $region13: #{psa_forward.17} parent=11 // pred_check
        %p140 = pneg %p57
      $region14: #{psa_forward.17} parent=11 // pred_check_branch
        %142 = sbr.rel (%p140) target = $region16
      $region15: #{psa_forward.17} parent=11 // pred_region
        _
      $region16: #{psa_forward.17} parent=11 // pred_fallthru
        _
      // Predicated region
      $region17: #{psa_forward.17} parent=11 // pred_check
        %p143 = pneg %p78
      $region18: #{psa_forward.17} parent=11 // pred_check_branch
        %145 = sbr.rel (%p143) target = $region20
      $region19: #{psa_forward.17} parent=11 // pred_region
        _
      $region20: #{psa_forward.17} parent=11 // pred_fallthru
        _
      // Predicated region
      $region21: #{psa_forward.17} parent=11 // pred_check
        %p146 = pneg %p99
      $region22: #{psa_forward.17} parent=11 // pred_check_branch
        %148 = sbr.rel (%p146) target = $region24
      $region23: #{psa_forward.17} parent=11 // pred_region
        _
      $region24: #{psa_forward.17} parent=11 // pred_fallthru
        _
    $region12: #{psa_forward.17} parent=5 // pred_fallthru
      _
    %p149 = scmp.lt.s32.totalorder %s10, 2
    // Predicated region
    $region25: #{psa_forward.17} parent=5 // pred_check
      %p150 = pneg %p149
    $region26: #{psa_forward.17} parent=5 // pred_check_branch
      %152 = sbr.rel (%p150) target = $region28
    $region27: #{psa_forward.17} parent=5 // pred_region
      // Predicated region
      $region29: #{psa_forward.17} parent=27 // pred_check
        %p153 = pneg %p30
      $region30: #{psa_forward.17} parent=27 // pred_check_branch
        %155 = sbr.rel (%p153) target = $region32
      $region31: #{psa_forward.17} parent=27 // pred_region
        %p156 = scmp.lt.s32.totalorder %s10, 1
        %s157 = scalar_select %p156, %s10, 1
        %s158 = smul.addr %s157, 20
        %s159 = smul.addr %s158, 4
        %s160 = scalar_lea.vmem %s0, %s159
      $region32: #{psa_forward.17} parent=27 // pred_fallthru
        _
    $region28: #{psa_forward.17} parent=5 // pred_fallthru
      _
    %p161 = scmp.le.s32.totalorder 1, %s10
    %p162 = scmp.lt.s32.totalorder %s10, 3
    %p163 = pnand %p161, %p162
    %p164 = pneg %p163
    // Predicated region
    $region33: #{psa_forward.17} parent=5 // pred_check
      _
    $region34: #{psa_forward.17} parent=5 // pred_check_branch
      %166 = sbr.rel (%p163) target = $region36
    $region35: #{psa_forward.17} parent=5 // pred_region
      %s167 = ssub.s32 %s10, 1
      %p168 = scmp.lt.s32.totalorder %s15, 1
      %s169 = scalar_select %p168, %s15, 1
      %s170 = smul.addr %s169, 20
      %s171 = smul.addr %s170, 4
      %s172 = scalar_lea.vmem %s0, %s171
      %p173 = pneg %p36
      %p174 = pneg %p33
      %p175 = pneg %p57
      %p176 = pneg %p54
      %p177 = pneg %p78
      %p178 = pneg %p75
      %p179 = pneg %p99
      %p180 = pneg %p96
      %p181 = pneg %p125
      %p182 = pneg %p122
      %p183 = scmp.lt.s32.totalorder %s15, 1
      %s184 = scalar_select %p183, %s15, 1
      %s185 = smul.addr %s184, 8
      %s186 = smul.addr %s185, 4
      %s187 = scalar_lea.vmem %s4, %s186
      %p188 = scmp.lt.s32.totalorder %s15, 1
      %s189 = scalar_select %p188, %s15, 1
      %s190 = smul.addr %s189, 20
      %s191 = smul.addr %s190, 4
      %s192 = scalar_lea.vmem %s0, %s191
      %p193 = scmp.lt.s32.totalorder %s15, 1
      %s194 = scalar_select %p193, %s15, 1
      %s195 = smul.addr %s194, 8
      %s196 = smul.addr %s195, 4
      %s197 = scalar_lea.vmem %s4, %s196
      %v199 = vld [vmem:[%s192] sm:$0xf]
      %v200 = vld [vmem:[%s192 + $0x8] sm:$0xf]
      %v201 = vld [vmem:[%s192 + $0x10] sm:$0xf]
      %v202 = vld [vmem:[%s192 + $0x18] sm:$0xf]
      %v203 = vld [vmem:[%s192 + $0x20] sm:$0xf]
      %v204 = vld [vmem:[%s192 + $0x28] sm:$0xf]
      %v205 = vld [vmem:[%s192 + $0x30] sm:$0xf]
      %v206 = vld [vmem:[%s192 + $0x38] sm:$0xf]
      %v207 = vld [vmem:[%s1] sm:$0xf]
      %v208 = vld [vmem:[%s1 + $0x4] sm:$0xf]
      %v209 = vld [vmem:[%s1 + $0x8] sm:$0xf]
      %v210 = vld [vmem:[%s1 + $0xc] sm:$0xf]
      %v211 = vld [vmem:[%s1 + $0x10] sm:$0xf]
      %v212 = vld [vmem:[%s1 + $0x14] sm:$0xf]
      %v213 = vld [vmem:[%s1 + $0x18] sm:$0xf]
      %v214 = vld [vmem:[%s1 + $0x1c] sm:$0xf]
      %v215 = vld [vmem:[%s1 + $0x20] sm:$0xf]
      %v216 = vld [vmem:[%s1 + $0x24] sm:$0xf]
      %v217 = vld [vmem:[%s1 + $0x28] sm:$0xf]
      %v218 = vld [vmem:[%s1 + $0x2c] sm:$0xf]
      %v219 = vld [vmem:[%s1 + $0x30] sm:$0xf]
      %v220 = vld [vmem:[%s1 + $0x34] sm:$0xf]
      %v221 = vld [vmem:[%s1 + $0x38] sm:$0xf]
      %v222 = vld [vmem:[%s1 + $0x3c] sm:$0xf]
      %v223 = vld [vmem:[%s192 + $0x4] sm:$0x1]
      %v224 = vld [vmem:[%s192 + $0xc] sm:$0x1]
      %v225 = vld [vmem:[%s192 + $0x14] sm:$0x1]
      %v226 = vld [vmem:[%s192 + $0x1c] sm:$0x1]
      %v227 = vld [vmem:[%s192 + $0x24] sm:$0x1]
      %v228 = vld [vmem:[%s192 + $0x2c] sm:$0x1]
      %v229 = vld [vmem:[%s192 + $0x34] sm:$0x1]
      %v230 = vld [vmem:[%s192 + $0x3c] sm:$0x1]
      %vm231 = vsmask.f32 3328
      %vm232 = vsmask.f32 7440
      %vm233 = vmor %vm231, %vm232
      %v235 = vshrl.u32 %v199, 16
      %v237 = vrot.slane %v235, 4
      %v238 = vshll.u32 %v199, 16
      %v240 = vrot.slane %v238, 5
      %v241 = vor.u32 %v237, %v240
      %v242 = vrot.slane %v241, 4
      %v244 = vshll.u32 %v223, 16
      %v246 = vrot.slane %v244, 5
      %v247 = vsel %vm233, %v242, %v246
      %v249 = vshrl.u32 %v200, 16
      %v251 = vrot.slane %v249, 4
      %v252 = vshll.u32 %v200, 16
      %v254 = vrot.slane %v252, 5
      %v255 = vor.u32 %v251, %v254
      %v256 = vrot.slane %v255, 4
      %v258 = vshll.u32 %v224, 16
      %v260 = vrot.slane %v258, 5
      %v261 = vsel %vm233, %v256, %v260
      %v263 = vshrl.u32 %v201, 16
      %v265 = vrot.slane %v263, 4
      %v266 = vshll.u32 %v201, 16
      %v268 = vrot.slane %v266, 5
      %v269 = vor.u32 %v265, %v268
      %v270 = vrot.slane %v269, 4
      %v272 = vshll.u32 %v225, 16
      %v274 = vrot.slane %v272, 5
      %v275 = vsel %vm233, %v270, %v274
      %v277 = vshrl.u32 %v202, 16
      %v279 = vrot.slane %v277, 4
      %v280 = vshll.u32 %v202, 16
      %v282 = vrot.slane %v280, 5
      %v283 = vor.u32 %v279, %v282
      %v284 = vrot.slane %v283, 4
      %v286 = vshll.u32 %v226, 16
      %v288 = vrot.slane %v286, 5
      %v289 = vsel %vm233, %v284, %v288
      %v291 = vshrl.u32 %v203, 16
      %v293 = vrot.slane %v291, 4
      %v294 = vshll.u32 %v203, 16
      %v296 = vrot.slane %v294, 5
      %v297 = vor.u32 %v293, %v296
      %v298 = vrot.slane %v297, 4
      %v300 = vshll.u32 %v227, 16
      %v302 = vrot.slane %v300, 5
      %v303 = vsel %vm233, %v298, %v302
      %v305 = vshrl.u32 %v204, 16
      %v307 = vrot.slane %v305, 4
      %v308 = vshll.u32 %v204, 16
      %v310 = vrot.slane %v308, 5
      %v311 = vor.u32 %v307, %v310
      %v312 = vrot.slane %v311, 4
      %v314 = vshll.u32 %v228, 16
      %v316 = vrot.slane %v314, 5
      %v317 = vsel %vm233, %v312, %v316
      %v319 = vshrl.u32 %v205, 16
      %v321 = vrot.slane %v319, 4
      %v322 = vshll.u32 %v205, 16
      %v324 = vrot.slane %v322, 5
      %v325 = vor.u32 %v321, %v324
      %v326 = vrot.slane %v325, 4
      %v328 = vshll.u32 %v229, 16
      %v330 = vrot.slane %v328, 5
      %v331 = vsel %vm233, %v326, %v330
      %v333 = vshrl.u32 %v206, 16
      %v335 = vrot.slane %v333, 4
      %v336 = vshll.u32 %v206, 16
      %v338 = vrot.slane %v336, 5
      %v339 = vor.u32 %v335, %v338
      %v340 = vrot.slane %v339, 4
      %v342 = vshll.u32 %v230, 16
      %v344 = vrot.slane %v342, 5
      %v345 = vsel %vm233, %v340, %v344
      %s346 = scalar_lea.vmem %s1, 64
      %v347 = vld [vmem:[%s346] sm:$0xf]
      %v348 = vld [vmem:[%s346 + $0x4] sm:$0xf]
      %v349 = vld [vmem:[%s346 + $0x8] sm:$0xf]
      %v350 = vld [vmem:[%s346 + $0xc] sm:$0xf]
      %v351 = vld [vmem:[%s346 + $0x10] sm:$0xf]
      %v352 = vld [vmem:[%s346 + $0x14] sm:$0xf]
      %v353 = vld [vmem:[%s346 + $0x18] sm:$0xf]
      %v354 = vld [vmem:[%s346 + $0x1c] sm:$0xf]
      %v355 = vld [vmem:[%s346 + $0x20] sm:$0xf]
      %v356 = vld [vmem:[%s346 + $0x24] sm:$0xf]
      %v357 = vld [vmem:[%s346 + $0x28] sm:$0xf]
      %v358 = vld [vmem:[%s346 + $0x2c] sm:$0xf]
      %v359 = vld [vmem:[%s346 + $0x30] sm:$0xf]
      %v360 = vld [vmem:[%s346 + $0x34] sm:$0xf]
      %v361 = vld [vmem:[%s346 + $0x38] sm:$0xf]
      %v362 = vld [vmem:[%s346 + $0x3c] sm:$0xf]
      %v363 = vunpack.c.l.b16 %v247
      %v364 = vunpack.c.l.b16 %v261
      %v365 = vunpack.c.l.b16 %v275
      %v366 = vunpack.c.l.b16 %v289
      %v367 = vunpack.c.l.b16 %v303
      %v368 = vunpack.c.l.b16 %v317
      %v369 = vunpack.c.l.b16 %v331
      %v370 = vunpack.c.l.b16 %v345
      %v371 = vpack.c.b16 %v364, %v363
      %v372 = vpack.c.b16 %v366, %v365
      %v373 = vpack.c.b16 %v368, %v367
      %v374 = vpack.c.b16 %v370, %v369
      %v395 = vunpack.c.l.b16 %v347
      %v396 = vunpack.c.l.b16 %v348
      %v397 = vunpack.c.l.b16 %v349
      %v398 = vunpack.c.l.b16 %v350
      %v399 = vunpack.c.l.b16 %v351
      %v400 = vunpack.c.l.b16 %v352
      %v401 = vunpack.c.l.b16 %v353
      %v402 = vunpack.c.l.b16 %v354
      %v403 = vunpack.c.l.b16 %v355
      %v404 = vunpack.c.l.b16 %v356
      %v405 = vunpack.c.l.b16 %v357
      %v406 = vunpack.c.l.b16 %v358
      %v407 = vunpack.c.l.b16 %v359
      %v408 = vunpack.c.l.b16 %v360
      %v409 = vunpack.c.l.b16 %v361
      %v410 = vunpack.c.l.b16 %v362
      %v411 = vpack.c.b16 %v396, %v395
      %v412 = vpack.c.b16 %v398, %v397
      %v413 = vpack.c.b16 %v400, %v399
      %v414 = vpack.c.b16 %v402, %v401
      %v415 = vpack.c.b16 %v404, %v403
      %v416 = vpack.c.b16 %v406, %v405
      %v417 = vpack.c.b16 %v408, %v407
      %v418 = vpack.c.b16 %v410, %v409
      %427 = vmatprep.subr.bf16.mxu0 0
      %428 = vmatpush1.bf16.msra.mxu0 %v411
      %429 = vmatprep.subr.bf16.mxu0 0
      %430 = vmatpush1.bf16.msra.mxu0 %v412
      %431 = vmatprep.subr.bf16.mxu0 0
      %432 = vmatpush1.bf16.msra.mxu0 %v413
      %433 = vmatprep.subr.bf16.mxu0 0
      %434 = vmatpush1.bf16.msra.mxu0 %v414
      %435 = vmatprep.subr.bf16.mxu0 0
      %436 = vmatpush1.bf16.msra.mxu0 %v415
      %437 = vmatprep.subr.bf16.mxu0 0
      %438 = vmatpush1.bf16.msra.mxu0 %v416
      %439 = vmatprep.subr.bf16.mxu0 0
      %440 = vmatpush1.bf16.msra.mxu0 %v417
      %441 = vmatprep.subr.bf16.mxu0 0
      %442 = vmatpush1.bf16.msra.mxu0 %v418
      %443 = vmatprep.subr.bf16.mxu0 0
      %444 = vmatpush1.bf16.msra.mxu0 0
      %445 = vmatprep.subr.bf16.mxu0 0
      %446 = vmatpush1.bf16.msra.mxu0 0
      %447 = vmatprep.subr.bf16.mxu0 0
      %448 = vmatpush1.bf16.msra.mxu0 0
      %449 = vmatprep.subr.bf16.mxu0 0
      %450 = vmatpush1.bf16.msra.mxu0 0
      %451 = vmatprep.subr.bf16.mxu0 0
      %452 = vmatpush1.bf16.msra.mxu0 0
      %453 = vmatprep.subr.bf16.mxu0 0
      %454 = vmatpush1.bf16.msra.mxu0 0
      %455 = vmatprep.subr.bf16.mxu0 0
      %456 = vmatpush1.bf16.msra.mxu0 0
      %457 = vmatprep.subr.bf16.mxu0 0
      %458 = vmatpush1.bf16.msra.mxu0 0
      %459 = vmatprep.mubr.bf16.mxu0 0
      %460 = vmatmul.mubr.bf16.gmra.mrb[0].mxu0 %v371
      %v461 = vpop.f32.mrb[0].mxu0
      %v462 = vadd.f32 0.0, %v461
      %v463 = vpop.f32.mrb[0].mxu0
      %v464 = vpop.f32.mrb[0].mxu0
      %v465 = vadd.f32 0.0, %v464
      %v466 = vpop.f32.mrb[0].mxu0
      %467 = vmatprep.mubr.bf16.mxu0 0
      %468 = vmatmul.mubr.bf16.gmra.mrb[0].mxu0 %v372
      %v469 = vpop.f32.mrb[0].mxu0
      %v470 = vadd.f32 0.0, %v469
      %v471 = vpop.f32.mrb[0].mxu0
      %v472 = vpop.f32.mrb[0].mxu0
      %v473 = vadd.f32 0.0, %v472
      %v474 = vpop.f32.mrb[0].mxu0
      %475 = vmatprep.mubr.bf16.mxu0 0
      %476 = vmatmul.mubr.bf16.gmra.mrb[0].mxu0 %v373
      %v477 = vpop.f32.mrb[0].mxu0
      %v478 = vadd.f32 0.0, %v477
      %v479 = vpop.f32.mrb[0].mxu0
      %v480 = vpop.f32.mrb[0].mxu0
      %v481 = vadd.f32 0.0, %v480
      %v482 = vpop.f32.mrb[0].mxu0
      %483 = vmatprep.mubr.bf16.mxu0 0
      %484 = vmatmul.mubr.bf16.gmra.mrb[0].mxu0 %v374
      %v485 = vpop.f32.mrb[0].mxu0
      %v486 = vadd.f32 0.0, %v485
      %v487 = vpop.f32.mrb[0].mxu0
      %v488 = vpop.f32.mrb[0].mxu0
      %v489 = vadd.f32 0.0, %v488
      %v490 = vpop.f32.mrb[0].mxu0
      %491 = vdwg.mxu0
      %v500 = vunpack.c.l.b16 %v199
      %v501 = vunpack.c.l.b16 %v200
      %v502 = vunpack.c.l.b16 %v201
      %v503 = vunpack.c.l.b16 %v202
      %v504 = vunpack.c.l.b16 %v203
      %v505 = vunpack.c.l.b16 %v204
      %v506 = vunpack.c.l.b16 %v205
      %v507 = vunpack.c.l.b16 %v206
      %v508 = vpack.c.b16 %v501, %v500
      %v509 = vpack.c.b16 %v503, %v502
      %v510 = vpack.c.b16 %v505, %v504
      %v511 = vpack.c.b16 %v507, %v506
      %v532 = vunpack.c.l.b16 %v207
      %v533 = vunpack.c.l.b16 %v208
      %v534 = vunpack.c.l.b16 %v209
      %v535 = vunpack.c.l.b16 %v210
      %v536 = vunpack.c.l.b16 %v211
      %v537 = vunpack.c.l.b16 %v212
      %v538 = vunpack.c.l.b16 %v213
      %v539 = vunpack.c.l.b16 %v214
      %v540 = vunpack.c.l.b16 %v215
      %v541 = vunpack.c.l.b16 %v216
      %v542 = vunpack.c.l.b16 %v217
      %v543 = vunpack.c.l.b16 %v218
      %v544 = vunpack.c.l.b16 %v219
      %v545 = vunpack.c.l.b16 %v220
      %v546 = vunpack.c.l.b16 %v221
      %v547 = vunpack.c.l.b16 %v222
      %v548 = vpack.c.b16 %v533, %v532
      %v549 = vpack.c.b16 %v535, %v534
      %v550 = vpack.c.b16 %v537, %v536
      %v551 = vpack.c.b16 %v539, %v538
      %v552 = vpack.c.b16 %v541, %v540
      %v553 = vpack.c.b16 %v543, %v542
      %v554 = vpack.c.b16 %v545, %v544
      %v555 = vpack.c.b16 %v547, %v546
      %564 = vmatprep.subr.bf16.mxu0 0
      %565 = vmatpush1.bf16.msra.mxu0 %v548
      %566 = vmatprep.subr.bf16.mxu0 0
      %567 = vmatpush1.bf16.msra.mxu0 %v549
      %568 = vmatprep.subr.bf16.mxu0 0
      %569 = vmatpush1.bf16.msra.mxu0 %v550
      %570 = vmatprep.subr.bf16.mxu0 0
      %571 = vmatpush1.bf16.msra.mxu0 %v551
      %572 = vmatprep.subr.bf16.mxu0 0
      %573 = vmatpush1.bf16.msra.mxu0 %v552
      %574 = vmatprep.subr.bf16.mxu0 0
      %575 = vmatpush1.bf16.msra.mxu0 %v553
      %576 = vmatprep.subr.bf16.mxu0 0
      %577 = vmatpush1.bf16.msra.mxu0 %v554
      %578 = vmatprep.subr.bf16.mxu0 0
      %579 = vmatpush1.bf16.msra.mxu0 %v555
      %580 = vmatprep.subr.bf16.mxu0 0
      %581 = vmatpush1.bf16.msra.mxu0 0
      %582 = vmatprep.subr.bf16.mxu0 0
      %583 = vmatpush1.bf16.msra.mxu0 0
      %584 = vmatprep.subr.bf16.mxu0 0
      %585 = vmatpush1.bf16.msra.mxu0 0
      %586 = vmatprep.subr.bf16.mxu0 0
      %587 = vmatpush1.bf16.msra.mxu0 0
      %588 = vmatprep.subr.bf16.mxu0 0
      %589 = vmatpush1.bf16.msra.mxu0 0
      %590 = vmatprep.subr.bf16.mxu0 0
      %591 = vmatpush1.bf16.msra.mxu0 0
      %592 = vmatprep.subr.bf16.mxu0 0
      %593 = vmatpush1.bf16.msra.mxu0 0
      %594 = vmatprep.subr.bf16.mxu0 0
      %595 = vmatpush1.bf16.msra.mxu0 0
      %596 = vmatprep.mubr.bf16.mxu0 0
      %597 = vmatmul.mubr.bf16.gmra.mrb[0].mxu0 %v508
      %v598 = vpop.f32.mrb[0].mxu0
      %v599 = vadd.f32 %v462, %v598
      %v600 = vpop.f32.mrb[0].mxu0
      %v601 = vpop.f32.mrb[0].mxu0
      %v602 = vadd.f32 %v465, %v601
      %v603 = vpop.f32.mrb[0].mxu0
      %604 = vmatprep.mubr.bf16.mxu0 0
      %605 = vmatmul.mubr.bf16.gmra.mrb[0].mxu0 %v509
      %v606 = vpop.f32.mrb[0].mxu0
      %v607 = vadd.f32 %v470, %v606
      %v608 = vpop.f32.mrb[0].mxu0
      %v609 = vpop.f32.mrb[0].mxu0
      %v610 = vadd.f32 %v473, %v609
      %v611 = vpop.f32.mrb[0].mxu0
      %612 = vmatprep.mubr.bf16.mxu0 0
      %613 = vmatmul.mubr.bf16.gmra.mrb[0].mxu0 %v510
      %v614 = vpop.f32.mrb[0].mxu0
      %v615 = vadd.f32 %v478, %v614
      %v616 = vpop.f32.mrb[0].mxu0
      %v617 = vpop.f32.mrb[0].mxu0
      %v618 = vadd.f32 %v481, %v617
      %v619 = vpop.f32.mrb[0].mxu0
      %620 = vmatprep.mubr.bf16.mxu0 0
      %621 = vmatmul.mubr.bf16.gmra.mrb[0].mxu0 %v511
      %v622 = vpop.f32.mrb[0].mxu0
      %v623 = vadd.f32 %v486, %v622
      %v624 = vpop.f32.mrb[0].mxu0
      %v625 = vpop.f32.mrb[0].mxu0
      %v626 = vadd.f32 %v489, %v625
      %v627 = vpop.f32.mrb[0].mxu0
      %628 = vdwg.mxu0
      %v629 = vld [vmem:[%s192] sm:$0xe]
      %v630 = vld [vmem:[%s192 + $0x8] sm:$0xe]
      %v631 = vld [vmem:[%s192 + $0x10] sm:$0xe]
      %v632 = vld [vmem:[%s192 + $0x18] sm:$0xe]
      %v633 = vld [vmem:[%s192 + $0x20] sm:$0xe]
      %v634 = vld [vmem:[%s192 + $0x28] sm:$0xe]
      %v635 = vld [vmem:[%s192 + $0x30] sm:$0xe]
      %v636 = vld [vmem:[%s192 + $0x38] sm:$0xe]
      %vm653 = vcmask 1042432
      %vm654 = vcmask 1046532
      %vm655 = vmor %vm653, %vm654
      %v656 = vrot.slane %v629, 5
      %v657 = vrot.slane %v656, 4
      %v658 = vrot.slane %v223, 5
      %v659 = vsel %vm655, %v657, %v658
      %v660 = vrot.slane %v630, 5
      %v661 = vrot.slane %v660, 4
      %v662 = vrot.slane %v224, 5
      %v663 = vsel %vm655, %v661, %v662
      %v664 = vrot.slane %v631, 5
      %v665 = vrot.slane %v664, 4
      %v666 = vrot.slane %v225, 5
      %v667 = vsel %vm655, %v665, %v666
      %v668 = vrot.slane %v632, 5
      %v669 = vrot.slane %v668, 4
      %v670 = vrot.slane %v226, 5
      %v671 = vsel %vm655, %v669, %v670
      %v672 = vrot.slane %v633, 5
      %v673 = vrot.slane %v672, 4
      %v674 = vrot.slane %v227, 5
      %v675 = vsel %vm655, %v673, %v674
      %v676 = vrot.slane %v634, 5
      %v677 = vrot.slane %v676, 4
      %v678 = vrot.slane %v228, 5
      %v679 = vsel %vm655, %v677, %v678
      %v680 = vrot.slane %v635, 5
      %v681 = vrot.slane %v680, 4
      %v682 = vrot.slane %v229, 5
      %v683 = vsel %vm655, %v681, %v682
      %v684 = vrot.slane %v636, 5
      %v685 = vrot.slane %v684, 4
      %v686 = vrot.slane %v230, 5
      %v687 = vsel %vm655, %v685, %v686
      %s688 = scalar_lea.vmem %s1, 128
      %v689 = vld [vmem:[%s688] sm:$0xf]
      %v690 = vld [vmem:[%s688 + $0x4] sm:$0xf]
      %v691 = vld [vmem:[%s688 + $0x8] sm:$0xf]
      %v692 = vld [vmem:[%s688 + $0xc] sm:$0xf]
      %v693 = vld [vmem:[%s688 + $0x10] sm:$0xf]
      %v694 = vld [vmem:[%s688 + $0x14] sm:$0xf]
      %v695 = vld [vmem:[%s688 + $0x18] sm:$0xf]
      %v696 = vld [vmem:[%s688 + $0x1c] sm:$0xf]
      %v697 = vld [vmem:[%s688 + $0x20] sm:$0xf]
      %v698 = vld [vmem:[%s688 + $0x24] sm:$0xf]
      %v699 = vld [vmem:[%s688 + $0x28] sm:$0xf]
      %v700 = vld [vmem:[%s688 + $0x2c] sm:$0xf]
      %v701 = vld [vmem:[%s688 + $0x30] sm:$0xf]
      %v702 = vld [vmem:[%s688 + $0x34] sm:$0xf]
      %v703 = vld [vmem:[%s688 + $0x38] sm:$0xf]
      %v704 = vld [vmem:[%s688 + $0x3c] sm:$0xf]
      %v705 = vunpack.c.l.b16 %v659
      %v706 = vunpack.c.l.b16 %v663
      %v707 = vunpack.c.l.b16 %v667
      %v708 = vunpack.c.l.b16 %v671
      %v709 = vunpack.c.l.b16 %v675
      %v710 = vunpack.c.l.b16 %v679
      %v711 = vunpack.c.l.b16 %v683
      %v712 = vunpack.c.l.b16 %v687
      %v713 = vpack.c.b16 %v706, %v705
      %v714 = vpack.c.b16 %v708, %v707
      %v715 = vpack.c.b16 %v710, %v709
      %v716 = vpack.c.b16 %v712, %v711
      %v737 = vunpack.c.l.b16 %v689
      %v738 = vunpack.c.l.b16 %v690
      %v739 = vunpack.c.l.b16 %v691
      %v740 = vunpack.c.l.b16 %v692
      %v741 = vunpack.c.l.b16 %v693
      %v742 = vunpack.c.l.b16 %v694
      %v743 = vunpack.c.l.b16 %v695
      %v744 = vunpack.c.l.b16 %v696
      %v745 = vunpack.c.l.b16 %v697
      %v746 = vunpack.c.l.b16 %v698
      %v747 = vunpack.c.l.b16 %v699
      %v748 = vunpack.c.l.b16 %v700
      %v749 = vunpack.c.l.b16 %v701
      %v750 = vunpack.c.l.b16 %v702
      %v751 = vunpack.c.l.b16 %v703
      %v752 = vunpack.c.l.b16 %v704
      %v753 = vpack.c.b16 %v738, %v737
      %v754 = vpack.c.b16 %v740, %v739
      %v755 = vpack.c.b16 %v742, %v741
      %v756 = vpack.c.b16 %v744, %v743
      %v757 = vpack.c.b16 %v746, %v745
      %v758 = vpack.c.b16 %v748, %v747
      %v759 = vpack.c.b16 %v750, %v749
      %v760 = vpack.c.b16 %v752, %v751
      %769 = vmatprep.subr.bf16.mxu0 0
      %770 = vmatpush1.bf16.msra.mxu0 %v753
      %771 = vmatprep.subr.bf16.mxu0 0
      %772 = vmatpush1.bf16.msra.mxu0 %v754
      %773 = vmatprep.subr.bf16.mxu0 0
      %774 = vmatpush1.bf16.msra.mxu0 %v755
      %775 = vmatprep.subr.bf16.mxu0 0
      %776 = vmatpush1.bf16.msra.mxu0 %v756
      %777 = vmatprep.subr.bf16.mxu0 0
      %778 = vmatpush1.bf16.msra.mxu0 %v757
      %779 = vmatprep.subr.bf16.mxu0 0
      %780 = vmatpush1.bf16.msra.mxu0 %v758
      %781 = vmatprep.subr.bf16.mxu0 0
      %782 = vmatpush1.bf16.msra.mxu0 %v759
      %783 = vmatprep.subr.bf16.mxu0 0
      %784 = vmatpush1.bf16.msra.mxu0 %v760
      %785 = vmatprep.subr.bf16.mxu0 0
      %786 = vmatpush1.bf16.msra.mxu0 0
      %787 = vmatprep.subr.bf16.mxu0 0
      %788 = vmatpush1.bf16.msra.mxu0 0
      %789 = vmatprep.subr.bf16.mxu0 0
      %790 = vmatpush1.bf16.msra.mxu0 0
      %791 = vmatprep.subr.bf16.mxu0 0
      %792 = vmatpush1.bf16.msra.mxu0 0
      %793 = vmatprep.subr.bf16.mxu0 0
      %794 = vmatpush1.bf16.msra.mxu0 0
      %795 = vmatprep.subr.bf16.mxu0 0
      %796 = vmatpush1.bf16.msra.mxu0 0
      %797 = vmatprep.subr.bf16.mxu0 0
      %798 = vmatpush1.bf16.msra.mxu0 0
      %799 = vmatprep.subr.bf16.mxu0 0
      %800 = vmatpush1.bf16.msra.mxu0 0
      %801 = vmatprep.mubr.bf16.mxu0 0
      %802 = vmatmul.mubr.bf16.gmra.mrb[0].mxu0 %v713
      %v803 = vpop.f32.mrb[0].mxu0
      %v804 = vadd.f32 0.0, %v803
      %v805 = vpop.f32.mrb[0].mxu0
      %v806 = vpop.f32.mrb[0].mxu0
      %v807 = vadd.f32 0.0, %v806
      %v808 = vpop.f32.mrb[0].mxu0
      %809 = vmatprep.mubr.bf16.mxu0 0
      %810 = vmatmul.mubr.bf16.gmra.mrb[0].mxu0 %v714
      %v811 = vpop.f32.mrb[0].mxu0
      %v812 = vadd.f32 0.0, %v811
      %v813 = vpop.f32.mrb[0].mxu0
      %v814 = vpop.f32.mrb[0].mxu0
      %v815 = vadd.f32 0.0, %v814
      %v816 = vpop.f32.mrb[0].mxu0
      %817 = vmatprep.mubr.bf16.mxu0 0
      %818 = vmatmul.mubr.bf16.gmra.mrb[0].mxu0 %v715
      %v819 = vpop.f32.mrb[0].mxu0
      %v820 = vadd.f32 0.0, %v819
      %v821 = vpop.f32.mrb[0].mxu0
      %v822 = vpop.f32.mrb[0].mxu0
      %v823 = vadd.f32 0.0, %v822
      %v824 = vpop.f32.mrb[0].mxu0
      %825 = vmatprep.mubr.bf16.mxu0 0
      %826 = vmatmul.mubr.bf16.gmra.mrb[0].mxu0 %v716
      %v827 = vpop.f32.mrb[0].mxu0
      %v828 = vadd.f32 0.0, %v827
      %v829 = vpop.f32.mrb[0].mxu0
      %v830 = vpop.f32.mrb[0].mxu0
      %v831 = vadd.f32 0.0, %v830
      %v832 = vpop.f32.mrb[0].mxu0
      %833 = vdwg.mxu0
      %v834 = vadd.f32 %v599, %v804
      %v835 = vadd.f32 %v602, %v807
      %v836 = vadd.f32 %v607, %v812
      %v837 = vadd.f32 %v610, %v815
      %v838 = vadd.f32 %v615, %v820
      %v839 = vadd.f32 %v618, %v823
      %v840 = vadd.f32 %v623, %v828
      %v841 = vadd.f32 %v626, %v831
      %s842 = scalar_lea.vmem %s192, 8
      %v843 = vld [vmem:[%s842] sm:$0xf]
      %v844 = vld [vmem:[%s842 + $0x8] sm:$0xf]
      %v845 = vld [vmem:[%s842 + $0x10] sm:$0xf]
      %v846 = vld [vmem:[%s842 + $0x18] sm:$0xf]
      %v847 = vld [vmem:[%s842 + $0x20] sm:$0xf]
      %v848 = vld [vmem:[%s842 + $0x28] sm:$0xf]
      %v849 = vld [vmem:[%s842 + $0x30] sm:$0xf]
      %v850 = vld [vmem:[%s842 + $0x38] sm:$0xf]
      %s851 = scalar_lea.vmem %s1, 192
      %v852 = vld [vmem:[%s851] sm:$0xf]
      %v853 = vld [vmem:[%s851 + $0x4] sm:$0xf]
      %v854 = vld [vmem:[%s851 + $0x8] sm:$0xf]
      %v855 = vld [vmem:[%s851 + $0xc] sm:$0xf]
      %v856 = vld [vmem:[%s851 + $0x10] sm:$0xf]
      %v857 = vld [vmem:[%s851 + $0x14] sm:$0xf]
      %v858 = vld [vmem:[%s851 + $0x18] sm:$0xf]
      %v859 = vld [vmem:[%s851 + $0x1c] sm:$0xf]
      %v860 = vld [vmem:[%s851 + $0x20] sm:$0xf]
      %v861 = vld [vmem:[%s851 + $0x24] sm:$0xf]
      %v862 = vld [vmem:[%s851 + $0x28] sm:$0xf]
      %v863 = vld [vmem:[%s851 + $0x2c] sm:$0xf]
      %v864 = vld [vmem:[%s851 + $0x30] sm:$0xf]
      %v865 = vld [vmem:[%s851 + $0x34] sm:$0xf]
      %v866 = vld [vmem:[%s851 + $0x38] sm:$0xf]
      %v867 = vld [vmem:[%s851 + $0x3c] sm:$0xf]
      %v876 = vunpack.c.l.b16 %v843
      %v877 = vunpack.c.l.b16 %v844
      %v878 = vunpack.c.l.b16 %v845
      %v879 = vunpack.c.l.b16 %v846
      %v880 = vunpack.c.l.b16 %v847
      %v881 = vunpack.c.l.b16 %v848
      %v882 = vunpack.c.l.b16 %v849
      %v883 = vunpack.c.l.b16 %v850
      %v884 = vpack.c.b16 %v877, %v876
      %v885 = vpack.c.b16 %v879, %v878
      %v886 = vpack.c.b16 %v881, %v880
      %v887 = vpack.c.b16 %v883, %v882
      %v908 = vunpack.c.l.b16 %v852
      %v909 = vunpack.c.l.b16 %v853
      %v910 = vunpack.c.l.b16 %v854
      %v911 = vunpack.c.l.b16 %v855
      %v912 = vunpack.c.l.b16 %v856
      %v913 = vunpack.c.l.b16 %v857
      %v914 = vunpack.c.l.b16 %v858
      %v915 = vunpack.c.l.b16 %v859
      %v916 = vunpack.c.l.b16 %v860
      %v917 = vunpack.c.l.b16 %v861
      %v918 = vunpack.c.l.b16 %v862
      %v919 = vunpack.c.l.b16 %v863
      %v920 = vunpack.c.l.b16 %v864
      %v921 = vunpack.c.l.b16 %v865
      %v922 = vunpack.c.l.b16 %v866
      %v923 = vunpack.c.l.b16 %v867
      %v924 = vpack.c.b16 %v909, %v908
      %v925 = vpack.c.b16 %v911, %v910
      %v926 = vpack.c.b16 %v913, %v912
      %v927 = vpack.c.b16 %v915, %v914
      %v928 = vpack.c.b16 %v917, %v916
      %v929 = vpack.c.b16 %v919, %v918
      %v930 = vpack.c.b16 %v921, %v920
      %v931 = vpack.c.b16 %v923, %v922
      %940 = vmatprep.subr.bf16.mxu0 0
      %941 = vmatpush1.bf16.msra.mxu0 %v924
      %942 = vmatprep.subr.bf16.mxu0 0
      %943 = vmatpush1.bf16.msra.mxu0 %v925
      %944 = vmatprep.subr.bf16.mxu0 0
      %945 = vmatpush1.bf16.msra.mxu0 %v926
      %946 = vmatprep.subr.bf16.mxu0 0
      %947 = vmatpush1.bf16.msra.mxu0 %v927
      %948 = vmatprep.subr.bf16.mxu0 0
      %949 = vmatpush1.bf16.msra.mxu0 %v928
      %950 = vmatprep.subr.bf16.mxu0 0
      %951 = vmatpush1.bf16.msra.mxu0 %v929
      %952 = vmatprep.subr.bf16.mxu0 0
      %953 = vmatpush1.bf16.msra.mxu0 %v930
      %954 = vmatprep.subr.bf16.mxu0 0
      %955 = vmatpush1.bf16.msra.mxu0 %v931
      %956 = vmatprep.subr.bf16.mxu0 0
      %957 = vmatpush1.bf16.msra.mxu0 0
      %958 = vmatprep.subr.bf16.mxu0 0
      %959 = vmatpush1.bf16.msra.mxu0 0
      %960 = vmatprep.subr.bf16.mxu0 0
      %961 = vmatpush1.bf16.msra.mxu0 0
      %962 = vmatprep.subr.bf16.mxu0 0
      %963 = vmatpush1.bf16.msra.mxu0 0
      %964 = vmatprep.subr.bf16.mxu0 0
      %965 = vmatpush1.bf16.msra.mxu0 0
      %966 = vmatprep.subr.bf16.mxu0 0
      %967 = vmatpush1.bf16.msra.mxu0 0
      %968 = vmatprep.subr.bf16.mxu0 0
      %969 = vmatpush1.bf16.msra.mxu0 0
      %970 = vmatprep.subr.bf16.mxu0 0
      %971 = vmatpush1.bf16.msra.mxu0 0
      %972 = vmatprep.mubr.bf16.mxu0 0
      %973 = vmatmul.mubr.bf16.gmra.mrb[0].mxu0 %v884
      %v974 = vpop.f32.mrb[0].mxu0
      %v975 = vadd.f32 0.0, %v974
      %v976 = vpop.f32.mrb[0].mxu0
      %v977 = vpop.f32.mrb[0].mxu0
      %v978 = vadd.f32 0.0, %v977
      %v979 = vpop.f32.mrb[0].mxu0
      %980 = vmatprep.mubr.bf16.mxu0 0
      %981 = vmatmul.mubr.bf16.gmra.mrb[0].mxu0 %v885
      %v982 = vpop.f32.mrb[0].mxu0
      %v983 = vadd.f32 0.0, %v982
      %v984 = vpop.f32.mrb[0].mxu0
      %v985 = vpop.f32.mrb[0].mxu0
      %v986 = vadd.f32 0.0, %v985
      %v987 = vpop.f32.mrb[0].mxu0
      %988 = vmatprep.mubr.bf16.mxu0 0
      %989 = vmatmul.mubr.bf16.gmra.mrb[0].mxu0 %v886
      %v990 = vpop.f32.mrb[0].mxu0
      %v991 = vadd.f32 0.0, %v990
      %v992 = vpop.f32.mrb[0].mxu0
      %v993 = vpop.f32.mrb[0].mxu0
      %v994 = vadd.f32 0.0, %v993
      %v995 = vpop.f32.mrb[0].mxu0
      %996 = vmatprep.mubr.bf16.mxu0 0
      %997 = vmatmul.mubr.bf16.gmra.mrb[0].mxu0 %v887
      %v998 = vpop.f32.mrb[0].mxu0
      %v999 = vadd.f32 0.0, %v998
      %v1000 = vpop.f32.mrb[0].mxu0
      %v1001 = vpop.f32.mrb[0].mxu0
      %v1002 = vadd.f32 0.0, %v1001
      %v1003 = vpop.f32.mrb[0].mxu0
      %1004 = vdwg.mxu0
      %v1005 = vadd.f32 %v834, %v975
      %v1006 = vadd.f32 %v835, %v978
      %v1007 = vadd.f32 %v836, %v983
      %v1008 = vadd.f32 %v837, %v986
      %v1009 = vadd.f32 %v838, %v991
      %v1010 = vadd.f32 %v839, %v994
      %v1011 = vadd.f32 %v840, %v999
      %v1012 = vadd.f32 %v841, %v1002
      %v1013 = vld [vmem:[%s842] sm:$0xf]
      %v1014 = vld [vmem:[%s842 + $0x4] sm:$0x1]
      %v1015 = vld [vmem:[%s842 + $0x8] sm:$0xf]
      %v1016 = vld [vmem:[%s842 + $0xc] sm:$0x1]
      %v1017 = vld [vmem:[%s842 + $0x10] sm:$0xf]
      %v1018 = vld [vmem:[%s842 + $0x14] sm:$0x1]
      %v1019 = vld [vmem:[%s842 + $0x18] sm:$0xf]
      %v1020 = vld [vmem:[%s842 + $0x1c] sm:$0x1]
      %v1021 = vld [vmem:[%s842 + $0x20] sm:$0xf]
      %v1022 = vld [vmem:[%s842 + $0x24] sm:$0x1]
      %v1023 = vld [vmem:[%s842 + $0x28] sm:$0xf]
      %v1024 = vld [vmem:[%s842 + $0x2c] sm:$0x1]
      %v1025 = vld [vmem:[%s842 + $0x30] sm:$0xf]
      %v1026 = vld [vmem:[%s842 + $0x34] sm:$0x1]
      %v1027 = vld [vmem:[%s842 + $0x38] sm:$0xf]
      %v1028 = vld [vmem:[%s842 + $0x3c] sm:$0x1]
      %v1030 = vshrl.u32 %v1013, 16
      %v1032 = vrot.slane %v1030, 4
      %v1033 = vshll.u32 %v1013, 16
      %v1035 = vrot.slane %v1033, 5
      %v1036 = vor.u32 %v1032, %v1035
      %v1037 = vrot.slane %v1036, 4
      %v1039 = vshll.u32 %v1014, 16
      %v1041 = vrot.slane %v1039, 5
      %v1042 = vsel %vm233, %v1037, %v1041
      %v1044 = vshrl.u32 %v1015, 16
      %v1046 = vrot.slane %v1044, 4
      %v1047 = vshll.u32 %v1015, 16
      %v1049 = vrot.slane %v1047, 5
      %v1050 = vor.u32 %v1046, %v1049
      %v1051 = vrot.slane %v1050, 4
      %v1053 = vshll.u32 %v1016, 16
      %v1055 = vrot.slane %v1053, 5
      %v1056 = vsel %vm233, %v1051, %v1055
      %v1058 = vshrl.u32 %v1017, 16
      %v1060 = vrot.slane %v1058, 4
      %v1061 = vshll.u32 %v1017, 16
      %v1063 = vrot.slane %v1061, 5
      %v1064 = vor.u32 %v1060, %v1063
      %v1065 = vrot.slane %v1064, 4
      %v1067 = vshll.u32 %v1018, 16
      %v1069 = vrot.slane %v1067, 5
      %v1070 = vsel %vm233, %v1065, %v1069
      %v1072 = vshrl.u32 %v1019, 16
      %v1074 = vrot.slane %v1072, 4
      %v1075 = vshll.u32 %v1019, 16
      %v1077 = vrot.slane %v1075, 5
      %v1078 = vor.u32 %v1074, %v1077
      %v1079 = vrot.slane %v1078, 4
      %v1081 = vshll.u32 %v1020, 16
      %v1083 = vrot.slane %v1081, 5
      %v1084 = vsel %vm233, %v1079, %v1083
      %v1086 = vshrl.u32 %v1021, 16
      %v1088 = vrot.slane %v1086, 4
      %v1089 = vshll.u32 %v1021, 16
      %v1091 = vrot.slane %v1089, 5
      %v1092 = vor.u32 %v1088, %v1091
      %v1093 = vrot.slane %v1092, 4
      %v1095 = vshll.u32 %v1022, 16
      %v1097 = vrot.slane %v1095, 5
      %v1098 = vsel %vm233, %v1093, %v1097
      %v1100 = vshrl.u32 %v1023, 16
      %v1102 = vrot.slane %v1100, 4
      %v1103 = vshll.u32 %v1023, 16
      %v1105 = vrot.slane %v1103, 5
      %v1106 = vor.u32 %v1102, %v1105
      %v1107 = vrot.slane %v1106, 4
      %v1109 = vshll.u32 %v1024, 16
      %v1111 = vrot.slane %v1109, 5
      %v1112 = vsel %vm233, %v1107, %v1111
      %v1114 = vshrl.u32 %v1025, 16
      %v1116 = vrot.slane %v1114, 4
      %v1117 = vshll.u32 %v1025, 16
      %v1119 = vrot.slane %v1117, 5
      %v1120 = vor.u32 %v1116, %v1119
      %v1121 = vrot.slane %v1120, 4
      %v1123 = vshll.u32 %v1026, 16
      %v1125 = vrot.slane %v1123, 5
      %v1126 = vsel %vm233, %v1121, %v1125
      %v1128 = vshrl.u32 %v1027, 16
      %v1130 = vrot.slane %v1128, 4
      %v1131 = vshll.u32 %v1027, 16
      %v1133 = vrot.slane %v1131, 5
      %v1134 = vor.u32 %v1130, %v1133
      %v1135 = vrot.slane %v1134, 4
      %v1137 = vshll.u32 %v1028, 16
      %v1139 = vrot.slane %v1137, 5
      %v1140 = vsel %vm233, %v1135, %v1139
      %s1141 = scalar_lea.vmem %s1, 256
      %v1142 = vld [vmem:[%s1141] sm:$0xf]
      %v1143 = vld [vmem:[%s1141 + $0x4] sm:$0xf]
      %v1144 = vld [vmem:[%s1141 + $0x8] sm:$0xf]
      %v1145 = vld [vmem:[%s1141 + $0xc] sm:$0xf]
      %v1146 = vld [vmem:[%s1141 + $0x10] sm:$0xf]
      %v1147 = vld [vmem:[%s1141 + $0x14] sm:$0xf]
      %v1148 = vld [vmem:[%s1141 + $0x18] sm:$0xf]
      %v1149 = vld [vmem:[%s1141 + $0x1c] sm:$0xf]
      %v1150 = vld [vmem:[%s1141 + $0x20] sm:$0xf]
      %v1151 = vld [vmem:[%s1141 + $0x24] sm:$0xf]
      %v1152 = vld [vmem:[%s1141 + $0x28] sm:$0xf]
      %v1153 = vld [vmem:[%s1141 + $0x2c] sm:$0xf]
      %v1154 = vld [vmem:[%s1141 + $0x30] sm:$0xf]
      %v1155 = vld [vmem:[%s1141 + $0x34] sm:$0xf]
      %v1156 = vld [vmem:[%s1141 + $0x38] sm:$0xf]
      %v1157 = vld [vmem:[%s1141 + $0x3c] sm:$0xf]
      %v1158 = vunpack.c.l.b16 %v1042
      %v1159 = vunpack.c.l.b16 %v1056
      %v1160 = vunpack.c.l.b16 %v1070
      %v1161 = vunpack.c.l.b16 %v1084
      %v1162 = vunpack.c.l.b16 %v1098
      %v1163 = vunpack.c.l.b16 %v1112
      %v1164 = vunpack.c.l.b16 %v1126
      %v1165 = vunpack.c.l.b16 %v1140
      %v1166 = vpack.c.b16 %v1159, %v1158
      %v1167 = vpack.c.b16 %v1161, %v1160
      %v1168 = vpack.c.b16 %v1163, %v1162
      %v1169 = vpack.c.b16 %v1165, %v1164
      %v1190 = vunpack.c.l.b16 %v1142
      %v1191 = vunpack.c.l.b16 %v1143
      %v1192 = vunpack.c.l.b16 %v1144
      %v1193 = vunpack.c.l.b16 %v1145
      %v1194 = vunpack.c.l.b16 %v1146
      %v1195 = vunpack.c.l.b16 %v1147
      %v1196 = vunpack.c.l.b16 %v1148
      %v1197 = vunpack.c.l.b16 %v1149
      %v1198 = vunpack.c.l.b16 %v1150
      %v1199 = vunpack.c.l.b16 %v1151
      %v1200 = vunpack.c.l.b16 %v1152
      %v1201 = vunpack.c.l.b16 %v1153
      %v1202 = vunpack.c.l.b16 %v1154
      %v1203 = vunpack.c.l.b16 %v1155
      %v1204 = vunpack.c.l.b16 %v1156
      %v1205 = vunpack.c.l.b16 %v1157
      %v1206 = vpack.c.b16 %v1191, %v1190
      %v1207 = vpack.c.b16 %v1193, %v1192
      %v1208 = vpack.c.b16 %v1195, %v1194
      %v1209 = vpack.c.b16 %v1197, %v1196
      %v1210 = vpack.c.b16 %v1199, %v1198
      %v1211 = vpack.c.b16 %v1201, %v1200
      %v1212 = vpack.c.b16 %v1203, %v1202
      %v1213 = vpack.c.b16 %v1205, %v1204
      %1222 = vmatprep.subr.bf16.mxu0 0
      %1223 = vmatpush1.bf16.msra.mxu0 %v1206
      %1224 = vmatprep.subr.bf16.mxu0 0
      %1225 = vmatpush1.bf16.msra.mxu0 %v1207
      %1226 = vmatprep.subr.bf16.mxu0 0
      %1227 = vmatpush1.bf16.msra.mxu0 %v1208
      %1228 = vmatprep.subr.bf16.mxu0 0
      %1229 = vmatpush1.bf16.msra.mxu0 %v1209
      %1230 = vmatprep.subr.bf16.mxu0 0
      %1231 = vmatpush1.bf16.msra.mxu0 %v1210
      %1232 = vmatprep.subr.bf16.mxu0 0
      %1233 = vmatpush1.bf16.msra.mxu0 %v1211
      %1234 = vmatprep.subr.bf16.mxu0 0
      %1235 = vmatpush1.bf16.msra.mxu0 %v1212
      %1236 = vmatprep.subr.bf16.mxu0 0
      %1237 = vmatpush1.bf16.msra.mxu0 %v1213
      %1238 = vmatprep.subr.bf16.mxu0 0
      %1239 = vmatpush1.bf16.msra.mxu0 0
      %1240 = vmatprep.subr.bf16.mxu0 0
      %1241 = vmatpush1.bf16.msra.mxu0 0
      %1242 = vmatprep.subr.bf16.mxu0 0
      %1243 = vmatpush1.bf16.msra.mxu0 0
      %1244 = vmatprep.subr.bf16.mxu0 0
      %1245 = vmatpush1.bf16.msra.mxu0 0
      %1246 = vmatprep.subr.bf16.mxu0 0
      %1247 = vmatpush1.bf16.msra.mxu0 0
      %1248 = vmatprep.subr.bf16.mxu0 0
      %1249 = vmatpush1.bf16.msra.mxu0 0
      %1250 = vmatprep.subr.bf16.mxu0 0
      %1251 = vmatpush1.bf16.msra.mxu0 0
      %1252 = vmatprep.subr.bf16.mxu0 0
      %1253 = vmatpush1.bf16.msra.mxu0 0
      %1254 = vmatprep.mubr.bf16.mxu0 0
      %1255 = vmatmul.mubr.bf16.gmra.mrb[0].mxu0 %v1166
      %v1256 = vpop.f32.mrb[0].mxu0
      %v1257 = vadd.f32 0.0, %v1256
      %v1258 = vpop.f32.mrb[0].mxu0
      %v1259 = vpop.f32.mrb[0].mxu0
      %v1260 = vadd.f32 0.0, %v1259
      %v1261 = vpop.f32.mrb[0].mxu0
      %1262 = vmatprep.mubr.bf16.mxu0 0
      %1263 = vmatmul.mubr.bf16.gmra.mrb[0].mxu0 %v1167
      %v1264 = vpop.f32.mrb[0].mxu0
      %v1265 = vadd.f32 0.0, %v1264
      %v1266 = vpop.f32.mrb[0].mxu0
      %v1267 = vpop.f32.mrb[0].mxu0
      %v1268 = vadd.f32 0.0, %v1267
      %v1269 = vpop.f32.mrb[0].mxu0
      %1270 = vmatprep.mubr.bf16.mxu0 0
      %1271 = vmatmul.mubr.bf16.gmra.mrb[0].mxu0 %v1168
      %v1272 = vpop.f32.mrb[0].mxu0
      %v1273 = vadd.f32 0.0, %v1272
      %v1274 = vpop.f32.mrb[0].mxu0
      %v1275 = vpop.f32.mrb[0].mxu0
      %v1276 = vadd.f32 0.0, %v1275
      %v1277 = vpop.f32.mrb[0].mxu0
      %1278 = vmatprep.mubr.bf16.mxu0 0
      %1279 = vmatmul.mubr.bf16.gmra.mrb[0].mxu0 %v1169
      %v1280 = vpop.f32.mrb[0].mxu0
      %v1281 = vadd.f32 0.0, %v1280
      %v1282 = vpop.f32.mrb[0].mxu0
      %v1283 = vpop.f32.mrb[0].mxu0
      %v1284 = vadd.f32 0.0, %v1283
      %v1285 = vpop.f32.mrb[0].mxu0
      %1286 = vdwg.mxu0
      %v1287 = vadd.f32 %v1005, %v1257
      %v1288 = vadd.f32 %v1006, %v1260
      %v1289 = vadd.f32 %v1007, %v1265
      %v1290 = vadd.f32 %v1008, %v1268
      %v1291 = vadd.f32 %v1009, %v1273
      %v1292 = vadd.f32 %v1010, %v1276
      %v1293 = vadd.f32 %v1011, %v1281
      %v1294 = vadd.f32 %v1012, %v1284
      %v1295 = vld [vmem:[%s842] sm:$0xe]
      %v1296 = vld [vmem:[%s842 + $0x8] sm:$0xe]
      %v1297 = vld [vmem:[%s842 + $0x10] sm:$0xe]
      %v1298 = vld [vmem:[%s842 + $0x18] sm:$0xe]
      %v1299 = vld [vmem:[%s842 + $0x20] sm:$0xe]
      %v1300 = vld [vmem:[%s842 + $0x28] sm:$0xe]
      %v1301 = vld [vmem:[%s842 + $0x30] sm:$0xe]
      %v1302 = vld [vmem:[%s842 + $0x38] sm:$0xe]
      %v1319 = vrot.slane %v1295, 5
      %v1320 = vrot.slane %v1319, 4
      %v1321 = vrot.slane %v1014, 5
      %v1322 = vsel %vm655, %v1320, %v1321
      %v1323 = vrot.slane %v1296, 5
      %v1324 = vrot.slane %v1323, 4
      %v1325 = vrot.slane %v1016, 5
      %v1326 = vsel %vm655, %v1324, %v1325
      %v1327 = vrot.slane %v1297, 5
      %v1328 = vrot.slane %v1327, 4
      %v1329 = vrot.slane %v1018, 5
      %v1330 = vsel %vm655, %v1328, %v1329
      %v1331 = vrot.slane %v1298, 5
      %v1332 = vrot.slane %v1331, 4
      %v1333 = vrot.slane %v1020, 5
      %v1334 = vsel %vm655, %v1332, %v1333
      %v1335 = vrot.slane %v1299, 5
      %v1336 = vrot.slane %v1335, 4
      %v1337 = vrot.slane %v1022, 5
      %v1338 = vsel %vm655, %v1336, %v1337
      %v1339 = vrot.slane %v1300, 5
      %v1340 = vrot.slane %v1339, 4
      %v1341 = vrot.slane %v1024, 5
      %v1342 = vsel %vm655, %v1340, %v1341
      %v1343 = vrot.slane %v1301, 5
      %v1344 = vrot.slane %v1343, 4
      %v1345 = vrot.slane %v1026, 5
      %v1346 = vsel %vm655, %v1344, %v1345
      %v1347 = vrot.slane %v1302, 5
      %v1348 = vrot.slane %v1347, 4
      %v1349 = vrot.slane %v1028, 5
      %v1350 = vsel %vm655, %v1348, %v1349
      %s1351 = scalar_lea.vmem %s1, 320
      %v1352 = vld [vmem:[%s1351] sm:$0xf]
      %v1353 = vld [vmem:[%s1351 + $0x4] sm:$0xf]
      %v1354 = vld [vmem:[%s1351 + $0x8] sm:$0xf]
      %v1355 = vld [vmem:[%s1351 + $0xc] sm:$0xf]
      %v1356 = vld [vmem:[%s1351 + $0x10] sm:$0xf]
      %v1357 = vld [vmem:[%s1351 + $0x14] sm:$0xf]
      %v1358 = vld [vmem:[%s1351 + $0x18] sm:$0xf]
      %v1359 = vld [vmem:[%s1351 + $0x1c] sm:$0xf]
      %v1360 = vld [vmem:[%s1351 + $0x20] sm:$0xf]
      %v1361 = vld [vmem:[%s1351 + $0x24] sm:$0xf]
      %v1362 = vld [vmem:[%s1351 + $0x28] sm:$0xf]
      %v1363 = vld [vmem:[%s1351 + $0x2c] sm:$0xf]
      %v1364 = vld [vmem:[%s1351 + $0x30] sm:$0xf]
      %v1365 = vld [vmem:[%s1351 + $0x34] sm:$0xf]
      %v1366 = vld [vmem:[%s1351 + $0x38] sm:$0xf]
      %v1367 = vld [vmem:[%s1351 + $0x3c] sm:$0xf]
      %v1368 = vunpack.c.l.b16 %v1322
      %v1369 = vunpack.c.l.b16 %v1326
      %v1370 = vunpack.c.l.b16 %v1330
      %v1371 = vunpack.c.l.b16 %v1334
      %v1372 = vunpack.c.l.b16 %v1338
      %v1373 = vunpack.c.l.b16 %v1342
      %v1374 = vunpack.c.l.b16 %v1346
      %v1375 = vunpack.c.l.b16 %v1350
      %v1376 = vpack.c.b16 %v1369, %v1368
      %v1377 = vpack.c.b16 %v1371, %v1370
      %v1378 = vpack.c.b16 %v1373, %v1372
      %v1379 = vpack.c.b16 %v1375, %v1374
      %v1400 = vunpack.c.l.b16 %v1352
      %v1401 = vunpack.c.l.b16 %v1353
      %v1402 = vunpack.c.l.b16 %v1354
      %v1403 = vunpack.c.l.b16 %v1355
      %v1404 = vunpack.c.l.b16 %v1356
      %v1405 = vunpack.c.l.b16 %v1357
      %v1406 = vunpack.c.l.b16 %v1358
      %v1407 = vunpack.c.l.b16 %v1359
      %v1408 = vunpack.c.l.b16 %v1360
      %v1409 = vunpack.c.l.b16 %v1361
      %v1410 = vunpack.c.l.b16 %v1362
      %v1411 = vunpack.c.l.b16 %v1363
      %v1412 = vunpack.c.l.b16 %v1364
      %v1413 = vunpack.c.l.b16 %v1365
      %v1414 = vunpack.c.l.b16 %v1366
      %v1415 = vunpack.c.l.b16 %v1367
      %v1416 = vpack.c.b16 %v1401, %v1400
      %v1417 = vpack.c.b16 %v1403, %v1402
      %v1418 = vpack.c.b16 %v1405, %v1404
      %v1419 = vpack.c.b16 %v1407, %v1406
      %v1420 = vpack.c.b16 %v1409, %v1408
      %v1421 = vpack.c.b16 %v1411, %v1410
      %v1422 = vpack.c.b16 %v1413, %v1412
      %v1423 = vpack.c.b16 %v1415, %v1414
      %1432 = vmatprep.subr.bf16.mxu0 0
      %1433 = vmatpush1.bf16.msra.mxu0 %v1416
      %1434 = vmatprep.subr.bf16.mxu0 0
      %1435 = vmatpush1.bf16.msra.mxu0 %v1417
      %1436 = vmatprep.subr.bf16.mxu0 0
      %1437 = vmatpush1.bf16.msra.mxu0 %v1418
      %1438 = vmatprep.subr.bf16.mxu0 0
      %1439 = vmatpush1.bf16.msra.mxu0 %v1419
      %1440 = vmatprep.subr.bf16.mxu0 0
      %1441 = vmatpush1.bf16.msra.mxu0 %v1420
      %1442 = vmatprep.subr.bf16.mxu0 0
      %1443 = vmatpush1.bf16.msra.mxu0 %v1421
      %1444 = vmatprep.subr.bf16.mxu0 0
      %1445 = vmatpush1.bf16.msra.mxu0 %v1422
      %1446 = vmatprep.subr.bf16.mxu0 0
      %1447 = vmatpush1.bf16.msra.mxu0 %v1423
      %1448 = vmatprep.subr.bf16.mxu0 0
      %1449 = vmatpush1.bf16.msra.mxu0 0
      %1450 = vmatprep.subr.bf16.mxu0 0
      %1451 = vmatpush1.bf16.msra.mxu0 0
      %1452 = vmatprep.subr.bf16.mxu0 0
      %1453 = vmatpush1.bf16.msra.mxu0 0
      %1454 = vmatprep.subr.bf16.mxu0 0
      %1455 = vmatpush1.bf16.msra.mxu0 0
      %1456 = vmatprep.subr.bf16.mxu0 0
      %1457 = vmatpush1.bf16.msra.mxu0 0
      %1458 = vmatprep.subr.bf16.mxu0 0
      %1459 = vmatpush1.bf16.msra.mxu0 0
      %1460 = vmatprep.subr.bf16.mxu0 0
      %1461 = vmatpush1.bf16.msra.mxu0 0
      %1462 = vmatprep.subr.bf16.mxu0 0
      %1463 = vmatpush1.bf16.msra.mxu0 0
      %1464 = vmatprep.mubr.bf16.mxu0 0
      %1465 = vmatmul.mubr.bf16.gmra.mrb[0].mxu0 %v1376
      %v1466 = vpop.f32.mrb[0].mxu0
      %v1467 = vadd.f32 0.0, %v1466
      %v1468 = vpop.f32.mrb[0].mxu0
      %v1469 = vpop.f32.mrb[0].mxu0
      %v1470 = vadd.f32 0.0, %v1469
      %v1471 = vpop.f32.mrb[0].mxu0
      %1472 = vmatprep.mubr.bf16.mxu0 0
      %1473 = vmatmul.mubr.bf16.gmra.mrb[0].mxu0 %v1377
      %v1474 = vpop.f32.mrb[0].mxu0
      %v1475 = vadd.f32 0.0, %v1474
      %v1476 = vpop.f32.mrb[0].mxu0
      %v1477 = vpop.f32.mrb[0].mxu0
      %v1478 = vadd.f32 0.0, %v1477
      %v1479 = vpop.f32.mrb[0].mxu0
      %1480 = vmatprep.mubr.bf16.mxu0 0
      %1481 = vmatmul.mubr.bf16.gmra.mrb[0].mxu0 %v1378
      %v1482 = vpop.f32.mrb[0].mxu0
      %v1483 = vadd.f32 0.0, %v1482
      %v1484 = vpop.f32.mrb[0].mxu0
      %v1485 = vpop.f32.mrb[0].mxu0
      %v1486 = vadd.f32 0.0, %v1485
      %v1487 = vpop.f32.mrb[0].mxu0
      %1488 = vmatprep.mubr.bf16.mxu0 0
      %1489 = vmatmul.mubr.bf16.gmra.mrb[0].mxu0 %v1379
      %v1490 = vpop.f32.mrb[0].mxu0
      %v1491 = vadd.f32 0.0, %v1490
      %v1492 = vpop.f32.mrb[0].mxu0
      %v1493 = vpop.f32.mrb[0].mxu0
      %v1494 = vadd.f32 0.0, %v1493
      %v1495 = vpop.f32.mrb[0].mxu0
      %1496 = vdwg.mxu0
      %v1497 = vadd.f32 %v1287, %v1467
      %v1498 = vadd.f32 %v1288, %v1470
      %v1499 = vadd.f32 %v1289, %v1475
      %v1500 = vadd.f32 %v1290, %v1478
      %v1501 = vadd.f32 %v1291, %v1483
      %v1502 = vadd.f32 %v1292, %v1486
      %v1503 = vadd.f32 %v1293, %v1491
      %v1504 = vadd.f32 %v1294, %v1494
      %s1505 = scalar_lea.vmem %s192, 16
      %v1506 = vld [vmem:[%s1505] sm:$0xf]
      %v1507 = vld [vmem:[%s1505 + $0x8] sm:$0xf]
      %v1508 = vld [vmem:[%s1505 + $0x10] sm:$0xf]
      %v1509 = vld [vmem:[%s1505 + $0x18] sm:$0xf]
      %v1510 = vld [vmem:[%s1505 + $0x20] sm:$0xf]
      %v1511 = vld [vmem:[%s1505 + $0x28] sm:$0xf]
      %v1512 = vld [vmem:[%s1505 + $0x30] sm:$0xf]
      %v1513 = vld [vmem:[%s1505 + $0x38] sm:$0xf]
      %s1514 = scalar_lea.vmem %s1, 384
      %v1515 = vld [vmem:[%s1514] sm:$0xf]
      %v1516 = vld [vmem:[%s1514 + $0x4] sm:$0xf]
      %v1517 = vld [vmem:[%s1514 + $0x8] sm:$0xf]
      %v1518 = vld [vmem:[%s1514 + $0xc] sm:$0xf]
      %v1519 = vld [vmem:[%s1514 + $0x10] sm:$0xf]
      %v1520 = vld [vmem:[%s1514 + $0x14] sm:$0xf]
      %v1521 = vld [vmem:[%s1514 + $0x18] sm:$0xf]
      %v1522 = vld [vmem:[%s1514 + $0x1c] sm:$0xf]
      %v1523 = vld [vmem:[%s1514 + $0x20] sm:$0xf]
      %v1524 = vld [vmem:[%s1514 + $0x24] sm:$0xf]
      %v1525 = vld [vmem:[%s1514 + $0x28] sm:$0xf]
      %v1526 = vld [vmem:[%s1514 + $0x2c] sm:$0xf]
      %v1527 = vld [vmem:[%s1514 + $0x30] sm:$0xf]
      %v1528 = vld [vmem:[%s1514 + $0x34] sm:$0xf]
      %v1529 = vld [vmem:[%s1514 + $0x38] sm:$0xf]
      %v1530 = vld [vmem:[%s1514 + $0x3c] sm:$0xf]
      %v1539 = vunpack.c.l.b16 %v1506
      %v1540 = vunpack.c.l.b16 %v1507
      %v1541 = vunpack.c.l.b16 %v1508
      %v1542 = vunpack.c.l.b16 %v1509
      %v1543 = vunpack.c.l.b16 %v1510
      %v1544 = vunpack.c.l.b16 %v1511
      %v1545 = vunpack.c.l.b16 %v1512
      %v1546 = vunpack.c.l.b16 %v1513
      %v1547 = vpack.c.b16 %v1540, %v1539
      %v1548 = vpack.c.b16 %v1542, %v1541
      %v1549 = vpack.c.b16 %v1544, %v1543
      %v1550 = vpack.c.b16 %v1546, %v1545
      %v1571 = vunpack.c.l.b16 %v1515
      %v1572 = vunpack.c.l.b16 %v1516
      %v1573 = vunpack.c.l.b16 %v1517
      %v1574 = vunpack.c.l.b16 %v1518
      %v1575 = vunpack.c.l.b16 %v1519
      %v1576 = vunpack.c.l.b16 %v1520
      %v1577 = vunpack.c.l.b16 %v1521
      %v1578 = vunpack.c.l.b16 %v1522
      %v1579 = vunpack.c.l.b16 %v1523
      %v1580 = vunpack.c.l.b16 %v1524
      %v1581 = vunpack.c.l.b16 %v1525
      %v1582 = vunpack.c.l.b16 %v1526
      %v1583 = vunpack.c.l.b16 %v1527
      %v1584 = vunpack.c.l.b16 %v1528
      %v1585 = vunpack.c.l.b16 %v1529
      %v1586 = vunpack.c.l.b16 %v1530
      %v1587 = vpack.c.b16 %v1572, %v1571
      %v1588 = vpack.c.b16 %v1574, %v1573
      %v1589 = vpack.c.b16 %v1576, %v1575
      %v1590 = vpack.c.b16 %v1578, %v1577
      %v1591 = vpack.c.b16 %v1580, %v1579
      %v1592 = vpack.c.b16 %v1582, %v1581
      %v1593 = vpack.c.b16 %v1584, %v1583
      %v1594 = vpack.c.b16 %v1586, %v1585
      %1603 = vmatprep.subr.bf16.mxu0 0
      %1604 = vmatpush1.bf16.msra.mxu0 %v1587
      %1605 = vmatprep.subr.bf16.mxu0 0
      %1606 = vmatpush1.bf16.msra.mxu0 %v1588
      %1607 = vmatprep.subr.bf16.mxu0 0
      %1608 = vmatpush1.bf16.msra.mxu0 %v1589
      %1609 = vmatprep.subr.bf16.mxu0 0
      %1610 = vmatpush1.bf16.msra.mxu0 %v1590
      %1611 = vmatprep.subr.bf16.mxu0 0
      %1612 = vmatpush1.bf16.msra.mxu0 %v1591
      %1613 = vmatprep.subr.bf16.mxu0 0
      %1614 = vmatpush1.bf16.msra.mxu0 %v1592
      %1615 = vmatprep.subr.bf16.mxu0 0
      %1616 = vmatpush1.bf16.msra.mxu0 %v1593
      %1617 = vmatprep.subr.bf16.mxu0 0
      %1618 = vmatpush1.bf16.msra.mxu0 %v1594
      %1619 = vmatprep.subr.bf16.mxu0 0
      %1620 = vmatpush1.bf16.msra.mxu0 0
      %1621 = vmatprep.subr.bf16.mxu0 0
      %1622 = vmatpush1.bf16.msra.mxu0 0
      %1623 = vmatprep.subr.bf16.mxu0 0
      %1624 = vmatpush1.bf16.msra.mxu0 0
      %1625 = vmatprep.subr.bf16.mxu0 0
      %1626 = vmatpush1.bf16.msra.mxu0 0
      %1627 = vmatprep.subr.bf16.mxu0 0
      %1628 = vmatpush1.bf16.msra.mxu0 0
      %1629 = vmatprep.subr.bf16.mxu0 0
      %1630 = vmatpush1.bf16.msra.mxu0 0
      %1631 = vmatprep.subr.bf16.mxu0 0
      %1632 = vmatpush1.bf16.msra.mxu0 0
      %1633 = vmatprep.subr.bf16.mxu0 0
      %1634 = vmatpush1.bf16.msra.mxu0 0
      %1635 = vmatprep.mubr.bf16.mxu0 0
      %1636 = vmatmul.mubr.bf16.gmra.mrb[0].mxu0 %v1547
      %v1637 = vpop.f32.mrb[0].mxu0
      %v1638 = vadd.f32 0.0, %v1637
      %v1639 = vpop.f32.mrb[0].mxu0
      %v1640 = vpop.f32.mrb[0].mxu0
      %v1641 = vadd.f32 0.0, %v1640
      %v1642 = vpop.f32.mrb[0].mxu0
      %1643 = vmatprep.mubr.bf16.mxu0 0
      %1644 = vmatmul.mubr.bf16.gmra.mrb[0].mxu0 %v1548
      %v1645 = vpop.f32.mrb[0].mxu0
      %v1646 = vadd.f32 0.0, %v1645
      %v1647 = vpop.f32.mrb[0].mxu0
      %v1648 = vpop.f32.mrb[0].mxu0
      %v1649 = vadd.f32 0.0, %v1648
      %v1650 = vpop.f32.mrb[0].mxu0
      %1651 = vmatprep.mubr.bf16.mxu0 0
      %1652 = vmatmul.mubr.bf16.gmra.mrb[0].mxu0 %v1549
      %v1653 = vpop.f32.mrb[0].mxu0
      %v1654 = vadd.f32 0.0, %v1653
      %v1655 = vpop.f32.mrb[0].mxu0
      %v1656 = vpop.f32.mrb[0].mxu0
      %v1657 = vadd.f32 0.0, %v1656
      %v1658 = vpop.f32.mrb[0].mxu0
      %1659 = vmatprep.mubr.bf16.mxu0 0
      %1660 = vmatmul.mubr.bf16.gmra.mrb[0].mxu0 %v1550
      %v1661 = vpop.f32.mrb[0].mxu0
      %v1662 = vadd.f32 0.0, %v1661
      %v1663 = vpop.f32.mrb[0].mxu0
      %v1664 = vpop.f32.mrb[0].mxu0
      %v1665 = vadd.f32 0.0, %v1664
      %v1666 = vpop.f32.mrb[0].mxu0
      %1667 = vdwg.mxu0
      %v1668 = vadd.f32 %v1497, %v1638
      %v1669 = vadd.f32 %v1498, %v1641
      %v1670 = vadd.f32 %v1499, %v1646
      %v1671 = vadd.f32 %v1500, %v1649
      %v1672 = vadd.f32 %v1501, %v1654
      %v1673 = vadd.f32 %v1502, %v1657
      %v1674 = vadd.f32 %v1503, %v1662
      %v1675 = vadd.f32 %v1504, %v1665
      %v1676 = vld [vmem:[%s1505] sm:$0xf]
      %v1677 = vld [vmem:[%s1505 + $0x4] sm:$0x1]
      %v1678 = vld [vmem:[%s1505 + $0x8] sm:$0xf]
      %v1679 = vld [vmem:[%s1505 + $0xc] sm:$0x1]
      %v1680 = vld [vmem:[%s1505 + $0x10] sm:$0xf]
      %v1681 = vld [vmem:[%s1505 + $0x14] sm:$0x1]
      %v1682 = vld [vmem:[%s1505 + $0x18] sm:$0xf]
      %v1683 = vld [vmem:[%s1505 + $0x1c] sm:$0x1]
      %v1684 = vld [vmem:[%s1505 + $0x20] sm:$0xf]
      %v1685 = vld [vmem:[%s1505 + $0x24] sm:$0x1]
      %v1686 = vld [vmem:[%s1505 + $0x28] sm:$0xf]
      %v1687 = vld [vmem:[%s1505 + $0x2c] sm:$0x1]
      %v1688 = vld [vmem:[%s1505 + $0x30] sm:$0xf]
      %v1689 = vld [vmem:[%s1505 + $0x34] sm:$0x1]
      %v1690 = vld [vmem:[%s1505 + $0x38] sm:$0xf]
      %v1691 = vld [vmem:[%s1505 + $0x3c] sm:$0x1]
      %v1693 = vshrl.u32 %v1676, 16
      %v1695 = vrot.slane %v1693, 4
      %v1696 = vshll.u32 %v1676, 16
      %v1698 = vrot.slane %v1696, 5
      %v1699 = vor.u32 %v1695, %v1698
      %v1700 = vrot.slane %v1699, 4
      %v1702 = vshll.u32 %v1677, 16
      %v1704 = vrot.slane %v1702, 5
      %v1705 = vsel %vm233, %v1700, %v1704
      %v1707 = vshrl.u32 %v1678, 16
      %v1709 = vrot.slane %v1707, 4
      %v1710 = vshll.u32 %v1678, 16
      %v1712 = vrot.slane %v1710, 5
      %v1713 = vor.u32 %v1709, %v1712
      %v1714 = vrot.slane %v1713, 4
      %v1716 = vshll.u32 %v1679, 16
      %v1718 = vrot.slane %v1716, 5
      %v1719 = vsel %vm233, %v1714, %v1718
      %v1721 = vshrl.u32 %v1680, 16
      %v1723 = vrot.slane %v1721, 4
      %v1724 = vshll.u32 %v1680, 16
      %v1726 = vrot.slane %v1724, 5
      %v1727 = vor.u32 %v1723, %v1726
      %v1728 = vrot.slane %v1727, 4
      %v1730 = vshll.u32 %v1681, 16
      %v1732 = vrot.slane %v1730, 5
      %v1733 = vsel %vm233, %v1728, %v1732
      %v1735 = vshrl.u32 %v1682, 16
      %v1737 = vrot.slane %v1735, 4
      %v1738 = vshll.u32 %v1682, 16
      %v1740 = vrot.slane %v1738, 5
      %v1741 = vor.u32 %v1737, %v1740
      %v1742 = vrot.slane %v1741, 4
      %v1744 = vshll.u32 %v1683, 16
      %v1746 = vrot.slane %v1744, 5
      %v1747 = vsel %vm233, %v1742, %v1746
      %v1749 = vshrl.u32 %v1684, 16
      %v1751 = vrot.slane %v1749, 4
      %v1752 = vshll.u32 %v1684, 16
      %v1754 = vrot.slane %v1752, 5
      %v1755 = vor.u32 %v1751, %v1754
      %v1756 = vrot.slane %v1755, 4
      %v1758 = vshll.u32 %v1685, 16
      %v1760 = vrot.slane %v1758, 5
      %v1761 = vsel %vm233, %v1756, %v1760
      %v1763 = vshrl.u32 %v1686, 16
      %v1765 = vrot.slane %v1763, 4
      %v1766 = vshll.u32 %v1686, 16
      %v1768 = vrot.slane %v1766, 5
      %v1769 = vor.u32 %v1765, %v1768
      %v1770 = vrot.slane %v1769, 4
      %v1772 = vshll.u32 %v1687, 16
      %v1774 = vrot.slane %v1772, 5
      %v1775 = vsel %vm233, %v1770, %v1774
      %v1777 = vshrl.u32 %v1688, 16
      %v1779 = vrot.slane %v1777, 4
      %v1780 = vshll.u32 %v1688, 16
      %v1782 = vrot.slane %v1780, 5
      %v1783 = vor.u32 %v1779, %v1782
      %v1784 = vrot.slane %v1783, 4
      %v1786 = vshll.u32 %v1689, 16
      %v1788 = vrot.slane %v1786, 5
      %v1789 = vsel %vm233, %v1784, %v1788
      %v1791 = vshrl.u32 %v1690, 16
      %v1793 = vrot.slane %v1791, 4
      %v1794 = vshll.u32 %v1690, 16
      %v1796 = vrot.slane %v1794, 5
      %v1797 = vor.u32 %v1793, %v1796
      %v1798 = vrot.slane %v1797, 4
      %v1800 = vshll.u32 %v1691, 16
      %v1802 = vrot.slane %v1800, 5
      %v1803 = vsel %vm233, %v1798, %v1802
      %s1804 = scalar_lea.vmem %s1, 448
      %v1805 = vld [vmem:[%s1804] sm:$0xf]
      %v1806 = vld [vmem:[%s1804 + $0x4] sm:$0xf]
      %v1807 = vld [vmem:[%s1804 + $0x8] sm:$0xf]
      %v1808 = vld [vmem:[%s1804 + $0xc] sm:$0xf]
      %v1809 = vld [vmem:[%s1804 + $0x10] sm:$0xf]
      %v1810 = vld [vmem:[%s1804 + $0x14] sm:$0xf]
      %v1811 = vld [vmem:[%s1804 + $0x18] sm:$0xf]
      %v1812 = vld [vmem:[%s1804 + $0x1c] sm:$0xf]
      %v1813 = vld [vmem:[%s1804 + $0x20] sm:$0xf]
      %v1814 = vld [vmem:[%s1804 + $0x24] sm:$0xf]
      %v1815 = vld [vmem:[%s1804 + $0x28] sm:$0xf]
      %v1816 = vld [vmem:[%s1804 + $0x2c] sm:$0xf]
      %v1817 = vld [vmem:[%s1804 + $0x30] sm:$0xf]
      %v1818 = vld [vmem:[%s1804 + $0x34] sm:$0xf]
      %v1819 = vld [vmem:[%s1804 + $0x38] sm:$0xf]
      %v1820 = vld [vmem:[%s1804 + $0x3c] sm:$0xf]
      %v1821 = vunpack.c.l.b16 %v1705
      %v1822 = vunpack.c.l.b16 %v1719
      %v1823 = vunpack.c.l.b16 %v1733
      %v1824 = vunpack.c.l.b16 %v1747
      %v1825 = vunpack.c.l.b16 %v1761
      %v1826 = vunpack.c.l.b16 %v1775
      %v1827 = vunpack.c.l.b16 %v1789
      %v1828 = vunpack.c.l.b16 %v1803
      %v1829 = vpack.c.b16 %v1822, %v1821
      %v1830 = vpack.c.b16 %v1824, %v1823
      %v1831 = vpack.c.b16 %v1826, %v1825
      %v1832 = vpack.c.b16 %v1828, %v1827
      %v1853 = vunpack.c.l.b16 %v1805
      %v1854 = vunpack.c.l.b16 %v1806
      %v1855 = vunpack.c.l.b16 %v1807
      %v1856 = vunpack.c.l.b16 %v1808
      %v1857 = vunpack.c.l.b16 %v1809
      %v1858 = vunpack.c.l.b16 %v1810
      %v1859 = vunpack.c.l.b16 %v1811
      %v1860 = vunpack.c.l.b16 %v1812
      %v1861 = vunpack.c.l.b16 %v1813
      %v1862 = vunpack.c.l.b16 %v1814
      %v1863 = vunpack.c.l.b16 %v1815
      %v1864 = vunpack.c.l.b16 %v1816
      %v1865 = vunpack.c.l.b16 %v1817
      %v1866 = vunpack.c.l.b16 %v1818
      %v1867 = vunpack.c.l.b16 %v1819
      %v1868 = vunpack.c.l.b16 %v1820
      %v1869 = vpack.c.b16 %v1854, %v1853
      %v1870 = vpack.c.b16 %v1856, %v1855
      %v1871 = vpack.c.b16 %v1858, %v1857
      %v1872 = vpack.c.b16 %v1860, %v1859
      %v1873 = vpack.c.b16 %v1862, %v1861
      %v1874 = vpack.c.b16 %v1864, %v1863
      %v1875 = vpack.c.b16 %v1866, %v1865
      %v1876 = vpack.c.b16 %v1868, %v1867
      %1885 = vmatprep.subr.bf16.mxu0 0
      %1886 = vmatpush1.bf16.msra.mxu0 %v1869
      %1887 = vmatprep.subr.bf16.mxu0 0
      %1888 = vmatpush1.bf16.msra.mxu0 %v1870
      %1889 = vmatprep.subr.bf16.mxu0 0
      %1890 = vmatpush1.bf16.msra.mxu0 %v1871
      %1891 = vmatprep.subr.bf16.mxu0 0
      %1892 = vmatpush1.bf16.msra.mxu0 %v1872
      %1893 = vmatprep.subr.bf16.mxu0 0
      %1894 = vmatpush1.bf16.msra.mxu0 %v1873
      %1895 = vmatprep.subr.bf16.mxu0 0
      %1896 = vmatpush1.bf16.msra.mxu0 %v1874
      %1897 = vmatprep.subr.bf16.mxu0 0
      %1898 = vmatpush1.bf16.msra.mxu0 %v1875
      %1899 = vmatprep.subr.bf16.mxu0 0
      %1900 = vmatpush1.bf16.msra.mxu0 %v1876
      %1901 = vmatprep.subr.bf16.mxu0 0
      %1902 = vmatpush1.bf16.msra.mxu0 0
      %1903 = vmatprep.subr.bf16.mxu0 0
      %1904 = vmatpush1.bf16.msra.mxu0 0
      %1905 = vmatprep.subr.bf16.mxu0 0
      %1906 = vmatpush1.bf16.msra.mxu0 0
      %1907 = vmatprep.subr.bf16.mxu0 0
      %1908 = vmatpush1.bf16.msra.mxu0 0
      %1909 = vmatprep.subr.bf16.mxu0 0
      %1910 = vmatpush1.bf16.msra.mxu0 0
      %1911 = vmatprep.subr.bf16.mxu0 0
      %1912 = vmatpush1.bf16.msra.mxu0 0
      %1913 = vmatprep.subr.bf16.mxu0 0
      %1914 = vmatpush1.bf16.msra.mxu0 0
      %1915 = vmatprep.subr.bf16.mxu0 0
      %1916 = vmatpush1.bf16.msra.mxu0 0
      %1917 = vmatprep.mubr.bf16.mxu0 0
      %1918 = vmatmul.mubr.bf16.gmra.mrb[0].mxu0 %v1829
      %v1919 = vpop.f32.mrb[0].mxu0
      %v1920 = vadd.f32 0.0, %v1919
      %v1921 = vpop.f32.mrb[0].mxu0
      %v1922 = vpop.f32.mrb[0].mxu0
      %v1923 = vadd.f32 0.0, %v1922
      %v1924 = vpop.f32.mrb[0].mxu0
      %1925 = vmatprep.mubr.bf16.mxu0 0
      %1926 = vmatmul.mubr.bf16.gmra.mrb[0].mxu0 %v1830
      %v1927 = vpop.f32.mrb[0].mxu0
      %v1928 = vadd.f32 0.0, %v1927
      %v1929 = vpop.f32.mrb[0].mxu0
      %v1930 = vpop.f32.mrb[0].mxu0
      %v1931 = vadd.f32 0.0, %v1930
      %v1932 = vpop.f32.mrb[0].mxu0
      %1933 = vmatprep.mubr.bf16.mxu0 0
      %1934 = vmatmul.mubr.bf16.gmra.mrb[0].mxu0 %v1831
      %v1935 = vpop.f32.mrb[0].mxu0
      %v1936 = vadd.f32 0.0, %v1935
      %v1937 = vpop.f32.mrb[0].mxu0
      %v1938 = vpop.f32.mrb[0].mxu0
      %v1939 = vadd.f32 0.0, %v1938
      %v1940 = vpop.f32.mrb[0].mxu0
      %1941 = vmatprep.mubr.bf16.mxu0 0
      %1942 = vmatmul.mubr.bf16.gmra.mrb[0].mxu0 %v1832
      %v1943 = vpop.f32.mrb[0].mxu0
      %v1944 = vadd.f32 0.0, %v1943
      %v1945 = vpop.f32.mrb[0].mxu0
      %v1946 = vpop.f32.mrb[0].mxu0
      %v1947 = vadd.f32 0.0, %v1946
      %v1948 = vpop.f32.mrb[0].mxu0
      %1949 = vdwg.mxu0
      %v1950 = vadd.f32 %v1668, %v1920
      %v1951 = vadd.f32 %v1669, %v1923
      %v1952 = vadd.f32 %v1670, %v1928
      %v1953 = vadd.f32 %v1671, %v1931
      %v1954 = vadd.f32 %v1672, %v1936
      %v1955 = vadd.f32 %v1673, %v1939
      %v1956 = vadd.f32 %v1674, %v1944
      %v1957 = vadd.f32 %v1675, %v1947
      %v1958 = vld [vmem:[%s1505] sm:$0xe]
      %v1959 = vld [vmem:[%s1505 + $0x8] sm:$0xe]
      %v1960 = vld [vmem:[%s1505 + $0x10] sm:$0xe]
      %v1961 = vld [vmem:[%s1505 + $0x18] sm:$0xe]
      %v1962 = vld [vmem:[%s1505 + $0x20] sm:$0xe]
      %v1963 = vld [vmem:[%s1505 + $0x28] sm:$0xe]
      %v1964 = vld [vmem:[%s1505 + $0x30] sm:$0xe]
      %v1965 = vld [vmem:[%s1505 + $0x38] sm:$0xe]
      %v1982 = vrot.slane %v1958, 5
      %v1983 = vrot.slane %v1982, 4
      %v1984 = vrot.slane %v1677, 5
      %v1985 = vsel %vm655, %v1983, %v1984
      %v1986 = vrot.slane %v1959, 5
      %v1987 = vrot.slane %v1986, 4
      %v1988 = vrot.slane %v1679, 5
      %v1989 = vsel %vm655, %v1987, %v1988
      %v1990 = vrot.slane %v1960, 5
      %v1991 = vrot.slane %v1990, 4
      %v1992 = vrot.slane %v1681, 5
      %v1993 = vsel %vm655, %v1991, %v1992
      %v1994 = vrot.slane %v1961, 5
      %v1995 = vrot.slane %v1994, 4
      %v1996 = vrot.slane %v1683, 5
      %v1997 = vsel %vm655, %v1995, %v1996
      %v1998 = vrot.slane %v1962, 5
      %v1999 = vrot.slane %v1998, 4
      %v2000 = vrot.slane %v1685, 5
      %v2001 = vsel %vm655, %v1999, %v2000
      %v2002 = vrot.slane %v1963, 5
      %v2003 = vrot.slane %v2002, 4
      %v2004 = vrot.slane %v1687, 5
      %v2005 = vsel %vm655, %v2003, %v2004
      %v2006 = vrot.slane %v1964, 5
      %v2007 = vrot.slane %v2006, 4
      %v2008 = vrot.slane %v1689, 5
      %v2009 = vsel %vm655, %v2007, %v2008
      %v2010 = vrot.slane %v1965, 5
      %v2011 = vrot.slane %v2010, 4
      %v2012 = vrot.slane %v1691, 5
      %v2013 = vsel %vm655, %v2011, %v2012
      %s2014 = scalar_lea.vmem %s1, 512
      %v2015 = vld [vmem:[%s2014] sm:$0xf]
      %v2016 = vld [vmem:[%s2014 + $0x4] sm:$0xf]
      %v2017 = vld [vmem:[%s2014 + $0x8] sm:$0xf]
      %v2018 = vld [vmem:[%s2014 + $0xc] sm:$0xf]
      %v2019 = vld [vmem:[%s2014 + $0x10] sm:$0xf]
      %v2020 = vld [vmem:[%s2014 + $0x14] sm:$0xf]
      %v2021 = vld [vmem:[%s2014 + $0x18] sm:$0xf]
      %v2022 = vld [vmem:[%s2014 + $0x1c] sm:$0xf]
      %v2023 = vld [vmem:[%s2014 + $0x20] sm:$0xf]
      %v2024 = vld [vmem:[%s2014 + $0x24] sm:$0xf]
      %v2025 = vld [vmem:[%s2014 + $0x28] sm:$0xf]
      %v2026 = vld [vmem:[%s2014 + $0x2c] sm:$0xf]
      %v2027 = vld [vmem:[%s2014 + $0x30] sm:$0xf]
      %v2028 = vld [vmem:[%s2014 + $0x34] sm:$0xf]
      %v2029 = vld [vmem:[%s2014 + $0x38] sm:$0xf]
      %v2030 = vld [vmem:[%s2014 + $0x3c] sm:$0xf]
      %v2031 = vunpack.c.l.b16 %v1985
      %v2032 = vunpack.c.l.b16 %v1989
      %v2033 = vunpack.c.l.b16 %v1993
      %v2034 = vunpack.c.l.b16 %v1997
      %v2035 = vunpack.c.l.b16 %v2001
      %v2036 = vunpack.c.l.b16 %v2005
      %v2037 = vunpack.c.l.b16 %v2009
      %v2038 = vunpack.c.l.b16 %v2013
      %v2039 = vpack.c.b16 %v2032, %v2031
      %v2040 = vpack.c.b16 %v2034, %v2033
      %v2041 = vpack.c.b16 %v2036, %v2035
      %v2042 = vpack.c.b16 %v2038, %v2037
      %v2063 = vunpack.c.l.b16 %v2015
      %v2064 = vunpack.c.l.b16 %v2016
      %v2065 = vunpack.c.l.b16 %v2017
      %v2066 = vunpack.c.l.b16 %v2018
      %v2067 = vunpack.c.l.b16 %v2019
      %v2068 = vunpack.c.l.b16 %v2020
      %v2069 = vunpack.c.l.b16 %v2021
      %v2070 = vunpack.c.l.b16 %v2022
      %v2071 = vunpack.c.l.b16 %v2023
      %v2072 = vunpack.c.l.b16 %v2024
      %v2073 = vunpack.c.l.b16 %v2025
      %v2074 = vunpack.c.l.b16 %v2026
      %v2075 = vunpack.c.l.b16 %v2027
      %v2076 = vunpack.c.l.b16 %v2028
      %v2077 = vunpack.c.l.b16 %v2029
      %v2078 = vunpack.c.l.b16 %v2030
      %v2079 = vpack.c.b16 %v2064, %v2063
      %v2080 = vpack.c.b16 %v2066, %v2065
      %v2081 = vpack.c.b16 %v2068, %v2067
      %v2082 = vpack.c.b16 %v2070, %v2069
      %v2083 = vpack.c.b16 %v2072, %v2071
      %v2084 = vpack.c.b16 %v2074, %v2073
      %v2085 = vpack.c.b16 %v2076, %v2075
      %v2086 = vpack.c.b16 %v2078, %v2077
      %2095 = vmatprep.subr.bf16.mxu0 0
      %2096 = vmatpush1.bf16.msra.mxu0 %v2079
      %2097 = vmatprep.subr.bf16.mxu0 0
      %2098 = vmatpush1.bf16.msra.mxu0 %v2080
      %2099 = vmatprep.subr.bf16.mxu0 0
      %2100 = vmatpush1.bf16.msra.mxu0 %v2081
      %2101 = vmatprep.subr.bf16.mxu0 0
      %2102 = vmatpush1.bf16.msra.mxu0 %v2082
      %2103 = vmatprep.subr.bf16.mxu0 0
      %2104 = vmatpush1.bf16.msra.mxu0 %v2083
      %2105 = vmatprep.subr.bf16.mxu0 0
      %2106 = vmatpush1.bf16.msra.mxu0 %v2084
      %2107 = vmatprep.subr.bf16.mxu0 0
      %2108 = vmatpush1.bf16.msra.mxu0 %v2085
      %2109 = vmatprep.subr.bf16.mxu0 0
      %2110 = vmatpush1.bf16.msra.mxu0 %v2086
      %2111 = vmatprep.subr.bf16.mxu0 0
      %2112 = vmatpush1.bf16.msra.mxu0 0
      %2113 = vmatprep.subr.bf16.mxu0 0
      %2114 = vmatpush1.bf16.msra.mxu0 0
      %2115 = vmatprep.subr.bf16.mxu0 0
      %2116 = vmatpush1.bf16.msra.mxu0 0
      %2117 = vmatprep.subr.bf16.mxu0 0
      %2118 = vmatpush1.bf16.msra.mxu0 0
      %2119 = vmatprep.subr.bf16.mxu0 0
      %2120 = vmatpush1.bf16.msra.mxu0 0
      %2121 = vmatprep.subr.bf16.mxu0 0
      %2122 = vmatpush1.bf16.msra.mxu0 0
      %2123 = vmatprep.subr.bf16.mxu0 0
      %2124 = vmatpush1.bf16.msra.mxu0 0
      %2125 = vmatprep.subr.bf16.mxu0 0
      %2126 = vmatpush1.bf16.msra.mxu0 0
      %2127 = vmatprep.mubr.bf16.mxu0 0
      %2128 = vmatmul.mubr.bf16.gmra.mrb[0].mxu0 %v2039
      %v2129 = vpop.f32.mrb[0].mxu0
      %v2130 = vadd.f32 0.0, %v2129
      %v2131 = vpop.f32.mrb[0].mxu0
      %v2132 = vpop.f32.mrb[0].mxu0
      %v2133 = vadd.f32 0.0, %v2132
      %v2134 = vpop.f32.mrb[0].mxu0
      %2135 = vmatprep.mubr.bf16.mxu0 0
      %2136 = vmatmul.mubr.bf16.gmra.mrb[0].mxu0 %v2040
      %v2137 = vpop.f32.mrb[0].mxu0
      %v2138 = vadd.f32 0.0, %v2137
      %v2139 = vpop.f32.mrb[0].mxu0
      %v2140 = vpop.f32.mrb[0].mxu0
      %v2141 = vadd.f32 0.0, %v2140
      %v2142 = vpop.f32.mrb[0].mxu0
      %2143 = vmatprep.mubr.bf16.mxu0 0
      %2144 = vmatmul.mubr.bf16.gmra.mrb[0].mxu0 %v2041
      %v2145 = vpop.f32.mrb[0].mxu0
      %v2146 = vadd.f32 0.0, %v2145
      %v2147 = vpop.f32.mrb[0].mxu0
      %v2148 = vpop.f32.mrb[0].mxu0
      %v2149 = vadd.f32 0.0, %v2148
      %v2150 = vpop.f32.mrb[0].mxu0
      %2151 = vmatprep.mubr.bf16.mxu0 0
      %2152 = vmatmul.mubr.bf16.gmra.mrb[0].mxu0 %v2042
      %v2153 = vpop.f32.mrb[0].mxu0
      %v2154 = vadd.f32 0.0, %v2153
      %v2155 = vpop.f32.mrb[0].mxu0
      %v2156 = vpop.f32.mrb[0].mxu0
      %v2157 = vadd.f32 0.0, %v2156
      %v2158 = vpop.f32.mrb[0].mxu0
      %2159 = vdwg.mxu0
      %v2160 = vadd.f32 %v1950, %v2130
      %v2161 = vadd.f32 %v1951, %v2133
      %v2162 = vadd.f32 %v1952, %v2138
      %v2163 = vadd.f32 %v1953, %v2141
      %v2164 = vadd.f32 %v1954, %v2146
      %v2165 = vadd.f32 %v1955, %v2149
      %v2166 = vadd.f32 %v1956, %v2154
      %v2167 = vadd.f32 %v1957, %v2157
      %v2168 = vld [vmem:[%s2] sm:$0x1]
      %v2170 = vlaneseq
      %v2171 = vshrl.u32 %v2170, 7
      %v2172 = vsub.s32 0, %v2171
      %v2173 = vrot.slane %v2168, %v2172
      %v2175 = vmul.f32 %v2160, %v2173
      %v2176 = vmul.f32 %v2161, %v2173
      %v2177 = vmul.f32 %v2162, %v2173
      %v2178 = vmul.f32 %v2163, %v2173
      %v2179 = vmul.f32 %v2164, %v2173
      %v2180 = vmul.f32 %v2165, %v2173
      %v2181 = vmul.f32 %v2166, %v2173
      %v2182 = vmul.f32 %v2167, %v2173
      %v2183 = vld [vmem:[%s3] sm:$0x1]
      %v2185 = vlaneseq
      %v2186 = vshrl.u32 %v2185, 7
      %v2187 = vsub.s32 0, %v2186
      %v2188 = vrot.slane %v2183, %v2187
      %v2190 = vadd.f32 %v2175, %v2188
      %v2191 = vadd.f32 %v2176, %v2188
      %v2192 = vadd.f32 %v2177, %v2188
      %v2193 = vadd.f32 %v2178, %v2188
      %v2194 = vadd.f32 %v2179, %v2188
      %v2195 = vadd.f32 %v2180, %v2188
      %v2196 = vadd.f32 %v2181, %v2188
      %v2197 = vadd.f32 %v2182, %v2188
      %v2198 = vmax.f32 %v2190, 0.0
      %v2199 = vmax.f32 %v2191, 0.0
      %v2200 = vmax.f32 %v2192, 0.0
      %v2201 = vmax.f32 %v2193, 0.0
      %v2202 = vmax.f32 %v2194, 0.0
      %v2203 = vmax.f32 %v2195, 0.0
      %v2204 = vmax.f32 %v2196, 0.0
      %v2205 = vmax.f32 %v2197, 0.0
      %v2206 = vpack.c.bf16 %v2199, %v2198
      %v2207 = vpack.c.bf16 %v2201, %v2200
      %v2208 = vpack.c.bf16 %v2203, %v2202
      %v2209 = vpack.c.bf16 %v2205, %v2204
      %v2214 = vunpack.c.l.b16 %v2206
      %v2215 = vunpack.c.h.b16 %v2206
      %v2216 = vunpack.c.l.b16 %v2207
      %v2217 = vunpack.c.h.b16 %v2207
      %v2218 = vunpack.c.l.b16 %v2208
      %v2219 = vunpack.c.h.b16 %v2208
      %v2220 = vunpack.c.l.b16 %v2209
      %v2221 = vunpack.c.h.b16 %v2209
      %v2222 = vpack.c.b16 %v2214, %v2214
      %v2223 = vpack.c.b16 %v2215, %v2215
      %v2224 = vpack.c.b16 %v2216, %v2216
      %v2225 = vpack.c.b16 %v2217, %v2217
      %v2226 = vpack.c.b16 %v2218, %v2218
      %v2227 = vpack.c.b16 %v2219, %v2219
      %v2228 = vpack.c.b16 %v2220, %v2220
      %v2229 = vpack.c.b16 %v2221, %v2221
      %2238 = vst [vmem:[%s197] sm:$0xf] %v2222
      %2239 = vst [vmem:[%s197 + $0x4] sm:$0xf] %v2223
      %2240 = vst [vmem:[%s197 + $0x8] sm:$0xf] %v2224
      %2241 = vst [vmem:[%s197 + $0xc] sm:$0xf] %v2225
      %2242 = vst [vmem:[%s197 + $0x10] sm:$0xf] %v2226
      %2243 = vst [vmem:[%s197 + $0x14] sm:$0xf] %v2227
      %2244 = vst [vmem:[%s197 + $0x18] sm:$0xf] %v2228
      %2245 = vst [vmem:[%s197 + $0x1c] sm:$0xf] %v2229
      %p2246 = scmp.lt.s32.totalorder %s15, 1
      %s2247 = scalar_select %p2246, %s15, 1
      %s2248 = smul.addr %s2247, 8
      %s2249 = smul.addr %s2248, 4
      %s2250 = scalar_lea.vmem %s4, %s2249
      // Predicated region
      $region37: #{psa_forward.17} parent=35 // pred_check
        %p2251 = pneg %p122
      $region38: #{psa_forward.17} parent=35 // pred_check_branch
        %2253 = sbr.rel (%p2251) target = $region40
      $region39: #{psa_forward.17} parent=35 // pred_region
        _
      $region40: #{psa_forward.17} parent=35 // pred_fallthru
        _
    $region36: #{psa_forward.17} parent=5 // pred_fallthru
      _
    %p2254 = scmp.le.s32.totalorder 2, %s10
    // Predicated region
    $region41: #{psa_forward.17} parent=5 // pred_check
      %p2255 = pneg %p2254
    $region42: #{psa_forward.17} parent=5 // pred_check_branch
      %2257 = sbr.rel (%p2255) target = $region44
    $region43: #{psa_forward.17} parent=5 // pred_region
      %s2258 = ssub.s32 %s10, 2
      // Predicated region
      $region45: #{psa_forward.17} parent=43 // pred_check
        %p2259 = pneg %p128
      $region46: #{psa_forward.17} parent=43 // pred_check_branch
        %2261 = sbr.rel (%p2259) target = $region48
      $region47: #{psa_forward.17} parent=43 // pred_region
        %p2262 = scmp.lt.s32.totalorder %s16, 1
        %s2263 = scalar_select %p2262, %s16, 1
        %s2264 = smul.addr %s2263, 8
        %s2265 = smul.addr %s2264, 4
        %s2266 = scalar_lea.vmem %s4, %s2265
      $region48: #{psa_forward.17} parent=43 // pred_fallthru
        _
    $region44: #{psa_forward.17} parent=5 // pred_fallthru
      _
  $region6: #{psa_forward.17} parent=0 // loop_footer
    %s14 = sadd.s32 1, %s10
  $region7: #{psa_forward.17} parent=0 // loop_footer_branch
    %9 = sbr.rel target = $region3
  $region8: #{psa_forward.17} parent=0 // loop_exit
    _

// kernel: psa_forward.21
$region0: #{psa_forward.21}
  #allocation0 [shape = 'u32[]', space=smem, size = 0x4, offset = 0x4, fixed_abs, tag = 'smem constant byte address 0x4 - core index']
  #allocation1 [shape = 'u32[144,128]{1,0:T(1,128)}', space=vmem, size = 0x12000, scoped, tag = 'internal scratch']
  %s0 = inlined_call_operand.vmem [shape: bf16[2,6,6,128], index: 0, kind: input, shape index: {}]
  %s1 = inlined_call_operand.vmem [shape: bf16[9,128,128], index: 1, kind: input, shape index: {}]
  %s2 = inlined_call_operand.vmem [shape: f32[1,128], index: 2, kind: input, shape index: {}]
  %s3 = inlined_call_operand.vmem [shape: f32[1,128], index: 3, kind: input, shape index: {}]
  %s4 = inlined_call_operand.vmem [shape: bf16[2,16,128], index: 4, kind: output, shape index: {}]
  %s5 = sld [smem:[#allocation0]]
  $region49: #{psa_forward.21} parent=0
    _
  %s7 = ssub.s32 1, %s5
  %s8 = scalar_select 0, %s7, %s5
  loop: start=0, step=1, limit=4
  $region2: #{psa_forward.21} parent=0 // loop_pre_header
    _
  $region3: #{psa_forward.21} parent=0 // loop_header
    %s10 = sphi 0, %s14
    %p11 = scmp.ge.s32.totalorder %s10, 4
    %s20 = sphi 0, %s22
    %s23 = sphi 0, %s20
    %s24 = sphi 0, %s23
    %s40 = sphi 0, %s24
    %s44 = sphi 0, %s44
    %s46 = sphi 0, %s44
    %s47 = sphi 0, %s46
    %s61 = sphi 0, %s47
    %s65 = sphi 0, %s65
    %s67 = sphi 0, %s65
    %s68 = sphi 0, %s67
    %s82 = sphi 0, %s68
    %s86 = sphi 0, %s86
    %s88 = sphi 0, %s86
    %s89 = sphi 0, %s88
    %s103 = sphi 0, %s89
    %s109 = sphi 0, %s111
    %s112 = sphi 0, %s109
    %s113 = sphi 0, %s112
    %s129 = sphi 0, %s113
  $region4: #{psa_forward.21} parent=0 // loop_header_branch
    %13 = sbr.rel (%p11) target = $region8
  $region5: #{psa_forward.21} parent=0 // loop_body
    %s15 = ssub.s32 %s10, 1
    %s16 = ssub.s32 %s10, 2
    %s17 = sadd.s32 %s10, 1
    %s18 = ssub.s32 %s10, %s17
    %p19 = scmp.eq.s32.totalorder %s18, 0
    %s21 = sadd.s32 %s20, 1
    %s22 = scalar_select %p19, %s20, %s21
    %p25 = pneg %p19
    %p26 = scmp.eq.s32.totalorder %s10, 1
    %p27 = por %p25, %p26
    %p28 = scmp.ne.s32.totalorder %s20, %s23
    %p29 = scmp.eq.s32.totalorder %s10, 0
    %p30 = por %p28, %p29
    %p31 = scmp.ne.s32.totalorder %s20, %s23
    %p32 = scmp.eq.s32.totalorder %s15, 1
    %p33 = por %p31, %p32
    %p34 = scmp.ne.s32.totalorder %s23, %s24
    %p35 = scmp.eq.s32.totalorder %s15, 0
    %p36 = por %p34, %p35
    %p37 = scmp.ne.s32.totalorder %s23, %s24
    %p38 = scmp.eq.s32.totalorder %s16, 1
    %p39 = por %p37, %p38
    %p41 = scmp.ne.s32.totalorder %s24, %s40
    %p42 = scmp.eq.s32.totalorder %s16, 0
    %p43 = por %p41, %p42
    %s45 = sadd.s32 %s44, 1
    %p48 = scmp.eq.s32.totalorder %s10, 1
    %p49 = scmp.ne.s32.totalorder %s44, %s46
    %p50 = scmp.eq.s32.totalorder %s10, 0
    %p51 = por %p49, %p50
    %p52 = scmp.ne.s32.totalorder %s44, %s46
    %p53 = scmp.eq.s32.totalorder %s15, 1
    %p54 = por %p52, %p53
    %p55 = scmp.ne.s32.totalorder %s46, %s47
    %p56 = scmp.eq.s32.totalorder %s15, 0
    %p57 = por %p55, %p56
    %p58 = scmp.ne.s32.totalorder %s46, %s47
    %p59 = scmp.eq.s32.totalorder %s16, 1
    %p60 = por %p58, %p59
    %p62 = scmp.ne.s32.totalorder %s47, %s61
    %p63 = scmp.eq.s32.totalorder %s16, 0
    %p64 = por %p62, %p63
    %s66 = sadd.s32 %s65, 1
    %p69 = scmp.eq.s32.totalorder %s10, 1
    %p70 = scmp.ne.s32.totalorder %s65, %s67
    %p71 = scmp.eq.s32.totalorder %s10, 0
    %p72 = por %p70, %p71
    %p73 = scmp.ne.s32.totalorder %s65, %s67
    %p74 = scmp.eq.s32.totalorder %s15, 1
    %p75 = por %p73, %p74
    %p76 = scmp.ne.s32.totalorder %s67, %s68
    %p77 = scmp.eq.s32.totalorder %s15, 0
    %p78 = por %p76, %p77
    %p79 = scmp.ne.s32.totalorder %s67, %s68
    %p80 = scmp.eq.s32.totalorder %s16, 1
    %p81 = por %p79, %p80
    %p83 = scmp.ne.s32.totalorder %s68, %s82
    %p84 = scmp.eq.s32.totalorder %s16, 0
    %p85 = por %p83, %p84
    %s87 = sadd.s32 %s86, 1
    %p90 = scmp.eq.s32.totalorder %s10, 1
    %p91 = scmp.ne.s32.totalorder %s86, %s88
    %p92 = scmp.eq.s32.totalorder %s10, 0
    %p93 = por %p91, %p92
    %p94 = scmp.ne.s32.totalorder %s86, %s88
    %p95 = scmp.eq.s32.totalorder %s15, 1
    %p96 = por %p94, %p95
    %p97 = scmp.ne.s32.totalorder %s88, %s89
    %p98 = scmp.eq.s32.totalorder %s15, 0
    %p99 = por %p97, %p98
    %p100 = scmp.ne.s32.totalorder %s88, %s89
    %p101 = scmp.eq.s32.totalorder %s16, 1
    %p102 = por %p100, %p101
    %p104 = scmp.ne.s32.totalorder %s89, %s103
    %p105 = scmp.eq.s32.totalorder %s16, 0
    %p106 = por %p104, %p105
    %s107 = ssub.s32 %s10, %s17
    %p108 = scmp.eq.s32.totalorder %s107, 0
    %s110 = sadd.s32 %s109, 1
    %s111 = scalar_select %p108, %s109, %s110
    %p114 = pneg %p108
    %p115 = scmp.eq.s32.totalorder %s10, 1
    %p116 = por %p114, %p115
    %p117 = scmp.ne.s32.totalorder %s109, %s112
    %p118 = scmp.eq.s32.totalorder %s10, 0
    %p119 = por %p117, %p118
    %p120 = scmp.ne.s32.totalorder %s109, %s112
    %p121 = scmp.eq.s32.totalorder %s15, 1
    %p122 = por %p120, %p121
    %p123 = scmp.ne.s32.totalorder %s112, %s113
    %p124 = scmp.eq.s32.totalorder %s15, 0
    %p125 = por %p123, %p124
    %p126 = scmp.ne.s32.totalorder %s112, %s113
    %p127 = scmp.eq.s32.totalorder %s16, 1
    %p128 = por %p126, %p127
    %p130 = scmp.ne.s32.totalorder %s113, %s129
    %p131 = scmp.eq.s32.totalorder %s16, 0
    %p132 = por %p130, %p131
    %p133 = scmp.le.s32.totalorder 1, %s10
    %p134 = scmp.lt.s32.totalorder %s10, 3
    %p135 = pnand %p133, %p134
    %p136 = pneg %p135
    // Predicated region
    $region9: #{psa_forward.21} parent=5 // pred_check
      _
    $region10: #{psa_forward.21} parent=5 // pred_check_branch
      %138 = sbr.rel (%p135) target = $region12
    $region11: #{psa_forward.21} parent=5 // pred_region
      %s139 = ssub.s32 %s10, 1
      // Predicated region
      $region13: #{psa_forward.21} parent=11 // pred_check
        %p140 = pneg %p57
      $region14: #{psa_forward.21} parent=11 // pred_check_branch
        %142 = sbr.rel (%p140) target = $region16
      $region15: #{psa_forward.21} parent=11 // pred_region
        _
      $region16: #{psa_forward.21} parent=11 // pred_fallthru
        _
      // Predicated region
      $region17: #{psa_forward.21} parent=11 // pred_check
        %p143 = pneg %p78
      $region18: #{psa_forward.21} parent=11 // pred_check_branch
        %145 = sbr.rel (%p143) target = $region20
      $region19: #{psa_forward.21} parent=11 // pred_region
        _
      $region20: #{psa_forward.21} parent=11 // pred_fallthru
        _
      // Predicated region
      $region21: #{psa_forward.21} parent=11 // pred_check
        %p146 = pneg %p99
      $region22: #{psa_forward.21} parent=11 // pred_check_branch
        %148 = sbr.rel (%p146) target = $region24
      $region23: #{psa_forward.21} parent=11 // pred_region
        _
      $region24: #{psa_forward.21} parent=11 // pred_fallthru
        _
    $region12: #{psa_forward.21} parent=5 // pred_fallthru
      _
    %p149 = scmp.lt.s32.totalorder %s10, 2
    // Predicated region
    $region25: #{psa_forward.21} parent=5 // pred_check
      %p150 = pneg %p149
    $region26: #{psa_forward.21} parent=5 // pred_check_branch
      %152 = sbr.rel (%p150) target = $region28
    $region27: #{psa_forward.21} parent=5 // pred_region
      // Predicated region
      $region29: #{psa_forward.21} parent=27 // pred_check
        %p153 = pneg %p30
      $region30: #{psa_forward.21} parent=27 // pred_check_branch
        %155 = sbr.rel (%p153) target = $region32
      $region31: #{psa_forward.21} parent=27 // pred_region
        %p156 = scmp.lt.s32.totalorder %s10, 1
        %s157 = scalar_select %p156, %s10, 1
        %s158 = smul.addr %s157, 6
        %s159 = smul.addr %s158, 4
        %s160 = scalar_lea.vmem %s0, %s159
      $region32: #{psa_forward.21} parent=27 // pred_fallthru
        _
    $region28: #{psa_forward.21} parent=5 // pred_fallthru
      _
    %p161 = scmp.le.s32.totalorder 1, %s10
    %p162 = scmp.lt.s32.totalorder %s10, 3
    %p163 = pnand %p161, %p162
    %p164 = pneg %p163
    // Predicated region
    $region33: #{psa_forward.21} parent=5 // pred_check
      _
    $region34: #{psa_forward.21} parent=5 // pred_check_branch
      %166 = sbr.rel (%p163) target = $region36
    $region35: #{psa_forward.21} parent=5 // pred_region
      %s167 = ssub.s32 %s10, 1
      %p168 = scmp.lt.s32.totalorder %s15, 1
      %s169 = scalar_select %p168, %s15, 1
      %s170 = smul.addr %s169, 6
      %s171 = smul.addr %s170, 4
      %s172 = scalar_lea.vmem %s0, %s171
      %p173 = pneg %p36
      %p174 = pneg %p33
      %p175 = pneg %p57
      %p176 = pneg %p54
      %p177 = pneg %p78
      %p178 = pneg %p75
      %p179 = pneg %p99
      %p180 = pneg %p96
      %p181 = pneg %p125
      %p182 = pneg %p122
      %p183 = scmp.lt.s32.totalorder %s15, 1
      %s184 = scalar_select %p183, %s15, 1
      %s185 = smul.addr %s184, 2
      %s186 = smul.addr %s185, 4
      %s187 = scalar_lea.vmem %s4, %s186
      %p188 = scmp.lt.s32.totalorder %s15, 1
      %s189 = scalar_select %p188, %s15, 1
      %s190 = smul.addr %s189, 6
      %s191 = smul.addr %s190, 4
      %s192 = scalar_lea.vmem %s0, %s191
      %p193 = scmp.lt.s32.totalorder %s15, 1
      %s194 = scalar_select %p193, %s15, 1
      %s195 = smul.addr %s194, 2
      %s196 = smul.addr %s195, 4
      %s197 = scalar_lea.vmem %s4, %s196
      %v199 = vld [vmem:[%s192] sm:$0x3]
      %v200 = vld [vmem:[%s192 + $0x4] sm:$0x3]
      %v201 = vld [vmem:[%s192 + $0x8] sm:$0x3]
      %v202 = vld [vmem:[%s192 + $0xc] sm:$0x3]
      %v203 = vld [vmem:[%s1] sm:$0xf]
      %v204 = vld [vmem:[%s1 + $0x4] sm:$0xf]
      %v205 = vld [vmem:[%s1 + $0x8] sm:$0xf]
      %v206 = vld [vmem:[%s1 + $0xc] sm:$0xf]
      %v207 = vld [vmem:[%s1 + $0x10] sm:$0xf]
      %v208 = vld [vmem:[%s1 + $0x14] sm:$0xf]
      %v209 = vld [vmem:[%s1 + $0x18] sm:$0xf]
      %v210 = vld [vmem:[%s1 + $0x1c] sm:$0xf]
      %v211 = vld [vmem:[%s1 + $0x20] sm:$0xf]
      %v212 = vld [vmem:[%s1 + $0x24] sm:$0xf]
      %v213 = vld [vmem:[%s1 + $0x28] sm:$0xf]
      %v214 = vld [vmem:[%s1 + $0x2c] sm:$0xf]
      %v215 = vld [vmem:[%s1 + $0x30] sm:$0xf]
      %v216 = vld [vmem:[%s1 + $0x34] sm:$0xf]
      %v217 = vld [vmem:[%s1 + $0x38] sm:$0xf]
      %v218 = vld [vmem:[%s1 + $0x3c] sm:$0xf]
      %v219 = vld [vmem:[%s192] sm:$0x7]
      %v220 = vld [vmem:[%s192 + $0x4] sm:$0x7]
      %v221 = vld [vmem:[%s192 + $0x8] sm:$0x7]
      %v222 = vld [vmem:[%s192 + $0xc] sm:$0x7]
      %v228 = vunpack.c.l.s4 1983009808
      %v229 = vunpack.c.0.s8 %v228
      %v230 = vlaneseq
      %v231 = vshrl.u32 %v230, 7
      %v232 = vsub.s32 %v229, %v231
      %v233 = vrot.slane %v219, %v232
      %v234 = vcombine.high %v233, %v233
      %v236 = vunpack.c.l.s4 1983009808
      %v237 = vunpack.c.0.s8 %v236
      %v238 = vlaneseq
      %v239 = vshrl.u32 %v238, 7
      %v240 = vsub.s32 %v237, %v239
      %v241 = vrot.slane %v220, %v240
      %v242 = vcombine.high %v241, %v241
      %v244 = vunpack.c.l.s4 1983009808
      %v245 = vunpack.c.0.s8 %v244
      %v246 = vlaneseq
      %v247 = vshrl.u32 %v246, 7
      %v248 = vsub.s32 %v245, %v247
      %v249 = vrot.slane %v221, %v248
      %v250 = vcombine.high %v249, %v249
      %v252 = vunpack.c.l.s4 1983009808
      %v253 = vunpack.c.0.s8 %v252
      %v254 = vlaneseq
      %v255 = vshrl.u32 %v254, 7
      %v256 = vsub.s32 %v253, %v255
      %v257 = vrot.slane %v222, %v256
      %v258 = vcombine.high %v257, %v257
      %vm259 = vsmask.f32 1280
      %vm260 = vsmask.f32 3336
      %vm261 = vmor %vm259, %vm260
      %vm262 = vsmask.f32 5392
      %vm263 = vmor %vm261, %vm262
      %vm264 = vsmask.f32 7448
      %vm265 = vmor %vm263, %vm264
      %v267 = vshrl.u32 %v233, 16
      %v269 = vrot.slane %v267, 6
      %v270 = vshll.u32 %v233, 16
      %v272 = vrot.slane %v270, 7
      %v273 = vor.u32 %v269, %v272
      %v274 = vrot.slane %v273, 2
      %v276 = vshll.u32 %v234, 16
      %v278 = vrot.slane %v276, 7
      %v279 = vsel %vm265, %v274, %v278
      %v281 = vshrl.u32 %v241, 16
      %v283 = vrot.slane %v281, 6
      %v284 = vshll.u32 %v241, 16
      %v286 = vrot.slane %v284, 7
      %v287 = vor.u32 %v283, %v286
      %v288 = vrot.slane %v287, 2
      %v290 = vshll.u32 %v242, 16
      %v292 = vrot.slane %v290, 7
      %v293 = vsel %vm265, %v288, %v292
      %v295 = vshrl.u32 %v249, 16
      %v297 = vrot.slane %v295, 6
      %v298 = vshll.u32 %v249, 16
      %v300 = vrot.slane %v298, 7
      %v301 = vor.u32 %v297, %v300
      %v302 = vrot.slane %v301, 2
      %v304 = vshll.u32 %v250, 16
      %v306 = vrot.slane %v304, 7
      %v307 = vsel %vm265, %v302, %v306
      %v309 = vshrl.u32 %v257, 16
      %v311 = vrot.slane %v309, 6
      %v312 = vshll.u32 %v257, 16
      %v314 = vrot.slane %v312, 7
      %v315 = vor.u32 %v311, %v314
      %v316 = vrot.slane %v315, 2
      %v318 = vshll.u32 %v258, 16
      %v320 = vrot.slane %v318, 7
      %v321 = vsel %vm265, %v316, %v320
      %s322 = scalar_lea.vmem %s1, 64
      %v323 = vld [vmem:[%s322] sm:$0xf]
      %v324 = vld [vmem:[%s322 + $0x4] sm:$0xf]
      %v325 = vld [vmem:[%s322 + $0x8] sm:$0xf]
      %v326 = vld [vmem:[%s322 + $0xc] sm:$0xf]
      %v327 = vld [vmem:[%s322 + $0x10] sm:$0xf]
      %v328 = vld [vmem:[%s322 + $0x14] sm:$0xf]
      %v329 = vld [vmem:[%s322 + $0x18] sm:$0xf]
      %v330 = vld [vmem:[%s322 + $0x1c] sm:$0xf]
      %v331 = vld [vmem:[%s322 + $0x20] sm:$0xf]
      %v332 = vld [vmem:[%s322 + $0x24] sm:$0xf]
      %v333 = vld [vmem:[%s322 + $0x28] sm:$0xf]
      %v334 = vld [vmem:[%s322 + $0x2c] sm:$0xf]
      %v335 = vld [vmem:[%s322 + $0x30] sm:$0xf]
      %v336 = vld [vmem:[%s322 + $0x34] sm:$0xf]
      %v337 = vld [vmem:[%s322 + $0x38] sm:$0xf]
      %v338 = vld [vmem:[%s322 + $0x3c] sm:$0xf]
      %v339 = vcombine.low %v279, %v293
      %v340 = vcombine.low %v307, %v321
      %v342 = vunpack.c.l.s4 1983009808
      %v343 = vunpack.c.0.s8 %v342
      %v344 = vlaneseq
      %v345 = vshrl.u32 %v344, 7
      %v346 = vsub.s32 %v343, %v345
      %v347 = vrot.slane %v339, %v346
      %v349 = vunpack.c.l.s4 1983009808
      %v350 = vunpack.c.0.s8 %v349
      %v351 = vlaneseq
      %v352 = vshrl.u32 %v351, 7
      %v353 = vsub.s32 %v350, %v352
      %v354 = vrot.slane %v340, %v353
      %v355 = vcombine.low %v347, %v354
      %v373 = vunpack.c.l.b16 %v323
      %v374 = vunpack.c.l.b16 %v324
      %v375 = vunpack.c.l.b16 %v325
      %v376 = vunpack.c.l.b16 %v326
      %v377 = vunpack.c.l.b16 %v327
      %v378 = vunpack.c.l.b16 %v328
      %v379 = vunpack.c.l.b16 %v329
      %v380 = vunpack.c.l.b16 %v330
      %v381 = vunpack.c.l.b16 %v331
      %v382 = vunpack.c.l.b16 %v332
      %v383 = vunpack.c.l.b16 %v333
      %v384 = vunpack.c.l.b16 %v334
      %v385 = vunpack.c.l.b16 %v335
      %v386 = vunpack.c.l.b16 %v336
      %v387 = vunpack.c.l.b16 %v337
      %v388 = vunpack.c.l.b16 %v338
      %v389 = vpack.c.b16 %v374, %v373
      %v390 = vpack.c.b16 %v376, %v375
      %v391 = vpack.c.b16 %v378, %v377
      %v392 = vpack.c.b16 %v380, %v379
      %v393 = vpack.c.b16 %v382, %v381
      %v394 = vpack.c.b16 %v384, %v383
      %v395 = vpack.c.b16 %v386, %v385
      %v396 = vpack.c.b16 %v388, %v387
      %405 = vmatprep.subr.bf16.mxu0 0
      %406 = vmatpush1.bf16.msra.mxu0 %v389
      %407 = vmatprep.subr.bf16.mxu0 0
      %408 = vmatpush1.bf16.msra.mxu0 %v390
      %409 = vmatprep.subr.bf16.mxu0 0
      %410 = vmatpush1.bf16.msra.mxu0 %v391
      %411 = vmatprep.subr.bf16.mxu0 0
      %412 = vmatpush1.bf16.msra.mxu0 %v392
      %413 = vmatprep.subr.bf16.mxu0 0
      %414 = vmatpush1.bf16.msra.mxu0 %v393
      %415 = vmatprep.subr.bf16.mxu0 0
      %416 = vmatpush1.bf16.msra.mxu0 %v394
      %417 = vmatprep.subr.bf16.mxu0 0
      %418 = vmatpush1.bf16.msra.mxu0 %v395
      %419 = vmatprep.subr.bf16.mxu0 0
      %420 = vmatpush1.bf16.msra.mxu0 %v396
      %421 = vmatprep.subr.bf16.mxu0 0
      %422 = vmatpush1.bf16.msra.mxu0 0
      %423 = vmatprep.subr.bf16.mxu0 0
      %424 = vmatpush1.bf16.msra.mxu0 0
      %425 = vmatprep.subr.bf16.mxu0 0
      %426 = vmatpush1.bf16.msra.mxu0 0
      %427 = vmatprep.subr.bf16.mxu0 0
      %428 = vmatpush1.bf16.msra.mxu0 0
      %429 = vmatprep.subr.bf16.mxu0 0
      %430 = vmatpush1.bf16.msra.mxu0 0
      %431 = vmatprep.subr.bf16.mxu0 0
      %432 = vmatpush1.bf16.msra.mxu0 0
      %433 = vmatprep.subr.bf16.mxu0 0
      %434 = vmatpush1.bf16.msra.mxu0 0
      %435 = vmatprep.subr.bf16.mxu0 0
      %436 = vmatpush1.bf16.msra.mxu0 0
      %437 = vmatprep.mubr.bf16.mxu0 0
      %438 = vmatmul.mubr.bf16.gmra.mrb[0].mxu0 %v355
      %v439 = vpop.f32.mrb[0].mxu0
      %v440 = vadd.f32 0.0, %v439
      %v441 = vpop.f32.mrb[0].mxu0
      %v442 = vpop.f32.mrb[0].mxu0
      %v443 = vadd.f32 0.0, %v442
      %v444 = vpop.f32.mrb[0].mxu0
      %445 = vdwg.mxu0
      %v450 = vcombine.low %v199, %v200
      %v451 = vcombine.low %v201, %v202
      %v453 = vunpack.c.l.s4 1983009808
      %v454 = vunpack.c.0.s8 %v453
      %v455 = vlaneseq
      %v456 = vshrl.u32 %v455, 7
      %v457 = vsub.s32 %v454, %v456
      %v458 = vrot.slane %v450, %v457
      %v460 = vunpack.c.l.s4 1983009808
      %v461 = vunpack.c.0.s8 %v460
      %v462 = vlaneseq
      %v463 = vshrl.u32 %v462, 7
      %v464 = vsub.s32 %v461, %v463
      %v465 = vrot.slane %v451, %v464
      %v466 = vcombine.low %v458, %v465
      %v484 = vunpack.c.l.b16 %v203
      %v485 = vunpack.c.l.b16 %v204
      %v486 = vunpack.c.l.b16 %v205
      %v487 = vunpack.c.l.b16 %v206
      %v488 = vunpack.c.l.b16 %v207
      %v489 = vunpack.c.l.b16 %v208
      %v490 = vunpack.c.l.b16 %v209
      %v491 = vunpack.c.l.b16 %v210
      %v492 = vunpack.c.l.b16 %v211
      %v493 = vunpack.c.l.b16 %v212
      %v494 = vunpack.c.l.b16 %v213
      %v495 = vunpack.c.l.b16 %v214
      %v496 = vunpack.c.l.b16 %v215
      %v497 = vunpack.c.l.b16 %v216
      %v498 = vunpack.c.l.b16 %v217
      %v499 = vunpack.c.l.b16 %v218
      %v500 = vpack.c.b16 %v485, %v484
      %v501 = vpack.c.b16 %v487, %v486
      %v502 = vpack.c.b16 %v489, %v488
      %v503 = vpack.c.b16 %v491, %v490
      %v504 = vpack.c.b16 %v493, %v492
      %v505 = vpack.c.b16 %v495, %v494
      %v506 = vpack.c.b16 %v497, %v496
      %v507 = vpack.c.b16 %v499, %v498
      %516 = vmatprep.subr.bf16.mxu0 0
      %517 = vmatpush1.bf16.msra.mxu0 %v500
      %518 = vmatprep.subr.bf16.mxu0 0
      %519 = vmatpush1.bf16.msra.mxu0 %v501
      %520 = vmatprep.subr.bf16.mxu0 0
      %521 = vmatpush1.bf16.msra.mxu0 %v502
      %522 = vmatprep.subr.bf16.mxu0 0
      %523 = vmatpush1.bf16.msra.mxu0 %v503
      %524 = vmatprep.subr.bf16.mxu0 0
      %525 = vmatpush1.bf16.msra.mxu0 %v504
      %526 = vmatprep.subr.bf16.mxu0 0
      %527 = vmatpush1.bf16.msra.mxu0 %v505
      %528 = vmatprep.subr.bf16.mxu0 0
      %529 = vmatpush1.bf16.msra.mxu0 %v506
      %530 = vmatprep.subr.bf16.mxu0 0
      %531 = vmatpush1.bf16.msra.mxu0 %v507
      %532 = vmatprep.subr.bf16.mxu0 0
      %533 = vmatpush1.bf16.msra.mxu0 0
      %534 = vmatprep.subr.bf16.mxu0 0
      %535 = vmatpush1.bf16.msra.mxu0 0
      %536 = vmatprep.subr.bf16.mxu0 0
      %537 = vmatpush1.bf16.msra.mxu0 0
      %538 = vmatprep.subr.bf16.mxu0 0
      %539 = vmatpush1.bf16.msra.mxu0 0
      %540 = vmatprep.subr.bf16.mxu0 0
      %541 = vmatpush1.bf16.msra.mxu0 0
      %542 = vmatprep.subr.bf16.mxu0 0
      %543 = vmatpush1.bf16.msra.mxu0 0
      %544 = vmatprep.subr.bf16.mxu0 0
      %545 = vmatpush1.bf16.msra.mxu0 0
      %546 = vmatprep.subr.bf16.mxu0 0
      %547 = vmatpush1.bf16.msra.mxu0 0
      %548 = vmatprep.mubr.bf16.mxu0 0
      %549 = vmatmul.mubr.bf16.gmra.mrb[0].mxu0 %v466
      %v550 = vpop.f32.mrb[0].mxu0
      %v551 = vadd.f32 %v440, %v550
      %v552 = vpop.f32.mrb[0].mxu0
      %v553 = vpop.f32.mrb[0].mxu0
      %v554 = vadd.f32 %v443, %v553
      %v555 = vpop.f32.mrb[0].mxu0
      %556 = vdwg.mxu0
      %v557 = vld [vmem:[%s192] sm:$0x6]
      %v558 = vld [vmem:[%s192 + $0x4] sm:$0x6]
      %v559 = vld [vmem:[%s192 + $0x8] sm:$0x6]
      %v560 = vld [vmem:[%s192 + $0xc] sm:$0x6]
      %v566 = vunpack.c.l.s4 1983009808
      %v567 = vunpack.c.0.s8 %v566
      %v568 = vlaneseq
      %v569 = vshrl.u32 %v568, 7
      %v570 = vsub.s32 %v567, %v569
      %v571 = vrot.slane %v557, %v570
      %v572 = vcombine.high %v571, %v571
      %v574 = vunpack.c.l.s4 1983009808
      %v575 = vunpack.c.0.s8 %v574
      %v576 = vlaneseq
      %v577 = vshrl.u32 %v576, 7
      %v578 = vsub.s32 %v575, %v577
      %v579 = vrot.slane %v558, %v578
      %v580 = vcombine.high %v579, %v579
      %v582 = vunpack.c.l.s4 1983009808
      %v583 = vunpack.c.0.s8 %v582
      %v584 = vlaneseq
      %v585 = vshrl.u32 %v584, 7
      %v586 = vsub.s32 %v583, %v585
      %v587 = vrot.slane %v559, %v586
      %v588 = vcombine.high %v587, %v587
      %v590 = vunpack.c.l.s4 1983009808
      %v591 = vunpack.c.0.s8 %v590
      %v592 = vlaneseq
      %v593 = vshrl.u32 %v592, 7
      %v594 = vsub.s32 %v591, %v593
      %v595 = vrot.slane %v560, %v594
      %v596 = vcombine.high %v595, %v595
      %vm597 = vcmask 1040384
      %vm598 = vcmask 1042434
      %vm599 = vmor %vm597, %vm598
      %vm600 = vcmask 1044484
      %vm601 = vmor %vm599, %vm600
      %vm602 = vcmask 1046534
      %vm603 = vmor %vm601, %vm602
      %v604 = vrot.slane %v571, 7
      %v605 = vrot.slane %v604, 2
      %v606 = vrot.slane %v572, 7
      %v607 = vsel %vm603, %v605, %v606
      %v608 = vrot.slane %v579, 7
      %v609 = vrot.slane %v608, 2
      %v610 = vrot.slane %v580, 7
      %v611 = vsel %vm603, %v609, %v610
      %v612 = vrot.slane %v587, 7
      %v613 = vrot.slane %v612, 2
      %v614 = vrot.slane %v588, 7
      %v615 = vsel %vm603, %v613, %v614
      %v616 = vrot.slane %v595, 7
      %v617 = vrot.slane %v616, 2
      %v618 = vrot.slane %v596, 7
      %v619 = vsel %vm603, %v617, %v618
      %s620 = scalar_lea.vmem %s1, 128
      %v621 = vld [vmem:[%s620] sm:$0xf]
      %v622 = vld [vmem:[%s620 + $0x4] sm:$0xf]
      %v623 = vld [vmem:[%s620 + $0x8] sm:$0xf]
      %v624 = vld [vmem:[%s620 + $0xc] sm:$0xf]
      %v625 = vld [vmem:[%s620 + $0x10] sm:$0xf]
      %v626 = vld [vmem:[%s620 + $0x14] sm:$0xf]
      %v627 = vld [vmem:[%s620 + $0x18] sm:$0xf]
      %v628 = vld [vmem:[%s620 + $0x1c] sm:$0xf]
      %v629 = vld [vmem:[%s620 + $0x20] sm:$0xf]
      %v630 = vld [vmem:[%s620 + $0x24] sm:$0xf]
      %v631 = vld [vmem:[%s620 + $0x28] sm:$0xf]
      %v632 = vld [vmem:[%s620 + $0x2c] sm:$0xf]
      %v633 = vld [vmem:[%s620 + $0x30] sm:$0xf]
      %v634 = vld [vmem:[%s620 + $0x34] sm:$0xf]
      %v635 = vld [vmem:[%s620 + $0x38] sm:$0xf]
      %v636 = vld [vmem:[%s620 + $0x3c] sm:$0xf]
      %v637 = vcombine.low %v607, %v611
      %v638 = vcombine.low %v615, %v619
      %v640 = vunpack.c.l.s4 1983009808
      %v641 = vunpack.c.0.s8 %v640
      %v642 = vlaneseq
      %v643 = vshrl.u32 %v642, 7
      %v644 = vsub.s32 %v641, %v643
      %v645 = vrot.slane %v637, %v644
      %v647 = vunpack.c.l.s4 1983009808
      %v648 = vunpack.c.0.s8 %v647
      %v649 = vlaneseq
      %v650 = vshrl.u32 %v649, 7
      %v651 = vsub.s32 %v648, %v650
      %v652 = vrot.slane %v638, %v651
      %v653 = vcombine.low %v645, %v652
      %v671 = vunpack.c.l.b16 %v621
      %v672 = vunpack.c.l.b16 %v622
      %v673 = vunpack.c.l.b16 %v623
      %v674 = vunpack.c.l.b16 %v624
      %v675 = vunpack.c.l.b16 %v625
      %v676 = vunpack.c.l.b16 %v626
      %v677 = vunpack.c.l.b16 %v627
      %v678 = vunpack.c.l.b16 %v628
      %v679 = vunpack.c.l.b16 %v629
      %v680 = vunpack.c.l.b16 %v630
      %v681 = vunpack.c.l.b16 %v631
      %v682 = vunpack.c.l.b16 %v632
      %v683 = vunpack.c.l.b16 %v633
      %v684 = vunpack.c.l.b16 %v634
      %v685 = vunpack.c.l.b16 %v635
      %v686 = vunpack.c.l.b16 %v636
      %v687 = vpack.c.b16 %v672, %v671
      %v688 = vpack.c.b16 %v674, %v673
      %v689 = vpack.c.b16 %v676, %v675
      %v690 = vpack.c.b16 %v678, %v677
      %v691 = vpack.c.b16 %v680, %v679
      %v692 = vpack.c.b16 %v682, %v681
      %v693 = vpack.c.b16 %v684, %v683
      %v694 = vpack.c.b16 %v686, %v685
      %703 = vmatprep.subr.bf16.mxu0 0
      %704 = vmatpush1.bf16.msra.mxu0 %v687
      %705 = vmatprep.subr.bf16.mxu0 0
      %706 = vmatpush1.bf16.msra.mxu0 %v688
      %707 = vmatprep.subr.bf16.mxu0 0
      %708 = vmatpush1.bf16.msra.mxu0 %v689
      %709 = vmatprep.subr.bf16.mxu0 0
      %710 = vmatpush1.bf16.msra.mxu0 %v690
      %711 = vmatprep.subr.bf16.mxu0 0
      %712 = vmatpush1.bf16.msra.mxu0 %v691
      %713 = vmatprep.subr.bf16.mxu0 0
      %714 = vmatpush1.bf16.msra.mxu0 %v692
      %715 = vmatprep.subr.bf16.mxu0 0
      %716 = vmatpush1.bf16.msra.mxu0 %v693
      %717 = vmatprep.subr.bf16.mxu0 0
      %718 = vmatpush1.bf16.msra.mxu0 %v694
      %719 = vmatprep.subr.bf16.mxu0 0
      %720 = vmatpush1.bf16.msra.mxu0 0
      %721 = vmatprep.subr.bf16.mxu0 0
      %722 = vmatpush1.bf16.msra.mxu0 0
      %723 = vmatprep.subr.bf16.mxu0 0
      %724 = vmatpush1.bf16.msra.mxu0 0
      %725 = vmatprep.subr.bf16.mxu0 0
      %726 = vmatpush1.bf16.msra.mxu0 0
      %727 = vmatprep.subr.bf16.mxu0 0
      %728 = vmatpush1.bf16.msra.mxu0 0
      %729 = vmatprep.subr.bf16.mxu0 0
      %730 = vmatpush1.bf16.msra.mxu0 0
      %731 = vmatprep.subr.bf16.mxu0 0
      %732 = vmatpush1.bf16.msra.mxu0 0
      %733 = vmatprep.subr.bf16.mxu0 0
      %734 = vmatpush1.bf16.msra.mxu0 0
      %735 = vmatprep.mubr.bf16.mxu0 0
      %736 = vmatmul.mubr.bf16.gmra.mrb[0].mxu0 %v653
      %v737 = vpop.f32.mrb[0].mxu0
      %v738 = vadd.f32 0.0, %v737
      %v739 = vpop.f32.mrb[0].mxu0
      %v740 = vpop.f32.mrb[0].mxu0
      %v741 = vadd.f32 0.0, %v740
      %v742 = vpop.f32.mrb[0].mxu0
      %743 = vdwg.mxu0
      %v744 = vadd.f32 %v551, %v738
      %v745 = vadd.f32 %v554, %v741
      %s746 = scalar_lea.vmem %s192, 4
      %v747 = vld [vmem:[%s746] sm:$0x3]
      %v748 = vld [vmem:[%s746 + $0x4] sm:$0x3]
      %v749 = vld [vmem:[%s746 + $0x8] sm:$0x3]
      %v750 = vld [vmem:[%s746 + $0xc] sm:$0x3]
      %s751 = scalar_lea.vmem %s1, 192
      %v752 = vld [vmem:[%s751] sm:$0xf]
      %v753 = vld [vmem:[%s751 + $0x4] sm:$0xf]
      %v754 = vld [vmem:[%s751 + $0x8] sm:$0xf]
      %v755 = vld [vmem:[%s751 + $0xc] sm:$0xf]
      %v756 = vld [vmem:[%s751 + $0x10] sm:$0xf]
      %v757 = vld [vmem:[%s751 + $0x14] sm:$0xf]
      %v758 = vld [vmem:[%s751 + $0x18] sm:$0xf]
      %v759 = vld [vmem:[%s751 + $0x1c] sm:$0xf]
      %v760 = vld [vmem:[%s751 + $0x20] sm:$0xf]
      %v761 = vld [vmem:[%s751 + $0x24] sm:$0xf]
      %v762 = vld [vmem:[%s751 + $0x28] sm:$0xf]
      %v763 = vld [vmem:[%s751 + $0x2c] sm:$0xf]
      %v764 = vld [vmem:[%s751 + $0x30] sm:$0xf]
      %v765 = vld [vmem:[%s751 + $0x34] sm:$0xf]
      %v766 = vld [vmem:[%s751 + $0x38] sm:$0xf]
      %v767 = vld [vmem:[%s751 + $0x3c] sm:$0xf]
      %v772 = vcombine.low %v747, %v748
      %v773 = vcombine.low %v749, %v750
      %v775 = vunpack.c.l.s4 1983009808
      %v776 = vunpack.c.0.s8 %v775
      %v777 = vlaneseq
      %v778 = vshrl.u32 %v777, 7
      %v779 = vsub.s32 %v776, %v778
      %v780 = vrot.slane %v772, %v779
      %v782 = vunpack.c.l.s4 1983009808
      %v783 = vunpack.c.0.s8 %v782
      %v784 = vlaneseq
      %v785 = vshrl.u32 %v784, 7
      %v786 = vsub.s32 %v783, %v785
      %v787 = vrot.slane %v773, %v786
      %v788 = vcombine.low %v780, %v787
      %v806 = vunpack.c.l.b16 %v752
      %v807 = vunpack.c.l.b16 %v753
      %v808 = vunpack.c.l.b16 %v754
      %v809 = vunpack.c.l.b16 %v755
      %v810 = vunpack.c.l.b16 %v756
      %v811 = vunpack.c.l.b16 %v757
      %v812 = vunpack.c.l.b16 %v758
      %v813 = vunpack.c.l.b16 %v759
      %v814 = vunpack.c.l.b16 %v760
      %v815 = vunpack.c.l.b16 %v761
      %v816 = vunpack.c.l.b16 %v762
      %v817 = vunpack.c.l.b16 %v763
      %v818 = vunpack.c.l.b16 %v764
      %v819 = vunpack.c.l.b16 %v765
      %v820 = vunpack.c.l.b16 %v766
      %v821 = vunpack.c.l.b16 %v767
      %v822 = vpack.c.b16 %v807, %v806
      %v823 = vpack.c.b16 %v809, %v808
      %v824 = vpack.c.b16 %v811, %v810
      %v825 = vpack.c.b16 %v813, %v812
      %v826 = vpack.c.b16 %v815, %v814
      %v827 = vpack.c.b16 %v817, %v816
      %v828 = vpack.c.b16 %v819, %v818
      %v829 = vpack.c.b16 %v821, %v820
      %838 = vmatprep.subr.bf16.mxu0 0
      %839 = vmatpush1.bf16.msra.mxu0 %v822
      %840 = vmatprep.subr.bf16.mxu0 0
      %841 = vmatpush1.bf16.msra.mxu0 %v823
      %842 = vmatprep.subr.bf16.mxu0 0
      %843 = vmatpush1.bf16.msra.mxu0 %v824
      %844 = vmatprep.subr.bf16.mxu0 0
      %845 = vmatpush1.bf16.msra.mxu0 %v825
      %846 = vmatprep.subr.bf16.mxu0 0
      %847 = vmatpush1.bf16.msra.mxu0 %v826
      %848 = vmatprep.subr.bf16.mxu0 0
      %849 = vmatpush1.bf16.msra.mxu0 %v827
      %850 = vmatprep.subr.bf16.mxu0 0
      %851 = vmatpush1.bf16.msra.mxu0 %v828
      %852 = vmatprep.subr.bf16.mxu0 0
      %853 = vmatpush1.bf16.msra.mxu0 %v829
      %854 = vmatprep.subr.bf16.mxu0 0
      %855 = vmatpush1.bf16.msra.mxu0 0
      %856 = vmatprep.subr.bf16.mxu0 0
      %857 = vmatpush1.bf16.msra.mxu0 0
      %858 = vmatprep.subr.bf16.mxu0 0
      %859 = vmatpush1.bf16.msra.mxu0 0
      %860 = vmatprep.subr.bf16.mxu0 0
      %861 = vmatpush1.bf16.msra.mxu0 0
      %862 = vmatprep.subr.bf16.mxu0 0
      %863 = vmatpush1.bf16.msra.mxu0 0
      %864 = vmatprep.subr.bf16.mxu0 0
      %865 = vmatpush1.bf16.msra.mxu0 0
      %866 = vmatprep.subr.bf16.mxu0 0
      %867 = vmatpush1.bf16.msra.mxu0 0
      %868 = vmatprep.subr.bf16.mxu0 0
      %869 = vmatpush1.bf16.msra.mxu0 0
      %870 = vmatprep.mubr.bf16.mxu0 0
      %871 = vmatmul.mubr.bf16.gmra.mrb[0].mxu0 %v788
      %v872 = vpop.f32.mrb[0].mxu0
      %v873 = vadd.f32 0.0, %v872
      %v874 = vpop.f32.mrb[0].mxu0
      %v875 = vpop.f32.mrb[0].mxu0
      %v876 = vadd.f32 0.0, %v875
      %v877 = vpop.f32.mrb[0].mxu0
      %878 = vdwg.mxu0
      %v879 = vadd.f32 %v744, %v873
      %v880 = vadd.f32 %v745, %v876
      %v881 = vld [vmem:[%s746] sm:$0x7]
      %v882 = vld [vmem:[%s746 + $0x4] sm:$0x7]
      %v883 = vld [vmem:[%s746 + $0x8] sm:$0x7]
      %v884 = vld [vmem:[%s746 + $0xc] sm:$0x7]
      %v890 = vunpack.c.l.s4 1983009808
      %v891 = vunpack.c.0.s8 %v890
      %v892 = vlaneseq
      %v893 = vshrl.u32 %v892, 7
      %v894 = vsub.s32 %v891, %v893
      %v895 = vrot.slane %v881, %v894
      %v896 = vcombine.high %v895, %v895
      %v898 = vunpack.c.l.s4 1983009808
      %v899 = vunpack.c.0.s8 %v898
      %v900 = vlaneseq
      %v901 = vshrl.u32 %v900, 7
      %v902 = vsub.s32 %v899, %v901
      %v903 = vrot.slane %v882, %v902
      %v904 = vcombine.high %v903, %v903
      %v906 = vunpack.c.l.s4 1983009808
      %v907 = vunpack.c.0.s8 %v906
      %v908 = vlaneseq
      %v909 = vshrl.u32 %v908, 7
      %v910 = vsub.s32 %v907, %v909
      %v911 = vrot.slane %v883, %v910
      %v912 = vcombine.high %v911, %v911
      %v914 = vunpack.c.l.s4 1983009808
      %v915 = vunpack.c.0.s8 %v914
      %v916 = vlaneseq
      %v917 = vshrl.u32 %v916, 7
      %v918 = vsub.s32 %v915, %v917
      %v919 = vrot.slane %v884, %v918
      %v920 = vcombine.high %v919, %v919
      %v922 = vshrl.u32 %v895, 16
      %v924 = vrot.slane %v922, 6
      %v925 = vshll.u32 %v895, 16
      %v927 = vrot.slane %v925, 7
      %v928 = vor.u32 %v924, %v927
      %v929 = vrot.slane %v928, 2
      %v931 = vshll.u32 %v896, 16
      %v933 = vrot.slane %v931, 7
      %v934 = vsel %vm265, %v929, %v933
      %v936 = vshrl.u32 %v903, 16
      %v938 = vrot.slane %v936, 6
      %v939 = vshll.u32 %v903, 16
      %v941 = vrot.slane %v939, 7
      %v942 = vor.u32 %v938, %v941
      %v943 = vrot.slane %v942, 2
      %v945 = vshll.u32 %v904, 16
      %v947 = vrot.slane %v945, 7
      %v948 = vsel %vm265, %v943, %v947
      %v950 = vshrl.u32 %v911, 16
      %v952 = vrot.slane %v950, 6
      %v953 = vshll.u32 %v911, 16
      %v955 = vrot.slane %v953, 7
      %v956 = vor.u32 %v952, %v955
      %v957 = vrot.slane %v956, 2
      %v959 = vshll.u32 %v912, 16
      %v961 = vrot.slane %v959, 7
      %v962 = vsel %vm265, %v957, %v961
      %v964 = vshrl.u32 %v919, 16
      %v966 = vrot.slane %v964, 6
      %v967 = vshll.u32 %v919, 16
      %v969 = vrot.slane %v967, 7
      %v970 = vor.u32 %v966, %v969
      %v971 = vrot.slane %v970, 2
      %v973 = vshll.u32 %v920, 16
      %v975 = vrot.slane %v973, 7
      %v976 = vsel %vm265, %v971, %v975
      %s977 = scalar_lea.vmem %s1, 256
      %v978 = vld [vmem:[%s977] sm:$0xf]
      %v979 = vld [vmem:[%s977 + $0x4] sm:$0xf]
      %v980 = vld [vmem:[%s977 + $0x8] sm:$0xf]
      %v981 = vld [vmem:[%s977 + $0xc] sm:$0xf]
      %v982 = vld [vmem:[%s977 + $0x10] sm:$0xf]
      %v983 = vld [vmem:[%s977 + $0x14] sm:$0xf]
      %v984 = vld [vmem:[%s977 + $0x18] sm:$0xf]
      %v985 = vld [vmem:[%s977 + $0x1c] sm:$0xf]
      %v986 = vld [vmem:[%s977 + $0x20] sm:$0xf]
      %v987 = vld [vmem:[%s977 + $0x24] sm:$0xf]
      %v988 = vld [vmem:[%s977 + $0x28] sm:$0xf]
      %v989 = vld [vmem:[%s977 + $0x2c] sm:$0xf]
      %v990 = vld [vmem:[%s977 + $0x30] sm:$0xf]
      %v991 = vld [vmem:[%s977 + $0x34] sm:$0xf]
      %v992 = vld [vmem:[%s977 + $0x38] sm:$0xf]
      %v993 = vld [vmem:[%s977 + $0x3c] sm:$0xf]
      %v994 = vcombine.low %v934, %v948
      %v995 = vcombine.low %v962, %v976
      %v997 = vunpack.c.l.s4 1983009808
      %v998 = vunpack.c.0.s8 %v997
      %v999 = vlaneseq
      %v1000 = vshrl.u32 %v999, 7
      %v1001 = vsub.s32 %v998, %v1000
      %v1002 = vrot.slane %v994, %v1001
      %v1004 = vunpack.c.l.s4 1983009808
      %v1005 = vunpack.c.0.s8 %v1004
      %v1006 = vlaneseq
      %v1007 = vshrl.u32 %v1006, 7
      %v1008 = vsub.s32 %v1005, %v1007
      %v1009 = vrot.slane %v995, %v1008
      %v1010 = vcombine.low %v1002, %v1009
      %v1028 = vunpack.c.l.b16 %v978
      %v1029 = vunpack.c.l.b16 %v979
      %v1030 = vunpack.c.l.b16 %v980
      %v1031 = vunpack.c.l.b16 %v981
      %v1032 = vunpack.c.l.b16 %v982
      %v1033 = vunpack.c.l.b16 %v983
      %v1034 = vunpack.c.l.b16 %v984
      %v1035 = vunpack.c.l.b16 %v985
      %v1036 = vunpack.c.l.b16 %v986
      %v1037 = vunpack.c.l.b16 %v987
      %v1038 = vunpack.c.l.b16 %v988
      %v1039 = vunpack.c.l.b16 %v989
      %v1040 = vunpack.c.l.b16 %v990
      %v1041 = vunpack.c.l.b16 %v991
      %v1042 = vunpack.c.l.b16 %v992
      %v1043 = vunpack.c.l.b16 %v993
      %v1044 = vpack.c.b16 %v1029, %v1028
      %v1045 = vpack.c.b16 %v1031, %v1030
      %v1046 = vpack.c.b16 %v1033, %v1032
      %v1047 = vpack.c.b16 %v1035, %v1034
      %v1048 = vpack.c.b16 %v1037, %v1036
      %v1049 = vpack.c.b16 %v1039, %v1038
      %v1050 = vpack.c.b16 %v1041, %v1040
      %v1051 = vpack.c.b16 %v1043, %v1042
      %1060 = vmatprep.subr.bf16.mxu0 0
      %1061 = vmatpush1.bf16.msra.mxu0 %v1044
      %1062 = vmatprep.subr.bf16.mxu0 0
      %1063 = vmatpush1.bf16.msra.mxu0 %v1045
      %1064 = vmatprep.subr.bf16.mxu0 0
      %1065 = vmatpush1.bf16.msra.mxu0 %v1046
      %1066 = vmatprep.subr.bf16.mxu0 0
      %1067 = vmatpush1.bf16.msra.mxu0 %v1047
      %1068 = vmatprep.subr.bf16.mxu0 0
      %1069 = vmatpush1.bf16.msra.mxu0 %v1048
      %1070 = vmatprep.subr.bf16.mxu0 0
      %1071 = vmatpush1.bf16.msra.mxu0 %v1049
      %1072 = vmatprep.subr.bf16.mxu0 0
      %1073 = vmatpush1.bf16.msra.mxu0 %v1050
      %1074 = vmatprep.subr.bf16.mxu0 0
      %1075 = vmatpush1.bf16.msra.mxu0 %v1051
      %1076 = vmatprep.subr.bf16.mxu0 0
      %1077 = vmatpush1.bf16.msra.mxu0 0
      %1078 = vmatprep.subr.bf16.mxu0 0
      %1079 = vmatpush1.bf16.msra.mxu0 0
      %1080 = vmatprep.subr.bf16.mxu0 0
      %1081 = vmatpush1.bf16.msra.mxu0 0
      %1082 = vmatprep.subr.bf16.mxu0 0
      %1083 = vmatpush1.bf16.msra.mxu0 0
      %1084 = vmatprep.subr.bf16.mxu0 0
      %1085 = vmatpush1.bf16.msra.mxu0 0
      %1086 = vmatprep.subr.bf16.mxu0 0
      %1087 = vmatpush1.bf16.msra.mxu0 0
      %1088 = vmatprep.subr.bf16.mxu0 0
      %1089 = vmatpush1.bf16.msra.mxu0 0
      %1090 = vmatprep.subr.bf16.mxu0 0
      %1091 = vmatpush1.bf16.msra.mxu0 0
      %1092 = vmatprep.mubr.bf16.mxu0 0
      %1093 = vmatmul.mubr.bf16.gmra.mrb[0].mxu0 %v1010
      %v1094 = vpop.f32.mrb[0].mxu0
      %v1095 = vadd.f32 0.0, %v1094
      %v1096 = vpop.f32.mrb[0].mxu0
      %v1097 = vpop.f32.mrb[0].mxu0
      %v1098 = vadd.f32 0.0, %v1097
      %v1099 = vpop.f32.mrb[0].mxu0
      %1100 = vdwg.mxu0
      %v1101 = vadd.f32 %v879, %v1095
      %v1102 = vadd.f32 %v880, %v1098
      %v1103 = vld [vmem:[%s746] sm:$0x6]
      %v1104 = vld [vmem:[%s746 + $0x4] sm:$0x6]
      %v1105 = vld [vmem:[%s746 + $0x8] sm:$0x6]
      %v1106 = vld [vmem:[%s746 + $0xc] sm:$0x6]
      %v1112 = vunpack.c.l.s4 1983009808
      %v1113 = vunpack.c.0.s8 %v1112
      %v1114 = vlaneseq
      %v1115 = vshrl.u32 %v1114, 7
      %v1116 = vsub.s32 %v1113, %v1115
      %v1117 = vrot.slane %v1103, %v1116
      %v1118 = vcombine.high %v1117, %v1117
      %v1120 = vunpack.c.l.s4 1983009808
      %v1121 = vunpack.c.0.s8 %v1120
      %v1122 = vlaneseq
      %v1123 = vshrl.u32 %v1122, 7
      %v1124 = vsub.s32 %v1121, %v1123
      %v1125 = vrot.slane %v1104, %v1124
      %v1126 = vcombine.high %v1125, %v1125
      %v1128 = vunpack.c.l.s4 1983009808
      %v1129 = vunpack.c.0.s8 %v1128
      %v1130 = vlaneseq
      %v1131 = vshrl.u32 %v1130, 7
      %v1132 = vsub.s32 %v1129, %v1131
      %v1133 = vrot.slane %v1105, %v1132
      %v1134 = vcombine.high %v1133, %v1133
      %v1136 = vunpack.c.l.s4 1983009808
      %v1137 = vunpack.c.0.s8 %v1136
      %v1138 = vlaneseq
      %v1139 = vshrl.u32 %v1138, 7
      %v1140 = vsub.s32 %v1137, %v1139
      %v1141 = vrot.slane %v1106, %v1140
      %v1142 = vcombine.high %v1141, %v1141
      %v1143 = vrot.slane %v1117, 7
      %v1144 = vrot.slane %v1143, 2
      %v1145 = vrot.slane %v1118, 7
      %v1146 = vsel %vm603, %v1144, %v1145
      %v1147 = vrot.slane %v1125, 7
      %v1148 = vrot.slane %v1147, 2
      %v1149 = vrot.slane %v1126, 7
      %v1150 = vsel %vm603, %v1148, %v1149
      %v1151 = vrot.slane %v1133, 7
      %v1152 = vrot.slane %v1151, 2
      %v1153 = vrot.slane %v1134, 7
      %v1154 = vsel %vm603, %v1152, %v1153
      %v1155 = vrot.slane %v1141, 7
      %v1156 = vrot.slane %v1155, 2
      %v1157 = vrot.slane %v1142, 7
      %v1158 = vsel %vm603, %v1156, %v1157
      %s1159 = scalar_lea.vmem %s1, 320
      %v1160 = vld [vmem:[%s1159] sm:$0xf]
      %v1161 = vld [vmem:[%s1159 + $0x4] sm:$0xf]
      %v1162 = vld [vmem:[%s1159 + $0x8] sm:$0xf]
      %v1163 = vld [vmem:[%s1159 + $0xc] sm:$0xf]
      %v1164 = vld [vmem:[%s1159 + $0x10] sm:$0xf]
      %v1165 = vld [vmem:[%s1159 + $0x14] sm:$0xf]
      %v1166 = vld [vmem:[%s1159 + $0x18] sm:$0xf]
      %v1167 = vld [vmem:[%s1159 + $0x1c] sm:$0xf]
      %v1168 = vld [vmem:[%s1159 + $0x20] sm:$0xf]
      %v1169 = vld [vmem:[%s1159 + $0x24] sm:$0xf]
      %v1170 = vld [vmem:[%s1159 + $0x28] sm:$0xf]
      %v1171 = vld [vmem:[%s1159 + $0x2c] sm:$0xf]
      %v1172 = vld [vmem:[%s1159 + $0x30] sm:$0xf]
      %v1173 = vld [vmem:[%s1159 + $0x34] sm:$0xf]
      %v1174 = vld [vmem:[%s1159 + $0x38] sm:$0xf]
      %v1175 = vld [vmem:[%s1159 + $0x3c] sm:$0xf]
      %v1176 = vcombine.low %v1146, %v1150
      %v1177 = vcombine.low %v1154, %v1158
      %v1179 = vunpack.c.l.s4 1983009808
      %v1180 = vunpack.c.0.s8 %v1179
      %v1181 = vlaneseq
      %v1182 = vshrl.u32 %v1181, 7
      %v1183 = vsub.s32 %v1180, %v1182
      %v1184 = vrot.slane %v1176, %v1183
      %v1186 = vunpack.c.l.s4 1983009808
      %v1187 = vunpack.c.0.s8 %v1186
      %v1188 = vlaneseq
      %v1189 = vshrl.u32 %v1188, 7
      %v1190 = vsub.s32 %v1187, %v1189
      %v1191 = vrot.slane %v1177, %v1190
      %v1192 = vcombine.low %v1184, %v1191
      %v1210 = vunpack.c.l.b16 %v1160
      %v1211 = vunpack.c.l.b16 %v1161
      %v1212 = vunpack.c.l.b16 %v1162
      %v1213 = vunpack.c.l.b16 %v1163
      %v1214 = vunpack.c.l.b16 %v1164
      %v1215 = vunpack.c.l.b16 %v1165
      %v1216 = vunpack.c.l.b16 %v1166
      %v1217 = vunpack.c.l.b16 %v1167
      %v1218 = vunpack.c.l.b16 %v1168
      %v1219 = vunpack.c.l.b16 %v1169
      %v1220 = vunpack.c.l.b16 %v1170
      %v1221 = vunpack.c.l.b16 %v1171
      %v1222 = vunpack.c.l.b16 %v1172
      %v1223 = vunpack.c.l.b16 %v1173
      %v1224 = vunpack.c.l.b16 %v1174
      %v1225 = vunpack.c.l.b16 %v1175
      %v1226 = vpack.c.b16 %v1211, %v1210
      %v1227 = vpack.c.b16 %v1213, %v1212
      %v1228 = vpack.c.b16 %v1215, %v1214
      %v1229 = vpack.c.b16 %v1217, %v1216
      %v1230 = vpack.c.b16 %v1219, %v1218
      %v1231 = vpack.c.b16 %v1221, %v1220
      %v1232 = vpack.c.b16 %v1223, %v1222
      %v1233 = vpack.c.b16 %v1225, %v1224
      %1242 = vmatprep.subr.bf16.mxu0 0
      %1243 = vmatpush1.bf16.msra.mxu0 %v1226
      %1244 = vmatprep.subr.bf16.mxu0 0
      %1245 = vmatpush1.bf16.msra.mxu0 %v1227
      %1246 = vmatprep.subr.bf16.mxu0 0
      %1247 = vmatpush1.bf16.msra.mxu0 %v1228
      %1248 = vmatprep.subr.bf16.mxu0 0
      %1249 = vmatpush1.bf16.msra.mxu0 %v1229
      %1250 = vmatprep.subr.bf16.mxu0 0
      %1251 = vmatpush1.bf16.msra.mxu0 %v1230
      %1252 = vmatprep.subr.bf16.mxu0 0
      %1253 = vmatpush1.bf16.msra.mxu0 %v1231
      %1254 = vmatprep.subr.bf16.mxu0 0
      %1255 = vmatpush1.bf16.msra.mxu0 %v1232
      %1256 = vmatprep.subr.bf16.mxu0 0
      %1257 = vmatpush1.bf16.msra.mxu0 %v1233
      %1258 = vmatprep.subr.bf16.mxu0 0
      %1259 = vmatpush1.bf16.msra.mxu0 0
      %1260 = vmatprep.subr.bf16.mxu0 0
      %1261 = vmatpush1.bf16.msra.mxu0 0
      %1262 = vmatprep.subr.bf16.mxu0 0
      %1263 = vmatpush1.bf16.msra.mxu0 0
      %1264 = vmatprep.subr.bf16.mxu0 0
      %1265 = vmatpush1.bf16.msra.mxu0 0
      %1266 = vmatprep.subr.bf16.mxu0 0
      %1267 = vmatpush1.bf16.msra.mxu0 0
      %1268 = vmatprep.subr.bf16.mxu0 0
      %1269 = vmatpush1.bf16.msra.mxu0 0
      %1270 = vmatprep.subr.bf16.mxu0 0
      %1271 = vmatpush1.bf16.msra.mxu0 0
      %1272 = vmatprep.subr.bf16.mxu0 0
      %1273 = vmatpush1.bf16.msra.mxu0 0
      %1274 = vmatprep.mubr.bf16.mxu0 0
      %1275 = vmatmul.mubr.bf16.gmra.mrb[0].mxu0 %v1192
      %v1276 = vpop.f32.mrb[0].mxu0
      %v1277 = vadd.f32 0.0, %v1276
      %v1278 = vpop.f32.mrb[0].mxu0
      %v1279 = vpop.f32.mrb[0].mxu0
      %v1280 = vadd.f32 0.0, %v1279
      %v1281 = vpop.f32.mrb[0].mxu0
      %1282 = vdwg.mxu0
      %v1283 = vadd.f32 %v1101, %v1277
      %v1284 = vadd.f32 %v1102, %v1280
      %s1285 = scalar_lea.vmem %s192, 8
      %v1286 = vld [vmem:[%s1285] sm:$0x3]
      %v1287 = vld [vmem:[%s1285 + $0x4] sm:$0x3]
      %v1288 = vld [vmem:[%s1285 + $0x8] sm:$0x3]
      %v1289 = vld [vmem:[%s1285 + $0xc] sm:$0x3]
      %s1290 = scalar_lea.vmem %s1, 384
      %v1291 = vld [vmem:[%s1290] sm:$0xf]
      %v1292 = vld [vmem:[%s1290 + $0x4] sm:$0xf]
      %v1293 = vld [vmem:[%s1290 + $0x8] sm:$0xf]
      %v1294 = vld [vmem:[%s1290 + $0xc] sm:$0xf]
      %v1295 = vld [vmem:[%s1290 + $0x10] sm:$0xf]
      %v1296 = vld [vmem:[%s1290 + $0x14] sm:$0xf]
      %v1297 = vld [vmem:[%s1290 + $0x18] sm:$0xf]
      %v1298 = vld [vmem:[%s1290 + $0x1c] sm:$0xf]
      %v1299 = vld [vmem:[%s1290 + $0x20] sm:$0xf]
      %v1300 = vld [vmem:[%s1290 + $0x24] sm:$0xf]
      %v1301 = vld [vmem:[%s1290 + $0x28] sm:$0xf]
      %v1302 = vld [vmem:[%s1290 + $0x2c] sm:$0xf]
      %v1303 = vld [vmem:[%s1290 + $0x30] sm:$0xf]
      %v1304 = vld [vmem:[%s1290 + $0x34] sm:$0xf]
      %v1305 = vld [vmem:[%s1290 + $0x38] sm:$0xf]
      %v1306 = vld [vmem:[%s1290 + $0x3c] sm:$0xf]
      %v1311 = vcombine.low %v1286, %v1287
      %v1312 = vcombine.low %v1288, %v1289
      %v1314 = vunpack.c.l.s4 1983009808
      %v1315 = vunpack.c.0.s8 %v1314
      %v1316 = vlaneseq
      %v1317 = vshrl.u32 %v1316, 7
      %v1318 = vsub.s32 %v1315, %v1317
      %v1319 = vrot.slane %v1311, %v1318
      %v1321 = vunpack.c.l.s4 1983009808
      %v1322 = vunpack.c.0.s8 %v1321
      %v1323 = vlaneseq
      %v1324 = vshrl.u32 %v1323, 7
      %v1325 = vsub.s32 %v1322, %v1324
      %v1326 = vrot.slane %v1312, %v1325
      %v1327 = vcombine.low %v1319, %v1326
      %v1345 = vunpack.c.l.b16 %v1291
      %v1346 = vunpack.c.l.b16 %v1292
      %v1347 = vunpack.c.l.b16 %v1293
      %v1348 = vunpack.c.l.b16 %v1294
      %v1349 = vunpack.c.l.b16 %v1295
      %v1350 = vunpack.c.l.b16 %v1296
      %v1351 = vunpack.c.l.b16 %v1297
      %v1352 = vunpack.c.l.b16 %v1298
      %v1353 = vunpack.c.l.b16 %v1299
      %v1354 = vunpack.c.l.b16 %v1300
      %v1355 = vunpack.c.l.b16 %v1301
      %v1356 = vunpack.c.l.b16 %v1302
      %v1357 = vunpack.c.l.b16 %v1303
      %v1358 = vunpack.c.l.b16 %v1304
      %v1359 = vunpack.c.l.b16 %v1305
      %v1360 = vunpack.c.l.b16 %v1306
      %v1361 = vpack.c.b16 %v1346, %v1345
      %v1362 = vpack.c.b16 %v1348, %v1347
      %v1363 = vpack.c.b16 %v1350, %v1349
      %v1364 = vpack.c.b16 %v1352, %v1351
      %v1365 = vpack.c.b16 %v1354, %v1353
      %v1366 = vpack.c.b16 %v1356, %v1355
      %v1367 = vpack.c.b16 %v1358, %v1357
      %v1368 = vpack.c.b16 %v1360, %v1359
      %1377 = vmatprep.subr.bf16.mxu0 0
      %1378 = vmatpush1.bf16.msra.mxu0 %v1361
      %1379 = vmatprep.subr.bf16.mxu0 0
      %1380 = vmatpush1.bf16.msra.mxu0 %v1362
      %1381 = vmatprep.subr.bf16.mxu0 0
      %1382 = vmatpush1.bf16.msra.mxu0 %v1363
      %1383 = vmatprep.subr.bf16.mxu0 0
      %1384 = vmatpush1.bf16.msra.mxu0 %v1364
      %1385 = vmatprep.subr.bf16.mxu0 0
      %1386 = vmatpush1.bf16.msra.mxu0 %v1365
      %1387 = vmatprep.subr.bf16.mxu0 0
      %1388 = vmatpush1.bf16.msra.mxu0 %v1366
      %1389 = vmatprep.subr.bf16.mxu0 0
      %1390 = vmatpush1.bf16.msra.mxu0 %v1367
      %1391 = vmatprep.subr.bf16.mxu0 0
      %1392 = vmatpush1.bf16.msra.mxu0 %v1368
      %1393 = vmatprep.subr.bf16.mxu0 0
      %1394 = vmatpush1.bf16.msra.mxu0 0
      %1395 = vmatprep.subr.bf16.mxu0 0
      %1396 = vmatpush1.bf16.msra.mxu0 0
      %1397 = vmatprep.subr.bf16.mxu0 0
      %1398 = vmatpush1.bf16.msra.mxu0 0
      %1399 = vmatprep.subr.bf16.mxu0 0
      %1400 = vmatpush1.bf16.msra.mxu0 0
      %1401 = vmatprep.subr.bf16.mxu0 0
      %1402 = vmatpush1.bf16.msra.mxu0 0
      %1403 = vmatprep.subr.bf16.mxu0 0
      %1404 = vmatpush1.bf16.msra.mxu0 0
      %1405 = vmatprep.subr.bf16.mxu0 0
      %1406 = vmatpush1.bf16.msra.mxu0 0
      %1407 = vmatprep.subr.bf16.mxu0 0
      %1408 = vmatpush1.bf16.msra.mxu0 0
      %1409 = vmatprep.mubr.bf16.mxu0 0
      %1410 = vmatmul.mubr.bf16.gmra.mrb[0].mxu0 %v1327
      %v1411 = vpop.f32.mrb[0].mxu0
      %v1412 = vadd.f32 0.0, %v1411
      %v1413 = vpop.f32.mrb[0].mxu0
      %v1414 = vpop.f32.mrb[0].mxu0
      %v1415 = vadd.f32 0.0, %v1414
      %v1416 = vpop.f32.mrb[0].mxu0
      %1417 = vdwg.mxu0
      %v1418 = vadd.f32 %v1283, %v1412
      %v1419 = vadd.f32 %v1284, %v1415
      %v1420 = vld [vmem:[%s1285] sm:$0x7]
      %v1421 = vld [vmem:[%s1285 + $0x4] sm:$0x7]
      %v1422 = vld [vmem:[%s1285 + $0x8] sm:$0x7]
      %v1423 = vld [vmem:[%s1285 + $0xc] sm:$0x7]
      %v1429 = vunpack.c.l.s4 1983009808
      %v1430 = vunpack.c.0.s8 %v1429
      %v1431 = vlaneseq
      %v1432 = vshrl.u32 %v1431, 7
      %v1433 = vsub.s32 %v1430, %v1432
      %v1434 = vrot.slane %v1420, %v1433
      %v1435 = vcombine.high %v1434, %v1434
      %v1437 = vunpack.c.l.s4 1983009808
      %v1438 = vunpack.c.0.s8 %v1437
      %v1439 = vlaneseq
      %v1440 = vshrl.u32 %v1439, 7
      %v1441 = vsub.s32 %v1438, %v1440
      %v1442 = vrot.slane %v1421, %v1441
      %v1443 = vcombine.high %v1442, %v1442
      %v1445 = vunpack.c.l.s4 1983009808
      %v1446 = vunpack.c.0.s8 %v1445
      %v1447 = vlaneseq
      %v1448 = vshrl.u32 %v1447, 7
      %v1449 = vsub.s32 %v1446, %v1448
      %v1450 = vrot.slane %v1422, %v1449
      %v1451 = vcombine.high %v1450, %v1450
      %v1453 = vunpack.c.l.s4 1983009808
      %v1454 = vunpack.c.0.s8 %v1453
      %v1455 = vlaneseq
      %v1456 = vshrl.u32 %v1455, 7
      %v1457 = vsub.s32 %v1454, %v1456
      %v1458 = vrot.slane %v1423, %v1457
      %v1459 = vcombine.high %v1458, %v1458
      %v1461 = vshrl.u32 %v1434, 16
      %v1463 = vrot.slane %v1461, 6
      %v1464 = vshll.u32 %v1434, 16
      %v1466 = vrot.slane %v1464, 7
      %v1467 = vor.u32 %v1463, %v1466
      %v1468 = vrot.slane %v1467, 2
      %v1470 = vshll.u32 %v1435, 16
      %v1472 = vrot.slane %v1470, 7
      %v1473 = vsel %vm265, %v1468, %v1472
      %v1475 = vshrl.u32 %v1442, 16
      %v1477 = vrot.slane %v1475, 6
      %v1478 = vshll.u32 %v1442, 16
      %v1480 = vrot.slane %v1478, 7
      %v1481 = vor.u32 %v1477, %v1480
      %v1482 = vrot.slane %v1481, 2
      %v1484 = vshll.u32 %v1443, 16
      %v1486 = vrot.slane %v1484, 7
      %v1487 = vsel %vm265, %v1482, %v1486
      %v1489 = vshrl.u32 %v1450, 16
      %v1491 = vrot.slane %v1489, 6
      %v1492 = vshll.u32 %v1450, 16
      %v1494 = vrot.slane %v1492, 7
      %v1495 = vor.u32 %v1491, %v1494
      %v1496 = vrot.slane %v1495, 2
      %v1498 = vshll.u32 %v1451, 16
      %v1500 = vrot.slane %v1498, 7
      %v1501 = vsel %vm265, %v1496, %v1500
      %v1503 = vshrl.u32 %v1458, 16
      %v1505 = vrot.slane %v1503, 6
      %v1506 = vshll.u32 %v1458, 16
      %v1508 = vrot.slane %v1506, 7
      %v1509 = vor.u32 %v1505, %v1508
      %v1510 = vrot.slane %v1509, 2
      %v1512 = vshll.u32 %v1459, 16
      %v1514 = vrot.slane %v1512, 7
      %v1515 = vsel %vm265, %v1510, %v1514
      %s1516 = scalar_lea.vmem %s1, 448
      %v1517 = vld [vmem:[%s1516] sm:$0xf]
      %v1518 = vld [vmem:[%s1516 + $0x4] sm:$0xf]
      %v1519 = vld [vmem:[%s1516 + $0x8] sm:$0xf]
      %v1520 = vld [vmem:[%s1516 + $0xc] sm:$0xf]
      %v1521 = vld [vmem:[%s1516 + $0x10] sm:$0xf]
      %v1522 = vld [vmem:[%s1516 + $0x14] sm:$0xf]
      %v1523 = vld [vmem:[%s1516 + $0x18] sm:$0xf]
      %v1524 = vld [vmem:[%s1516 + $0x1c] sm:$0xf]
      %v1525 = vld [vmem:[%s1516 + $0x20] sm:$0xf]
      %v1526 = vld [vmem:[%s1516 + $0x24] sm:$0xf]
      %v1527 = vld [vmem:[%s1516 + $0x28] sm:$0xf]
      %v1528 = vld [vmem:[%s1516 + $0x2c] sm:$0xf]
      %v1529 = vld [vmem:[%s1516 + $0x30] sm:$0xf]
      %v1530 = vld [vmem:[%s1516 + $0x34] sm:$0xf]
      %v1531 = vld [vmem:[%s1516 + $0x38] sm:$0xf]
      %v1532 = vld [vmem:[%s1516 + $0x3c] sm:$0xf]
      %v1533 = vcombine.low %v1473, %v1487
      %v1534 = vcombine.low %v1501, %v1515
      %v1536 = vunpack.c.l.s4 1983009808
      %v1537 = vunpack.c.0.s8 %v1536
      %v1538 = vlaneseq
      %v1539 = vshrl.u32 %v1538, 7
      %v1540 = vsub.s32 %v1537, %v1539
      %v1541 = vrot.slane %v1533, %v1540
      %v1543 = vunpack.c.l.s4 1983009808
      %v1544 = vunpack.c.0.s8 %v1543
      %v1545 = vlaneseq
      %v1546 = vshrl.u32 %v1545, 7
      %v1547 = vsub.s32 %v1544, %v1546
      %v1548 = vrot.slane %v1534, %v1547
      %v1549 = vcombine.low %v1541, %v1548
      %v1567 = vunpack.c.l.b16 %v1517
      %v1568 = vunpack.c.l.b16 %v1518
      %v1569 = vunpack.c.l.b16 %v1519
      %v1570 = vunpack.c.l.b16 %v1520
      %v1571 = vunpack.c.l.b16 %v1521
      %v1572 = vunpack.c.l.b16 %v1522
      %v1573 = vunpack.c.l.b16 %v1523
      %v1574 = vunpack.c.l.b16 %v1524
      %v1575 = vunpack.c.l.b16 %v1525
      %v1576 = vunpack.c.l.b16 %v1526
      %v1577 = vunpack.c.l.b16 %v1527
      %v1578 = vunpack.c.l.b16 %v1528
      %v1579 = vunpack.c.l.b16 %v1529
      %v1580 = vunpack.c.l.b16 %v1530
      %v1581 = vunpack.c.l.b16 %v1531
      %v1582 = vunpack.c.l.b16 %v1532
      %v1583 = vpack.c.b16 %v1568, %v1567
      %v1584 = vpack.c.b16 %v1570, %v1569
      %v1585 = vpack.c.b16 %v1572, %v1571
      %v1586 = vpack.c.b16 %v1574, %v1573
      %v1587 = vpack.c.b16 %v1576, %v1575
      %v1588 = vpack.c.b16 %v1578, %v1577
      %v1589 = vpack.c.b16 %v1580, %v1579
      %v1590 = vpack.c.b16 %v1582, %v1581
      %1599 = vmatprep.subr.bf16.mxu0 0
      %1600 = vmatpush1.bf16.msra.mxu0 %v1583
      %1601 = vmatprep.subr.bf16.mxu0 0
      %1602 = vmatpush1.bf16.msra.mxu0 %v1584
      %1603 = vmatprep.subr.bf16.mxu0 0
      %1604 = vmatpush1.bf16.msra.mxu0 %v1585
      %1605 = vmatprep.subr.bf16.mxu0 0
      %1606 = vmatpush1.bf16.msra.mxu0 %v1586
      %1607 = vmatprep.subr.bf16.mxu0 0
      %1608 = vmatpush1.bf16.msra.mxu0 %v1587
      %1609 = vmatprep.subr.bf16.mxu0 0
      %1610 = vmatpush1.bf16.msra.mxu0 %v1588
      %1611 = vmatprep.subr.bf16.mxu0 0
      %1612 = vmatpush1.bf16.msra.mxu0 %v1589
      %1613 = vmatprep.subr.bf16.mxu0 0
      %1614 = vmatpush1.bf16.msra.mxu0 %v1590
      %1615 = vmatprep.subr.bf16.mxu0 0
      %1616 = vmatpush1.bf16.msra.mxu0 0
      %1617 = vmatprep.subr.bf16.mxu0 0
      %1618 = vmatpush1.bf16.msra.mxu0 0
      %1619 = vmatprep.subr.bf16.mxu0 0
      %1620 = vmatpush1.bf16.msra.mxu0 0
      %1621 = vmatprep.subr.bf16.mxu0 0
      %1622 = vmatpush1.bf16.msra.mxu0 0
      %1623 = vmatprep.subr.bf16.mxu0 0
      %1624 = vmatpush1.bf16.msra.mxu0 0
      %1625 = vmatprep.subr.bf16.mxu0 0
      %1626 = vmatpush1.bf16.msra.mxu0 0
      %1627 = vmatprep.subr.bf16.mxu0 0
      %1628 = vmatpush1.bf16.msra.mxu0 0
      %1629 = vmatprep.subr.bf16.mxu0 0
      %1630 = vmatpush1.bf16.msra.mxu0 0
      %1631 = vmatprep.mubr.bf16.mxu0 0
      %1632 = vmatmul.mubr.bf16.gmra.mrb[0].mxu0 %v1549
      %v1633 = vpop.f32.mrb[0].mxu0
      %v1634 = vadd.f32 0.0, %v1633
      %v1635 = vpop.f32.mrb[0].mxu0
      %v1636 = vpop.f32.mrb[0].mxu0
      %v1637 = vadd.f32 0.0, %v1636
      %v1638 = vpop.f32.mrb[0].mxu0
      %1639 = vdwg.mxu0
      %v1640 = vadd.f32 %v1418, %v1634
      %v1641 = vadd.f32 %v1419, %v1637
      %v1642 = vld [vmem:[%s1285] sm:$0x6]
      %v1643 = vld [vmem:[%s1285 + $0x4] sm:$0x6]
      %v1644 = vld [vmem:[%s1285 + $0x8] sm:$0x6]
      %v1645 = vld [vmem:[%s1285 + $0xc] sm:$0x6]
      %v1651 = vunpack.c.l.s4 1983009808
      %v1652 = vunpack.c.0.s8 %v1651
      %v1653 = vlaneseq
      %v1654 = vshrl.u32 %v1653, 7
      %v1655 = vsub.s32 %v1652, %v1654
      %v1656 = vrot.slane %v1642, %v1655
      %v1657 = vcombine.high %v1656, %v1656
      %v1659 = vunpack.c.l.s4 1983009808
      %v1660 = vunpack.c.0.s8 %v1659
      %v1661 = vlaneseq
      %v1662 = vshrl.u32 %v1661, 7
      %v1663 = vsub.s32 %v1660, %v1662
      %v1664 = vrot.slane %v1643, %v1663
      %v1665 = vcombine.high %v1664, %v1664
      %v1667 = vunpack.c.l.s4 1983009808
      %v1668 = vunpack.c.0.s8 %v1667
      %v1669 = vlaneseq
      %v1670 = vshrl.u32 %v1669, 7
      %v1671 = vsub.s32 %v1668, %v1670
      %v1672 = vrot.slane %v1644, %v1671
      %v1673 = vcombine.high %v1672, %v1672
      %v1675 = vunpack.c.l.s4 1983009808
      %v1676 = vunpack.c.0.s8 %v1675
      %v1677 = vlaneseq
      %v1678 = vshrl.u32 %v1677, 7
      %v1679 = vsub.s32 %v1676, %v1678
      %v1680 = vrot.slane %v1645, %v1679
      %v1681 = vcombine.high %v1680, %v1680
      %v1682 = vrot.slane %v1656, 7
      %v1683 = vrot.slane %v1682, 2
      %v1684 = vrot.slane %v1657, 7
      %v1685 = vsel %vm603, %v1683, %v1684
      %v1686 = vrot.slane %v1664, 7
      %v1687 = vrot.slane %v1686, 2
      %v1688 = vrot.slane %v1665, 7
      %v1689 = vsel %vm603, %v1687, %v1688
      %v1690 = vrot.slane %v1672, 7
      %v1691 = vrot.slane %v1690, 2
      %v1692 = vrot.slane %v1673, 7
      %v1693 = vsel %vm603, %v1691, %v1692
      %v1694 = vrot.slane %v1680, 7
      %v1695 = vrot.slane %v1694, 2
      %v1696 = vrot.slane %v1681, 7
      %v1697 = vsel %vm603, %v1695, %v1696
      %s1698 = scalar_lea.vmem %s1, 512
      %v1699 = vld [vmem:[%s1698] sm:$0xf]
      %v1700 = vld [vmem:[%s1698 + $0x4] sm:$0xf]
      %v1701 = vld [vmem:[%s1698 + $0x8] sm:$0xf]
      %v1702 = vld [vmem:[%s1698 + $0xc] sm:$0xf]
      %v1703 = vld [vmem:[%s1698 + $0x10] sm:$0xf]
      %v1704 = vld [vmem:[%s1698 + $0x14] sm:$0xf]
      %v1705 = vld [vmem:[%s1698 + $0x18] sm:$0xf]
      %v1706 = vld [vmem:[%s1698 + $0x1c] sm:$0xf]
      %v1707 = vld [vmem:[%s1698 + $0x20] sm:$0xf]
      %v1708 = vld [vmem:[%s1698 + $0x24] sm:$0xf]
      %v1709 = vld [vmem:[%s1698 + $0x28] sm:$0xf]
      %v1710 = vld [vmem:[%s1698 + $0x2c] sm:$0xf]
      %v1711 = vld [vmem:[%s1698 + $0x30] sm:$0xf]
      %v1712 = vld [vmem:[%s1698 + $0x34] sm:$0xf]
      %v1713 = vld [vmem:[%s1698 + $0x38] sm:$0xf]
      %v1714 = vld [vmem:[%s1698 + $0x3c] sm:$0xf]
      %v1715 = vcombine.low %v1685, %v1689
      %v1716 = vcombine.low %v1693, %v1697
      %v1718 = vunpack.c.l.s4 1983009808
      %v1719 = vunpack.c.0.s8 %v1718
      %v1720 = vlaneseq
      %v1721 = vshrl.u32 %v1720, 7
      %v1722 = vsub.s32 %v1719, %v1721
      %v1723 = vrot.slane %v1715, %v1722
      %v1725 = vunpack.c.l.s4 1983009808
      %v1726 = vunpack.c.0.s8 %v1725
      %v1727 = vlaneseq
      %v1728 = vshrl.u32 %v1727, 7
      %v1729 = vsub.s32 %v1726, %v1728
      %v1730 = vrot.slane %v1716, %v1729
      %v1731 = vcombine.low %v1723, %v1730
      %v1749 = vunpack.c.l.b16 %v1699
      %v1750 = vunpack.c.l.b16 %v1700
      %v1751 = vunpack.c.l.b16 %v1701
      %v1752 = vunpack.c.l.b16 %v1702
      %v1753 = vunpack.c.l.b16 %v1703
      %v1754 = vunpack.c.l.b16 %v1704
      %v1755 = vunpack.c.l.b16 %v1705
      %v1756 = vunpack.c.l.b16 %v1706
      %v1757 = vunpack.c.l.b16 %v1707
      %v1758 = vunpack.c.l.b16 %v1708
      %v1759 = vunpack.c.l.b16 %v1709
      %v1760 = vunpack.c.l.b16 %v1710
      %v1761 = vunpack.c.l.b16 %v1711
      %v1762 = vunpack.c.l.b16 %v1712
      %v1763 = vunpack.c.l.b16 %v1713
      %v1764 = vunpack.c.l.b16 %v1714
      %v1765 = vpack.c.b16 %v1750, %v1749
      %v1766 = vpack.c.b16 %v1752, %v1751
      %v1767 = vpack.c.b16 %v1754, %v1753
      %v1768 = vpack.c.b16 %v1756, %v1755
      %v1769 = vpack.c.b16 %v1758, %v1757
      %v1770 = vpack.c.b16 %v1760, %v1759
      %v1771 = vpack.c.b16 %v1762, %v1761
      %v1772 = vpack.c.b16 %v1764, %v1763
      %1781 = vmatprep.subr.bf16.mxu0 0
      %1782 = vmatpush1.bf16.msra.mxu0 %v1765
      %1783 = vmatprep.subr.bf16.mxu0 0
      %1784 = vmatpush1.bf16.msra.mxu0 %v1766
      %1785 = vmatprep.subr.bf16.mxu0 0
      %1786 = vmatpush1.bf16.msra.mxu0 %v1767
      %1787 = vmatprep.subr.bf16.mxu0 0
      %1788 = vmatpush1.bf16.msra.mxu0 %v1768
      %1789 = vmatprep.subr.bf16.mxu0 0
      %1790 = vmatpush1.bf16.msra.mxu0 %v1769
      %1791 = vmatprep.subr.bf16.mxu0 0
      %1792 = vmatpush1.bf16.msra.mxu0 %v1770
      %1793 = vmatprep.subr.bf16.mxu0 0
      %1794 = vmatpush1.bf16.msra.mxu0 %v1771
      %1795 = vmatprep.subr.bf16.mxu0 0
      %1796 = vmatpush1.bf16.msra.mxu0 %v1772
      %1797 = vmatprep.subr.bf16.mxu0 0
      %1798 = vmatpush1.bf16.msra.mxu0 0
      %1799 = vmatprep.subr.bf16.mxu0 0
      %1800 = vmatpush1.bf16.msra.mxu0 0
      %1801 = vmatprep.subr.bf16.mxu0 0
      %1802 = vmatpush1.bf16.msra.mxu0 0
      %1803 = vmatprep.subr.bf16.mxu0 0
      %1804 = vmatpush1.bf16.msra.mxu0 0
      %1805 = vmatprep.subr.bf16.mxu0 0
      %1806 = vmatpush1.bf16.msra.mxu0 0
      %1807 = vmatprep.subr.bf16.mxu0 0
      %1808 = vmatpush1.bf16.msra.mxu0 0
      %1809 = vmatprep.subr.bf16.mxu0 0
      %1810 = vmatpush1.bf16.msra.mxu0 0
      %1811 = vmatprep.subr.bf16.mxu0 0
      %1812 = vmatpush1.bf16.msra.mxu0 0
      %1813 = vmatprep.mubr.bf16.mxu0 0
      %1814 = vmatmul.mubr.bf16.gmra.mrb[0].mxu0 %v1731
      %v1815 = vpop.f32.mrb[0].mxu0
      %v1816 = vadd.f32 0.0, %v1815
      %v1817 = vpop.f32.mrb[0].mxu0
      %v1818 = vpop.f32.mrb[0].mxu0
      %v1819 = vadd.f32 0.0, %v1818
      %v1820 = vpop.f32.mrb[0].mxu0
      %1821 = vdwg.mxu0
      %v1822 = vadd.f32 %v1640, %v1816
      %v1823 = vadd.f32 %v1641, %v1819
      %v1824 = vld [vmem:[%s2] sm:$0x1]
      %v1826 = vlaneseq
      %v1827 = vshrl.u32 %v1826, 7
      %v1828 = vsub.s32 0, %v1827
      %v1829 = vrot.slane %v1824, %v1828
      %v1831 = vmul.f32 %v1822, %v1829
      %v1832 = vmul.f32 %v1823, %v1829
      %v1833 = vld [vmem:[%s3] sm:$0x1]
      %v1835 = vlaneseq
      %v1836 = vshrl.u32 %v1835, 7
      %v1837 = vsub.s32 0, %v1836
      %v1838 = vrot.slane %v1833, %v1837
      %v1840 = vadd.f32 %v1831, %v1838
      %v1841 = vadd.f32 %v1832, %v1838
      %v1842 = vmax.f32 %v1840, 0.0
      %v1843 = vmax.f32 %v1841, 0.0
      %v1844 = vpack.c.bf16 %v1843, %v1842
      %v1846 = vunpack.c.l.b16 %v1844
      %v1847 = vunpack.c.h.b16 %v1844
      %v1848 = vpack.c.b16 %v1846, %v1846
      %v1849 = vpack.c.b16 %v1847, %v1847
      %1852 = vst [vmem:[%s197] sm:$0xf] %v1848
      %1853 = vst [vmem:[%s197 + $0x4] sm:$0xf] %v1849
      %p1854 = scmp.lt.s32.totalorder %s15, 1
      %s1855 = scalar_select %p1854, %s15, 1
      %s1856 = smul.addr %s1855, 2
      %s1857 = smul.addr %s1856, 4
      %s1858 = scalar_lea.vmem %s4, %s1857
      // Predicated region
      $region37: #{psa_forward.21} parent=35 // pred_check
        %p1859 = pneg %p122
      $region38: #{psa_forward.21} parent=35 // pred_check_branch
        %1861 = sbr.rel (%p1859) target = $region40
      $region39: #{psa_forward.21} parent=35 // pred_region
        _
      $region40: #{psa_forward.21} parent=35 // pred_fallthru
        _
    $region36: #{psa_forward.21} parent=5 // pred_fallthru
      _
    %p1862 = scmp.le.s32.totalorder 2, %s10
    // Predicated region
    $region41: #{psa_forward.21} parent=5 // pred_check
      %p1863 = pneg %p1862
    $region42: #{psa_forward.21} parent=5 // pred_check_branch
      %1865 = sbr.rel (%p1863) target = $region44
    $region43: #{psa_forward.21} parent=5 // pred_region
      %s1866 = ssub.s32 %s10, 2
      // Predicated region
      $region45: #{psa_forward.21} parent=43 // pred_check
        %p1867 = pneg %p128
      $region46: #{psa_forward.21} parent=43 // pred_check_branch
        %1869 = sbr.rel (%p1867) target = $region48
      $region47: #{psa_forward.21} parent=43 // pred_region
        %p1870 = scmp.lt.s32.totalorder %s16, 1
        %s1871 = scalar_select %p1870, %s16, 1
        %s1872 = smul.addr %s1871, 2
        %s1873 = smul.addr %s1872, 4
        %s1874 = scalar_lea.vmem %s4, %s1873
      $region48: #{psa_forward.21} parent=43 // pred_fallthru
        _
    $region44: #{psa_forward.21} parent=5 // pred_fallthru
      _
  $region6: #{psa_forward.21} parent=0 // loop_footer
    %s14 = sadd.s32 1, %s10
  $region7: #{psa_forward.21} parent=0 // loop_footer_branch
    %9 = sbr.rel target = $region3
  $region8: #{psa_forward.21} parent=0 // loop_exit
    _

// kernel: psa_forward.26
$region0: #{psa_forward.26}
  #allocation0 [shape = 'u32[]', space=smem, size = 0x4, offset = 0x4, fixed_abs, tag = 'smem constant byte address 0x4 - core index']
  #allocation1 [shape = 'u32[144,128]{1,0:T(1,128)}', space=vmem, size = 0x12000, scoped, tag = 'internal scratch']
  %s0 = inlined_call_operand.vmem [shape: bf16[16,1152], index: 0, kind: input, shape index: {}]
  %s1 = inlined_call_operand.vmem [shape: bf16[1152,256], index: 1, kind: input, shape index: {}]
  %s2 = inlined_call_operand.vmem [shape: f32[1,256], index: 2, kind: input, shape index: {}]
  %s3 = inlined_call_operand.vmem [shape: f32[1,256], index: 3, kind: input, shape index: {}]
  %s4 = inlined_call_operand.vmem [shape: bf16[16,256], index: 4, kind: output, shape index: {}]
  %s5 = sld [smem:[#allocation0]]
  $region26: #{psa_forward.26} parent=0
    _
  %s7 = ssub.s32 1, %s5
  %s8 = scalar_select 0, %s7, %s5
  // Predicated region
  $region2: #{psa_forward.26} parent=0 // pred_check
    _
  $region3: #{psa_forward.26} parent=0 // pred_check_branch
    %10 = sbr.rel (0) target = $region5
  $region4: #{psa_forward.26} parent=0 // pred_region
    _
  $region5: #{psa_forward.26} parent=0 // pred_fallthru
    _
  // Predicated region
  $region6: #{psa_forward.26} parent=0 // pred_check
    _
  $region7: #{psa_forward.26} parent=0 // pred_check_branch
    %12 = sbr.rel (0) target = $region9
  $region8: #{psa_forward.26} parent=0 // pred_region
    _
  $region9: #{psa_forward.26} parent=0 // pred_fallthru
    _
  // Predicated region
  $region10: #{psa_forward.26} parent=0 // pred_check
    _
  $region11: #{psa_forward.26} parent=0 // pred_check_branch
    %14 = sbr.rel (0) target = $region13
  $region12: #{psa_forward.26} parent=0 // pred_region
    _
  $region13: #{psa_forward.26} parent=0 // pred_fallthru
    _
  // Predicated region
  $region14: #{psa_forward.26} parent=0 // pred_check
    _
  $region15: #{psa_forward.26} parent=0 // pred_check_branch
    %16 = sbr.rel (0) target = $region17
  $region16: #{psa_forward.26} parent=0 // pred_region
    _
  $region17: #{psa_forward.26} parent=0 // pred_fallthru
    _
  %v18 = vld [vmem:[%s0] sm:$0xff]
  %v19 = vld [vmem:[%s0 + $0x8] sm:$0xff]
  %v20 = vld [vmem:[%s0 + $0x10] sm:$0xff]
  %v21 = vld [vmem:[%s0 + $0x18] sm:$0xff]
  %v22 = vld [vmem:[%s0 + $0x20] sm:$0xf]
  %v23 = vld [vmem:[%s0 + $0x24] sm:$0xff]
  %v24 = vld [vmem:[%s0 + $0x2c] sm:$0xff]
  %v25 = vld [vmem:[%s0 + $0x34] sm:$0xff]
  %v26 = vld [vmem:[%s0 + $0x3c] sm:$0xff]
  %v27 = vld [vmem:[%s0 + $0x44] sm:$0xf]
  %v28 = vld [vmem:[%s1] sm:$0xff]
  %v29 = vld [vmem:[%s1 + $0x8] sm:$0xff]
  %v30 = vld [vmem:[%s1 + $0x10] sm:$0xff]
  %v31 = vld [vmem:[%s1 + $0x18] sm:$0xff]
  %v32 = vld [vmem:[%s1 + $0x20] sm:$0xff]
  %v33 = vld [vmem:[%s1 + $0x28] sm:$0xff]
  %v34 = vld [vmem:[%s1 + $0x30] sm:$0xff]
  %v35 = vld [vmem:[%s1 + $0x38] sm:$0xff]
  %v36 = vld [vmem:[%s1 + $0x40] sm:$0xff]
  %v37 = vld [vmem:[%s1 + $0x48] sm:$0xff]
  %v38 = vld [vmem:[%s1 + $0x50] sm:$0xff]
  %v39 = vld [vmem:[%s1 + $0x58] sm:$0xff]
  %v40 = vld [vmem:[%s1 + $0x60] sm:$0xff]
  %v41 = vld [vmem:[%s1 + $0x68] sm:$0xff]
  %v42 = vld [vmem:[%s1 + $0x70] sm:$0xff]
  %v43 = vld [vmem:[%s1 + $0x78] sm:$0xff]
  %v44 = vld [vmem:[%s1 + $0x80] sm:$0xff]
  %v45 = vld [vmem:[%s1 + $0x88] sm:$0xff]
  %v46 = vld [vmem:[%s1 + $0x90] sm:$0xff]
  %v47 = vld [vmem:[%s1 + $0x98] sm:$0xff]
  %v48 = vld [vmem:[%s1 + $0xa0] sm:$0xff]
  %v49 = vld [vmem:[%s1 + $0xa8] sm:$0xff]
  %v50 = vld [vmem:[%s1 + $0xb0] sm:$0xff]
  %v51 = vld [vmem:[%s1 + $0xb8] sm:$0xff]
  %v52 = vld [vmem:[%s1 + $0xc0] sm:$0xff]
  %v53 = vld [vmem:[%s1 + $0xc8] sm:$0xff]
  %v54 = vld [vmem:[%s1 + $0xd0] sm:$0xff]
  %v55 = vld [vmem:[%s1 + $0xd8] sm:$0xff]
  %v56 = vld [vmem:[%s1 + $0xe0] sm:$0xff]
  %v57 = vld [vmem:[%s1 + $0xe8] sm:$0xff]
  %v58 = vld [vmem:[%s1 + $0xf0] sm:$0xff]
  %v59 = vld [vmem:[%s1 + $0xf8] sm:$0xff]
  %v60 = vld [vmem:[%s1 + $0x100] sm:$0xff]
  %v61 = vld [vmem:[%s1 + $0x108] sm:$0xff]
  %v62 = vld [vmem:[%s1 + $0x110] sm:$0xff]
  %v63 = vld [vmem:[%s1 + $0x118] sm:$0xff]
  %v64 = vld [vmem:[%s1 + $0x120] sm:$0xff]
  %v65 = vld [vmem:[%s1 + $0x128] sm:$0xff]
  %v66 = vld [vmem:[%s1 + $0x130] sm:$0xff]
  %v67 = vld [vmem:[%s1 + $0x138] sm:$0xff]
  %v68 = vld [vmem:[%s1 + $0x140] sm:$0xff]
  %v69 = vld [vmem:[%s1 + $0x148] sm:$0xff]
  %v70 = vld [vmem:[%s1 + $0x150] sm:$0xff]
  %v71 = vld [vmem:[%s1 + $0x158] sm:$0xff]
  %v72 = vld [vmem:[%s1 + $0x160] sm:$0xff]
  %v73 = vld [vmem:[%s1 + $0x168] sm:$0xff]
  %v74 = vld [vmem:[%s1 + $0x170] sm:$0xff]
  %v75 = vld [vmem:[%s1 + $0x178] sm:$0xff]
  %v76 = vld [vmem:[%s1 + $0x180] sm:$0xff]
  %v77 = vld [vmem:[%s1 + $0x188] sm:$0xff]
  %v78 = vld [vmem:[%s1 + $0x190] sm:$0xff]
  %v79 = vld [vmem:[%s1 + $0x198] sm:$0xff]
  %v80 = vld [vmem:[%s1 + $0x1a0] sm:$0xff]
  %v81 = vld [vmem:[%s1 + $0x1a8] sm:$0xff]
  %v82 = vld [vmem:[%s1 + $0x1b0] sm:$0xff]
  %v83 = vld [vmem:[%s1 + $0x1b8] sm:$0xff]
  %v84 = vld [vmem:[%s1 + $0x1c0] sm:$0xff]
  %v85 = vld [vmem:[%s1 + $0x1c8] sm:$0xff]
  %v86 = vld [vmem:[%s1 + $0x1d0] sm:$0xff]
  %v87 = vld [vmem:[%s1 + $0x1d8] sm:$0xff]
  %v88 = vld [vmem:[%s1 + $0x1e0] sm:$0xff]
  %v89 = vld [vmem:[%s1 + $0x1e8] sm:$0xff]
  %v90 = vld [vmem:[%s1 + $0x1f0] sm:$0xff]
  %v91 = vld [vmem:[%s1 + $0x1f8] sm:$0xff]
  %v92 = vld [vmem:[%s1 + $0x200] sm:$0xff]
  %v93 = vld [vmem:[%s1 + $0x208] sm:$0xff]
  %v94 = vld [vmem:[%s1 + $0x210] sm:$0xff]
  %v95 = vld [vmem:[%s1 + $0x218] sm:$0xff]
  %v96 = vld [vmem:[%s1 + $0x220] sm:$0xff]
  %v97 = vld [vmem:[%s1 + $0x228] sm:$0xff]
  %v98 = vld [vmem:[%s1 + $0x230] sm:$0xff]
  %v99 = vld [vmem:[%s1 + $0x238] sm:$0xff]
  %v100 = vld [vmem:[%s1 + $0x240] sm:$0xff]
  %v101 = vld [vmem:[%s1 + $0x248] sm:$0xff]
  %v102 = vld [vmem:[%s1 + $0x250] sm:$0xff]
  %v103 = vld [vmem:[%s1 + $0x258] sm:$0xff]
  %v104 = vld [vmem:[%s1 + $0x260] sm:$0xff]
  %v105 = vld [vmem:[%s1 + $0x268] sm:$0xff]
  %v106 = vld [vmem:[%s1 + $0x270] sm:$0xff]
  %v107 = vld [vmem:[%s1 + $0x278] sm:$0xff]
  %v108 = vld [vmem:[%s1 + $0x280] sm:$0xff]
  %v109 = vld [vmem:[%s1 + $0x288] sm:$0xff]
  %v110 = vld [vmem:[%s1 + $0x290] sm:$0xff]
  %v111 = vld [vmem:[%s1 + $0x298] sm:$0xff]
  %v112 = vld [vmem:[%s1 + $0x2a0] sm:$0xff]
  %v113 = vld [vmem:[%s1 + $0x2a8] sm:$0xff]
  %v114 = vld [vmem:[%s1 + $0x2b0] sm:$0xff]
  %v115 = vld [vmem:[%s1 + $0x2b8] sm:$0xff]
  %v116 = vld [vmem:[%s1 + $0x2c0] sm:$0xff]
  %v117 = vld [vmem:[%s1 + $0x2c8] sm:$0xff]
  %v118 = vld [vmem:[%s1 + $0x2d0] sm:$0xff]
  %v119 = vld [vmem:[%s1 + $0x2d8] sm:$0xff]
  %v120 = vld [vmem:[%s1 + $0x2e0] sm:$0xff]
  %v121 = vld [vmem:[%s1 + $0x2e8] sm:$0xff]
  %v122 = vld [vmem:[%s1 + $0x2f0] sm:$0xff]
  %v123 = vld [vmem:[%s1 + $0x2f8] sm:$0xff]
  %v124 = vld [vmem:[%s1 + $0x300] sm:$0xff]
  %v125 = vld [vmem:[%s1 + $0x308] sm:$0xff]
  %v126 = vld [vmem:[%s1 + $0x310] sm:$0xff]
  %v127 = vld [vmem:[%s1 + $0x318] sm:$0xff]
  %v128 = vld [vmem:[%s1 + $0x320] sm:$0xff]
  %v129 = vld [vmem:[%s1 + $0x328] sm:$0xff]
  %v130 = vld [vmem:[%s1 + $0x330] sm:$0xff]
  %v131 = vld [vmem:[%s1 + $0x338] sm:$0xff]
  %v132 = vld [vmem:[%s1 + $0x340] sm:$0xff]
  %v133 = vld [vmem:[%s1 + $0x348] sm:$0xff]
  %v134 = vld [vmem:[%s1 + $0x350] sm:$0xff]
  %v135 = vld [vmem:[%s1 + $0x358] sm:$0xff]
  %v136 = vld [vmem:[%s1 + $0x360] sm:$0xff]
  %v137 = vld [vmem:[%s1 + $0x368] sm:$0xff]
  %v138 = vld [vmem:[%s1 + $0x370] sm:$0xff]
  %v139 = vld [vmem:[%s1 + $0x378] sm:$0xff]
  %v140 = vld [vmem:[%s1 + $0x380] sm:$0xff]
  %v141 = vld [vmem:[%s1 + $0x388] sm:$0xff]
  %v142 = vld [vmem:[%s1 + $0x390] sm:$0xff]
  %v143 = vld [vmem:[%s1 + $0x398] sm:$0xff]
  %v144 = vld [vmem:[%s1 + $0x3a0] sm:$0xff]
  %v145 = vld [vmem:[%s1 + $0x3a8] sm:$0xff]
  %v146 = vld [vmem:[%s1 + $0x3b0] sm:$0xff]
  %v147 = vld [vmem:[%s1 + $0x3b8] sm:$0xff]
  %v148 = vld [vmem:[%s1 + $0x3c0] sm:$0xff]
  %v149 = vld [vmem:[%s1 + $0x3c8] sm:$0xff]
  %v150 = vld [vmem:[%s1 + $0x3d0] sm:$0xff]
  %v151 = vld [vmem:[%s1 + $0x3d8] sm:$0xff]
  %v152 = vld [vmem:[%s1 + $0x3e0] sm:$0xff]
  %v153 = vld [vmem:[%s1 + $0x3e8] sm:$0xff]
  %v154 = vld [vmem:[%s1 + $0x3f0] sm:$0xff]
  %v155 = vld [vmem:[%s1 + $0x3f8] sm:$0xff]
  %v156 = vld [vmem:[%s1 + $0x400] sm:$0xff]
  %v157 = vld [vmem:[%s1 + $0x408] sm:$0xff]
  %v158 = vld [vmem:[%s1 + $0x410] sm:$0xff]
  %v159 = vld [vmem:[%s1 + $0x418] sm:$0xff]
  %v160 = vld [vmem:[%s1 + $0x420] sm:$0xff]
  %v161 = vld [vmem:[%s1 + $0x428] sm:$0xff]
  %v162 = vld [vmem:[%s1 + $0x430] sm:$0xff]
  %v163 = vld [vmem:[%s1 + $0x438] sm:$0xff]
  %v164 = vld [vmem:[%s1 + $0x440] sm:$0xff]
  %v165 = vld [vmem:[%s1 + $0x448] sm:$0xff]
  %v166 = vld [vmem:[%s1 + $0x450] sm:$0xff]
  %v167 = vld [vmem:[%s1 + $0x458] sm:$0xff]
  %v168 = vld [vmem:[%s1 + $0x460] sm:$0xff]
  %v169 = vld [vmem:[%s1 + $0x468] sm:$0xff]
  %v170 = vld [vmem:[%s1 + $0x470] sm:$0xff]
  %v171 = vld [vmem:[%s1 + $0x478] sm:$0xff]
  %v182 = vunpack.c.l.b16 %v18
  %v183 = vunpack.c.h.b16 %v18
  %v184 = vunpack.c.l.b16 %v19
  %v185 = vunpack.c.h.b16 %v19
  %v186 = vunpack.c.l.b16 %v20
  %v187 = vunpack.c.h.b16 %v20
  %v188 = vunpack.c.l.b16 %v21
  %v189 = vunpack.c.h.b16 %v21
  %v190 = vunpack.c.l.b16 %v22
  %v191 = vunpack.c.l.b16 %v23
  %v192 = vunpack.c.h.b16 %v23
  %v193 = vunpack.c.l.b16 %v24
  %v194 = vunpack.c.h.b16 %v24
  %v195 = vunpack.c.l.b16 %v25
  %v196 = vunpack.c.h.b16 %v25
  %v197 = vunpack.c.l.b16 %v26
  %v198 = vunpack.c.h.b16 %v26
  %v199 = vunpack.c.l.b16 %v27
  %v200 = vpack.c.b16 %v191, %v182
  %v201 = vpack.c.b16 %v192, %v183
  %v202 = vpack.c.b16 %v193, %v184
  %v203 = vpack.c.b16 %v194, %v185
  %v204 = vpack.c.b16 %v195, %v186
  %v205 = vpack.c.b16 %v196, %v187
  %v206 = vpack.c.b16 %v197, %v188
  %v207 = vpack.c.b16 %v198, %v189
  %v208 = vpack.c.b16 %v199, %v190
  %v362 = vunpack.c.l.b16 %v28
  %v363 = vunpack.c.h.b16 %v28
  %v364 = vunpack.c.l.b16 %v29
  %v365 = vunpack.c.h.b16 %v29
  %v366 = vunpack.c.l.b16 %v30
  %v367 = vunpack.c.h.b16 %v30
  %v368 = vunpack.c.l.b16 %v31
  %v369 = vunpack.c.h.b16 %v31
  %v370 = vunpack.c.l.b16 %v32
  %v371 = vunpack.c.h.b16 %v32
  %v372 = vunpack.c.l.b16 %v33
  %v373 = vunpack.c.h.b16 %v33
  %v374 = vunpack.c.l.b16 %v34
  %v375 = vunpack.c.h.b16 %v34
  %v376 = vunpack.c.l.b16 %v35
  %v377 = vunpack.c.h.b16 %v35
  %v378 = vunpack.c.l.b16 %v36
  %v379 = vunpack.c.h.b16 %v36
  %v380 = vunpack.c.l.b16 %v37
  %v381 = vunpack.c.h.b16 %v37
  %v382 = vunpack.c.l.b16 %v38
  %v383 = vunpack.c.h.b16 %v38
  %v384 = vunpack.c.l.b16 %v39
  %v385 = vunpack.c.h.b16 %v39
  %v386 = vunpack.c.l.b16 %v40
  %v387 = vunpack.c.h.b16 %v40
  %v388 = vunpack.c.l.b16 %v41
  %v389 = vunpack.c.h.b16 %v41
  %v390 = vunpack.c.l.b16 %v42
  %v391 = vunpack.c.h.b16 %v42
  %v392 = vunpack.c.l.b16 %v43
  %v393 = vunpack.c.h.b16 %v43
  %v394 = vunpack.c.l.b16 %v44
  %v395 = vunpack.c.h.b16 %v44
  %v396 = vunpack.c.l.b16 %v45
  %v397 = vunpack.c.h.b16 %v45
  %v398 = vunpack.c.l.b16 %v46
  %v399 = vunpack.c.h.b16 %v46
  %v400 = vunpack.c.l.b16 %v47
  %v401 = vunpack.c.h.b16 %v47
  %v402 = vunpack.c.l.b16 %v48
  %v403 = vunpack.c.h.b16 %v48
  %v404 = vunpack.c.l.b16 %v49
  %v405 = vunpack.c.h.b16 %v49
  %v406 = vunpack.c.l.b16 %v50
  %v407 = vunpack.c.h.b16 %v50
  %v408 = vunpack.c.l.b16 %v51
  %v409 = vunpack.c.h.b16 %v51
  %v410 = vunpack.c.l.b16 %v52
  %v411 = vunpack.c.h.b16 %v52
  %v412 = vunpack.c.l.b16 %v53
  %v413 = vunpack.c.h.b16 %v53
  %v414 = vunpack.c.l.b16 %v54
  %v415 = vunpack.c.h.b16 %v54
  %v416 = vunpack.c.l.b16 %v55
  %v417 = vunpack.c.h.b16 %v55
  %v418 = vunpack.c.l.b16 %v56
  %v419 = vunpack.c.h.b16 %v56
  %v420 = vunpack.c.l.b16 %v57
  %v421 = vunpack.c.h.b16 %v57
  %v422 = vunpack.c.l.b16 %v58
  %v423 = vunpack.c.h.b16 %v58
  %v424 = vunpack.c.l.b16 %v59
  %v425 = vunpack.c.h.b16 %v59
  %v426 = vunpack.c.l.b16 %v60
  %v427 = vunpack.c.h.b16 %v60
  %v428 = vunpack.c.l.b16 %v61
  %v429 = vunpack.c.h.b16 %v61
  %v430 = vunpack.c.l.b16 %v62
  %v431 = vunpack.c.h.b16 %v62
  %v432 = vunpack.c.l.b16 %v63
  %v433 = vunpack.c.h.b16 %v63
  %v434 = vunpack.c.l.b16 %v64
  %v435 = vunpack.c.h.b16 %v64
  %v436 = vunpack.c.l.b16 %v65
  %v437 = vunpack.c.h.b16 %v65
  %v438 = vunpack.c.l.b16 %v66
  %v439 = vunpack.c.h.b16 %v66
  %v440 = vunpack.c.l.b16 %v67
  %v441 = vunpack.c.h.b16 %v67
  %v442 = vunpack.c.l.b16 %v68
  %v443 = vunpack.c.h.b16 %v68
  %v444 = vunpack.c.l.b16 %v69
  %v445 = vunpack.c.h.b16 %v69
  %v446 = vunpack.c.l.b16 %v70
  %v447 = vunpack.c.h.b16 %v70
  %v448 = vunpack.c.l.b16 %v71
  %v449 = vunpack.c.h.b16 %v71
  %v450 = vunpack.c.l.b16 %v72
  %v451 = vunpack.c.h.b16 %v72
  %v452 = vunpack.c.l.b16 %v73
  %v453 = vunpack.c.h.b16 %v73
  %v454 = vunpack.c.l.b16 %v74
  %v455 = vunpack.c.h.b16 %v74
  %v456 = vunpack.c.l.b16 %v75
  %v457 = vunpack.c.h.b16 %v75
  %v458 = vunpack.c.l.b16 %v76
  %v459 = vunpack.c.h.b16 %v76
  %v460 = vunpack.c.l.b16 %v77
  %v461 = vunpack.c.h.b16 %v77
  %v462 = vunpack.c.l.b16 %v78
  %v463 = vunpack.c.h.b16 %v78
  %v464 = vunpack.c.l.b16 %v79
  %v465 = vunpack.c.h.b16 %v79
  %v466 = vunpack.c.l.b16 %v80
  %v467 = vunpack.c.h.b16 %v80
  %v468 = vunpack.c.l.b16 %v81
  %v469 = vunpack.c.h.b16 %v81
  %v470 = vunpack.c.l.b16 %v82
  %v471 = vunpack.c.h.b16 %v82
  %v472 = vunpack.c.l.b16 %v83
  %v473 = vunpack.c.h.b16 %v83
  %v474 = vunpack.c.l.b16 %v84
  %v475 = vunpack.c.h.b16 %v84
  %v476 = vunpack.c.l.b16 %v85
  %v477 = vunpack.c.h.b16 %v85
  %v478 = vunpack.c.l.b16 %v86
  %v479 = vunpack.c.h.b16 %v86
  %v480 = vunpack.c.l.b16 %v87
  %v481 = vunpack.c.h.b16 %v87
  %v482 = vunpack.c.l.b16 %v88
  %v483 = vunpack.c.h.b16 %v88
  %v484 = vunpack.c.l.b16 %v89
  %v485 = vunpack.c.h.b16 %v89
  %v486 = vunpack.c.l.b16 %v90
  %v487 = vunpack.c.h.b16 %v90
  %v488 = vunpack.c.l.b16 %v91
  %v489 = vunpack.c.h.b16 %v91
  %v490 = vunpack.c.l.b16 %v92
  %v491 = vunpack.c.h.b16 %v92
  %v492 = vunpack.c.l.b16 %v93
  %v493 = vunpack.c.h.b16 %v93
  %v494 = vunpack.c.l.b16 %v94
  %v495 = vunpack.c.h.b16 %v94
  %v496 = vunpack.c.l.b16 %v95
  %v497 = vunpack.c.h.b16 %v95
  %v498 = vunpack.c.l.b16 %v96
  %v499 = vunpack.c.h.b16 %v96
  %v500 = vunpack.c.l.b16 %v97
  %v501 = vunpack.c.h.b16 %v97
  %v502 = vunpack.c.l.b16 %v98
  %v503 = vunpack.c.h.b16 %v98
  %v504 = vunpack.c.l.b16 %v99
  %v505 = vunpack.c.h.b16 %v99
  %v506 = vunpack.c.l.b16 %v100
  %v507 = vunpack.c.h.b16 %v100
  %v508 = vunpack.c.l.b16 %v101
  %v509 = vunpack.c.h.b16 %v101
  %v510 = vunpack.c.l.b16 %v102
  %v511 = vunpack.c.h.b16 %v102
  %v512 = vunpack.c.l.b16 %v103
  %v513 = vunpack.c.h.b16 %v103
  %v514 = vunpack.c.l.b16 %v104
  %v515 = vunpack.c.h.b16 %v104
  %v516 = vunpack.c.l.b16 %v105
  %v517 = vunpack.c.h.b16 %v105
  %v518 = vunpack.c.l.b16 %v106
  %v519 = vunpack.c.h.b16 %v106
  %v520 = vunpack.c.l.b16 %v107
  %v521 = vunpack.c.h.b16 %v107
  %v522 = vunpack.c.l.b16 %v108
  %v523 = vunpack.c.h.b16 %v108
  %v524 = vunpack.c.l.b16 %v109
  %v525 = vunpack.c.h.b16 %v109
  %v526 = vunpack.c.l.b16 %v110
  %v527 = vunpack.c.h.b16 %v110
  %v528 = vunpack.c.l.b16 %v111
  %v529 = vunpack.c.h.b16 %v111
  %v530 = vunpack.c.l.b16 %v112
  %v531 = vunpack.c.h.b16 %v112
  %v532 = vunpack.c.l.b16 %v113
  %v533 = vunpack.c.h.b16 %v113
  %v534 = vunpack.c.l.b16 %v114
  %v535 = vunpack.c.h.b16 %v114
  %v536 = vunpack.c.l.b16 %v115
  %v537 = vunpack.c.h.b16 %v115
  %v538 = vunpack.c.l.b16 %v116
  %v539 = vunpack.c.h.b16 %v116
  %v540 = vunpack.c.l.b16 %v117
  %v541 = vunpack.c.h.b16 %v117
  %v542 = vunpack.c.l.b16 %v118
  %v543 = vunpack.c.h.b16 %v118
  %v544 = vunpack.c.l.b16 %v119
  %v545 = vunpack.c.h.b16 %v119
  %v546 = vunpack.c.l.b16 %v120
  %v547 = vunpack.c.h.b16 %v120
  %v548 = vunpack.c.l.b16 %v121
  %v549 = vunpack.c.h.b16 %v121
  %v550 = vunpack.c.l.b16 %v122
  %v551 = vunpack.c.h.b16 %v122
  %v552 = vunpack.c.l.b16 %v123
  %v553 = vunpack.c.h.b16 %v123
  %v554 = vunpack.c.l.b16 %v124
  %v555 = vunpack.c.h.b16 %v124
  %v556 = vunpack.c.l.b16 %v125
  %v557 = vunpack.c.h.b16 %v125
  %v558 = vunpack.c.l.b16 %v126
  %v559 = vunpack.c.h.b16 %v126
  %v560 = vunpack.c.l.b16 %v127
  %v561 = vunpack.c.h.b16 %v127
  %v562 = vunpack.c.l.b16 %v128
  %v563 = vunpack.c.h.b16 %v128
  %v564 = vunpack.c.l.b16 %v129
  %v565 = vunpack.c.h.b16 %v129
  %v566 = vunpack.c.l.b16 %v130
  %v567 = vunpack.c.h.b16 %v130
  %v568 = vunpack.c.l.b16 %v131
  %v569 = vunpack.c.h.b16 %v131
  %v570 = vunpack.c.l.b16 %v132
  %v571 = vunpack.c.h.b16 %v132
  %v572 = vunpack.c.l.b16 %v133
  %v573 = vunpack.c.h.b16 %v133
  %v574 = vunpack.c.l.b16 %v134
  %v575 = vunpack.c.h.b16 %v134
  %v576 = vunpack.c.l.b16 %v135
  %v577 = vunpack.c.h.b16 %v135
  %v578 = vunpack.c.l.b16 %v136
  %v579 = vunpack.c.h.b16 %v136
  %v580 = vunpack.c.l.b16 %v137
  %v581 = vunpack.c.h.b16 %v137
  %v582 = vunpack.c.l.b16 %v138
  %v583 = vunpack.c.h.b16 %v138
  %v584 = vunpack.c.l.b16 %v139
  %v585 = vunpack.c.h.b16 %v139
  %v586 = vunpack.c.l.b16 %v140
  %v587 = vunpack.c.h.b16 %v140
  %v588 = vunpack.c.l.b16 %v141
  %v589 = vunpack.c.h.b16 %v141
  %v590 = vunpack.c.l.b16 %v142
  %v591 = vunpack.c.h.b16 %v142
  %v592 = vunpack.c.l.b16 %v143
  %v593 = vunpack.c.h.b16 %v143
  %v594 = vunpack.c.l.b16 %v144
  %v595 = vunpack.c.h.b16 %v144
  %v596 = vunpack.c.l.b16 %v145
  %v597 = vunpack.c.h.b16 %v145
  %v598 = vunpack.c.l.b16 %v146
  %v599 = vunpack.c.h.b16 %v146
  %v600 = vunpack.c.l.b16 %v147
  %v601 = vunpack.c.h.b16 %v147
  %v602 = vunpack.c.l.b16 %v148
  %v603 = vunpack.c.h.b16 %v148
  %v604 = vunpack.c.l.b16 %v149
  %v605 = vunpack.c.h.b16 %v149
  %v606 = vunpack.c.l.b16 %v150
  %v607 = vunpack.c.h.b16 %v150
  %v608 = vunpack.c.l.b16 %v151
  %v609 = vunpack.c.h.b16 %v151
  %v610 = vunpack.c.l.b16 %v152
  %v611 = vunpack.c.h.b16 %v152
  %v612 = vunpack.c.l.b16 %v153
  %v613 = vunpack.c.h.b16 %v153
  %v614 = vunpack.c.l.b16 %v154
  %v615 = vunpack.c.h.b16 %v154
  %v616 = vunpack.c.l.b16 %v155
  %v617 = vunpack.c.h.b16 %v155
  %v618 = vunpack.c.l.b16 %v156
  %v619 = vunpack.c.h.b16 %v156
  %v620 = vunpack.c.l.b16 %v157
  %v621 = vunpack.c.h.b16 %v157
  %v622 = vunpack.c.l.b16 %v158
  %v623 = vunpack.c.h.b16 %v158
  %v624 = vunpack.c.l.b16 %v159
  %v625 = vunpack.c.h.b16 %v159
  %v626 = vunpack.c.l.b16 %v160
  %v627 = vunpack.c.h.b16 %v160
  %v628 = vunpack.c.l.b16 %v161
  %v629 = vunpack.c.h.b16 %v161
  %v630 = vunpack.c.l.b16 %v162
  %v631 = vunpack.c.h.b16 %v162
  %v632 = vunpack.c.l.b16 %v163
  %v633 = vunpack.c.h.b16 %v163
  %v634 = vunpack.c.l.b16 %v164
  %v635 = vunpack.c.h.b16 %v164
  %v636 = vunpack.c.l.b16 %v165
  %v637 = vunpack.c.h.b16 %v165
  %v638 = vunpack.c.l.b16 %v166
  %v639 = vunpack.c.h.b16 %v166
  %v640 = vunpack.c.l.b16 %v167
  %v641 = vunpack.c.h.b16 %v167
  %v642 = vunpack.c.l.b16 %v168
  %v643 = vunpack.c.h.b16 %v168
  %v644 = vunpack.c.l.b16 %v169
  %v645 = vunpack.c.h.b16 %v169
  %v646 = vunpack.c.l.b16 %v170
  %v647 = vunpack.c.h.b16 %v170
  %v648 = vunpack.c.l.b16 %v171
  %v649 = vunpack.c.h.b16 %v171
  %v650 = vpack.c.b16 %v364, %v362
  %v651 = vpack.c.b16 %v365, %v363
  %v652 = vpack.c.b16 %v368, %v366
  %v653 = vpack.c.b16 %v369, %v367
  %v654 = vpack.c.b16 %v372, %v370
  %v655 = vpack.c.b16 %v373, %v371
  %v656 = vpack.c.b16 %v376, %v374
  %v657 = vpack.c.b16 %v377, %v375
  %v658 = vpack.c.b16 %v380, %v378
  %v659 = vpack.c.b16 %v381, %v379
  %v660 = vpack.c.b16 %v384, %v382
  %v661 = vpack.c.b16 %v385, %v383
  %v662 = vpack.c.b16 %v388, %v386
  %v663 = vpack.c.b16 %v389, %v387
  %v664 = vpack.c.b16 %v392, %v390
  %v665 = vpack.c.b16 %v393, %v391
  %v666 = vpack.c.b16 %v396, %v394
  %v667 = vpack.c.b16 %v397, %v395
  %v668 = vpack.c.b16 %v400, %v398
  %v669 = vpack.c.b16 %v401, %v399
  %v670 = vpack.c.b16 %v404, %v402
  %v671 = vpack.c.b16 %v405, %v403
  %v672 = vpack.c.b16 %v408, %v406
  %v673 = vpack.c.b16 %v409, %v407
  %v674 = vpack.c.b16 %v412, %v410
  %v675 = vpack.c.b16 %v413, %v411
  %v676 = vpack.c.b16 %v416, %v414
  %v677 = vpack.c.b16 %v417, %v415
  %v678 = vpack.c.b16 %v420, %v418
  %v679 = vpack.c.b16 %v421, %v419
  %v680 = vpack.c.b16 %v424, %v422
  %v681 = vpack.c.b16 %v425, %v423
  %v682 = vpack.c.b16 %v428, %v426
  %v683 = vpack.c.b16 %v429, %v427
  %v684 = vpack.c.b16 %v432, %v430
  %v685 = vpack.c.b16 %v433, %v431
  %v686 = vpack.c.b16 %v436, %v434
  %v687 = vpack.c.b16 %v437, %v435
  %v688 = vpack.c.b16 %v440, %v438
  %v689 = vpack.c.b16 %v441, %v439
  %v690 = vpack.c.b16 %v444, %v442
  %v691 = vpack.c.b16 %v445, %v443
  %v692 = vpack.c.b16 %v448, %v446
  %v693 = vpack.c.b16 %v449, %v447
  %v694 = vpack.c.b16 %v452, %v450
  %v695 = vpack.c.b16 %v453, %v451
  %v696 = vpack.c.b16 %v456, %v454
  %v697 = vpack.c.b16 %v457, %v455
  %v698 = vpack.c.b16 %v460, %v458
  %v699 = vpack.c.b16 %v461, %v459
  %v700 = vpack.c.b16 %v464, %v462
  %v701 = vpack.c.b16 %v465, %v463
  %v702 = vpack.c.b16 %v468, %v466
  %v703 = vpack.c.b16 %v469, %v467
  %v704 = vpack.c.b16 %v472, %v470
  %v705 = vpack.c.b16 %v473, %v471
  %v706 = vpack.c.b16 %v476, %v474
  %v707 = vpack.c.b16 %v477, %v475
  %v708 = vpack.c.b16 %v480, %v478
  %v709 = vpack.c.b16 %v481, %v479
  %v710 = vpack.c.b16 %v484, %v482
  %v711 = vpack.c.b16 %v485, %v483
  %v712 = vpack.c.b16 %v488, %v486
  %v713 = vpack.c.b16 %v489, %v487
  %v714 = vpack.c.b16 %v492, %v490
  %v715 = vpack.c.b16 %v493, %v491
  %v716 = vpack.c.b16 %v496, %v494
  %v717 = vpack.c.b16 %v497, %v495
  %v718 = vpack.c.b16 %v500, %v498
  %v719 = vpack.c.b16 %v501, %v499
  %v720 = vpack.c.b16 %v504, %v502
  %v721 = vpack.c.b16 %v505, %v503
  %v722 = vpack.c.b16 %v508, %v506
  %v723 = vpack.c.b16 %v509, %v507
  %v724 = vpack.c.b16 %v512, %v510
  %v725 = vpack.c.b16 %v513, %v511
  %v726 = vpack.c.b16 %v516, %v514
  %v727 = vpack.c.b16 %v517, %v515
  %v728 = vpack.c.b16 %v520, %v518
  %v729 = vpack.c.b16 %v521, %v519
  %v730 = vpack.c.b16 %v524, %v522
  %v731 = vpack.c.b16 %v525, %v523
  %v732 = vpack.c.b16 %v528, %v526
  %v733 = vpack.c.b16 %v529, %v527
  %v734 = vpack.c.b16 %v532, %v530
  %v735 = vpack.c.b16 %v533, %v531
  %v736 = vpack.c.b16 %v536, %v534
  %v737 = vpack.c.b16 %v537, %v535
  %v738 = vpack.c.b16 %v540, %v538
  %v739 = vpack.c.b16 %v541, %v539
  %v740 = vpack.c.b16 %v544, %v542
  %v741 = vpack.c.b16 %v545, %v543
  %v742 = vpack.c.b16 %v548, %v546
  %v743 = vpack.c.b16 %v549, %v547
  %v744 = vpack.c.b16 %v552, %v550
  %v745 = vpack.c.b16 %v553, %v551
  %v746 = vpack.c.b16 %v556, %v554
  %v747 = vpack.c.b16 %v557, %v555
  %v748 = vpack.c.b16 %v560, %v558
  %v749 = vpack.c.b16 %v561, %v559
  %v750 = vpack.c.b16 %v564, %v562
  %v751 = vpack.c.b16 %v565, %v563
  %v752 = vpack.c.b16 %v568, %v566
  %v753 = vpack.c.b16 %v569, %v567
  %v754 = vpack.c.b16 %v572, %v570
  %v755 = vpack.c.b16 %v573, %v571
  %v756 = vpack.c.b16 %v576, %v574
  %v757 = vpack.c.b16 %v577, %v575
  %v758 = vpack.c.b16 %v580, %v578
  %v759 = vpack.c.b16 %v581, %v579
  %v760 = vpack.c.b16 %v584, %v582
  %v761 = vpack.c.b16 %v585, %v583
  %v762 = vpack.c.b16 %v588, %v586
  %v763 = vpack.c.b16 %v589, %v587
  %v764 = vpack.c.b16 %v592, %v590
  %v765 = vpack.c.b16 %v593, %v591
  %v766 = vpack.c.b16 %v596, %v594
  %v767 = vpack.c.b16 %v597, %v595
  %v768 = vpack.c.b16 %v600, %v598
  %v769 = vpack.c.b16 %v601, %v599
  %v770 = vpack.c.b16 %v604, %v602
  %v771 = vpack.c.b16 %v605, %v603
  %v772 = vpack.c.b16 %v608, %v606
  %v773 = vpack.c.b16 %v609, %v607
  %v774 = vpack.c.b16 %v612, %v610
  %v775 = vpack.c.b16 %v613, %v611
  %v776 = vpack.c.b16 %v616, %v614
  %v777 = vpack.c.b16 %v617, %v615
  %v778 = vpack.c.b16 %v620, %v618
  %v779 = vpack.c.b16 %v621, %v619
  %v780 = vpack.c.b16 %v624, %v622
  %v781 = vpack.c.b16 %v625, %v623
  %v782 = vpack.c.b16 %v628, %v626
  %v783 = vpack.c.b16 %v629, %v627
  %v784 = vpack.c.b16 %v632, %v630
  %v785 = vpack.c.b16 %v633, %v631
  %v786 = vpack.c.b16 %v636, %v634
  %v787 = vpack.c.b16 %v637, %v635
  %v788 = vpack.c.b16 %v640, %v638
  %v789 = vpack.c.b16 %v641, %v639
  %v790 = vpack.c.b16 %v644, %v642
  %v791 = vpack.c.b16 %v645, %v643
  %v792 = vpack.c.b16 %v648, %v646
  %v793 = vpack.c.b16 %v649, %v647
  %938 = vmatprep.subr.bf16.mxu0 %v651
  %939 = vmatpush1.bf16.msra.mxu0 %v650
  %940 = vmatprep.subr.bf16.mxu0 %v653
  %941 = vmatpush1.bf16.msra.mxu0 %v652
  %942 = vmatprep.subr.bf16.mxu0 %v655
  %943 = vmatpush1.bf16.msra.mxu0 %v654
  %944 = vmatprep.subr.bf16.mxu0 %v657
  %945 = vmatpush1.bf16.msra.mxu0 %v656
  %946 = vmatprep.subr.bf16.mxu0 %v659
  %947 = vmatpush1.bf16.msra.mxu0 %v658
  %948 = vmatprep.subr.bf16.mxu0 %v661
  %949 = vmatpush1.bf16.msra.mxu0 %v660
  %950 = vmatprep.subr.bf16.mxu0 %v663
  %951 = vmatpush1.bf16.msra.mxu0 %v662
  %952 = vmatprep.subr.bf16.mxu0 %v665
  %953 = vmatpush1.bf16.msra.mxu0 %v664
  %954 = vmatprep.subr.bf16.mxu0 %v667
  %955 = vmatpush1.bf16.msra.mxu0 %v666
  %956 = vmatprep.subr.bf16.mxu0 %v669
  %957 = vmatpush1.bf16.msra.mxu0 %v668
  %958 = vmatprep.subr.bf16.mxu0 %v671
  %959 = vmatpush1.bf16.msra.mxu0 %v670
  %960 = vmatprep.subr.bf16.mxu0 %v673
  %961 = vmatpush1.bf16.msra.mxu0 %v672
  %962 = vmatprep.subr.bf16.mxu0 %v675
  %963 = vmatpush1.bf16.msra.mxu0 %v674
  %964 = vmatprep.subr.bf16.mxu0 %v677
  %965 = vmatpush1.bf16.msra.mxu0 %v676
  %966 = vmatprep.subr.bf16.mxu0 %v679
  %967 = vmatpush1.bf16.msra.mxu0 %v678
  %968 = vmatprep.subr.bf16.mxu0 %v681
  %969 = vmatpush1.bf16.msra.mxu0 %v680
  %970 = vmatprep.mubr.bf16.mxu0 %v201
  %971 = vmatmul.mubr.bf16.gmra.mrb[0].mxu0 %v200
  %v972 = vpop.f32.mrb[0].mxu0
  %v973 = vadd.f32 0.0, %v972
  %v974 = vpop.f32.mrb[0].mxu0
  %v975 = vadd.f32 0.0, %v974
  %v976 = vpop.f32.mrb[0].mxu0
  %v977 = vadd.f32 0.0, %v976
  %v978 = vpop.f32.mrb[0].mxu0
  %v979 = vadd.f32 0.0, %v978
  %980 = vdwg.mxu0
  %981 = vmatprep.subr.bf16.mxu0 %v683
  %982 = vmatpush1.bf16.msra.mxu0 %v682
  %983 = vmatprep.subr.bf16.mxu0 %v685
  %984 = vmatpush1.bf16.msra.mxu0 %v684
  %985 = vmatprep.subr.bf16.mxu0 %v687
  %986 = vmatpush1.bf16.msra.mxu0 %v686
  %987 = vmatprep.subr.bf16.mxu0 %v689
  %988 = vmatpush1.bf16.msra.mxu0 %v688
  %989 = vmatprep.subr.bf16.mxu0 %v691
  %990 = vmatpush1.bf16.msra.mxu0 %v690
  %991 = vmatprep.subr.bf16.mxu0 %v693
  %992 = vmatpush1.bf16.msra.mxu0 %v692
  %993 = vmatprep.subr.bf16.mxu0 %v695
  %994 = vmatpush1.bf16.msra.mxu0 %v694
  %995 = vmatprep.subr.bf16.mxu0 %v697
  %996 = vmatpush1.bf16.msra.mxu0 %v696
  %997 = vmatprep.subr.bf16.mxu0 %v699
  %998 = vmatpush1.bf16.msra.mxu0 %v698
  %999 = vmatprep.subr.bf16.mxu0 %v701
  %1000 = vmatpush1.bf16.msra.mxu0 %v700
  %1001 = vmatprep.subr.bf16.mxu0 %v703
  %1002 = vmatpush1.bf16.msra.mxu0 %v702
  %1003 = vmatprep.subr.bf16.mxu0 %v705
  %1004 = vmatpush1.bf16.msra.mxu0 %v704
  %1005 = vmatprep.subr.bf16.mxu0 %v707
  %1006 = vmatpush1.bf16.msra.mxu0 %v706
  %1007 = vmatprep.subr.bf16.mxu0 %v709
  %1008 = vmatpush1.bf16.msra.mxu0 %v708
  %1009 = vmatprep.subr.bf16.mxu0 %v711
  %1010 = vmatpush1.bf16.msra.mxu0 %v710
  %1011 = vmatprep.subr.bf16.mxu0 %v713
  %1012 = vmatpush1.bf16.msra.mxu0 %v712
  %1013 = vmatprep.mubr.bf16.mxu0 %v203
  %1014 = vmatmul.mubr.bf16.gmra.mrb[0].mxu0 %v202
  %v1015 = vpop.f32.mrb[0].mxu0
  %v1016 = vadd.f32 %v973, %v1015
  %v1017 = vpop.f32.mrb[0].mxu0
  %v1018 = vadd.f32 %v975, %v1017
  %v1019 = vpop.f32.mrb[0].mxu0
  %v1020 = vadd.f32 %v977, %v1019
  %v1021 = vpop.f32.mrb[0].mxu0
  %v1022 = vadd.f32 %v979, %v1021
  %1023 = vdwg.mxu0
  %1024 = vmatprep.subr.bf16.mxu0 %v715
  %1025 = vmatpush1.bf16.msra.mxu0 %v714
  %1026 = vmatprep.subr.bf16.mxu0 %v717
  %1027 = vmatpush1.bf16.msra.mxu0 %v716
  %1028 = vmatprep.subr.bf16.mxu0 %v719
  %1029 = vmatpush1.bf16.msra.mxu0 %v718
  %1030 = vmatprep.subr.bf16.mxu0 %v721
  %1031 = vmatpush1.bf16.msra.mxu0 %v720
  %1032 = vmatprep.subr.bf16.mxu0 %v723
  %1033 = vmatpush1.bf16.msra.mxu0 %v722
  %1034 = vmatprep.subr.bf16.mxu0 %v725
  %1035 = vmatpush1.bf16.msra.mxu0 %v724
  %1036 = vmatprep.subr.bf16.mxu0 %v727
  %1037 = vmatpush1.bf16.msra.mxu0 %v726
  %1038 = vmatprep.subr.bf16.mxu0 %v729
  %1039 = vmatpush1.bf16.msra.mxu0 %v728
  %1040 = vmatprep.subr.bf16.mxu0 %v731
  %1041 = vmatpush1.bf16.msra.mxu0 %v730
  %1042 = vmatprep.subr.bf16.mxu0 %v733
  %1043 = vmatpush1.bf16.msra.mxu0 %v732
  %1044 = vmatprep.subr.bf16.mxu0 %v735
  %1045 = vmatpush1.bf16.msra.mxu0 %v734
  %1046 = vmatprep.subr.bf16.mxu0 %v737
  %1047 = vmatpush1.bf16.msra.mxu0 %v736
  %1048 = vmatprep.subr.bf16.mxu0 %v739
  %1049 = vmatpush1.bf16.msra.mxu0 %v738
  %1050 = vmatprep.subr.bf16.mxu0 %v741
  %1051 = vmatpush1.bf16.msra.mxu0 %v740
  %1052 = vmatprep.subr.bf16.mxu0 %v743
  %1053 = vmatpush1.bf16.msra.mxu0 %v742
  %1054 = vmatprep.subr.bf16.mxu0 %v745
  %1055 = vmatpush1.bf16.msra.mxu0 %v744
  %1056 = vmatprep.mubr.bf16.mxu0 %v205
  %1057 = vmatmul.mubr.bf16.gmra.mrb[0].mxu0 %v204
  %v1058 = vpop.f32.mrb[0].mxu0
  %v1059 = vadd.f32 %v1016, %v1058
  %v1060 = vpop.f32.mrb[0].mxu0
  %v1061 = vadd.f32 %v1018, %v1060
  %v1062 = vpop.f32.mrb[0].mxu0
  %v1063 = vadd.f32 %v1020, %v1062
  %v1064 = vpop.f32.mrb[0].mxu0
  %v1065 = vadd.f32 %v1022, %v1064
  %1066 = vdwg.mxu0
  %1067 = vmatprep.subr.bf16.mxu0 %v747
  %1068 = vmatpush1.bf16.msra.mxu0 %v746
  %1069 = vmatprep.subr.bf16.mxu0 %v749
  %1070 = vmatpush1.bf16.msra.mxu0 %v748
  %1071 = vmatprep.subr.bf16.mxu0 %v751
  %1072 = vmatpush1.bf16.msra.mxu0 %v750
  %1073 = vmatprep.subr.bf16.mxu0 %v753
  %1074 = vmatpush1.bf16.msra.mxu0 %v752
  %1075 = vmatprep.subr.bf16.mxu0 %v755
  %1076 = vmatpush1.bf16.msra.mxu0 %v754
  %1077 = vmatprep.subr.bf16.mxu0 %v757
  %1078 = vmatpush1.bf16.msra.mxu0 %v756
  %1079 = vmatprep.subr.bf16.mxu0 %v759
  %1080 = vmatpush1.bf16.msra.mxu0 %v758
  %1081 = vmatprep.subr.bf16.mxu0 %v761
  %1082 = vmatpush1.bf16.msra.mxu0 %v760
  %1083 = vmatprep.subr.bf16.mxu0 %v763
  %1084 = vmatpush1.bf16.msra.mxu0 %v762
  %1085 = vmatprep.subr.bf16.mxu0 %v765
  %1086 = vmatpush1.bf16.msra.mxu0 %v764
  %1087 = vmatprep.subr.bf16.mxu0 %v767
  %1088 = vmatpush1.bf16.msra.mxu0 %v766
  %1089 = vmatprep.subr.bf16.mxu0 %v769
  %1090 = vmatpush1.bf16.msra.mxu0 %v768
  %1091 = vmatprep.subr.bf16.mxu0 %v771
  %1092 = vmatpush1.bf16.msra.mxu0 %v770
  %1093 = vmatprep.subr.bf16.mxu0 %v773
  %1094 = vmatpush1.bf16.msra.mxu0 %v772
  %1095 = vmatprep.subr.bf16.mxu0 %v775
  %1096 = vmatpush1.bf16.msra.mxu0 %v774
  %1097 = vmatprep.subr.bf16.mxu0 %v777
  %1098 = vmatpush1.bf16.msra.mxu0 %v776
  %1099 = vmatprep.mubr.bf16.mxu0 %v207
  %1100 = vmatmul.mubr.bf16.gmra.mrb[0].mxu0 %v206
  %v1101 = vpop.f32.mrb[0].mxu0
  %v1102 = vadd.f32 %v1059, %v1101
  %v1103 = vpop.f32.mrb[0].mxu0
  %v1104 = vadd.f32 %v1061, %v1103
  %v1105 = vpop.f32.mrb[0].mxu0
  %v1106 = vadd.f32 %v1063, %v1105
  %v1107 = vpop.f32.mrb[0].mxu0
  %v1108 = vadd.f32 %v1065, %v1107
  %1109 = vdwg.mxu0
  %1110 = vmatprep.subr.bf16.mxu0 %v779
  %1111 = vmatpush1.bf16.msra.mxu0 %v778
  %1112 = vmatprep.subr.bf16.mxu0 %v781
  %1113 = vmatpush1.bf16.msra.mxu0 %v780
  %1114 = vmatprep.subr.bf16.mxu0 %v783
  %1115 = vmatpush1.bf16.msra.mxu0 %v782
  %1116 = vmatprep.subr.bf16.mxu0 %v785
  %1117 = vmatpush1.bf16.msra.mxu0 %v784
  %1118 = vmatprep.subr.bf16.mxu0 %v787
  %1119 = vmatpush1.bf16.msra.mxu0 %v786
  %1120 = vmatprep.subr.bf16.mxu0 %v789
  %1121 = vmatpush1.bf16.msra.mxu0 %v788
  %1122 = vmatprep.subr.bf16.mxu0 %v791
  %1123 = vmatpush1.bf16.msra.mxu0 %v790
  %1124 = vmatprep.subr.bf16.mxu0 %v793
  %1125 = vmatpush1.bf16.msra.mxu0 %v792
  %1126 = vmatprep.subr.bf16.mxu0 0
  %1127 = vmatpush1.bf16.msra.mxu0 0
  %1128 = vmatprep.subr.bf16.mxu0 0
  %1129 = vmatpush1.bf16.msra.mxu0 0
  %1130 = vmatprep.subr.bf16.mxu0 0
  %1131 = vmatpush1.bf16.msra.mxu0 0
  %1132 = vmatprep.subr.bf16.mxu0 0
  %1133 = vmatpush1.bf16.msra.mxu0 0
  %1134 = vmatprep.subr.bf16.mxu0 0
  %1135 = vmatpush1.bf16.msra.mxu0 0
  %1136 = vmatprep.subr.bf16.mxu0 0
  %1137 = vmatpush1.bf16.msra.mxu0 0
  %1138 = vmatprep.subr.bf16.mxu0 0
  %1139 = vmatpush1.bf16.msra.mxu0 0
  %1140 = vmatprep.subr.bf16.mxu0 0
  %1141 = vmatpush1.bf16.msra.mxu0 0
  %1142 = vmatprep.mubr.bf16.mxu0 0
  %1143 = vmatmul.mubr.bf16.gmra.mrb[0].mxu0 %v208
  %v1144 = vpop.f32.mrb[0].mxu0
  %v1145 = vadd.f32 %v1102, %v1144
  %v1146 = vpop.f32.mrb[0].mxu0
  %v1147 = vadd.f32 %v1104, %v1146
  %v1148 = vpop.f32.mrb[0].mxu0
  %v1149 = vadd.f32 %v1106, %v1148
  %v1150 = vpop.f32.mrb[0].mxu0
  %v1151 = vadd.f32 %v1108, %v1150
  %1152 = vdwg.mxu0
  %v1153 = vld [vmem:[%s2] sm:$0x3]
  %v1155 = vlaneseq
  %v1156 = vshrl.u32 %v1155, 7
  %v1157 = vsub.s32 0, %v1156
  %v1158 = vrot.slane %v1153, %v1157
  %v1159 = vlaneseq
  %v1160 = vshrl.u32 %v1159, 7
  %v1161 = vsub.s32 1, %v1160
  %v1162 = vrot.slane %v1153, %v1161
  %v1165 = vmul.f32 %v1145, %v1158
  %v1166 = vmul.f32 %v1147, %v1162
  %v1167 = vmul.f32 %v1149, %v1158
  %v1168 = vmul.f32 %v1151, %v1162
  %v1169 = vld [vmem:[%s3] sm:$0x3]
  %v1171 = vlaneseq
  %v1172 = vshrl.u32 %v1171, 7
  %v1173 = vsub.s32 0, %v1172
  %v1174 = vrot.slane %v1169, %v1173
  %v1175 = vlaneseq
  %v1176 = vshrl.u32 %v1175, 7
  %v1177 = vsub.s32 1, %v1176
  %v1178 = vrot.slane %v1169, %v1177
  %v1181 = vadd.f32 %v1165, %v1174
  %v1182 = vadd.f32 %v1166, %v1178
  %v1183 = vadd.f32 %v1167, %v1174
  %v1184 = vadd.f32 %v1168, %v1178
  %v1185 = vmax.f32 %v1181, 0.0
  %v1186 = vmax.f32 %v1182, 0.0
  %v1187 = vmax.f32 %v1183, 0.0
  %v1188 = vmax.f32 %v1184, 0.0
  %v1189 = vpack.c.bf16 %v1187, %v1185
  %v1190 = vpack.c.bf16 %v1188, %v1186
  %v1193 = vunpack.c.l.b16 %v1189
  %v1194 = vunpack.c.l.b16 %v1190
  %v1195 = vunpack.c.h.b16 %v1189
  %v1196 = vunpack.c.h.b16 %v1190
  %v1197 = vpack.c.b16 %v1194, %v1193
  %v1198 = vpack.c.b16 %v1196, %v1195
  %1201 = vst [vmem:[%s4] sm:$0xff] %v1197
  %1202 = vst [vmem:[%s4 + $0x8] sm:$0xff] %v1198
  // Predicated region
  $region18: #{psa_forward.26} parent=0 // pred_check
    _
  $region19: #{psa_forward.26} parent=0 // pred_check_branch
    %1204 = sbr.rel (0) target = $region21
  $region20: #{psa_forward.26} parent=0 // pred_region
    _
  $region21: #{psa_forward.26} parent=0 // pred_fallthru
    _
  // Predicated region
  $region22: #{psa_forward.26} parent=0 // pred_check
    _
  $region23: #{psa_forward.26} parent=0 // pred_check_branch
    %1206 = sbr.rel (0) target = $region25
  $region24: #{psa_forward.26} parent=0 // pred_region
    _
  $region25: #{psa_forward.26} parent=0 // pred_fallthru
    _

// kernel: psa_forward.27
$region0: #{psa_forward.27}
  #allocation0 [shape = 'u32[]', space=smem, size = 0x4, offset = 0x4, fixed_abs, tag = 'smem constant byte address 0x4 - core index']
  #allocation1 [shape = 'u32[144,128]{1,0:T(1,128)}', space=vmem, size = 0x12000, scoped, tag = 'internal scratch']
  %s0 = inlined_call_operand.vmem [shape: bf16[2,4,4,256], index: 0, kind: input, shape index: {}]
  %s1 = inlined_call_operand.vmem [shape: bf16[9,256,256], index: 1, kind: input, shape index: {}]
  %s2 = inlined_call_operand.vmem [shape: f32[1,256], index: 2, kind: input, shape index: {}]
  %s3 = inlined_call_operand.vmem [shape: f32[1,256], index: 3, kind: input, shape index: {}]
  %s4 = inlined_call_operand.vmem [shape: bf16[2,4,256], index: 4, kind: output, shape index: {}]
  %s5 = sld [smem:[#allocation0]]
  $region49: #{psa_forward.27} parent=0
    _
  %s7 = ssub.s32 1, %s5
  %s8 = scalar_select 0, %s7, %s5
  loop: start=0, step=1, limit=4
  $region2: #{psa_forward.27} parent=0 // loop_pre_header
    _
  $region3: #{psa_forward.27} parent=0 // loop_header
    %s10 = sphi 0, %s14
    %p11 = scmp.ge.s32.totalorder %s10, 4
    %s20 = sphi 0, %s22
    %s23 = sphi 0, %s20
    %s24 = sphi 0, %s23
    %s40 = sphi 0, %s24
    %s44 = sphi 0, %s44
    %s46 = sphi 0, %s44
    %s47 = sphi 0, %s46
    %s61 = sphi 0, %s47
    %s65 = sphi 0, %s65
    %s67 = sphi 0, %s65
    %s68 = sphi 0, %s67
    %s82 = sphi 0, %s68
    %s86 = sphi 0, %s86
    %s88 = sphi 0, %s86
    %s89 = sphi 0, %s88
    %s103 = sphi 0, %s89
    %s109 = sphi 0, %s111
    %s112 = sphi 0, %s109
    %s113 = sphi 0, %s112
    %s129 = sphi 0, %s113
  $region4: #{psa_forward.27} parent=0 // loop_header_branch
    %13 = sbr.rel (%p11) target = $region8
  $region5: #{psa_forward.27} parent=0 // loop_body
    %s15 = ssub.s32 %s10, 1
    %s16 = ssub.s32 %s10, 2
    %s17 = sadd.s32 %s10, 1
    %s18 = ssub.s32 %s10, %s17
    %p19 = scmp.eq.s32.totalorder %s18, 0
    %s21 = sadd.s32 %s20, 1
    %s22 = scalar_select %p19, %s20, %s21
    %p25 = pneg %p19
    %p26 = scmp.eq.s32.totalorder %s10, 1
    %p27 = por %p25, %p26
    %p28 = scmp.ne.s32.totalorder %s20, %s23
    %p29 = scmp.eq.s32.totalorder %s10, 0
    %p30 = por %p28, %p29
    %p31 = scmp.ne.s32.totalorder %s20, %s23
    %p32 = scmp.eq.s32.totalorder %s15, 1
    %p33 = por %p31, %p32
    %p34 = scmp.ne.s32.totalorder %s23, %s24
    %p35 = scmp.eq.s32.totalorder %s15, 0
    %p36 = por %p34, %p35
    %p37 = scmp.ne.s32.totalorder %s23, %s24
    %p38 = scmp.eq.s32.totalorder %s16, 1
    %p39 = por %p37, %p38
    %p41 = scmp.ne.s32.totalorder %s24, %s40
    %p42 = scmp.eq.s32.totalorder %s16, 0
    %p43 = por %p41, %p42
    %s45 = sadd.s32 %s44, 1
    %p48 = scmp.eq.s32.totalorder %s10, 1
    %p49 = scmp.ne.s32.totalorder %s44, %s46
    %p50 = scmp.eq.s32.totalorder %s10, 0
    %p51 = por %p49, %p50
    %p52 = scmp.ne.s32.totalorder %s44, %s46
    %p53 = scmp.eq.s32.totalorder %s15, 1
    %p54 = por %p52, %p53
    %p55 = scmp.ne.s32.totalorder %s46, %s47
    %p56 = scmp.eq.s32.totalorder %s15, 0
    %p57 = por %p55, %p56
    %p58 = scmp.ne.s32.totalorder %s46, %s47
    %p59 = scmp.eq.s32.totalorder %s16, 1
    %p60 = por %p58, %p59
    %p62 = scmp.ne.s32.totalorder %s47, %s61
    %p63 = scmp.eq.s32.totalorder %s16, 0
    %p64 = por %p62, %p63
    %s66 = sadd.s32 %s65, 1
    %p69 = scmp.eq.s32.totalorder %s10, 1
    %p70 = scmp.ne.s32.totalorder %s65, %s67
    %p71 = scmp.eq.s32.totalorder %s10, 0
    %p72 = por %p70, %p71
    %p73 = scmp.ne.s32.totalorder %s65, %s67
    %p74 = scmp.eq.s32.totalorder %s15, 1
    %p75 = por %p73, %p74
    %p76 = scmp.ne.s32.totalorder %s67, %s68
    %p77 = scmp.eq.s32.totalorder %s15, 0
    %p78 = por %p76, %p77
    %p79 = scmp.ne.s32.totalorder %s67, %s68
    %p80 = scmp.eq.s32.totalorder %s16, 1
    %p81 = por %p79, %p80
    %p83 = scmp.ne.s32.totalorder %s68, %s82
    %p84 = scmp.eq.s32.totalorder %s16, 0
    %p85 = por %p83, %p84
    %s87 = sadd.s32 %s86, 1
    %p90 = scmp.eq.s32.totalorder %s10, 1
    %p91 = scmp.ne.s32.totalorder %s86, %s88
    %p92 = scmp.eq.s32.totalorder %s10, 0
    %p93 = por %p91, %p92
    %p94 = scmp.ne.s32.totalorder %s86, %s88
    %p95 = scmp.eq.s32.totalorder %s15, 1
    %p96 = por %p94, %p95
    %p97 = scmp.ne.s32.totalorder %s88, %s89
    %p98 = scmp.eq.s32.totalorder %s15, 0
    %p99 = por %p97, %p98
    %p100 = scmp.ne.s32.totalorder %s88, %s89
    %p101 = scmp.eq.s32.totalorder %s16, 1
    %p102 = por %p100, %p101
    %p104 = scmp.ne.s32.totalorder %s89, %s103
    %p105 = scmp.eq.s32.totalorder %s16, 0
    %p106 = por %p104, %p105
    %s107 = ssub.s32 %s10, %s17
    %p108 = scmp.eq.s32.totalorder %s107, 0
    %s110 = sadd.s32 %s109, 1
    %s111 = scalar_select %p108, %s109, %s110
    %p114 = pneg %p108
    %p115 = scmp.eq.s32.totalorder %s10, 1
    %p116 = por %p114, %p115
    %p117 = scmp.ne.s32.totalorder %s109, %s112
    %p118 = scmp.eq.s32.totalorder %s10, 0
    %p119 = por %p117, %p118
    %p120 = scmp.ne.s32.totalorder %s109, %s112
    %p121 = scmp.eq.s32.totalorder %s15, 1
    %p122 = por %p120, %p121
    %p123 = scmp.ne.s32.totalorder %s112, %s113
    %p124 = scmp.eq.s32.totalorder %s15, 0
    %p125 = por %p123, %p124
    %p126 = scmp.ne.s32.totalorder %s112, %s113
    %p127 = scmp.eq.s32.totalorder %s16, 1
    %p128 = por %p126, %p127
    %p130 = scmp.ne.s32.totalorder %s113, %s129
    %p131 = scmp.eq.s32.totalorder %s16, 0
    %p132 = por %p130, %p131
    %p133 = scmp.le.s32.totalorder 1, %s10
    %p134 = scmp.lt.s32.totalorder %s10, 3
    %p135 = pnand %p133, %p134
    %p136 = pneg %p135
    // Predicated region
    $region9: #{psa_forward.27} parent=5 // pred_check
      _
    $region10: #{psa_forward.27} parent=5 // pred_check_branch
      %138 = sbr.rel (%p135) target = $region12
    $region11: #{psa_forward.27} parent=5 // pred_region
      %s139 = ssub.s32 %s10, 1
      // Predicated region
      $region13: #{psa_forward.27} parent=11 // pred_check
        %p140 = pneg %p57
      $region14: #{psa_forward.27} parent=11 // pred_check_branch
        %142 = sbr.rel (%p140) target = $region16
      $region15: #{psa_forward.27} parent=11 // pred_region
        _
      $region16: #{psa_forward.27} parent=11 // pred_fallthru
        _
      // Predicated region
      $region17: #{psa_forward.27} parent=11 // pred_check
        %p143 = pneg %p78
      $region18: #{psa_forward.27} parent=11 // pred_check_branch
        %145 = sbr.rel (%p143) target = $region20
      $region19: #{psa_forward.27} parent=11 // pred_region
        _
      $region20: #{psa_forward.27} parent=11 // pred_fallthru
        _
      // Predicated region
      $region21: #{psa_forward.27} parent=11 // pred_check
        %p146 = pneg %p99
      $region22: #{psa_forward.27} parent=11 // pred_check_branch
        %148 = sbr.rel (%p146) target = $region24
      $region23: #{psa_forward.27} parent=11 // pred_region
        _
      $region24: #{psa_forward.27} parent=11 // pred_fallthru
        _
    $region12: #{psa_forward.27} parent=5 // pred_fallthru
      _
    %p149 = scmp.lt.s32.totalorder %s10, 2
    // Predicated region
    $region25: #{psa_forward.27} parent=5 // pred_check
      %p150 = pneg %p149
    $region26: #{psa_forward.27} parent=5 // pred_check_branch
      %152 = sbr.rel (%p150) target = $region28
    $region27: #{psa_forward.27} parent=5 // pred_region
      // Predicated region
      $region29: #{psa_forward.27} parent=27 // pred_check
        %p153 = pneg %p30
      $region30: #{psa_forward.27} parent=27 // pred_check_branch
        %155 = sbr.rel (%p153) target = $region32
      $region31: #{psa_forward.27} parent=27 // pred_region
        %p156 = scmp.lt.s32.totalorder %s10, 1
        %s157 = scalar_select %p156, %s10, 1
        %s158 = smul.addr %s157, 8
        %s159 = smul.addr %s158, 2
        %s160 = scalar_lea.vmem %s0, %s159
      $region32: #{psa_forward.27} parent=27 // pred_fallthru
        _
    $region28: #{psa_forward.27} parent=5 // pred_fallthru
      _
    %p161 = scmp.le.s32.totalorder 1, %s10
    %p162 = scmp.lt.s32.totalorder %s10, 3
    %p163 = pnand %p161, %p162
    %p164 = pneg %p163
    // Predicated region
    $region33: #{psa_forward.27} parent=5 // pred_check
      _
    $region34: #{psa_forward.27} parent=5 // pred_check_branch
      %166 = sbr.rel (%p163) target = $region36
    $region35: #{psa_forward.27} parent=5 // pred_region
      %s167 = ssub.s32 %s10, 1
      %p168 = scmp.lt.s32.totalorder %s15, 1
      %s169 = scalar_select %p168, %s15, 1
      %s170 = smul.addr %s169, 8
      %s171 = smul.addr %s170, 2
      %s172 = scalar_lea.vmem %s0, %s171
      %p173 = pneg %p36
      %p174 = pneg %p33
      %p175 = pneg %p57
      %p176 = pneg %p54
      %p177 = pneg %p78
      %p178 = pneg %p75
      %p179 = pneg %p99
      %p180 = pneg %p96
      %p181 = pneg %p125
      %p182 = pneg %p122
      %p183 = scmp.lt.s32.totalorder %s15, 1
      %s184 = scalar_select %p183, %s15, 1
      %s185 = smul.addr %s184, 2
      %s186 = smul.addr %s185, 2
      %s187 = scalar_lea.vmem %s4, %s186
      %p188 = scmp.lt.s32.totalorder %s15, 1
      %s189 = scalar_select %p188, %s15, 1
      %s190 = smul.addr %s189, 8
      %s191 = smul.addr %s190, 2
      %s192 = scalar_lea.vmem %s0, %s191
      %p193 = scmp.lt.s32.totalorder %s15, 1
      %s194 = scalar_select %p193, %s15, 1
      %s195 = smul.addr %s194, 2
      %s196 = smul.addr %s195, 2
      %s197 = scalar_lea.vmem %s4, %s196
      %v198 = vld [vmem:[%s192] sm:$0x5]
      %v199 = vld [vmem:[%s192 + $0x4] sm:$0x5]
      %v203 = vunpack.c.l.s4 1966171168
      %v204 = vunpack.c.0.s8 %v203
      %v205 = vlaneseq
      %v206 = vshrl.u32 %v205, 7
      %v207 = vsub.s32 %v204, %v206
      %v208 = vrot.slane %v198, %v207
      %v210 = vunpack.c.l.s4 1966171168
      %v211 = vunpack.c.0.s8 %v210
      %v212 = vlaneseq
      %v213 = vshrl.u32 %v212, 7
      %v214 = vsub.s32 %v211, %v213
      %v215 = vrot.slane %v199, %v214
      %v216 = vld [vmem:[%s1] sm:$0xff]
      %v217 = vld [vmem:[%s1 + $0x8] sm:$0xff]
      %v218 = vld [vmem:[%s1 + $0x10] sm:$0xff]
      %v219 = vld [vmem:[%s1 + $0x18] sm:$0xff]
      %v220 = vld [vmem:[%s1 + $0x20] sm:$0xff]
      %v221 = vld [vmem:[%s1 + $0x28] sm:$0xff]
      %v222 = vld [vmem:[%s1 + $0x30] sm:$0xff]
      %v223 = vld [vmem:[%s1 + $0x38] sm:$0xff]
      %v224 = vld [vmem:[%s1 + $0x40] sm:$0xff]
      %v225 = vld [vmem:[%s1 + $0x48] sm:$0xff]
      %v226 = vld [vmem:[%s1 + $0x50] sm:$0xff]
      %v227 = vld [vmem:[%s1 + $0x58] sm:$0xff]
      %v228 = vld [vmem:[%s1 + $0x60] sm:$0xff]
      %v229 = vld [vmem:[%s1 + $0x68] sm:$0xff]
      %v230 = vld [vmem:[%s1 + $0x70] sm:$0xff]
      %v231 = vld [vmem:[%s1 + $0x78] sm:$0xff]
      %v232 = vld [vmem:[%s1 + $0x80] sm:$0xff]
      %v233 = vld [vmem:[%s1 + $0x88] sm:$0xff]
      %v234 = vld [vmem:[%s1 + $0x90] sm:$0xff]
      %v235 = vld [vmem:[%s1 + $0x98] sm:$0xff]
      %v236 = vld [vmem:[%s1 + $0xa0] sm:$0xff]
      %v237 = vld [vmem:[%s1 + $0xa8] sm:$0xff]
      %v238 = vld [vmem:[%s1 + $0xb0] sm:$0xff]
      %v239 = vld [vmem:[%s1 + $0xb8] sm:$0xff]
      %v240 = vld [vmem:[%s1 + $0xc0] sm:$0xff]
      %v241 = vld [vmem:[%s1 + $0xc8] sm:$0xff]
      %v242 = vld [vmem:[%s1 + $0xd0] sm:$0xff]
      %v243 = vld [vmem:[%s1 + $0xd8] sm:$0xff]
      %v244 = vld [vmem:[%s1 + $0xe0] sm:$0xff]
      %v245 = vld [vmem:[%s1 + $0xe8] sm:$0xff]
      %v246 = vld [vmem:[%s1 + $0xf0] sm:$0xff]
      %v247 = vld [vmem:[%s1 + $0xf8] sm:$0xff]
      %v248 = vld [vmem:[%s192] sm:$0xf]
      %v249 = vld [vmem:[%s192 + $0x4] sm:$0xf]
      %v253 = vunpack.c.l.s4 1966171168
      %v254 = vunpack.c.0.s8 %v253
      %v255 = vlaneseq
      %v256 = vshrl.u32 %v255, 7
      %v257 = vsub.s32 %v254, %v256
      %v258 = vrot.slane %v248, %v257
      %v259 = vcombine.high %v258, %v258
      %v261 = vunpack.c.l.s4 1966171168
      %v262 = vunpack.c.0.s8 %v261
      %v263 = vlaneseq
      %v264 = vshrl.u32 %v263, 7
      %v265 = vsub.s32 %v262, %v264
      %v266 = vrot.slane %v249, %v265
      %v267 = vcombine.high %v266, %v266
      %vm268 = vsmask.f32 256
      %vm269 = vsmask.f32 1284
      %vm270 = vmor %vm268, %vm269
      %vm271 = vsmask.f32 2312
      %vm272 = vmor %vm270, %vm271
      %vm273 = vsmask.f32 3340
      %vm274 = vmor %vm272, %vm273
      %vm275 = vsmask.f32 4368
      %vm276 = vmor %vm274, %vm275
      %vm277 = vsmask.f32 5396
      %vm278 = vmor %vm276, %vm277
      %vm279 = vsmask.f32 6424
      %vm280 = vmor %vm278, %vm279
      %vm281 = vsmask.f32 7452
      %vm282 = vmor %vm280, %vm281
      %v284 = vshrl.u32 %v258, 16
      %v286 = vrot.slane %v284, 7
      %v287 = vrot.slane %v286, 1
      %v289 = vshll.u32 %v259, 16
      %v291 = vsel %vm282, %v287, %v289
      %v293 = vshrl.u32 %v266, 16
      %v295 = vrot.slane %v293, 7
      %v296 = vrot.slane %v295, 1
      %v298 = vshll.u32 %v267, 16
      %v300 = vsel %vm282, %v296, %v298
      %s301 = scalar_lea.vmem %s1, 256
      %v302 = vld [vmem:[%s301] sm:$0xff]
      %v303 = vld [vmem:[%s301 + $0x8] sm:$0xff]
      %v304 = vld [vmem:[%s301 + $0x10] sm:$0xff]
      %v305 = vld [vmem:[%s301 + $0x18] sm:$0xff]
      %v306 = vld [vmem:[%s301 + $0x20] sm:$0xff]
      %v307 = vld [vmem:[%s301 + $0x28] sm:$0xff]
      %v308 = vld [vmem:[%s301 + $0x30] sm:$0xff]
      %v309 = vld [vmem:[%s301 + $0x38] sm:$0xff]
      %v310 = vld [vmem:[%s301 + $0x40] sm:$0xff]
      %v311 = vld [vmem:[%s301 + $0x48] sm:$0xff]
      %v312 = vld [vmem:[%s301 + $0x50] sm:$0xff]
      %v313 = vld [vmem:[%s301 + $0x58] sm:$0xff]
      %v314 = vld [vmem:[%s301 + $0x60] sm:$0xff]
      %v315 = vld [vmem:[%s301 + $0x68] sm:$0xff]
      %v316 = vld [vmem:[%s301 + $0x70] sm:$0xff]
      %v317 = vld [vmem:[%s301 + $0x78] sm:$0xff]
      %v318 = vld [vmem:[%s301 + $0x80] sm:$0xff]
      %v319 = vld [vmem:[%s301 + $0x88] sm:$0xff]
      %v320 = vld [vmem:[%s301 + $0x90] sm:$0xff]
      %v321 = vld [vmem:[%s301 + $0x98] sm:$0xff]
      %v322 = vld [vmem:[%s301 + $0xa0] sm:$0xff]
      %v323 = vld [vmem:[%s301 + $0xa8] sm:$0xff]
      %v324 = vld [vmem:[%s301 + $0xb0] sm:$0xff]
      %v325 = vld [vmem:[%s301 + $0xb8] sm:$0xff]
      %v326 = vld [vmem:[%s301 + $0xc0] sm:$0xff]
      %v327 = vld [vmem:[%s301 + $0xc8] sm:$0xff]
      %v328 = vld [vmem:[%s301 + $0xd0] sm:$0xff]
      %v329 = vld [vmem:[%s301 + $0xd8] sm:$0xff]
      %v330 = vld [vmem:[%s301 + $0xe0] sm:$0xff]
      %v331 = vld [vmem:[%s301 + $0xe8] sm:$0xff]
      %v332 = vld [vmem:[%s301 + $0xf0] sm:$0xff]
      %v333 = vld [vmem:[%s301 + $0xf8] sm:$0xff]
      %v334 = vcombine.low %v291, %v300
      %v336 = vunpack.c.l.s4 1966171168
      %v337 = vunpack.c.0.s8 %v336
      %v338 = vlaneseq
      %v339 = vshrl.u32 %v338, 7
      %v340 = vsub.s32 %v337, %v339
      %v341 = vrot.slane %v334, %v340
      %v342 = vcombine.high %v341, %v341
      %v344 = vunpack.c.l.s4 1966171168
      %v345 = vunpack.c.0.s8 %v344
      %v346 = vlaneseq
      %v347 = vshrl.u32 %v346, 7
      %v348 = vsub.s32 %v345, %v347
      %v349 = vrot.slane %v341, %v348
      %v351 = vunpack.c.l.s4 1966171168
      %v352 = vunpack.c.0.s8 %v351
      %v353 = vlaneseq
      %v354 = vshrl.u32 %v353, 7
      %v355 = vsub.s32 %v352, %v354
      %v356 = vrot.slane %v342, %v355
      %v391 = vunpack.c.l.b16 %v302
      %v392 = vunpack.c.h.b16 %v302
      %v393 = vunpack.c.l.b16 %v303
      %v394 = vunpack.c.h.b16 %v303
      %v395 = vunpack.c.l.b16 %v304
      %v396 = vunpack.c.h.b16 %v304
      %v397 = vunpack.c.l.b16 %v305
      %v398 = vunpack.c.h.b16 %v305
      %v399 = vunpack.c.l.b16 %v306
      %v400 = vunpack.c.h.b16 %v306
      %v401 = vunpack.c.l.b16 %v307
      %v402 = vunpack.c.h.b16 %v307
      %v403 = vunpack.c.l.b16 %v308
      %v404 = vunpack.c.h.b16 %v308
      %v405 = vunpack.c.l.b16 %v309
      %v406 = vunpack.c.h.b16 %v309
      %v407 = vunpack.c.l.b16 %v310
      %v408 = vunpack.c.h.b16 %v310
      %v409 = vunpack.c.l.b16 %v311
      %v410 = vunpack.c.h.b16 %v311
      %v411 = vunpack.c.l.b16 %v312
      %v412 = vunpack.c.h.b16 %v312
      %v413 = vunpack.c.l.b16 %v313
      %v414 = vunpack.c.h.b16 %v313
      %v415 = vunpack.c.l.b16 %v314
      %v416 = vunpack.c.h.b16 %v314
      %v417 = vunpack.c.l.b16 %v315
      %v418 = vunpack.c.h.b16 %v315
      %v419 = vunpack.c.l.b16 %v316
      %v420 = vunpack.c.h.b16 %v316
      %v421 = vunpack.c.l.b16 %v317
      %v422 = vunpack.c.h.b16 %v317
      %v423 = vunpack.c.l.b16 %v318
      %v424 = vunpack.c.h.b16 %v318
      %v425 = vunpack.c.l.b16 %v319
      %v426 = vunpack.c.h.b16 %v319
      %v427 = vunpack.c.l.b16 %v320
      %v428 = vunpack.c.h.b16 %v320
      %v429 = vunpack.c.l.b16 %v321
      %v430 = vunpack.c.h.b16 %v321
      %v431 = vunpack.c.l.b16 %v322
      %v432 = vunpack.c.h.b16 %v322
      %v433 = vunpack.c.l.b16 %v323
      %v434 = vunpack.c.h.b16 %v323
      %v435 = vunpack.c.l.b16 %v324
      %v436 = vunpack.c.h.b16 %v324
      %v437 = vunpack.c.l.b16 %v325
      %v438 = vunpack.c.h.b16 %v325
      %v439 = vunpack.c.l.b16 %v326
      %v440 = vunpack.c.h.b16 %v326
      %v441 = vunpack.c.l.b16 %v327
      %v442 = vunpack.c.h.b16 %v327
      %v443 = vunpack.c.l.b16 %v328
      %v444 = vunpack.c.h.b16 %v328
      %v445 = vunpack.c.l.b16 %v329
      %v446 = vunpack.c.h.b16 %v329
      %v447 = vunpack.c.l.b16 %v330
      %v448 = vunpack.c.h.b16 %v330
      %v449 = vunpack.c.l.b16 %v331
      %v450 = vunpack.c.h.b16 %v331
      %v451 = vunpack.c.l.b16 %v332
      %v452 = vunpack.c.h.b16 %v332
      %v453 = vunpack.c.l.b16 %v333
      %v454 = vunpack.c.h.b16 %v333
      %v455 = vpack.c.b16 %v393, %v391
      %v456 = vpack.c.b16 %v394, %v392
      %v457 = vpack.c.b16 %v397, %v395
      %v458 = vpack.c.b16 %v398, %v396
      %v459 = vpack.c.b16 %v401, %v399
      %v460 = vpack.c.b16 %v402, %v400
      %v461 = vpack.c.b16 %v405, %v403
      %v462 = vpack.c.b16 %v406, %v404
      %v463 = vpack.c.b16 %v409, %v407
      %v464 = vpack.c.b16 %v410, %v408
      %v465 = vpack.c.b16 %v413, %v411
      %v466 = vpack.c.b16 %v414, %v412
      %v467 = vpack.c.b16 %v417, %v415
      %v468 = vpack.c.b16 %v418, %v416
      %v469 = vpack.c.b16 %v421, %v419
      %v470 = vpack.c.b16 %v422, %v420
      %v471 = vpack.c.b16 %v425, %v423
      %v472 = vpack.c.b16 %v426, %v424
      %v473 = vpack.c.b16 %v429, %v427
      %v474 = vpack.c.b16 %v430, %v428
      %v475 = vpack.c.b16 %v433, %v431
      %v476 = vpack.c.b16 %v434, %v432
      %v477 = vpack.c.b16 %v437, %v435
      %v478 = vpack.c.b16 %v438, %v436
      %v479 = vpack.c.b16 %v441, %v439
      %v480 = vpack.c.b16 %v442, %v440
      %v481 = vpack.c.b16 %v445, %v443
      %v482 = vpack.c.b16 %v446, %v444
      %v483 = vpack.c.b16 %v449, %v447
      %v484 = vpack.c.b16 %v450, %v448
      %v485 = vpack.c.b16 %v453, %v451
      %v486 = vpack.c.b16 %v454, %v452
      %519 = vmatprep.subr.bf16.mxu0 %v456
      %520 = vmatpush1.bf16.msra.mxu0 %v455
      %521 = vmatprep.subr.bf16.mxu0 %v458
      %522 = vmatpush1.bf16.msra.mxu0 %v457
      %523 = vmatprep.subr.bf16.mxu0 %v460
      %524 = vmatpush1.bf16.msra.mxu0 %v459
      %525 = vmatprep.subr.bf16.mxu0 %v462
      %526 = vmatpush1.bf16.msra.mxu0 %v461
      %527 = vmatprep.subr.bf16.mxu0 %v464
      %528 = vmatpush1.bf16.msra.mxu0 %v463
      %529 = vmatprep.subr.bf16.mxu0 %v466
      %530 = vmatpush1.bf16.msra.mxu0 %v465
      %531 = vmatprep.subr.bf16.mxu0 %v468
      %532 = vmatpush1.bf16.msra.mxu0 %v467
      %533 = vmatprep.subr.bf16.mxu0 %v470
      %534 = vmatpush1.bf16.msra.mxu0 %v469
      %535 = vmatprep.subr.bf16.mxu0 %v472
      %536 = vmatpush1.bf16.msra.mxu0 %v471
      %537 = vmatprep.subr.bf16.mxu0 %v474
      %538 = vmatpush1.bf16.msra.mxu0 %v473
      %539 = vmatprep.subr.bf16.mxu0 %v476
      %540 = vmatpush1.bf16.msra.mxu0 %v475
      %541 = vmatprep.subr.bf16.mxu0 %v478
      %542 = vmatpush1.bf16.msra.mxu0 %v477
      %543 = vmatprep.subr.bf16.mxu0 %v480
      %544 = vmatpush1.bf16.msra.mxu0 %v479
      %545 = vmatprep.subr.bf16.mxu0 %v482
      %546 = vmatpush1.bf16.msra.mxu0 %v481
      %547 = vmatprep.subr.bf16.mxu0 %v484
      %548 = vmatpush1.bf16.msra.mxu0 %v483
      %549 = vmatprep.subr.bf16.mxu0 %v486
      %550 = vmatpush1.bf16.msra.mxu0 %v485
      %551 = vmatprep.mubr.bf16.mxu0 %v356
      %552 = vmatmul.mubr.bf16.gmra.mrb[0].mxu0 %v349
      %v553 = vpop.f32.mrb[0].mxu0
      %v554 = vadd.f32 0.0, %v553
      %v555 = vpop.f32.mrb[0].mxu0
      %v556 = vadd.f32 0.0, %v555
      %v557 = vpop.f32.mrb[0].mxu0
      %v558 = vpop.f32.mrb[0].mxu0
      %559 = vdwg.mxu0
      %v560 = vcombine.low %v208, %v215
      %v562 = vunpack.c.l.s4 1966171168
      %v563 = vunpack.c.0.s8 %v562
      %v564 = vlaneseq
      %v565 = vshrl.u32 %v564, 7
      %v566 = vsub.s32 %v563, %v565
      %v567 = vrot.slane %v560, %v566
      %v568 = vcombine.high %v567, %v567
      %v570 = vunpack.c.l.s4 1966171168
      %v571 = vunpack.c.0.s8 %v570
      %v572 = vlaneseq
      %v573 = vshrl.u32 %v572, 7
      %v574 = vsub.s32 %v571, %v573
      %v575 = vrot.slane %v567, %v574
      %v577 = vunpack.c.l.s4 1966171168
      %v578 = vunpack.c.0.s8 %v577
      %v579 = vlaneseq
      %v580 = vshrl.u32 %v579, 7
      %v581 = vsub.s32 %v578, %v580
      %v582 = vrot.slane %v568, %v581
      %v617 = vunpack.c.l.b16 %v216
      %v618 = vunpack.c.h.b16 %v216
      %v619 = vunpack.c.l.b16 %v217
      %v620 = vunpack.c.h.b16 %v217
      %v621 = vunpack.c.l.b16 %v218
      %v622 = vunpack.c.h.b16 %v218
      %v623 = vunpack.c.l.b16 %v219
      %v624 = vunpack.c.h.b16 %v219
      %v625 = vunpack.c.l.b16 %v220
      %v626 = vunpack.c.h.b16 %v220
      %v627 = vunpack.c.l.b16 %v221
      %v628 = vunpack.c.h.b16 %v221
      %v629 = vunpack.c.l.b16 %v222
      %v630 = vunpack.c.h.b16 %v222
      %v631 = vunpack.c.l.b16 %v223
      %v632 = vunpack.c.h.b16 %v223
      %v633 = vunpack.c.l.b16 %v224
      %v634 = vunpack.c.h.b16 %v224
      %v635 = vunpack.c.l.b16 %v225
      %v636 = vunpack.c.h.b16 %v225
      %v637 = vunpack.c.l.b16 %v226
      %v638 = vunpack.c.h.b16 %v226
      %v639 = vunpack.c.l.b16 %v227
      %v640 = vunpack.c.h.b16 %v227
      %v641 = vunpack.c.l.b16 %v228
      %v642 = vunpack.c.h.b16 %v228
      %v643 = vunpack.c.l.b16 %v229
      %v644 = vunpack.c.h.b16 %v229
      %v645 = vunpack.c.l.b16 %v230
      %v646 = vunpack.c.h.b16 %v230
      %v647 = vunpack.c.l.b16 %v231
      %v648 = vunpack.c.h.b16 %v231
      %v649 = vunpack.c.l.b16 %v232
      %v650 = vunpack.c.h.b16 %v232
      %v651 = vunpack.c.l.b16 %v233
      %v652 = vunpack.c.h.b16 %v233
      %v653 = vunpack.c.l.b16 %v234
      %v654 = vunpack.c.h.b16 %v234
      %v655 = vunpack.c.l.b16 %v235
      %v656 = vunpack.c.h.b16 %v235
      %v657 = vunpack.c.l.b16 %v236
      %v658 = vunpack.c.h.b16 %v236
      %v659 = vunpack.c.l.b16 %v237
      %v660 = vunpack.c.h.b16 %v237
      %v661 = vunpack.c.l.b16 %v238
      %v662 = vunpack.c.h.b16 %v238
      %v663 = vunpack.c.l.b16 %v239
      %v664 = vunpack.c.h.b16 %v239
      %v665 = vunpack.c.l.b16 %v240
      %v666 = vunpack.c.h.b16 %v240
      %v667 = vunpack.c.l.b16 %v241
      %v668 = vunpack.c.h.b16 %v241
      %v669 = vunpack.c.l.b16 %v242
      %v670 = vunpack.c.h.b16 %v242
      %v671 = vunpack.c.l.b16 %v243
      %v672 = vunpack.c.h.b16 %v243
      %v673 = vunpack.c.l.b16 %v244
      %v674 = vunpack.c.h.b16 %v244
      %v675 = vunpack.c.l.b16 %v245
      %v676 = vunpack.c.h.b16 %v245
      %v677 = vunpack.c.l.b16 %v246
      %v678 = vunpack.c.h.b16 %v246
      %v679 = vunpack.c.l.b16 %v247
      %v680 = vunpack.c.h.b16 %v247
      %v681 = vpack.c.b16 %v619, %v617
      %v682 = vpack.c.b16 %v620, %v618
      %v683 = vpack.c.b16 %v623, %v621
      %v684 = vpack.c.b16 %v624, %v622
      %v685 = vpack.c.b16 %v627, %v625
      %v686 = vpack.c.b16 %v628, %v626
      %v687 = vpack.c.b16 %v631, %v629
      %v688 = vpack.c.b16 %v632, %v630
      %v689 = vpack.c.b16 %v635, %v633
      %v690 = vpack.c.b16 %v636, %v634
      %v691 = vpack.c.b16 %v639, %v637
      %v692 = vpack.c.b16 %v640, %v638
      %v693 = vpack.c.b16 %v643, %v641
      %v694 = vpack.c.b16 %v644, %v642
      %v695 = vpack.c.b16 %v647, %v645
      %v696 = vpack.c.b16 %v648, %v646
      %v697 = vpack.c.b16 %v651, %v649
      %v698 = vpack.c.b16 %v652, %v650
      %v699 = vpack.c.b16 %v655, %v653
      %v700 = vpack.c.b16 %v656, %v654
      %v701 = vpack.c.b16 %v659, %v657
      %v702 = vpack.c.b16 %v660, %v658
      %v703 = vpack.c.b16 %v663, %v661
      %v704 = vpack.c.b16 %v664, %v662
      %v705 = vpack.c.b16 %v667, %v665
      %v706 = vpack.c.b16 %v668, %v666
      %v707 = vpack.c.b16 %v671, %v669
      %v708 = vpack.c.b16 %v672, %v670
      %v709 = vpack.c.b16 %v675, %v673
      %v710 = vpack.c.b16 %v676, %v674
      %v711 = vpack.c.b16 %v679, %v677
      %v712 = vpack.c.b16 %v680, %v678
      %745 = vmatprep.subr.bf16.mxu0 %v682
      %746 = vmatpush1.bf16.msra.mxu0 %v681
      %747 = vmatprep.subr.bf16.mxu0 %v684
      %748 = vmatpush1.bf16.msra.mxu0 %v683
      %749 = vmatprep.subr.bf16.mxu0 %v686
      %750 = vmatpush1.bf16.msra.mxu0 %v685
      %751 = vmatprep.subr.bf16.mxu0 %v688
      %752 = vmatpush1.bf16.msra.mxu0 %v687
      %753 = vmatprep.subr.bf16.mxu0 %v690
      %754 = vmatpush1.bf16.msra.mxu0 %v689
      %755 = vmatprep.subr.bf16.mxu0 %v692
      %756 = vmatpush1.bf16.msra.mxu0 %v691
      %757 = vmatprep.subr.bf16.mxu0 %v694
      %758 = vmatpush1.bf16.msra.mxu0 %v693
      %759 = vmatprep.subr.bf16.mxu0 %v696
      %760 = vmatpush1.bf16.msra.mxu0 %v695
      %761 = vmatprep.subr.bf16.mxu0 %v698
      %762 = vmatpush1.bf16.msra.mxu0 %v697
      %763 = vmatprep.subr.bf16.mxu0 %v700
      %764 = vmatpush1.bf16.msra.mxu0 %v699
      %765 = vmatprep.subr.bf16.mxu0 %v702
      %766 = vmatpush1.bf16.msra.mxu0 %v701
      %767 = vmatprep.subr.bf16.mxu0 %v704
      %768 = vmatpush1.bf16.msra.mxu0 %v703
      %769 = vmatprep.subr.bf16.mxu0 %v706
      %770 = vmatpush1.bf16.msra.mxu0 %v705
      %771 = vmatprep.subr.bf16.mxu0 %v708
      %772 = vmatpush1.bf16.msra.mxu0 %v707
      %773 = vmatprep.subr.bf16.mxu0 %v710
      %774 = vmatpush1.bf16.msra.mxu0 %v709
      %775 = vmatprep.subr.bf16.mxu0 %v712
      %776 = vmatpush1.bf16.msra.mxu0 %v711
      %777 = vmatprep.mubr.bf16.mxu0 %v582
      %778 = vmatmul.mubr.bf16.gmra.mrb[0].mxu0 %v575
      %v779 = vpop.f32.mrb[0].mxu0
      %v780 = vadd.f32 %v554, %v779
      %v781 = vpop.f32.mrb[0].mxu0
      %v782 = vadd.f32 %v556, %v781
      %v783 = vpop.f32.mrb[0].mxu0
      %v784 = vpop.f32.mrb[0].mxu0
      %785 = vdwg.mxu0
      %v786 = vld [vmem:[%s192] sm:$0xa]
      %v787 = vld [vmem:[%s192 + $0x4] sm:$0xa]
      %v791 = vunpack.c.l.s4 1966171168
      %v792 = vunpack.c.0.s8 %v791
      %v793 = vlaneseq
      %v794 = vshrl.u32 %v793, 7
      %v795 = vsub.s32 %v792, %v794
      %v796 = vrot.slane %v786, %v795
      %v797 = vcombine.high %v796, %v796
      %v799 = vunpack.c.l.s4 1966171168
      %v800 = vunpack.c.0.s8 %v799
      %v801 = vlaneseq
      %v802 = vshrl.u32 %v801, 7
      %v803 = vsub.s32 %v800, %v802
      %v804 = vrot.slane %v787, %v803
      %v805 = vcombine.high %v804, %v804
      %s806 = scalar_lea.vmem %s1, 512
      %v807 = vld [vmem:[%s806] sm:$0xff]
      %v808 = vld [vmem:[%s806 + $0x8] sm:$0xff]
      %v809 = vld [vmem:[%s806 + $0x10] sm:$0xff]
      %v810 = vld [vmem:[%s806 + $0x18] sm:$0xff]
      %v811 = vld [vmem:[%s806 + $0x20] sm:$0xff]
      %v812 = vld [vmem:[%s806 + $0x28] sm:$0xff]
      %v813 = vld [vmem:[%s806 + $0x30] sm:$0xff]
      %v814 = vld [vmem:[%s806 + $0x38] sm:$0xff]
      %v815 = vld [vmem:[%s806 + $0x40] sm:$0xff]
      %v816 = vld [vmem:[%s806 + $0x48] sm:$0xff]
      %v817 = vld [vmem:[%s806 + $0x50] sm:$0xff]
      %v818 = vld [vmem:[%s806 + $0x58] sm:$0xff]
      %v819 = vld [vmem:[%s806 + $0x60] sm:$0xff]
      %v820 = vld [vmem:[%s806 + $0x68] sm:$0xff]
      %v821 = vld [vmem:[%s806 + $0x70] sm:$0xff]
      %v822 = vld [vmem:[%s806 + $0x78] sm:$0xff]
      %v823 = vld [vmem:[%s806 + $0x80] sm:$0xff]
      %v824 = vld [vmem:[%s806 + $0x88] sm:$0xff]
      %v825 = vld [vmem:[%s806 + $0x90] sm:$0xff]
      %v826 = vld [vmem:[%s806 + $0x98] sm:$0xff]
      %v827 = vld [vmem:[%s806 + $0xa0] sm:$0xff]
      %v828 = vld [vmem:[%s806 + $0xa8] sm:$0xff]
      %v829 = vld [vmem:[%s806 + $0xb0] sm:$0xff]
      %v830 = vld [vmem:[%s806 + $0xb8] sm:$0xff]
      %v831 = vld [vmem:[%s806 + $0xc0] sm:$0xff]
      %v832 = vld [vmem:[%s806 + $0xc8] sm:$0xff]
      %v833 = vld [vmem:[%s806 + $0xd0] sm:$0xff]
      %v834 = vld [vmem:[%s806 + $0xd8] sm:$0xff]
      %v835 = vld [vmem:[%s806 + $0xe0] sm:$0xff]
      %v836 = vld [vmem:[%s806 + $0xe8] sm:$0xff]
      %v837 = vld [vmem:[%s806 + $0xf0] sm:$0xff]
      %v838 = vld [vmem:[%s806 + $0xf8] sm:$0xff]
      %v839 = vcombine.low %v797, %v805
      %v841 = vunpack.c.l.s4 1966171168
      %v842 = vunpack.c.0.s8 %v841
      %v843 = vlaneseq
      %v844 = vshrl.u32 %v843, 7
      %v845 = vsub.s32 %v842, %v844
      %v846 = vrot.slane %v839, %v845
      %v847 = vcombine.high %v846, %v846
      %v849 = vunpack.c.l.s4 1966171168
      %v850 = vunpack.c.0.s8 %v849
      %v851 = vlaneseq
      %v852 = vshrl.u32 %v851, 7
      %v853 = vsub.s32 %v850, %v852
      %v854 = vrot.slane %v846, %v853
      %v856 = vunpack.c.l.s4 1966171168
      %v857 = vunpack.c.0.s8 %v856
      %v858 = vlaneseq
      %v859 = vshrl.u32 %v858, 7
      %v860 = vsub.s32 %v857, %v859
      %v861 = vrot.slane %v847, %v860
      %v896 = vunpack.c.l.b16 %v807
      %v897 = vunpack.c.h.b16 %v807
      %v898 = vunpack.c.l.b16 %v808
      %v899 = vunpack.c.h.b16 %v808
      %v900 = vunpack.c.l.b16 %v809
      %v901 = vunpack.c.h.b16 %v809
      %v902 = vunpack.c.l.b16 %v810
      %v903 = vunpack.c.h.b16 %v810
      %v904 = vunpack.c.l.b16 %v811
      %v905 = vunpack.c.h.b16 %v811
      %v906 = vunpack.c.l.b16 %v812
      %v907 = vunpack.c.h.b16 %v812
      %v908 = vunpack.c.l.b16 %v813
      %v909 = vunpack.c.h.b16 %v813
      %v910 = vunpack.c.l.b16 %v814
      %v911 = vunpack.c.h.b16 %v814
      %v912 = vunpack.c.l.b16 %v815
      %v913 = vunpack.c.h.b16 %v815
      %v914 = vunpack.c.l.b16 %v816
      %v915 = vunpack.c.h.b16 %v816
      %v916 = vunpack.c.l.b16 %v817
      %v917 = vunpack.c.h.b16 %v817
      %v918 = vunpack.c.l.b16 %v818
      %v919 = vunpack.c.h.b16 %v818
      %v920 = vunpack.c.l.b16 %v819
      %v921 = vunpack.c.h.b16 %v819
      %v922 = vunpack.c.l.b16 %v820
      %v923 = vunpack.c.h.b16 %v820
      %v924 = vunpack.c.l.b16 %v821
      %v925 = vunpack.c.h.b16 %v821
      %v926 = vunpack.c.l.b16 %v822
      %v927 = vunpack.c.h.b16 %v822
      %v928 = vunpack.c.l.b16 %v823
      %v929 = vunpack.c.h.b16 %v823
      %v930 = vunpack.c.l.b16 %v824
      %v931 = vunpack.c.h.b16 %v824
      %v932 = vunpack.c.l.b16 %v825
      %v933 = vunpack.c.h.b16 %v825
      %v934 = vunpack.c.l.b16 %v826
      %v935 = vunpack.c.h.b16 %v826
      %v936 = vunpack.c.l.b16 %v827
      %v937 = vunpack.c.h.b16 %v827
      %v938 = vunpack.c.l.b16 %v828
      %v939 = vunpack.c.h.b16 %v828
      %v940 = vunpack.c.l.b16 %v829
      %v941 = vunpack.c.h.b16 %v829
      %v942 = vunpack.c.l.b16 %v830
      %v943 = vunpack.c.h.b16 %v830
      %v944 = vunpack.c.l.b16 %v831
      %v945 = vunpack.c.h.b16 %v831
      %v946 = vunpack.c.l.b16 %v832
      %v947 = vunpack.c.h.b16 %v832
      %v948 = vunpack.c.l.b16 %v833
      %v949 = vunpack.c.h.b16 %v833
      %v950 = vunpack.c.l.b16 %v834
      %v951 = vunpack.c.h.b16 %v834
      %v952 = vunpack.c.l.b16 %v835
      %v953 = vunpack.c.h.b16 %v835
      %v954 = vunpack.c.l.b16 %v836
      %v955 = vunpack.c.h.b16 %v836
      %v956 = vunpack.c.l.b16 %v837
      %v957 = vunpack.c.h.b16 %v837
      %v958 = vunpack.c.l.b16 %v838
      %v959 = vunpack.c.h.b16 %v838
      %v960 = vpack.c.b16 %v898, %v896
      %v961 = vpack.c.b16 %v899, %v897
      %v962 = vpack.c.b16 %v902, %v900
      %v963 = vpack.c.b16 %v903, %v901
      %v964 = vpack.c.b16 %v906, %v904
      %v965 = vpack.c.b16 %v907, %v905
      %v966 = vpack.c.b16 %v910, %v908
      %v967 = vpack.c.b16 %v911, %v909
      %v968 = vpack.c.b16 %v914, %v912
      %v969 = vpack.c.b16 %v915, %v913
      %v970 = vpack.c.b16 %v918, %v916
      %v971 = vpack.c.b16 %v919, %v917
      %v972 = vpack.c.b16 %v922, %v920
      %v973 = vpack.c.b16 %v923, %v921
      %v974 = vpack.c.b16 %v926, %v924
      %v975 = vpack.c.b16 %v927, %v925
      %v976 = vpack.c.b16 %v930, %v928
      %v977 = vpack.c.b16 %v931, %v929
      %v978 = vpack.c.b16 %v934, %v932
      %v979 = vpack.c.b16 %v935, %v933
      %v980 = vpack.c.b16 %v938, %v936
      %v981 = vpack.c.b16 %v939, %v937
      %v982 = vpack.c.b16 %v942, %v940
      %v983 = vpack.c.b16 %v943, %v941
      %v984 = vpack.c.b16 %v946, %v944
      %v985 = vpack.c.b16 %v947, %v945
      %v986 = vpack.c.b16 %v950, %v948
      %v987 = vpack.c.b16 %v951, %v949
      %v988 = vpack.c.b16 %v954, %v952
      %v989 = vpack.c.b16 %v955, %v953
      %v990 = vpack.c.b16 %v958, %v956
      %v991 = vpack.c.b16 %v959, %v957
      %1024 = vmatprep.subr.bf16.mxu0 %v961
      %1025 = vmatpush1.bf16.msra.mxu0 %v960
      %1026 = vmatprep.subr.bf16.mxu0 %v963
      %1027 = vmatpush1.bf16.msra.mxu0 %v962
      %1028 = vmatprep.subr.bf16.mxu0 %v965
      %1029 = vmatpush1.bf16.msra.mxu0 %v964
      %1030 = vmatprep.subr.bf16.mxu0 %v967
      %1031 = vmatpush1.bf16.msra.mxu0 %v966
      %1032 = vmatprep.subr.bf16.mxu0 %v969
      %1033 = vmatpush1.bf16.msra.mxu0 %v968
      %1034 = vmatprep.subr.bf16.mxu0 %v971
      %1035 = vmatpush1.bf16.msra.mxu0 %v970
      %1036 = vmatprep.subr.bf16.mxu0 %v973
      %1037 = vmatpush1.bf16.msra.mxu0 %v972
      %1038 = vmatprep.subr.bf16.mxu0 %v975
      %1039 = vmatpush1.bf16.msra.mxu0 %v974
      %1040 = vmatprep.subr.bf16.mxu0 %v977
      %1041 = vmatpush1.bf16.msra.mxu0 %v976
      %1042 = vmatprep.subr.bf16.mxu0 %v979
      %1043 = vmatpush1.bf16.msra.mxu0 %v978
      %1044 = vmatprep.subr.bf16.mxu0 %v981
      %1045 = vmatpush1.bf16.msra.mxu0 %v980
      %1046 = vmatprep.subr.bf16.mxu0 %v983
      %1047 = vmatpush1.bf16.msra.mxu0 %v982
      %1048 = vmatprep.subr.bf16.mxu0 %v985
      %1049 = vmatpush1.bf16.msra.mxu0 %v984
      %1050 = vmatprep.subr.bf16.mxu0 %v987
      %1051 = vmatpush1.bf16.msra.mxu0 %v986
      %1052 = vmatprep.subr.bf16.mxu0 %v989
      %1053 = vmatpush1.bf16.msra.mxu0 %v988
      %1054 = vmatprep.subr.bf16.mxu0 %v991
      %1055 = vmatpush1.bf16.msra.mxu0 %v990
      %1056 = vmatprep.mubr.bf16.mxu0 %v861
      %1057 = vmatmul.mubr.bf16.gmra.mrb[0].mxu0 %v854
      %v1058 = vpop.f32.mrb[0].mxu0
      %v1059 = vadd.f32 0.0, %v1058
      %v1060 = vpop.f32.mrb[0].mxu0
      %v1061 = vadd.f32 0.0, %v1060
      %v1062 = vpop.f32.mrb[0].mxu0
      %v1063 = vpop.f32.mrb[0].mxu0
      %1064 = vdwg.mxu0
      %v1065 = vadd.f32 %v780, %v1059
      %v1066 = vadd.f32 %v782, %v1061
      %s1067 = scalar_lea.vmem %s192, 4
      %v1068 = vld [vmem:[%s1067] sm:$0x5]
      %v1069 = vld [vmem:[%s1067 + $0x4] sm:$0x5]
      %v1073 = vunpack.c.l.s4 1966171168
      %v1074 = vunpack.c.0.s8 %v1073
      %v1075 = vlaneseq
      %v1076 = vshrl.u32 %v1075, 7
      %v1077 = vsub.s32 %v1074, %v1076
      %v1078 = vrot.slane %v1068, %v1077
      %v1080 = vunpack.c.l.s4 1966171168
      %v1081 = vunpack.c.0.s8 %v1080
      %v1082 = vlaneseq
      %v1083 = vshrl.u32 %v1082, 7
      %v1084 = vsub.s32 %v1081, %v1083
      %v1085 = vrot.slane %v1069, %v1084
      %s1086 = scalar_lea.vmem %s1, 768
      %v1087 = vld [vmem:[%s1086] sm:$0xff]
      %v1088 = vld [vmem:[%s1086 + $0x8] sm:$0xff]
      %v1089 = vld [vmem:[%s1086 + $0x10] sm:$0xff]
      %v1090 = vld [vmem:[%s1086 + $0x18] sm:$0xff]
      %v1091 = vld [vmem:[%s1086 + $0x20] sm:$0xff]
      %v1092 = vld [vmem:[%s1086 + $0x28] sm:$0xff]
      %v1093 = vld [vmem:[%s1086 + $0x30] sm:$0xff]
      %v1094 = vld [vmem:[%s1086 + $0x38] sm:$0xff]
      %v1095 = vld [vmem:[%s1086 + $0x40] sm:$0xff]
      %v1096 = vld [vmem:[%s1086 + $0x48] sm:$0xff]
      %v1097 = vld [vmem:[%s1086 + $0x50] sm:$0xff]
      %v1098 = vld [vmem:[%s1086 + $0x58] sm:$0xff]
      %v1099 = vld [vmem:[%s1086 + $0x60] sm:$0xff]
      %v1100 = vld [vmem:[%s1086 + $0x68] sm:$0xff]
      %v1101 = vld [vmem:[%s1086 + $0x70] sm:$0xff]
      %v1102 = vld [vmem:[%s1086 + $0x78] sm:$0xff]
      %v1103 = vld [vmem:[%s1086 + $0x80] sm:$0xff]
      %v1104 = vld [vmem:[%s1086 + $0x88] sm:$0xff]
      %v1105 = vld [vmem:[%s1086 + $0x90] sm:$0xff]
      %v1106 = vld [vmem:[%s1086 + $0x98] sm:$0xff]
      %v1107 = vld [vmem:[%s1086 + $0xa0] sm:$0xff]
      %v1108 = vld [vmem:[%s1086 + $0xa8] sm:$0xff]
      %v1109 = vld [vmem:[%s1086 + $0xb0] sm:$0xff]
      %v1110 = vld [vmem:[%s1086 + $0xb8] sm:$0xff]
      %v1111 = vld [vmem:[%s1086 + $0xc0] sm:$0xff]
      %v1112 = vld [vmem:[%s1086 + $0xc8] sm:$0xff]
      %v1113 = vld [vmem:[%s1086 + $0xd0] sm:$0xff]
      %v1114 = vld [vmem:[%s1086 + $0xd8] sm:$0xff]
      %v1115 = vld [vmem:[%s1086 + $0xe0] sm:$0xff]
      %v1116 = vld [vmem:[%s1086 + $0xe8] sm:$0xff]
      %v1117 = vld [vmem:[%s1086 + $0xf0] sm:$0xff]
      %v1118 = vld [vmem:[%s1086 + $0xf8] sm:$0xff]
      %v1119 = vcombine.low %v1078, %v1085
      %v1121 = vunpack.c.l.s4 1966171168
      %v1122 = vunpack.c.0.s8 %v1121
      %v1123 = vlaneseq
      %v1124 = vshrl.u32 %v1123, 7
      %v1125 = vsub.s32 %v1122, %v1124
      %v1126 = vrot.slane %v1119, %v1125
      %v1127 = vcombine.high %v1126, %v1126
      %v1129 = vunpack.c.l.s4 1966171168
      %v1130 = vunpack.c.0.s8 %v1129
      %v1131 = vlaneseq
      %v1132 = vshrl.u32 %v1131, 7
      %v1133 = vsub.s32 %v1130, %v1132
      %v1134 = vrot.slane %v1126, %v1133
      %v1136 = vunpack.c.l.s4 1966171168
      %v1137 = vunpack.c.0.s8 %v1136
      %v1138 = vlaneseq
      %v1139 = vshrl.u32 %v1138, 7
      %v1140 = vsub.s32 %v1137, %v1139
      %v1141 = vrot.slane %v1127, %v1140
      %v1176 = vunpack.c.l.b16 %v1087
      %v1177 = vunpack.c.h.b16 %v1087
      %v1178 = vunpack.c.l.b16 %v1088
      %v1179 = vunpack.c.h.b16 %v1088
      %v1180 = vunpack.c.l.b16 %v1089
      %v1181 = vunpack.c.h.b16 %v1089
      %v1182 = vunpack.c.l.b16 %v1090
      %v1183 = vunpack.c.h.b16 %v1090
      %v1184 = vunpack.c.l.b16 %v1091
      %v1185 = vunpack.c.h.b16 %v1091
      %v1186 = vunpack.c.l.b16 %v1092
      %v1187 = vunpack.c.h.b16 %v1092
      %v1188 = vunpack.c.l.b16 %v1093
      %v1189 = vunpack.c.h.b16 %v1093
      %v1190 = vunpack.c.l.b16 %v1094
      %v1191 = vunpack.c.h.b16 %v1094
      %v1192 = vunpack.c.l.b16 %v1095
      %v1193 = vunpack.c.h.b16 %v1095
      %v1194 = vunpack.c.l.b16 %v1096
      %v1195 = vunpack.c.h.b16 %v1096
      %v1196 = vunpack.c.l.b16 %v1097
      %v1197 = vunpack.c.h.b16 %v1097
      %v1198 = vunpack.c.l.b16 %v1098
      %v1199 = vunpack.c.h.b16 %v1098
      %v1200 = vunpack.c.l.b16 %v1099
      %v1201 = vunpack.c.h.b16 %v1099
      %v1202 = vunpack.c.l.b16 %v1100
      %v1203 = vunpack.c.h.b16 %v1100
      %v1204 = vunpack.c.l.b16 %v1101
      %v1205 = vunpack.c.h.b16 %v1101
      %v1206 = vunpack.c.l.b16 %v1102
      %v1207 = vunpack.c.h.b16 %v1102
      %v1208 = vunpack.c.l.b16 %v1103
      %v1209 = vunpack.c.h.b16 %v1103
      %v1210 = vunpack.c.l.b16 %v1104
      %v1211 = vunpack.c.h.b16 %v1104
      %v1212 = vunpack.c.l.b16 %v1105
      %v1213 = vunpack.c.h.b16 %v1105
      %v1214 = vunpack.c.l.b16 %v1106
      %v1215 = vunpack.c.h.b16 %v1106
      %v1216 = vunpack.c.l.b16 %v1107
      %v1217 = vunpack.c.h.b16 %v1107
      %v1218 = vunpack.c.l.b16 %v1108
      %v1219 = vunpack.c.h.b16 %v1108
      %v1220 = vunpack.c.l.b16 %v1109
      %v1221 = vunpack.c.h.b16 %v1109
      %v1222 = vunpack.c.l.b16 %v1110
      %v1223 = vunpack.c.h.b16 %v1110
      %v1224 = vunpack.c.l.b16 %v1111
      %v1225 = vunpack.c.h.b16 %v1111
      %v1226 = vunpack.c.l.b16 %v1112
      %v1227 = vunpack.c.h.b16 %v1112
      %v1228 = vunpack.c.l.b16 %v1113
      %v1229 = vunpack.c.h.b16 %v1113
      %v1230 = vunpack.c.l.b16 %v1114
      %v1231 = vunpack.c.h.b16 %v1114
      %v1232 = vunpack.c.l.b16 %v1115
      %v1233 = vunpack.c.h.b16 %v1115
      %v1234 = vunpack.c.l.b16 %v1116
      %v1235 = vunpack.c.h.b16 %v1116
      %v1236 = vunpack.c.l.b16 %v1117
      %v1237 = vunpack.c.h.b16 %v1117
      %v1238 = vunpack.c.l.b16 %v1118
      %v1239 = vunpack.c.h.b16 %v1118
      %v1240 = vpack.c.b16 %v1178, %v1176
      %v1241 = vpack.c.b16 %v1179, %v1177
      %v1242 = vpack.c.b16 %v1182, %v1180
      %v1243 = vpack.c.b16 %v1183, %v1181
      %v1244 = vpack.c.b16 %v1186, %v1184
      %v1245 = vpack.c.b16 %v1187, %v1185
      %v1246 = vpack.c.b16 %v1190, %v1188
      %v1247 = vpack.c.b16 %v1191, %v1189
      %v1248 = vpack.c.b16 %v1194, %v1192
      %v1249 = vpack.c.b16 %v1195, %v1193
      %v1250 = vpack.c.b16 %v1198, %v1196
      %v1251 = vpack.c.b16 %v1199, %v1197
      %v1252 = vpack.c.b16 %v1202, %v1200
      %v1253 = vpack.c.b16 %v1203, %v1201
      %v1254 = vpack.c.b16 %v1206, %v1204
      %v1255 = vpack.c.b16 %v1207, %v1205
      %v1256 = vpack.c.b16 %v1210, %v1208
      %v1257 = vpack.c.b16 %v1211, %v1209
      %v1258 = vpack.c.b16 %v1214, %v1212
      %v1259 = vpack.c.b16 %v1215, %v1213
      %v1260 = vpack.c.b16 %v1218, %v1216
      %v1261 = vpack.c.b16 %v1219, %v1217
      %v1262 = vpack.c.b16 %v1222, %v1220
      %v1263 = vpack.c.b16 %v1223, %v1221
      %v1264 = vpack.c.b16 %v1226, %v1224
      %v1265 = vpack.c.b16 %v1227, %v1225
      %v1266 = vpack.c.b16 %v1230, %v1228
      %v1267 = vpack.c.b16 %v1231, %v1229
      %v1268 = vpack.c.b16 %v1234, %v1232
      %v1269 = vpack.c.b16 %v1235, %v1233
      %v1270 = vpack.c.b16 %v1238, %v1236
      %v1271 = vpack.c.b16 %v1239, %v1237
      %1304 = vmatprep.subr.bf16.mxu0 %v1241
      %1305 = vmatpush1.bf16.msra.mxu0 %v1240
      %1306 = vmatprep.subr.bf16.mxu0 %v1243
      %1307 = vmatpush1.bf16.msra.mxu0 %v1242
      %1308 = vmatprep.subr.bf16.mxu0 %v1245
      %1309 = vmatpush1.bf16.msra.mxu0 %v1244
      %1310 = vmatprep.subr.bf16.mxu0 %v1247
      %1311 = vmatpush1.bf16.msra.mxu0 %v1246
      %1312 = vmatprep.subr.bf16.mxu0 %v1249
      %1313 = vmatpush1.bf16.msra.mxu0 %v1248
      %1314 = vmatprep.subr.bf16.mxu0 %v1251
      %1315 = vmatpush1.bf16.msra.mxu0 %v1250
      %1316 = vmatprep.subr.bf16.mxu0 %v1253
      %1317 = vmatpush1.bf16.msra.mxu0 %v1252
      %1318 = vmatprep.subr.bf16.mxu0 %v1255
      %1319 = vmatpush1.bf16.msra.mxu0 %v1254
      %1320 = vmatprep.subr.bf16.mxu0 %v1257
      %1321 = vmatpush1.bf16.msra.mxu0 %v1256
      %1322 = vmatprep.subr.bf16.mxu0 %v1259
      %1323 = vmatpush1.bf16.msra.mxu0 %v1258
      %1324 = vmatprep.subr.bf16.mxu0 %v1261
      %1325 = vmatpush1.bf16.msra.mxu0 %v1260
      %1326 = vmatprep.subr.bf16.mxu0 %v1263
      %1327 = vmatpush1.bf16.msra.mxu0 %v1262
      %1328 = vmatprep.subr.bf16.mxu0 %v1265
      %1329 = vmatpush1.bf16.msra.mxu0 %v1264
      %1330 = vmatprep.subr.bf16.mxu0 %v1267
      %1331 = vmatpush1.bf16.msra.mxu0 %v1266
      %1332 = vmatprep.subr.bf16.mxu0 %v1269
      %1333 = vmatpush1.bf16.msra.mxu0 %v1268
      %1334 = vmatprep.subr.bf16.mxu0 %v1271
      %1335 = vmatpush1.bf16.msra.mxu0 %v1270
      %1336 = vmatprep.mubr.bf16.mxu0 %v1141
      %1337 = vmatmul.mubr.bf16.gmra.mrb[0].mxu0 %v1134
      %v1338 = vpop.f32.mrb[0].mxu0
      %v1339 = vadd.f32 0.0, %v1338
      %v1340 = vpop.f32.mrb[0].mxu0
      %v1341 = vadd.f32 0.0, %v1340
      %v1342 = vpop.f32.mrb[0].mxu0
      %v1343 = vpop.f32.mrb[0].mxu0
      %1344 = vdwg.mxu0
      %v1345 = vadd.f32 %v1065, %v1339
      %v1346 = vadd.f32 %v1066, %v1341
      %v1347 = vld [vmem:[%s1067] sm:$0xf]
      %v1348 = vld [vmem:[%s1067 + $0x4] sm:$0xf]
      %v1352 = vunpack.c.l.s4 1966171168
      %v1353 = vunpack.c.0.s8 %v1352
      %v1354 = vlaneseq
      %v1355 = vshrl.u32 %v1354, 7
      %v1356 = vsub.s32 %v1353, %v1355
      %v1357 = vrot.slane %v1347, %v1356
      %v1358 = vcombine.high %v1357, %v1357
      %v1360 = vunpack.c.l.s4 1966171168
      %v1361 = vunpack.c.0.s8 %v1360
      %v1362 = vlaneseq
      %v1363 = vshrl.u32 %v1362, 7
      %v1364 = vsub.s32 %v1361, %v1363
      %v1365 = vrot.slane %v1348, %v1364
      %v1366 = vcombine.high %v1365, %v1365
      %v1368 = vshrl.u32 %v1357, 16
      %v1370 = vrot.slane %v1368, 7
      %v1371 = vrot.slane %v1370, 1
      %v1373 = vshll.u32 %v1358, 16
      %v1375 = vsel %vm282, %v1371, %v1373
      %v1377 = vshrl.u32 %v1365, 16
      %v1379 = vrot.slane %v1377, 7
      %v1380 = vrot.slane %v1379, 1
      %v1382 = vshll.u32 %v1366, 16
      %v1384 = vsel %vm282, %v1380, %v1382
      %s1385 = scalar_lea.vmem %s1, 1024
      %v1386 = vld [vmem:[%s1385] sm:$0xff]
      %v1387 = vld [vmem:[%s1385 + $0x8] sm:$0xff]
      %v1388 = vld [vmem:[%s1385 + $0x10] sm:$0xff]
      %v1389 = vld [vmem:[%s1385 + $0x18] sm:$0xff]
      %v1390 = vld [vmem:[%s1385 + $0x20] sm:$0xff]
      %v1391 = vld [vmem:[%s1385 + $0x28] sm:$0xff]
      %v1392 = vld [vmem:[%s1385 + $0x30] sm:$0xff]
      %v1393 = vld [vmem:[%s1385 + $0x38] sm:$0xff]
      %v1394 = vld [vmem:[%s1385 + $0x40] sm:$0xff]
      %v1395 = vld [vmem:[%s1385 + $0x48] sm:$0xff]
      %v1396 = vld [vmem:[%s1385 + $0x50] sm:$0xff]
      %v1397 = vld [vmem:[%s1385 + $0x58] sm:$0xff]
      %v1398 = vld [vmem:[%s1385 + $0x60] sm:$0xff]
      %v1399 = vld [vmem:[%s1385 + $0x68] sm:$0xff]
      %v1400 = vld [vmem:[%s1385 + $0x70] sm:$0xff]
      %v1401 = vld [vmem:[%s1385 + $0x78] sm:$0xff]
      %v1402 = vld [vmem:[%s1385 + $0x80] sm:$0xff]
      %v1403 = vld [vmem:[%s1385 + $0x88] sm:$0xff]
      %v1404 = vld [vmem:[%s1385 + $0x90] sm:$0xff]
      %v1405 = vld [vmem:[%s1385 + $0x98] sm:$0xff]
      %v1406 = vld [vmem:[%s1385 + $0xa0] sm:$0xff]
      %v1407 = vld [vmem:[%s1385 + $0xa8] sm:$0xff]
      %v1408 = vld [vmem:[%s1385 + $0xb0] sm:$0xff]
      %v1409 = vld [vmem:[%s1385 + $0xb8] sm:$0xff]
      %v1410 = vld [vmem:[%s1385 + $0xc0] sm:$0xff]
      %v1411 = vld [vmem:[%s1385 + $0xc8] sm:$0xff]
      %v1412 = vld [vmem:[%s1385 + $0xd0] sm:$0xff]
      %v1413 = vld [vmem:[%s1385 + $0xd8] sm:$0xff]
      %v1414 = vld [vmem:[%s1385 + $0xe0] sm:$0xff]
      %v1415 = vld [vmem:[%s1385 + $0xe8] sm:$0xff]
      %v1416 = vld [vmem:[%s1385 + $0xf0] sm:$0xff]
      %v1417 = vld [vmem:[%s1385 + $0xf8] sm:$0xff]
      %v1418 = vcombine.low %v1375, %v1384
      %v1420 = vunpack.c.l.s4 1966171168
      %v1421 = vunpack.c.0.s8 %v1420
      %v1422 = vlaneseq
      %v1423 = vshrl.u32 %v1422, 7
      %v1424 = vsub.s32 %v1421, %v1423
      %v1425 = vrot.slane %v1418, %v1424
      %v1426 = vcombine.high %v1425, %v1425
      %v1428 = vunpack.c.l.s4 1966171168
      %v1429 = vunpack.c.0.s8 %v1428
      %v1430 = vlaneseq
      %v1431 = vshrl.u32 %v1430, 7
      %v1432 = vsub.s32 %v1429, %v1431
      %v1433 = vrot.slane %v1425, %v1432
      %v1435 = vunpack.c.l.s4 1966171168
      %v1436 = vunpack.c.0.s8 %v1435
      %v1437 = vlaneseq
      %v1438 = vshrl.u32 %v1437, 7
      %v1439 = vsub.s32 %v1436, %v1438
      %v1440 = vrot.slane %v1426, %v1439
      %v1475 = vunpack.c.l.b16 %v1386
      %v1476 = vunpack.c.h.b16 %v1386
      %v1477 = vunpack.c.l.b16 %v1387
      %v1478 = vunpack.c.h.b16 %v1387
      %v1479 = vunpack.c.l.b16 %v1388
      %v1480 = vunpack.c.h.b16 %v1388
      %v1481 = vunpack.c.l.b16 %v1389
      %v1482 = vunpack.c.h.b16 %v1389
      %v1483 = vunpack.c.l.b16 %v1390
      %v1484 = vunpack.c.h.b16 %v1390
      %v1485 = vunpack.c.l.b16 %v1391
      %v1486 = vunpack.c.h.b16 %v1391
      %v1487 = vunpack.c.l.b16 %v1392
      %v1488 = vunpack.c.h.b16 %v1392
      %v1489 = vunpack.c.l.b16 %v1393
      %v1490 = vunpack.c.h.b16 %v1393
      %v1491 = vunpack.c.l.b16 %v1394
      %v1492 = vunpack.c.h.b16 %v1394
      %v1493 = vunpack.c.l.b16 %v1395
      %v1494 = vunpack.c.h.b16 %v1395
      %v1495 = vunpack.c.l.b16 %v1396
      %v1496 = vunpack.c.h.b16 %v1396
      %v1497 = vunpack.c.l.b16 %v1397
      %v1498 = vunpack.c.h.b16 %v1397
      %v1499 = vunpack.c.l.b16 %v1398
      %v1500 = vunpack.c.h.b16 %v1398
      %v1501 = vunpack.c.l.b16 %v1399
      %v1502 = vunpack.c.h.b16 %v1399
      %v1503 = vunpack.c.l.b16 %v1400
      %v1504 = vunpack.c.h.b16 %v1400
      %v1505 = vunpack.c.l.b16 %v1401
      %v1506 = vunpack.c.h.b16 %v1401
      %v1507 = vunpack.c.l.b16 %v1402
      %v1508 = vunpack.c.h.b16 %v1402
      %v1509 = vunpack.c.l.b16 %v1403
      %v1510 = vunpack.c.h.b16 %v1403
      %v1511 = vunpack.c.l.b16 %v1404
      %v1512 = vunpack.c.h.b16 %v1404
      %v1513 = vunpack.c.l.b16 %v1405
      %v1514 = vunpack.c.h.b16 %v1405
      %v1515 = vunpack.c.l.b16 %v1406
      %v1516 = vunpack.c.h.b16 %v1406
      %v1517 = vunpack.c.l.b16 %v1407
      %v1518 = vunpack.c.h.b16 %v1407
      %v1519 = vunpack.c.l.b16 %v1408
      %v1520 = vunpack.c.h.b16 %v1408
      %v1521 = vunpack.c.l.b16 %v1409
      %v1522 = vunpack.c.h.b16 %v1409
      %v1523 = vunpack.c.l.b16 %v1410
      %v1524 = vunpack.c.h.b16 %v1410
      %v1525 = vunpack.c.l.b16 %v1411
      %v1526 = vunpack.c.h.b16 %v1411
      %v1527 = vunpack.c.l.b16 %v1412
      %v1528 = vunpack.c.h.b16 %v1412
      %v1529 = vunpack.c.l.b16 %v1413
      %v1530 = vunpack.c.h.b16 %v1413
      %v1531 = vunpack.c.l.b16 %v1414
      %v1532 = vunpack.c.h.b16 %v1414
      %v1533 = vunpack.c.l.b16 %v1415
      %v1534 = vunpack.c.h.b16 %v1415
      %v1535 = vunpack.c.l.b16 %v1416
      %v1536 = vunpack.c.h.b16 %v1416
      %v1537 = vunpack.c.l.b16 %v1417
      %v1538 = vunpack.c.h.b16 %v1417
      %v1539 = vpack.c.b16 %v1477, %v1475
      %v1540 = vpack.c.b16 %v1478, %v1476
      %v1541 = vpack.c.b16 %v1481, %v1479
      %v1542 = vpack.c.b16 %v1482, %v1480
      %v1543 = vpack.c.b16 %v1485, %v1483
      %v1544 = vpack.c.b16 %v1486, %v1484
      %v1545 = vpack.c.b16 %v1489, %v1487
      %v1546 = vpack.c.b16 %v1490, %v1488
      %v1547 = vpack.c.b16 %v1493, %v1491
      %v1548 = vpack.c.b16 %v1494, %v1492
      %v1549 = vpack.c.b16 %v1497, %v1495
      %v1550 = vpack.c.b16 %v1498, %v1496
      %v1551 = vpack.c.b16 %v1501, %v1499
      %v1552 = vpack.c.b16 %v1502, %v1500
      %v1553 = vpack.c.b16 %v1505, %v1503
      %v1554 = vpack.c.b16 %v1506, %v1504
      %v1555 = vpack.c.b16 %v1509, %v1507
      %v1556 = vpack.c.b16 %v1510, %v1508
      %v1557 = vpack.c.b16 %v1513, %v1511
      %v1558 = vpack.c.b16 %v1514, %v1512
      %v1559 = vpack.c.b16 %v1517, %v1515
      %v1560 = vpack.c.b16 %v1518, %v1516
      %v1561 = vpack.c.b16 %v1521, %v1519
      %v1562 = vpack.c.b16 %v1522, %v1520
      %v1563 = vpack.c.b16 %v1525, %v1523
      %v1564 = vpack.c.b16 %v1526, %v1524
      %v1565 = vpack.c.b16 %v1529, %v1527
      %v1566 = vpack.c.b16 %v1530, %v1528
      %v1567 = vpack.c.b16 %v1533, %v1531
      %v1568 = vpack.c.b16 %v1534, %v1532
      %v1569 = vpack.c.b16 %v1537, %v1535
      %v1570 = vpack.c.b16 %v1538, %v1536
      %1603 = vmatprep.subr.bf16.mxu0 %v1540
      %1604 = vmatpush1.bf16.msra.mxu0 %v1539
      %1605 = vmatprep.subr.bf16.mxu0 %v1542
      %1606 = vmatpush1.bf16.msra.mxu0 %v1541
      %1607 = vmatprep.subr.bf16.mxu0 %v1544
      %1608 = vmatpush1.bf16.msra.mxu0 %v1543
      %1609 = vmatprep.subr.bf16.mxu0 %v1546
      %1610 = vmatpush1.bf16.msra.mxu0 %v1545
      %1611 = vmatprep.subr.bf16.mxu0 %v1548
      %1612 = vmatpush1.bf16.msra.mxu0 %v1547
      %1613 = vmatprep.subr.bf16.mxu0 %v1550
      %1614 = vmatpush1.bf16.msra.mxu0 %v1549
      %1615 = vmatprep.subr.bf16.mxu0 %v1552
      %1616 = vmatpush1.bf16.msra.mxu0 %v1551
      %1617 = vmatprep.subr.bf16.mxu0 %v1554
      %1618 = vmatpush1.bf16.msra.mxu0 %v1553
      %1619 = vmatprep.subr.bf16.mxu0 %v1556
      %1620 = vmatpush1.bf16.msra.mxu0 %v1555
      %1621 = vmatprep.subr.bf16.mxu0 %v1558
      %1622 = vmatpush1.bf16.msra.mxu0 %v1557
      %1623 = vmatprep.subr.bf16.mxu0 %v1560
      %1624 = vmatpush1.bf16.msra.mxu0 %v1559
      %1625 = vmatprep.subr.bf16.mxu0 %v1562
      %1626 = vmatpush1.bf16.msra.mxu0 %v1561
      %1627 = vmatprep.subr.bf16.mxu0 %v1564
      %1628 = vmatpush1.bf16.msra.mxu0 %v1563
      %1629 = vmatprep.subr.bf16.mxu0 %v1566
      %1630 = vmatpush1.bf16.msra.mxu0 %v1565
      %1631 = vmatprep.subr.bf16.mxu0 %v1568
      %1632 = vmatpush1.bf16.msra.mxu0 %v1567
      %1633 = vmatprep.subr.bf16.mxu0 %v1570
      %1634 = vmatpush1.bf16.msra.mxu0 %v1569
      %1635 = vmatprep.mubr.bf16.mxu0 %v1440
      %1636 = vmatmul.mubr.bf16.gmra.mrb[0].mxu0 %v1433
      %v1637 = vpop.f32.mrb[0].mxu0
      %v1638 = vadd.f32 0.0, %v1637
      %v1639 = vpop.f32.mrb[0].mxu0
      %v1640 = vadd.f32 0.0, %v1639
      %v1641 = vpop.f32.mrb[0].mxu0
      %v1642 = vpop.f32.mrb[0].mxu0
      %1643 = vdwg.mxu0
      %v1644 = vadd.f32 %v1345, %v1638
      %v1645 = vadd.f32 %v1346, %v1640
      %v1646 = vld [vmem:[%s1067] sm:$0xa]
      %v1647 = vld [vmem:[%s1067 + $0x4] sm:$0xa]
      %v1651 = vunpack.c.l.s4 1966171168
      %v1652 = vunpack.c.0.s8 %v1651
      %v1653 = vlaneseq
      %v1654 = vshrl.u32 %v1653, 7
      %v1655 = vsub.s32 %v1652, %v1654
      %v1656 = vrot.slane %v1646, %v1655
      %v1657 = vcombine.high %v1656, %v1656
      %v1659 = vunpack.c.l.s4 1966171168
      %v1660 = vunpack.c.0.s8 %v1659
      %v1661 = vlaneseq
      %v1662 = vshrl.u32 %v1661, 7
      %v1663 = vsub.s32 %v1660, %v1662
      %v1664 = vrot.slane %v1647, %v1663
      %v1665 = vcombine.high %v1664, %v1664
      %s1666 = scalar_lea.vmem %s1, 1280
      %v1667 = vld [vmem:[%s1666] sm:$0xff]
      %v1668 = vld [vmem:[%s1666 + $0x8] sm:$0xff]
      %v1669 = vld [vmem:[%s1666 + $0x10] sm:$0xff]
      %v1670 = vld [vmem:[%s1666 + $0x18] sm:$0xff]
      %v1671 = vld [vmem:[%s1666 + $0x20] sm:$0xff]
      %v1672 = vld [vmem:[%s1666 + $0x28] sm:$0xff]
      %v1673 = vld [vmem:[%s1666 + $0x30] sm:$0xff]
      %v1674 = vld [vmem:[%s1666 + $0x38] sm:$0xff]
      %v1675 = vld [vmem:[%s1666 + $0x40] sm:$0xff]
      %v1676 = vld [vmem:[%s1666 + $0x48] sm:$0xff]
      %v1677 = vld [vmem:[%s1666 + $0x50] sm:$0xff]
      %v1678 = vld [vmem:[%s1666 + $0x58] sm:$0xff]
      %v1679 = vld [vmem:[%s1666 + $0x60] sm:$0xff]
      %v1680 = vld [vmem:[%s1666 + $0x68] sm:$0xff]
      %v1681 = vld [vmem:[%s1666 + $0x70] sm:$0xff]
      %v1682 = vld [vmem:[%s1666 + $0x78] sm:$0xff]
      %v1683 = vld [vmem:[%s1666 + $0x80] sm:$0xff]
      %v1684 = vld [vmem:[%s1666 + $0x88] sm:$0xff]
      %v1685 = vld [vmem:[%s1666 + $0x90] sm:$0xff]
      %v1686 = vld [vmem:[%s1666 + $0x98] sm:$0xff]
      %v1687 = vld [vmem:[%s1666 + $0xa0] sm:$0xff]
      %v1688 = vld [vmem:[%s1666 + $0xa8] sm:$0xff]
      %v1689 = vld [vmem:[%s1666 + $0xb0] sm:$0xff]
      %v1690 = vld [vmem:[%s1666 + $0xb8] sm:$0xff]
      %v1691 = vld [vmem:[%s1666 + $0xc0] sm:$0xff]
      %v1692 = vld [vmem:[%s1666 + $0xc8] sm:$0xff]
      %v1693 = vld [vmem:[%s1666 + $0xd0] sm:$0xff]
      %v1694 = vld [vmem:[%s1666 + $0xd8] sm:$0xff]
      %v1695 = vld [vmem:[%s1666 + $0xe0] sm:$0xff]
      %v1696 = vld [vmem:[%s1666 + $0xe8] sm:$0xff]
      %v1697 = vld [vmem:[%s1666 + $0xf0] sm:$0xff]
      %v1698 = vld [vmem:[%s1666 + $0xf8] sm:$0xff]
      %v1699 = vcombine.low %v1657, %v1665
      %v1701 = vunpack.c.l.s4 1966171168
      %v1702 = vunpack.c.0.s8 %v1701
      %v1703 = vlaneseq
      %v1704 = vshrl.u32 %v1703, 7
      %v1705 = vsub.s32 %v1702, %v1704
      %v1706 = vrot.slane %v1699, %v1705
      %v1707 = vcombine.high %v1706, %v1706
      %v1709 = vunpack.c.l.s4 1966171168
      %v1710 = vunpack.c.0.s8 %v1709
      %v1711 = vlaneseq
      %v1712 = vshrl.u32 %v1711, 7
      %v1713 = vsub.s32 %v1710, %v1712
      %v1714 = vrot.slane %v1706, %v1713
      %v1716 = vunpack.c.l.s4 1966171168
      %v1717 = vunpack.c.0.s8 %v1716
      %v1718 = vlaneseq
      %v1719 = vshrl.u32 %v1718, 7
      %v1720 = vsub.s32 %v1717, %v1719
      %v1721 = vrot.slane %v1707, %v1720
      %v1756 = vunpack.c.l.b16 %v1667
      %v1757 = vunpack.c.h.b16 %v1667
      %v1758 = vunpack.c.l.b16 %v1668
      %v1759 = vunpack.c.h.b16 %v1668
      %v1760 = vunpack.c.l.b16 %v1669
      %v1761 = vunpack.c.h.b16 %v1669
      %v1762 = vunpack.c.l.b16 %v1670
      %v1763 = vunpack.c.h.b16 %v1670
      %v1764 = vunpack.c.l.b16 %v1671
      %v1765 = vunpack.c.h.b16 %v1671
      %v1766 = vunpack.c.l.b16 %v1672
      %v1767 = vunpack.c.h.b16 %v1672
      %v1768 = vunpack.c.l.b16 %v1673
      %v1769 = vunpack.c.h.b16 %v1673
      %v1770 = vunpack.c.l.b16 %v1674
      %v1771 = vunpack.c.h.b16 %v1674
      %v1772 = vunpack.c.l.b16 %v1675
      %v1773 = vunpack.c.h.b16 %v1675
      %v1774 = vunpack.c.l.b16 %v1676
      %v1775 = vunpack.c.h.b16 %v1676
      %v1776 = vunpack.c.l.b16 %v1677
      %v1777 = vunpack.c.h.b16 %v1677
      %v1778 = vunpack.c.l.b16 %v1678
      %v1779 = vunpack.c.h.b16 %v1678
      %v1780 = vunpack.c.l.b16 %v1679
      %v1781 = vunpack.c.h.b16 %v1679
      %v1782 = vunpack.c.l.b16 %v1680
      %v1783 = vunpack.c.h.b16 %v1680
      %v1784 = vunpack.c.l.b16 %v1681
      %v1785 = vunpack.c.h.b16 %v1681
      %v1786 = vunpack.c.l.b16 %v1682
      %v1787 = vunpack.c.h.b16 %v1682
      %v1788 = vunpack.c.l.b16 %v1683
      %v1789 = vunpack.c.h.b16 %v1683
      %v1790 = vunpack.c.l.b16 %v1684
      %v1791 = vunpack.c.h.b16 %v1684
      %v1792 = vunpack.c.l.b16 %v1685
      %v1793 = vunpack.c.h.b16 %v1685
      %v1794 = vunpack.c.l.b16 %v1686
      %v1795 = vunpack.c.h.b16 %v1686
      %v1796 = vunpack.c.l.b16 %v1687
      %v1797 = vunpack.c.h.b16 %v1687
      %v1798 = vunpack.c.l.b16 %v1688
      %v1799 = vunpack.c.h.b16 %v1688
      %v1800 = vunpack.c.l.b16 %v1689
      %v1801 = vunpack.c.h.b16 %v1689
      %v1802 = vunpack.c.l.b16 %v1690
      %v1803 = vunpack.c.h.b16 %v1690
      %v1804 = vunpack.c.l.b16 %v1691
      %v1805 = vunpack.c.h.b16 %v1691
      %v1806 = vunpack.c.l.b16 %v1692
      %v1807 = vunpack.c.h.b16 %v1692
      %v1808 = vunpack.c.l.b16 %v1693
      %v1809 = vunpack.c.h.b16 %v1693
      %v1810 = vunpack.c.l.b16 %v1694
      %v1811 = vunpack.c.h.b16 %v1694
      %v1812 = vunpack.c.l.b16 %v1695
      %v1813 = vunpack.c.h.b16 %v1695
      %v1814 = vunpack.c.l.b16 %v1696
      %v1815 = vunpack.c.h.b16 %v1696
      %v1816 = vunpack.c.l.b16 %v1697
      %v1817 = vunpack.c.h.b16 %v1697
      %v1818 = vunpack.c.l.b16 %v1698
      %v1819 = vunpack.c.h.b16 %v1698
      %v1820 = vpack.c.b16 %v1758, %v1756
      %v1821 = vpack.c.b16 %v1759, %v1757
      %v1822 = vpack.c.b16 %v1762, %v1760
      %v1823 = vpack.c.b16 %v1763, %v1761
      %v1824 = vpack.c.b16 %v1766, %v1764
      %v1825 = vpack.c.b16 %v1767, %v1765
      %v1826 = vpack.c.b16 %v1770, %v1768
      %v1827 = vpack.c.b16 %v1771, %v1769
      %v1828 = vpack.c.b16 %v1774, %v1772
      %v1829 = vpack.c.b16 %v1775, %v1773
      %v1830 = vpack.c.b16 %v1778, %v1776
      %v1831 = vpack.c.b16 %v1779, %v1777
      %v1832 = vpack.c.b16 %v1782, %v1780
      %v1833 = vpack.c.b16 %v1783, %v1781
      %v1834 = vpack.c.b16 %v1786, %v1784
      %v1835 = vpack.c.b16 %v1787, %v1785
      %v1836 = vpack.c.b16 %v1790, %v1788
      %v1837 = vpack.c.b16 %v1791, %v1789
      %v1838 = vpack.c.b16 %v1794, %v1792
      %v1839 = vpack.c.b16 %v1795, %v1793
      %v1840 = vpack.c.b16 %v1798, %v1796
      %v1841 = vpack.c.b16 %v1799, %v1797
      %v1842 = vpack.c.b16 %v1802, %v1800
      %v1843 = vpack.c.b16 %v1803, %v1801
      %v1844 = vpack.c.b16 %v1806, %v1804
      %v1845 = vpack.c.b16 %v1807, %v1805
      %v1846 = vpack.c.b16 %v1810, %v1808
      %v1847 = vpack.c.b16 %v1811, %v1809
      %v1848 = vpack.c.b16 %v1814, %v1812
      %v1849 = vpack.c.b16 %v1815, %v1813
      %v1850 = vpack.c.b16 %v1818, %v1816
      %v1851 = vpack.c.b16 %v1819, %v1817
      %1884 = vmatprep.subr.bf16.mxu0 %v1821
      %1885 = vmatpush1.bf16.msra.mxu0 %v1820
      %1886 = vmatprep.subr.bf16.mxu0 %v1823
      %1887 = vmatpush1.bf16.msra.mxu0 %v1822
      %1888 = vmatprep.subr.bf16.mxu0 %v1825
      %1889 = vmatpush1.bf16.msra.mxu0 %v1824
      %1890 = vmatprep.subr.bf16.mxu0 %v1827
      %1891 = vmatpush1.bf16.msra.mxu0 %v1826
      %1892 = vmatprep.subr.bf16.mxu0 %v1829
      %1893 = vmatpush1.bf16.msra.mxu0 %v1828
      %1894 = vmatprep.subr.bf16.mxu0 %v1831
      %1895 = vmatpush1.bf16.msra.mxu0 %v1830
      %1896 = vmatprep.subr.bf16.mxu0 %v1833
      %1897 = vmatpush1.bf16.msra.mxu0 %v1832
      %1898 = vmatprep.subr.bf16.mxu0 %v1835
      %1899 = vmatpush1.bf16.msra.mxu0 %v1834
      %1900 = vmatprep.subr.bf16.mxu0 %v1837
      %1901 = vmatpush1.bf16.msra.mxu0 %v1836
      %1902 = vmatprep.subr.bf16.mxu0 %v1839
      %1903 = vmatpush1.bf16.msra.mxu0 %v1838
      %1904 = vmatprep.subr.bf16.mxu0 %v1841
      %1905 = vmatpush1.bf16.msra.mxu0 %v1840
      %1906 = vmatprep.subr.bf16.mxu0 %v1843
      %1907 = vmatpush1.bf16.msra.mxu0 %v1842
      %1908 = vmatprep.subr.bf16.mxu0 %v1845
      %1909 = vmatpush1.bf16.msra.mxu0 %v1844
      %1910 = vmatprep.subr.bf16.mxu0 %v1847
      %1911 = vmatpush1.bf16.msra.mxu0 %v1846
      %1912 = vmatprep.subr.bf16.mxu0 %v1849
      %1913 = vmatpush1.bf16.msra.mxu0 %v1848
      %1914 = vmatprep.subr.bf16.mxu0 %v1851
      %1915 = vmatpush1.bf16.msra.mxu0 %v1850
      %1916 = vmatprep.mubr.bf16.mxu0 %v1721
      %1917 = vmatmul.mubr.bf16.gmra.mrb[0].mxu0 %v1714
      %v1918 = vpop.f32.mrb[0].mxu0
      %v1919 = vadd.f32 0.0, %v1918
      %v1920 = vpop.f32.mrb[0].mxu0
      %v1921 = vadd.f32 0.0, %v1920
      %v1922 = vpop.f32.mrb[0].mxu0
      %v1923 = vpop.f32.mrb[0].mxu0
      %1924 = vdwg.mxu0
      %v1925 = vadd.f32 %v1644, %v1919
      %v1926 = vadd.f32 %v1645, %v1921
      %s1927 = scalar_lea.vmem %s192, 8
      %v1928 = vld [vmem:[%s1927] sm:$0x5]
      %v1929 = vld [vmem:[%s1927 + $0x4] sm:$0x5]
      %v1933 = vunpack.c.l.s4 1966171168
      %v1934 = vunpack.c.0.s8 %v1933
      %v1935 = vlaneseq
      %v1936 = vshrl.u32 %v1935, 7
      %v1937 = vsub.s32 %v1934, %v1936
      %v1938 = vrot.slane %v1928, %v1937
      %v1940 = vunpack.c.l.s4 1966171168
      %v1941 = vunpack.c.0.s8 %v1940
      %v1942 = vlaneseq
      %v1943 = vshrl.u32 %v1942, 7
      %v1944 = vsub.s32 %v1941, %v1943
      %v1945 = vrot.slane %v1929, %v1944
      %s1946 = scalar_lea.vmem %s1, 1536
      %v1947 = vld [vmem:[%s1946] sm:$0xff]
      %v1948 = vld [vmem:[%s1946 + $0x8] sm:$0xff]
      %v1949 = vld [vmem:[%s1946 + $0x10] sm:$0xff]
      %v1950 = vld [vmem:[%s1946 + $0x18] sm:$0xff]
      %v1951 = vld [vmem:[%s1946 + $0x20] sm:$0xff]
      %v1952 = vld [vmem:[%s1946 + $0x28] sm:$0xff]
      %v1953 = vld [vmem:[%s1946 + $0x30] sm:$0xff]
      %v1954 = vld [vmem:[%s1946 + $0x38] sm:$0xff]
      %v1955 = vld [vmem:[%s1946 + $0x40] sm:$0xff]
      %v1956 = vld [vmem:[%s1946 + $0x48] sm:$0xff]
      %v1957 = vld [vmem:[%s1946 + $0x50] sm:$0xff]
      %v1958 = vld [vmem:[%s1946 + $0x58] sm:$0xff]
      %v1959 = vld [vmem:[%s1946 + $0x60] sm:$0xff]
      %v1960 = vld [vmem:[%s1946 + $0x68] sm:$0xff]
      %v1961 = vld [vmem:[%s1946 + $0x70] sm:$0xff]
      %v1962 = vld [vmem:[%s1946 + $0x78] sm:$0xff]
      %v1963 = vld [vmem:[%s1946 + $0x80] sm:$0xff]
      %v1964 = vld [vmem:[%s1946 + $0x88] sm:$0xff]
      %v1965 = vld [vmem:[%s1946 + $0x90] sm:$0xff]
      %v1966 = vld [vmem:[%s1946 + $0x98] sm:$0xff]
      %v1967 = vld [vmem:[%s1946 + $0xa0] sm:$0xff]
      %v1968 = vld [vmem:[%s1946 + $0xa8] sm:$0xff]
      %v1969 = vld [vmem:[%s1946 + $0xb0] sm:$0xff]
      %v1970 = vld [vmem:[%s1946 + $0xb8] sm:$0xff]
      %v1971 = vld [vmem:[%s1946 + $0xc0] sm:$0xff]
      %v1972 = vld [vmem:[%s1946 + $0xc8] sm:$0xff]
      %v1973 = vld [vmem:[%s1946 + $0xd0] sm:$0xff]
      %v1974 = vld [vmem:[%s1946 + $0xd8] sm:$0xff]
      %v1975 = vld [vmem:[%s1946 + $0xe0] sm:$0xff]
      %v1976 = vld [vmem:[%s1946 + $0xe8] sm:$0xff]
      %v1977 = vld [vmem:[%s1946 + $0xf0] sm:$0xff]
      %v1978 = vld [vmem:[%s1946 + $0xf8] sm:$0xff]
      %v1979 = vcombine.low %v1938, %v1945
      %v1981 = vunpack.c.l.s4 1966171168
      %v1982 = vunpack.c.0.s8 %v1981
      %v1983 = vlaneseq
      %v1984 = vshrl.u32 %v1983, 7
      %v1985 = vsub.s32 %v1982, %v1984
      %v1986 = vrot.slane %v1979, %v1985
      %v1987 = vcombine.high %v1986, %v1986
      %v1989 = vunpack.c.l.s4 1966171168
      %v1990 = vunpack.c.0.s8 %v1989
      %v1991 = vlaneseq
      %v1992 = vshrl.u32 %v1991, 7
      %v1993 = vsub.s32 %v1990, %v1992
      %v1994 = vrot.slane %v1986, %v1993
      %v1996 = vunpack.c.l.s4 1966171168
      %v1997 = vunpack.c.0.s8 %v1996
      %v1998 = vlaneseq
      %v1999 = vshrl.u32 %v1998, 7
      %v2000 = vsub.s32 %v1997, %v1999
      %v2001 = vrot.slane %v1987, %v2000
      %v2036 = vunpack.c.l.b16 %v1947
      %v2037 = vunpack.c.h.b16 %v1947
      %v2038 = vunpack.c.l.b16 %v1948
      %v2039 = vunpack.c.h.b16 %v1948
      %v2040 = vunpack.c.l.b16 %v1949
      %v2041 = vunpack.c.h.b16 %v1949
      %v2042 = vunpack.c.l.b16 %v1950
      %v2043 = vunpack.c.h.b16 %v1950
      %v2044 = vunpack.c.l.b16 %v1951
      %v2045 = vunpack.c.h.b16 %v1951
      %v2046 = vunpack.c.l.b16 %v1952
      %v2047 = vunpack.c.h.b16 %v1952
      %v2048 = vunpack.c.l.b16 %v1953
      %v2049 = vunpack.c.h.b16 %v1953
      %v2050 = vunpack.c.l.b16 %v1954
      %v2051 = vunpack.c.h.b16 %v1954
      %v2052 = vunpack.c.l.b16 %v1955
      %v2053 = vunpack.c.h.b16 %v1955
      %v2054 = vunpack.c.l.b16 %v1956
      %v2055 = vunpack.c.h.b16 %v1956
      %v2056 = vunpack.c.l.b16 %v1957
      %v2057 = vunpack.c.h.b16 %v1957
      %v2058 = vunpack.c.l.b16 %v1958
      %v2059 = vunpack.c.h.b16 %v1958
      %v2060 = vunpack.c.l.b16 %v1959
      %v2061 = vunpack.c.h.b16 %v1959
      %v2062 = vunpack.c.l.b16 %v1960
      %v2063 = vunpack.c.h.b16 %v1960
      %v2064 = vunpack.c.l.b16 %v1961
      %v2065 = vunpack.c.h.b16 %v1961
      %v2066 = vunpack.c.l.b16 %v1962
      %v2067 = vunpack.c.h.b16 %v1962
      %v2068 = vunpack.c.l.b16 %v1963
      %v2069 = vunpack.c.h.b16 %v1963
      %v2070 = vunpack.c.l.b16 %v1964
      %v2071 = vunpack.c.h.b16 %v1964
      %v2072 = vunpack.c.l.b16 %v1965
      %v2073 = vunpack.c.h.b16 %v1965
      %v2074 = vunpack.c.l.b16 %v1966
      %v2075 = vunpack.c.h.b16 %v1966
      %v2076 = vunpack.c.l.b16 %v1967
      %v2077 = vunpack.c.h.b16 %v1967
      %v2078 = vunpack.c.l.b16 %v1968
      %v2079 = vunpack.c.h.b16 %v1968
      %v2080 = vunpack.c.l.b16 %v1969
      %v2081 = vunpack.c.h.b16 %v1969
      %v2082 = vunpack.c.l.b16 %v1970
      %v2083 = vunpack.c.h.b16 %v1970
      %v2084 = vunpack.c.l.b16 %v1971
      %v2085 = vunpack.c.h.b16 %v1971
      %v2086 = vunpack.c.l.b16 %v1972
      %v2087 = vunpack.c.h.b16 %v1972
      %v2088 = vunpack.c.l.b16 %v1973
      %v2089 = vunpack.c.h.b16 %v1973
      %v2090 = vunpack.c.l.b16 %v1974
      %v2091 = vunpack.c.h.b16 %v1974
      %v2092 = vunpack.c.l.b16 %v1975
      %v2093 = vunpack.c.h.b16 %v1975
      %v2094 = vunpack.c.l.b16 %v1976
      %v2095 = vunpack.c.h.b16 %v1976
      %v2096 = vunpack.c.l.b16 %v1977
      %v2097 = vunpack.c.h.b16 %v1977
      %v2098 = vunpack.c.l.b16 %v1978
      %v2099 = vunpack.c.h.b16 %v1978
      %v2100 = vpack.c.b16 %v2038, %v2036
      %v2101 = vpack.c.b16 %v2039, %v2037
      %v2102 = vpack.c.b16 %v2042, %v2040
      %v2103 = vpack.c.b16 %v2043, %v2041
      %v2104 = vpack.c.b16 %v2046, %v2044
      %v2105 = vpack.c.b16 %v2047, %v2045
      %v2106 = vpack.c.b16 %v2050, %v2048
      %v2107 = vpack.c.b16 %v2051, %v2049
      %v2108 = vpack.c.b16 %v2054, %v2052
      %v2109 = vpack.c.b16 %v2055, %v2053
      %v2110 = vpack.c.b16 %v2058, %v2056
      %v2111 = vpack.c.b16 %v2059, %v2057
      %v2112 = vpack.c.b16 %v2062, %v2060
      %v2113 = vpack.c.b16 %v2063, %v2061
      %v2114 = vpack.c.b16 %v2066, %v2064
      %v2115 = vpack.c.b16 %v2067, %v2065
      %v2116 = vpack.c.b16 %v2070, %v2068
      %v2117 = vpack.c.b16 %v2071, %v2069
      %v2118 = vpack.c.b16 %v2074, %v2072
      %v2119 = vpack.c.b16 %v2075, %v2073
      %v2120 = vpack.c.b16 %v2078, %v2076
      %v2121 = vpack.c.b16 %v2079, %v2077
      %v2122 = vpack.c.b16 %v2082, %v2080
      %v2123 = vpack.c.b16 %v2083, %v2081
      %v2124 = vpack.c.b16 %v2086, %v2084
      %v2125 = vpack.c.b16 %v2087, %v2085
      %v2126 = vpack.c.b16 %v2090, %v2088
      %v2127 = vpack.c.b16 %v2091, %v2089
      %v2128 = vpack.c.b16 %v2094, %v2092
      %v2129 = vpack.c.b16 %v2095, %v2093
      %v2130 = vpack.c.b16 %v2098, %v2096
      %v2131 = vpack.c.b16 %v2099, %v2097
      %2164 = vmatprep.subr.bf16.mxu0 %v2101
      %2165 = vmatpush1.bf16.msra.mxu0 %v2100
      %2166 = vmatprep.subr.bf16.mxu0 %v2103
      %2167 = vmatpush1.bf16.msra.mxu0 %v2102
      %2168 = vmatprep.subr.bf16.mxu0 %v2105
      %2169 = vmatpush1.bf16.msra.mxu0 %v2104
      %2170 = vmatprep.subr.bf16.mxu0 %v2107
      %2171 = vmatpush1.bf16.msra.mxu0 %v2106
      %2172 = vmatprep.subr.bf16.mxu0 %v2109
      %2173 = vmatpush1.bf16.msra.mxu0 %v2108
      %2174 = vmatprep.subr.bf16.mxu0 %v2111
      %2175 = vmatpush1.bf16.msra.mxu0 %v2110
      %2176 = vmatprep.subr.bf16.mxu0 %v2113
      %2177 = vmatpush1.bf16.msra.mxu0 %v2112
      %2178 = vmatprep.subr.bf16.mxu0 %v2115
      %2179 = vmatpush1.bf16.msra.mxu0 %v2114
      %2180 = vmatprep.subr.bf16.mxu0 %v2117
      %2181 = vmatpush1.bf16.msra.mxu0 %v2116
      %2182 = vmatprep.subr.bf16.mxu0 %v2119
      %2183 = vmatpush1.bf16.msra.mxu0 %v2118
      %2184 = vmatprep.subr.bf16.mxu0 %v2121
      %2185 = vmatpush1.bf16.msra.mxu0 %v2120
      %2186 = vmatprep.subr.bf16.mxu0 %v2123
      %2187 = vmatpush1.bf16.msra.mxu0 %v2122
      %2188 = vmatprep.subr.bf16.mxu0 %v2125
      %2189 = vmatpush1.bf16.msra.mxu0 %v2124
      %2190 = vmatprep.subr.bf16.mxu0 %v2127
      %2191 = vmatpush1.bf16.msra.mxu0 %v2126
      %2192 = vmatprep.subr.bf16.mxu0 %v2129
      %2193 = vmatpush1.bf16.msra.mxu0 %v2128
      %2194 = vmatprep.subr.bf16.mxu0 %v2131
      %2195 = vmatpush1.bf16.msra.mxu0 %v2130
      %2196 = vmatprep.mubr.bf16.mxu0 %v2001
      %2197 = vmatmul.mubr.bf16.gmra.mrb[0].mxu0 %v1994
      %v2198 = vpop.f32.mrb[0].mxu0
      %v2199 = vadd.f32 0.0, %v2198
      %v2200 = vpop.f32.mrb[0].mxu0
      %v2201 = vadd.f32 0.0, %v2200
      %v2202 = vpop.f32.mrb[0].mxu0
      %v2203 = vpop.f32.mrb[0].mxu0
      %2204 = vdwg.mxu0
      %v2205 = vadd.f32 %v1925, %v2199
      %v2206 = vadd.f32 %v1926, %v2201
      %v2207 = vld [vmem:[%s1927] sm:$0xf]
      %v2208 = vld [vmem:[%s1927 + $0x4] sm:$0xf]
      %v2212 = vunpack.c.l.s4 1966171168
      %v2213 = vunpack.c.0.s8 %v2212
      %v2214 = vlaneseq
      %v2215 = vshrl.u32 %v2214, 7
      %v2216 = vsub.s32 %v2213, %v2215
      %v2217 = vrot.slane %v2207, %v2216
      %v2218 = vcombine.high %v2217, %v2217
      %v2220 = vunpack.c.l.s4 1966171168
      %v2221 = vunpack.c.0.s8 %v2220
      %v2222 = vlaneseq
      %v2223 = vshrl.u32 %v2222, 7
      %v2224 = vsub.s32 %v2221, %v2223
      %v2225 = vrot.slane %v2208, %v2224
      %v2226 = vcombine.high %v2225, %v2225
      %v2228 = vshrl.u32 %v2217, 16
      %v2230 = vrot.slane %v2228, 7
      %v2231 = vrot.slane %v2230, 1
      %v2233 = vshll.u32 %v2218, 16
      %v2235 = vsel %vm282, %v2231, %v2233
      %v2237 = vshrl.u32 %v2225, 16
      %v2239 = vrot.slane %v2237, 7
      %v2240 = vrot.slane %v2239, 1
      %v2242 = vshll.u32 %v2226, 16
      %v2244 = vsel %vm282, %v2240, %v2242
      %s2245 = scalar_lea.vmem %s1, 1792
      %v2246 = vld [vmem:[%s2245] sm:$0xff]
      %v2247 = vld [vmem:[%s2245 + $0x8] sm:$0xff]
      %v2248 = vld [vmem:[%s2245 + $0x10] sm:$0xff]
      %v2249 = vld [vmem:[%s2245 + $0x18] sm:$0xff]
      %v2250 = vld [vmem:[%s2245 + $0x20] sm:$0xff]
      %v2251 = vld [vmem:[%s2245 + $0x28] sm:$0xff]
      %v2252 = vld [vmem:[%s2245 + $0x30] sm:$0xff]
      %v2253 = vld [vmem:[%s2245 + $0x38] sm:$0xff]
      %v2254 = vld [vmem:[%s2245 + $0x40] sm:$0xff]
      %v2255 = vld [vmem:[%s2245 + $0x48] sm:$0xff]
      %v2256 = vld [vmem:[%s2245 + $0x50] sm:$0xff]
      %v2257 = vld [vmem:[%s2245 + $0x58] sm:$0xff]
      %v2258 = vld [vmem:[%s2245 + $0x60] sm:$0xff]
      %v2259 = vld [vmem:[%s2245 + $0x68] sm:$0xff]
      %v2260 = vld [vmem:[%s2245 + $0x70] sm:$0xff]
      %v2261 = vld [vmem:[%s2245 + $0x78] sm:$0xff]
      %v2262 = vld [vmem:[%s2245 + $0x80] sm:$0xff]
      %v2263 = vld [vmem:[%s2245 + $0x88] sm:$0xff]
      %v2264 = vld [vmem:[%s2245 + $0x90] sm:$0xff]
      %v2265 = vld [vmem:[%s2245 + $0x98] sm:$0xff]
      %v2266 = vld [vmem:[%s2245 + $0xa0] sm:$0xff]
      %v2267 = vld [vmem:[%s2245 + $0xa8] sm:$0xff]
      %v2268 = vld [vmem:[%s2245 + $0xb0] sm:$0xff]
      %v2269 = vld [vmem:[%s2245 + $0xb8] sm:$0xff]
      %v2270 = vld [vmem:[%s2245 + $0xc0] sm:$0xff]
      %v2271 = vld [vmem:[%s2245 + $0xc8] sm:$0xff]
      %v2272 = vld [vmem:[%s2245 + $0xd0] sm:$0xff]
      %v2273 = vld [vmem:[%s2245 + $0xd8] sm:$0xff]
      %v2274 = vld [vmem:[%s2245 + $0xe0] sm:$0xff]
      %v2275 = vld [vmem:[%s2245 + $0xe8] sm:$0xff]
      %v2276 = vld [vmem:[%s2245 + $0xf0] sm:$0xff]
      %v2277 = vld [vmem:[%s2245 + $0xf8] sm:$0xff]
      %v2278 = vcombine.low %v2235, %v2244
      %v2280 = vunpack.c.l.s4 1966171168
      %v2281 = vunpack.c.0.s8 %v2280
      %v2282 = vlaneseq
      %v2283 = vshrl.u32 %v2282, 7
      %v2284 = vsub.s32 %v2281, %v2283
      %v2285 = vrot.slane %v2278, %v2284
      %v2286 = vcombine.high %v2285, %v2285
      %v2288 = vunpack.c.l.s4 1966171168
      %v2289 = vunpack.c.0.s8 %v2288
      %v2290 = vlaneseq
      %v2291 = vshrl.u32 %v2290, 7
      %v2292 = vsub.s32 %v2289, %v2291
      %v2293 = vrot.slane %v2285, %v2292
      %v2295 = vunpack.c.l.s4 1966171168
      %v2296 = vunpack.c.0.s8 %v2295
      %v2297 = vlaneseq
      %v2298 = vshrl.u32 %v2297, 7
      %v2299 = vsub.s32 %v2296, %v2298
      %v2300 = vrot.slane %v2286, %v2299
      %v2335 = vunpack.c.l.b16 %v2246
      %v2336 = vunpack.c.h.b16 %v2246
      %v2337 = vunpack.c.l.b16 %v2247
      %v2338 = vunpack.c.h.b16 %v2247
      %v2339 = vunpack.c.l.b16 %v2248
      %v2340 = vunpack.c.h.b16 %v2248
      %v2341 = vunpack.c.l.b16 %v2249
      %v2342 = vunpack.c.h.b16 %v2249
      %v2343 = vunpack.c.l.b16 %v2250
      %v2344 = vunpack.c.h.b16 %v2250
      %v2345 = vunpack.c.l.b16 %v2251
      %v2346 = vunpack.c.h.b16 %v2251
      %v2347 = vunpack.c.l.b16 %v2252
      %v2348 = vunpack.c.h.b16 %v2252
      %v2349 = vunpack.c.l.b16 %v2253
      %v2350 = vunpack.c.h.b16 %v2253
      %v2351 = vunpack.c.l.b16 %v2254
      %v2352 = vunpack.c.h.b16 %v2254
      %v2353 = vunpack.c.l.b16 %v2255
      %v2354 = vunpack.c.h.b16 %v2255
      %v2355 = vunpack.c.l.b16 %v2256
      %v2356 = vunpack.c.h.b16 %v2256
      %v2357 = vunpack.c.l.b16 %v2257
      %v2358 = vunpack.c.h.b16 %v2257
      %v2359 = vunpack.c.l.b16 %v2258
      %v2360 = vunpack.c.h.b16 %v2258
      %v2361 = vunpack.c.l.b16 %v2259
      %v2362 = vunpack.c.h.b16 %v2259
      %v2363 = vunpack.c.l.b16 %v2260
      %v2364 = vunpack.c.h.b16 %v2260
      %v2365 = vunpack.c.l.b16 %v2261
      %v2366 = vunpack.c.h.b16 %v2261
      %v2367 = vunpack.c.l.b16 %v2262
      %v2368 = vunpack.c.h.b16 %v2262
      %v2369 = vunpack.c.l.b16 %v2263
      %v2370 = vunpack.c.h.b16 %v2263
      %v2371 = vunpack.c.l.b16 %v2264
      %v2372 = vunpack.c.h.b16 %v2264
      %v2373 = vunpack.c.l.b16 %v2265
      %v2374 = vunpack.c.h.b16 %v2265
      %v2375 = vunpack.c.l.b16 %v2266
      %v2376 = vunpack.c.h.b16 %v2266
      %v2377 = vunpack.c.l.b16 %v2267
      %v2378 = vunpack.c.h.b16 %v2267
      %v2379 = vunpack.c.l.b16 %v2268
      %v2380 = vunpack.c.h.b16 %v2268
      %v2381 = vunpack.c.l.b16 %v2269
      %v2382 = vunpack.c.h.b16 %v2269
      %v2383 = vunpack.c.l.b16 %v2270
      %v2384 = vunpack.c.h.b16 %v2270
      %v2385 = vunpack.c.l.b16 %v2271
      %v2386 = vunpack.c.h.b16 %v2271
      %v2387 = vunpack.c.l.b16 %v2272
      %v2388 = vunpack.c.h.b16 %v2272
      %v2389 = vunpack.c.l.b16 %v2273
      %v2390 = vunpack.c.h.b16 %v2273
      %v2391 = vunpack.c.l.b16 %v2274
      %v2392 = vunpack.c.h.b16 %v2274
      %v2393 = vunpack.c.l.b16 %v2275
      %v2394 = vunpack.c.h.b16 %v2275
      %v2395 = vunpack.c.l.b16 %v2276
      %v2396 = vunpack.c.h.b16 %v2276
      %v2397 = vunpack.c.l.b16 %v2277
      %v2398 = vunpack.c.h.b16 %v2277
      %v2399 = vpack.c.b16 %v2337, %v2335
      %v2400 = vpack.c.b16 %v2338, %v2336
      %v2401 = vpack.c.b16 %v2341, %v2339
      %v2402 = vpack.c.b16 %v2342, %v2340
      %v2403 = vpack.c.b16 %v2345, %v2343
      %v2404 = vpack.c.b16 %v2346, %v2344
      %v2405 = vpack.c.b16 %v2349, %v2347
      %v2406 = vpack.c.b16 %v2350, %v2348
      %v2407 = vpack.c.b16 %v2353, %v2351
      %v2408 = vpack.c.b16 %v2354, %v2352
      %v2409 = vpack.c.b16 %v2357, %v2355
      %v2410 = vpack.c.b16 %v2358, %v2356
      %v2411 = vpack.c.b16 %v2361, %v2359
      %v2412 = vpack.c.b16 %v2362, %v2360
      %v2413 = vpack.c.b16 %v2365, %v2363
      %v2414 = vpack.c.b16 %v2366, %v2364
      %v2415 = vpack.c.b16 %v2369, %v2367
      %v2416 = vpack.c.b16 %v2370, %v2368
      %v2417 = vpack.c.b16 %v2373, %v2371
      %v2418 = vpack.c.b16 %v2374, %v2372
      %v2419 = vpack.c.b16 %v2377, %v2375
      %v2420 = vpack.c.b16 %v2378, %v2376
      %v2421 = vpack.c.b16 %v2381, %v2379
      %v2422 = vpack.c.b16 %v2382, %v2380
      %v2423 = vpack.c.b16 %v2385, %v2383
      %v2424 = vpack.c.b16 %v2386, %v2384
      %v2425 = vpack.c.b16 %v2389, %v2387
      %v2426 = vpack.c.b16 %v2390, %v2388
      %v2427 = vpack.c.b16 %v2393, %v2391
      %v2428 = vpack.c.b16 %v2394, %v2392
      %v2429 = vpack.c.b16 %v2397, %v2395
      %v2430 = vpack.c.b16 %v2398, %v2396
      %2463 = vmatprep.subr.bf16.mxu0 %v2400
      %2464 = vmatpush1.bf16.msra.mxu0 %v2399
      %2465 = vmatprep.subr.bf16.mxu0 %v2402
      %2466 = vmatpush1.bf16.msra.mxu0 %v2401
      %2467 = vmatprep.subr.bf16.mxu0 %v2404
      %2468 = vmatpush1.bf16.msra.mxu0 %v2403
      %2469 = vmatprep.subr.bf16.mxu0 %v2406
      %2470 = vmatpush1.bf16.msra.mxu0 %v2405
      %2471 = vmatprep.subr.bf16.mxu0 %v2408
      %2472 = vmatpush1.bf16.msra.mxu0 %v2407
      %2473 = vmatprep.subr.bf16.mxu0 %v2410
      %2474 = vmatpush1.bf16.msra.mxu0 %v2409
      %2475 = vmatprep.subr.bf16.mxu0 %v2412
      %2476 = vmatpush1.bf16.msra.mxu0 %v2411
      %2477 = vmatprep.subr.bf16.mxu0 %v2414
      %2478 = vmatpush1.bf16.msra.mxu0 %v2413
      %2479 = vmatprep.subr.bf16.mxu0 %v2416
      %2480 = vmatpush1.bf16.msra.mxu0 %v2415
      %2481 = vmatprep.subr.bf16.mxu0 %v2418
      %2482 = vmatpush1.bf16.msra.mxu0 %v2417
      %2483 = vmatprep.subr.bf16.mxu0 %v2420
      %2484 = vmatpush1.bf16.msra.mxu0 %v2419
      %2485 = vmatprep.subr.bf16.mxu0 %v2422
      %2486 = vmatpush1.bf16.msra.mxu0 %v2421
      %2487 = vmatprep.subr.bf16.mxu0 %v2424
      %2488 = vmatpush1.bf16.msra.mxu0 %v2423
      %2489 = vmatprep.subr.bf16.mxu0 %v2426
      %2490 = vmatpush1.bf16.msra.mxu0 %v2425
      %2491 = vmatprep.subr.bf16.mxu0 %v2428
      %2492 = vmatpush1.bf16.msra.mxu0 %v2427
      %2493 = vmatprep.subr.bf16.mxu0 %v2430
      %2494 = vmatpush1.bf16.msra.mxu0 %v2429
      %2495 = vmatprep.mubr.bf16.mxu0 %v2300
      %2496 = vmatmul.mubr.bf16.gmra.mrb[0].mxu0 %v2293
      %v2497 = vpop.f32.mrb[0].mxu0
      %v2498 = vadd.f32 0.0, %v2497
      %v2499 = vpop.f32.mrb[0].mxu0
      %v2500 = vadd.f32 0.0, %v2499
      %v2501 = vpop.f32.mrb[0].mxu0
      %v2502 = vpop.f32.mrb[0].mxu0
      %2503 = vdwg.mxu0
      %v2504 = vadd.f32 %v2205, %v2498
      %v2505 = vadd.f32 %v2206, %v2500
      %v2506 = vld [vmem:[%s1927] sm:$0xa]
      %v2507 = vld [vmem:[%s1927 + $0x4] sm:$0xa]
      %v2511 = vunpack.c.l.s4 1966171168
      %v2512 = vunpack.c.0.s8 %v2511
      %v2513 = vlaneseq
      %v2514 = vshrl.u32 %v2513, 7
      %v2515 = vsub.s32 %v2512, %v2514
      %v2516 = vrot.slane %v2506, %v2515
      %v2517 = vcombine.high %v2516, %v2516
      %v2519 = vunpack.c.l.s4 1966171168
      %v2520 = vunpack.c.0.s8 %v2519
      %v2521 = vlaneseq
      %v2522 = vshrl.u32 %v2521, 7
      %v2523 = vsub.s32 %v2520, %v2522
      %v2524 = vrot.slane %v2507, %v2523
      %v2525 = vcombine.high %v2524, %v2524
      %s2526 = scalar_lea.vmem %s1, 2048
      %v2527 = vld [vmem:[%s2526] sm:$0xff]
      %v2528 = vld [vmem:[%s2526 + $0x8] sm:$0xff]
      %v2529 = vld [vmem:[%s2526 + $0x10] sm:$0xff]
      %v2530 = vld [vmem:[%s2526 + $0x18] sm:$0xff]
      %v2531 = vld [vmem:[%s2526 + $0x20] sm:$0xff]
      %v2532 = vld [vmem:[%s2526 + $0x28] sm:$0xff]
      %v2533 = vld [vmem:[%s2526 + $0x30] sm:$0xff]
      %v2534 = vld [vmem:[%s2526 + $0x38] sm:$0xff]
      %v2535 = vld [vmem:[%s2526 + $0x40] sm:$0xff]
      %v2536 = vld [vmem:[%s2526 + $0x48] sm:$0xff]
      %v2537 = vld [vmem:[%s2526 + $0x50] sm:$0xff]
      %v2538 = vld [vmem:[%s2526 + $0x58] sm:$0xff]
      %v2539 = vld [vmem:[%s2526 + $0x60] sm:$0xff]
      %v2540 = vld [vmem:[%s2526 + $0x68] sm:$0xff]
      %v2541 = vld [vmem:[%s2526 + $0x70] sm:$0xff]
      %v2542 = vld [vmem:[%s2526 + $0x78] sm:$0xff]
      %v2543 = vld [vmem:[%s2526 + $0x80] sm:$0xff]
      %v2544 = vld [vmem:[%s2526 + $0x88] sm:$0xff]
      %v2545 = vld [vmem:[%s2526 + $0x90] sm:$0xff]
      %v2546 = vld [vmem:[%s2526 + $0x98] sm:$0xff]
      %v2547 = vld [vmem:[%s2526 + $0xa0] sm:$0xff]
      %v2548 = vld [vmem:[%s2526 + $0xa8] sm:$0xff]
      %v2549 = vld [vmem:[%s2526 + $0xb0] sm:$0xff]
      %v2550 = vld [vmem:[%s2526 + $0xb8] sm:$0xff]
      %v2551 = vld [vmem:[%s2526 + $0xc0] sm:$0xff]
      %v2552 = vld [vmem:[%s2526 + $0xc8] sm:$0xff]
      %v2553 = vld [vmem:[%s2526 + $0xd0] sm:$0xff]
      %v2554 = vld [vmem:[%s2526 + $0xd8] sm:$0xff]
      %v2555 = vld [vmem:[%s2526 + $0xe0] sm:$0xff]
      %v2556 = vld [vmem:[%s2526 + $0xe8] sm:$0xff]
      %v2557 = vld [vmem:[%s2526 + $0xf0] sm:$0xff]
      %v2558 = vld [vmem:[%s2526 + $0xf8] sm:$0xff]
      %v2559 = vcombine.low %v2517, %v2525
      %v2561 = vunpack.c.l.s4 1966171168
      %v2562 = vunpack.c.0.s8 %v2561
      %v2563 = vlaneseq
      %v2564 = vshrl.u32 %v2563, 7
      %v2565 = vsub.s32 %v2562, %v2564
      %v2566 = vrot.slane %v2559, %v2565
      %v2567 = vcombine.high %v2566, %v2566
      %v2569 = vunpack.c.l.s4 1966171168
      %v2570 = vunpack.c.0.s8 %v2569
      %v2571 = vlaneseq
      %v2572 = vshrl.u32 %v2571, 7
      %v2573 = vsub.s32 %v2570, %v2572
      %v2574 = vrot.slane %v2566, %v2573
      %v2576 = vunpack.c.l.s4 1966171168
      %v2577 = vunpack.c.0.s8 %v2576
      %v2578 = vlaneseq
      %v2579 = vshrl.u32 %v2578, 7
      %v2580 = vsub.s32 %v2577, %v2579
      %v2581 = vrot.slane %v2567, %v2580
      %v2616 = vunpack.c.l.b16 %v2527
      %v2617 = vunpack.c.h.b16 %v2527
      %v2618 = vunpack.c.l.b16 %v2528
      %v2619 = vunpack.c.h.b16 %v2528
      %v2620 = vunpack.c.l.b16 %v2529
      %v2621 = vunpack.c.h.b16 %v2529
      %v2622 = vunpack.c.l.b16 %v2530
      %v2623 = vunpack.c.h.b16 %v2530
      %v2624 = vunpack.c.l.b16 %v2531
      %v2625 = vunpack.c.h.b16 %v2531
      %v2626 = vunpack.c.l.b16 %v2532
      %v2627 = vunpack.c.h.b16 %v2532
      %v2628 = vunpack.c.l.b16 %v2533
      %v2629 = vunpack.c.h.b16 %v2533
      %v2630 = vunpack.c.l.b16 %v2534
      %v2631 = vunpack.c.h.b16 %v2534
      %v2632 = vunpack.c.l.b16 %v2535
      %v2633 = vunpack.c.h.b16 %v2535
      %v2634 = vunpack.c.l.b16 %v2536
      %v2635 = vunpack.c.h.b16 %v2536
      %v2636 = vunpack.c.l.b16 %v2537
      %v2637 = vunpack.c.h.b16 %v2537
      %v2638 = vunpack.c.l.b16 %v2538
      %v2639 = vunpack.c.h.b16 %v2538
      %v2640 = vunpack.c.l.b16 %v2539
      %v2641 = vunpack.c.h.b16 %v2539
      %v2642 = vunpack.c.l.b16 %v2540
      %v2643 = vunpack.c.h.b16 %v2540
      %v2644 = vunpack.c.l.b16 %v2541
      %v2645 = vunpack.c.h.b16 %v2541
      %v2646 = vunpack.c.l.b16 %v2542
      %v2647 = vunpack.c.h.b16 %v2542
      %v2648 = vunpack.c.l.b16 %v2543
      %v2649 = vunpack.c.h.b16 %v2543
      %v2650 = vunpack.c.l.b16 %v2544
      %v2651 = vunpack.c.h.b16 %v2544
      %v2652 = vunpack.c.l.b16 %v2545
      %v2653 = vunpack.c.h.b16 %v2545
      %v2654 = vunpack.c.l.b16 %v2546
      %v2655 = vunpack.c.h.b16 %v2546
      %v2656 = vunpack.c.l.b16 %v2547
      %v2657 = vunpack.c.h.b16 %v2547
      %v2658 = vunpack.c.l.b16 %v2548
      %v2659 = vunpack.c.h.b16 %v2548
      %v2660 = vunpack.c.l.b16 %v2549
      %v2661 = vunpack.c.h.b16 %v2549
      %v2662 = vunpack.c.l.b16 %v2550
      %v2663 = vunpack.c.h.b16 %v2550
      %v2664 = vunpack.c.l.b16 %v2551
      %v2665 = vunpack.c.h.b16 %v2551
      %v2666 = vunpack.c.l.b16 %v2552
      %v2667 = vunpack.c.h.b16 %v2552
      %v2668 = vunpack.c.l.b16 %v2553
      %v2669 = vunpack.c.h.b16 %v2553
      %v2670 = vunpack.c.l.b16 %v2554
      %v2671 = vunpack.c.h.b16 %v2554
      %v2672 = vunpack.c.l.b16 %v2555
      %v2673 = vunpack.c.h.b16 %v2555
      %v2674 = vunpack.c.l.b16 %v2556
      %v2675 = vunpack.c.h.b16 %v2556
      %v2676 = vunpack.c.l.b16 %v2557
      %v2677 = vunpack.c.h.b16 %v2557
      %v2678 = vunpack.c.l.b16 %v2558
      %v2679 = vunpack.c.h.b16 %v2558
      %v2680 = vpack.c.b16 %v2618, %v2616
      %v2681 = vpack.c.b16 %v2619, %v2617
      %v2682 = vpack.c.b16 %v2622, %v2620
      %v2683 = vpack.c.b16 %v2623, %v2621
      %v2684 = vpack.c.b16 %v2626, %v2624
      %v2685 = vpack.c.b16 %v2627, %v2625
      %v2686 = vpack.c.b16 %v2630, %v2628
      %v2687 = vpack.c.b16 %v2631, %v2629
      %v2688 = vpack.c.b16 %v2634, %v2632
      %v2689 = vpack.c.b16 %v2635, %v2633
      %v2690 = vpack.c.b16 %v2638, %v2636
      %v2691 = vpack.c.b16 %v2639, %v2637
      %v2692 = vpack.c.b16 %v2642, %v2640
      %v2693 = vpack.c.b16 %v2643, %v2641
      %v2694 = vpack.c.b16 %v2646, %v2644
      %v2695 = vpack.c.b16 %v2647, %v2645
      %v2696 = vpack.c.b16 %v2650, %v2648
      %v2697 = vpack.c.b16 %v2651, %v2649
      %v2698 = vpack.c.b16 %v2654, %v2652
      %v2699 = vpack.c.b16 %v2655, %v2653
      %v2700 = vpack.c.b16 %v2658, %v2656
      %v2701 = vpack.c.b16 %v2659, %v2657
      %v2702 = vpack.c.b16 %v2662, %v2660
      %v2703 = vpack.c.b16 %v2663, %v2661
      %v2704 = vpack.c.b16 %v2666, %v2664
      %v2705 = vpack.c.b16 %v2667, %v2665
      %v2706 = vpack.c.b16 %v2670, %v2668
      %v2707 = vpack.c.b16 %v2671, %v2669
      %v2708 = vpack.c.b16 %v2674, %v2672
      %v2709 = vpack.c.b16 %v2675, %v2673
      %v2710 = vpack.c.b16 %v2678, %v2676
      %v2711 = vpack.c.b16 %v2679, %v2677
      %2744 = vmatprep.subr.bf16.mxu0 %v2681
      %2745 = vmatpush1.bf16.msra.mxu0 %v2680
      %2746 = vmatprep.subr.bf16.mxu0 %v2683
      %2747 = vmatpush1.bf16.msra.mxu0 %v2682
      %2748 = vmatprep.subr.bf16.mxu0 %v2685
      %2749 = vmatpush1.bf16.msra.mxu0 %v2684
      %2750 = vmatprep.subr.bf16.mxu0 %v2687
      %2751 = vmatpush1.bf16.msra.mxu0 %v2686
      %2752 = vmatprep.subr.bf16.mxu0 %v2689
      %2753 = vmatpush1.bf16.msra.mxu0 %v2688
      %2754 = vmatprep.subr.bf16.mxu0 %v2691
      %2755 = vmatpush1.bf16.msra.mxu0 %v2690
      %2756 = vmatprep.subr.bf16.mxu0 %v2693
      %2757 = vmatpush1.bf16.msra.mxu0 %v2692
      %2758 = vmatprep.subr.bf16.mxu0 %v2695
      %2759 = vmatpush1.bf16.msra.mxu0 %v2694
      %2760 = vmatprep.subr.bf16.mxu0 %v2697
      %2761 = vmatpush1.bf16.msra.mxu0 %v2696
      %2762 = vmatprep.subr.bf16.mxu0 %v2699
      %2763 = vmatpush1.bf16.msra.mxu0 %v2698
      %2764 = vmatprep.subr.bf16.mxu0 %v2701
      %2765 = vmatpush1.bf16.msra.mxu0 %v2700
      %2766 = vmatprep.subr.bf16.mxu0 %v2703
      %2767 = vmatpush1.bf16.msra.mxu0 %v2702
      %2768 = vmatprep.subr.bf16.mxu0 %v2705
      %2769 = vmatpush1.bf16.msra.mxu0 %v2704
      %2770 = vmatprep.subr.bf16.mxu0 %v2707
      %2771 = vmatpush1.bf16.msra.mxu0 %v2706
      %2772 = vmatprep.subr.bf16.mxu0 %v2709
      %2773 = vmatpush1.bf16.msra.mxu0 %v2708
      %2774 = vmatprep.subr.bf16.mxu0 %v2711
      %2775 = vmatpush1.bf16.msra.mxu0 %v2710
      %2776 = vmatprep.mubr.bf16.mxu0 %v2581
      %2777 = vmatmul.mubr.bf16.gmra.mrb[0].mxu0 %v2574
      %v2778 = vpop.f32.mrb[0].mxu0
      %v2779 = vadd.f32 0.0, %v2778
      %v2780 = vpop.f32.mrb[0].mxu0
      %v2781 = vadd.f32 0.0, %v2780
      %v2782 = vpop.f32.mrb[0].mxu0
      %v2783 = vpop.f32.mrb[0].mxu0
      %2784 = vdwg.mxu0
      %v2785 = vadd.f32 %v2504, %v2779
      %v2786 = vadd.f32 %v2505, %v2781
      %v2787 = vld [vmem:[%s2] sm:$0x3]
      %v2789 = vlaneseq
      %v2790 = vshrl.u32 %v2789, 7
      %v2791 = vsub.s32 0, %v2790
      %v2792 = vrot.slane %v2787, %v2791
      %v2793 = vlaneseq
      %v2794 = vshrl.u32 %v2793, 7
      %v2795 = vsub.s32 1, %v2794
      %v2796 = vrot.slane %v2787, %v2795
      %v2799 = vmul.f32 %v2785, %v2792
      %v2800 = vmul.f32 %v2786, %v2796
      %v2801 = vld [vmem:[%s3] sm:$0x3]
      %v2803 = vlaneseq
      %v2804 = vshrl.u32 %v2803, 7
      %v2805 = vsub.s32 0, %v2804
      %v2806 = vrot.slane %v2801, %v2805
      %v2807 = vlaneseq
      %v2808 = vshrl.u32 %v2807, 7
      %v2809 = vsub.s32 1, %v2808
      %v2810 = vrot.slane %v2801, %v2809
      %v2813 = vadd.f32 %v2799, %v2806
      %v2814 = vadd.f32 %v2800, %v2810
      %v2815 = vmax.f32 %v2813, 0.0
      %v2816 = vmax.f32 %v2814, 0.0
      %v2817 = vpack.c.bf16 %v2815, %v2815
      %v2818 = vpack.c.bf16 %v2816, %v2816
      %v2821 = vcombine.low %v2817, %v2818
      %v2823 = vunpack.c.l.s4 1983009808
      %v2824 = vunpack.c.0.s8 %v2823
      %v2825 = vlaneseq
      %v2826 = vshrl.u32 %v2825, 7
      %v2827 = vsub.s32 %v2824, %v2826
      %v2828 = vrot.slane %v2821, %v2827
      %2830 = vst [vmem:[%s197] sm:$0xf] %v2828
      %p2831 = scmp.lt.s32.totalorder %s15, 1
      %s2832 = scalar_select %p2831, %s15, 1
      %s2833 = smul.addr %s2832, 2
      %s2834 = smul.addr %s2833, 2
      %s2835 = scalar_lea.vmem %s4, %s2834
      // Predicated region
      $region37: #{psa_forward.27} parent=35 // pred_check
        %p2836 = pneg %p122
      $region38: #{psa_forward.27} parent=35 // pred_check_branch
        %2838 = sbr.rel (%p2836) target = $region40
      $region39: #{psa_forward.27} parent=35 // pred_region
        _
      $region40: #{psa_forward.27} parent=35 // pred_fallthru
        _
    $region36: #{psa_forward.27} parent=5 // pred_fallthru
      _
    %p2839 = scmp.le.s32.totalorder 2, %s10
    // Predicated region
    $region41: #{psa_forward.27} parent=5 // pred_check
      %p2840 = pneg %p2839
    $region42: #{psa_forward.27} parent=5 // pred_check_branch
      %2842 = sbr.rel (%p2840) target = $region44
    $region43: #{psa_forward.27} parent=5 // pred_region
      %s2843 = ssub.s32 %s10, 2
      // Predicated region
      $region45: #{psa_forward.27} parent=43 // pred_check
        %p2844 = pneg %p128
      $region46: #{psa_forward.27} parent=43 // pred_check_branch
        %2846 = sbr.rel (%p2844) target = $region48
      $region47: #{psa_forward.27} parent=43 // pred_region
        %p2847 = scmp.lt.s32.totalorder %s16, 1
        %s2848 = scalar_select %p2847, %s16, 1
        %s2849 = smul.addr %s2848, 2
        %s2850 = smul.addr %s2849, 2
        %s2851 = scalar_lea.vmem %s4, %s2850
      $region48: #{psa_forward.27} parent=43 // pred_fallthru
        _
    $region44: #{psa_forward.27} parent=5 // pred_fallthru
      _
  $region6: #{psa_forward.27} parent=0 // loop_footer
    %s14 = sadd.s32 1, %s10
  $region7: #{psa_forward.27} parent=0 // loop_footer_branch
    %9 = sbr.rel target = $region3
  $region8: #{psa_forward.27} parent=0 // loop_exit
    _

</llo_original>
